<compile_context>
chip_gen: v6e
topology: v6e:2x2x1
jax: 0.10.0
libtpu: 0.0.40
codegen_flags: <defaults>
</compile_context>

<pallas_src>
import jax
import jax.numpy as jnp
from jax.experimental import pallas as pl
from jax.experimental.pallas import tpu as pltpu


# ---------------------------------------------------------------------------
# Pallas kernels
# ---------------------------------------------------------------------------
def _gemm_bias_kernel(relu, with_res):
    """im2col-GEMM (bf16 operands, f32 accumulate) + bias (+ residual) (+ ReLU) epilogue in f32."""

    def _epilogue(acc, b_ref, r_ref, o_ref):
        y = acc + b_ref[...]                       # BN shift (scale already folded into weights)
        if r_ref is not None:
            y = y + r_ref[...].astype(jnp.float32)  # residual add
        if relu:
            y = jnp.maximum(y, 0.0)
        o_ref[...] = y.astype(o_ref.dtype)

    if with_res:
        def kernel(p_ref, w_ref, b_ref, r_ref, o_ref):
            acc = jnp.dot(p_ref[...], w_ref[...], preferred_element_type=jnp.float32)
            _epilogue(acc, b_ref, r_ref, o_ref)
    else:
        def kernel(p_ref, w_ref, b_ref, o_ref):
            acc = jnp.dot(p_ref[...], w_ref[...], preferred_element_type=jnp.float32)
            _epilogue(acc, b_ref, None, o_ref)
    return kernel


def _max_reduce_kernel(s_ref, o_ref):
    # s_ref: (KK, TR, 128) window slices, lane-dense; reduce max over the KK window taps.
    x = s_ref[0]
    for t in range(1, s_ref.shape[0]):
        x = jnp.maximum(x, s_ref[t])
    o_ref[...] = x


# ---------------------------------------------------------------------------
# Small helpers
# ---------------------------------------------------------------------------
def _round_up(x, m):
    return ((x + m - 1) // m) * m


_TILE_CANDIDATES = (512, 256, 128, 64, 32, 16, 8)


def _choose_row_tile(m):
    """Largest row tile (<=512) that still yields >=2 grid steps (keeps both v7x TCs busy)."""
    for t in _TILE_CANDIDATES:
        if pl.cdiv(m, t) >= 2:
            return t
    return 8  # tiny row counts (e.g. layer4 at this input size) -> single grid step is unavoidable


def _compiler_params():
    return pltpu.CompilerParams(
        dimension_semantics=("parallel",),
        vmem_limit_bytes=32 * 1024 * 1024,   # explicit scoped-VMEM budget (safe on v5e/v6e/v7x)
    )


# ---------------------------------------------------------------------------
# Glue: im2col patch extraction (pad + strided slice + stack), done in bf16
# ---------------------------------------------------------------------------
def _extract_patches(x, kh, kw, stride, pad, pad_value=0.0):
    N, H, W, C = x.shape
    xp = jnp.pad(x, ((0, 0), (pad, pad), (pad, pad), (0, 0)), constant_values=pad_value)
    OH = (H + 2 * pad - kh) // stride + 1
    OW = (W + 2 * pad - kw) // stride + 1
    cols = []
    for i in range(kh):
        for j in range(kw):
            patch = jax.lax.slice(
                xp,
                (0, i, j, 0),
                (N, i + (OH - 1) * stride + 1, j + (OW - 1) * stride + 1, C),
                (1, stride, stride, 1))
            cols.append(patch)                       # (N, OH, OW, C)
    patches = jnp.stack(cols, axis=3)                # (N, OH, OW, KH*KW, C)
    return patches, OH, OW


# ---------------------------------------------------------------------------
# Conv2d(bias=False) + BatchNorm(eval) [+ residual] [+ ReLU]
# ---------------------------------------------------------------------------
def conv_bn_act(x, w, bn, *, stride, pad, relu=True, residual=None):
    cout, cin, kh, kw = w.shape
    N = x.shape[0]

    # bf16 activations -> bf16 patch matrix (halves the im2col HBM traffic).
    x = x.astype(jnp.bfloat16)
    patches, OH, OW = _extract_patches(x, kh, kw, stride, pad)
    M = N * OH * OW
    K = kh * kw * cin
    pmat = patches.reshape(M, K)

    # Eval-mode BN folded into weights (scale) and a bias (shift).
    gamma, beta, mean, var = bn
    inv_std = jax.lax.rsqrt(var.astype(jnp.float32) + 1e-5)
    scale = gamma.astype(jnp.float32) * inv_std                       # (cout,)
    shift = beta.astype(jnp.float32) - mean.astype(jnp.float32) * scale

    # PyTorch weight (Cout, Cin, KH, KW) -> (KH*KW*Cin, Cout), scale folded in.
    wmat = jnp.transpose(w, (2, 3, 1, 0)).reshape(K, cout).astype(jnp.float32) * scale[None, :]

    # Pad K to a 128 multiple (clean MXU contraction) and cout to a 128 multiple
    # (lane-dense output stores); zero-padded columns are sliced off below.
    Kp = _round_up(K, 128)
    Cp = _round_up(cout, 128)

    TM = _choose_row_tile(M)
    Mp = _round_up(M, TM)

    pmat = jnp.pad(pmat, ((0, Mp - M), (0, Kp - K))).astype(jnp.bfloat16)
    wmat = jnp.pad(wmat, ((0, Kp - K), (0, Cp - cout))).astype(jnp.bfloat16)
    bias = jnp.pad(shift, (0, Cp - cout)).reshape(1, Cp).astype(jnp.float32)

    args = [pmat, wmat, bias]
    in_specs = [
        pl.BlockSpec((TM, Kp), lambda i: (i, 0)),
        pl.BlockSpec((Kp, Cp), lambda i: (0, 0)),
        pl.BlockSpec((1, Cp), lambda i: (0, 0)),
    ]
    if residual is not None:
        r = residual.astype(jnp.bfloat16).reshape(M, cout)
        r = jnp.pad(r, ((0, Mp - M), (0, Cp - cout)))
        args.append(r)
        in_specs.append(pl.BlockSpec((TM, Cp), lambda i: (i, 0)))

    out = pl.pallas_call(
        _gemm_bias_kernel(relu, residual is not None),
        out_shape=jax.ShapeDtypeStruct((Mp, Cp), jnp.bfloat16),
        grid=(Mp // TM,),
        in_specs=in_specs,
        out_specs=pl.BlockSpec((TM, Cp), lambda i: (i, 0)),
        compiler_params=_compiler_params(),
    )(*args)

    # Strip row / channel padding (the slice fuses into the next layer's glue).
    return out[:M, :cout].reshape(N, OH, OW, cout)


# ---------------------------------------------------------------------------
# MaxPool2d(k=3, stride=2, pad=1): lane-dense elementwise max over shifted slices
# ---------------------------------------------------------------------------
def maxpool2d(x, *, k, stride, pad):
    N, H, W, C = x.shape
    x = x.astype(jnp.bfloat16)
    xp = jnp.pad(x, ((0, 0), (pad, pad), (pad, pad), (0, 0)), constant_values=-jnp.inf)
    OH = (H + 2 * pad - k) // stride + 1
    OW = (W + 2 * pad - k) // stride + 1
    total = N * OH * OW * C

    LANE = 128
    rows = pl.cdiv(total, LANE)
    TR = _choose_row_tile(rows)
    Rp = _round_up(rows, TR)
    flat_pad = Rp * LANE - total

    slices = []
    for i in range(k):
        for j in range(k):
            s = jax.lax.slice(
                xp,
                (0, i, j, 0),
                (N, i + (OH - 1) * stride + 1, j + (OW - 1) * stride + 1, C),
                (1, stride, stride, 1)).reshape(-1)
            slices.append(jnp.pad(s, (0, flat_pad), constant_values=-jnp.inf))
    stk = jnp.stack(slices, axis=0).reshape(k * k, Rp, LANE)   # lane-dense bf16 slices

    out = pl.pallas_call(
        _max_reduce_kernel,
        out_shape=jax.ShapeDtypeStruct((Rp, LANE), jnp.bfloat16),
        grid=(Rp // TR,),
        in_specs=[pl.BlockSpec((k * k, TR, LANE), lambda i: (0, i, 0))],
        out_specs=pl.BlockSpec((TR, LANE), lambda i: (i, 0)),
        compiler_params=_compiler_params(),
    )(stk)
    return out.reshape(-1)[:total].reshape(N, OH, OW, C)


# ---------------------------------------------------------------------------
# ResNet BasicBlock + full trunk forward
# ---------------------------------------------------------------------------
def basic_block(x, p, stride):
    identity = x
    out = conv_bn_act(x, p["conv1_w"], p["bn1"], stride=stride, pad=1, relu=True)
    if "down_w" in p:
        identity = conv_bn_act(x, p["down_w"], p["down_bn"], stride=stride, pad=0, relu=False)
    # out = relu(bn2(conv2(out)) + identity) -- residual + relu fused in the GEMM kernel.
    out = conv_bn_act(out, p["conv2_w"], p["bn2"], stride=1, pad=1, relu=True, residual=identity)
    return out


def feature_extractor_forward(params, x_nchw):
    x = jnp.transpose(x_nchw, (0, 2, 3, 1))                     # NCHW -> NHWC
    x = conv_bn_act(x, params["conv1_w"], params["bn1"], stride=2, pad=3, relu=True)
    x = maxpool2d(x, k=3, stride=2, pad=1)
    for name, stride in (("layer1", 1), ("layer2", 2), ("layer3", 2), ("layer4", 2)):
        blocks = params[name]
        x = basic_block(x, blocks[0], stride)
        x = basic_block(x, blocks[1], 1)
    # AdaptiveAvgPool2d((1,1)) + flatten: left to XLA per perf review -- at (N, 2, 2, C) a
    # dedicated Pallas call is pure launch overhead.
    feats = jnp.mean(x.astype(jnp.float32), axis=(1, 2))        # (N, C) == avgpool + view(N, -1)
    return feats


# ---------------------------------------------------------------------------
# Deterministic parameter init (ResNet-18 topology, scaled-down widths)
# ---------------------------------------------------------------------------
def _conv_init(key, cout, cin, k):
    fan_in = cin * k * k
    return (jax.random.normal(key, (cout, cin, k, k), dtype=jnp.float32)
            * (2.0 / fan_in) ** 0.5)


def _bn_init(key, c):
    k1, k2, k3, k4 = jax.random.split(key, 4)
    gamma = 1.0 + 0.1 * jax.random.normal(k1, (c,), dtype=jnp.float32)
    beta = 0.1 * jax.random.normal(k2, (c,), dtype=jnp.float32)
    mean = 0.1 * jax.random.normal(k3, (c,), dtype=jnp.float32)
    var = 1.0 + 0.2 * jax.random.uniform(k4, (c,), dtype=jnp.float32)
    return (gamma, beta, mean, var)


def init_params(key, base_c=8, in_c=3):
    keys = iter(jax.random.split(key, 64))
    nk = lambda: next(keys)
    params = {
        "conv1_w": _conv_init(nk(), base_c, in_c, 7),
        "bn1": _bn_init(nk(), base_c),
    }
    cin = base_c
    layer_cfg = [("layer1", base_c, 1), ("layer2", base_c * 2, 2),
                 ("layer3", base_c * 4, 2), ("layer4", base_c * 8, 2)]
    for name, cout, stride in layer_cfg:
        blocks = []
        for bi in range(2):
            s = stride if bi == 0 else 1
            bp = {
                "conv1_w": _conv_init(nk(), cout, cin, 3),
                "bn1": _bn_init(nk(), cout),
                "conv2_w": _conv_init(nk(), cout, cout, 3),
                "bn2": _bn_init(nk(), cout),
            }
            if s != 1 or cin != cout:
                bp["down_w"] = _conv_init(nk(), cout, cin, 1)
                bp["down_bn"] = _bn_init(nk(), cout)
            blocks.append(bp)
            cin = cout
        params[name] = blocks
    return params


# ---------------------------------------------------------------------------
if __name__ == "__main__":
    root = jax.random.PRNGKey(0)
    k_x, k_p = jax.random.split(root)

    # Small input consistent with a ResNet trunk: N=2, C=3, H=W=64 (NCHW).
    x = jax.random.normal(k_x, (2, 3, 64, 64), dtype=jnp.float32)
    params = init_params(k_p, base_c=8, in_c=3)

    fwd = jax.jit(feature_extractor_forward)
    feats = jax.block_until_ready(fwd(params, x))

    assert feats.shape == (2, 64), feats.shape
    assert bool(jnp.all(jnp.isfinite(feats)))
    print("KERNEL_OK")
</pallas_src>

<mosaic_0001>
module attributes {stable_mosaic.version = 11 : i64} {
  func.func @kernel(%arg0: i32, %arg1: memref<512x256xbf16, #tpu.memory_space<vmem>>, %arg2: memref<256x128xbf16, #tpu.memory_space<vmem>>, %arg3: memref<1x128xf32, #tpu.memory_space<vmem>>, %arg4: memref<512x128xbf16, #tpu.memory_space<vmem>>) attributes {dimension_semantics = [#tpu.dimension_semantics<parallel>], iteration_bounds = array<i64: 4>, scalar_prefetch = 0 : i64, scratch_operands = 0 : i64, tpu.core_type = #tpu.core_type<tc>, window_params = [{transform_indices = @transform_0, window_bounds = array<i64: 512, 256>}, {pipeline_mode = #tpu.pipeline_mode<synchronous>, transform_indices = @transform_1, window_bounds = array<i64: 256, 128>}, {pipeline_mode = #tpu.pipeline_mode<synchronous>, transform_indices = @transform_2, window_bounds = array<i64: 1, 128>}, {transform_indices = @transform_3, window_bounds = array<i64: 512, 128>}]} {
    %c0 = arith.constant 0 : index
    %c0_0 = arith.constant 0 : index
    %0 = vector.load %arg1[%c0, %c0_0] : memref<512x256xbf16, #tpu.memory_space<vmem>>, vector<512x256xbf16>
    %c0_1 = arith.constant 0 : index
    %c0_2 = arith.constant 0 : index
    %1 = vector.load %arg2[%c0_1, %c0_2] : memref<256x128xbf16, #tpu.memory_space<vmem>>, vector<256x128xbf16>
    %cst = arith.constant dense<0.000000e+00> : vector<512x128xf32>
    %2 = tpu.matmul %0, %1, %cst {dimension_numbers = #tpu.dot_dimension_numbers<[1], [0], [0], [1], [0, 0, 1, 1], [], []>} : vector<512x256xbf16>, vector<256x128xbf16>, vector<512x128xf32> -> vector<512x128xf32>
    %c0_3 = arith.constant 0 : index
    %c0_4 = arith.constant 0 : index
    %3 = vector.load %arg3[%c0_3, %c0_4] : memref<1x128xf32, #tpu.memory_space<vmem>>, vector<1x128xf32>
    %4 = vector.broadcast %3 : vector<1x128xf32> to vector<512x128xf32>
    %5 = arith.addf %2, %4 : vector<512x128xf32>
    %cst_5 = arith.constant 0.000000e+00 : f32
    %6 = vector.broadcast %cst_5 : f32 to vector<512x128xf32>
    %7 = arith.maximumf %5, %6 : vector<512x128xf32>
    %8 = arith.truncf %7 : vector<512x128xf32> to vector<512x128xbf16>
    %c0_6 = arith.constant 0 : index
    %c0_7 = arith.constant 0 : index
    %9 = vector.load %arg4[%c0_6, %c0_7] : memref<512x128xbf16, #tpu.memory_space<vmem>>, vector<512x128xbf16>
    tpu.vector_store %arg4[%c0_6, %c0_7], %8 {strides = array<i32>} : memref<512x128xbf16, #tpu.memory_space<vmem>>, vector<512x128xbf16>,
    return
  }
  func.func @transform_0(%arg0: i32) -> (i32, i32) {
    %c0_i32 = arith.constant 0 : i32
    %c0_i32_0 = arith.constant 0 : i32
    return %arg0, %c0_i32 : i32, i32
  }
  func.func @transform_1(%arg0: i32) -> (i32, i32) {
    %c0_i32 = arith.constant 0 : i32
    %c0_i32_0 = arith.constant 0 : i32
    %c0_i32_1 = arith.constant 0 : i32
    return %c0_i32, %c0_i32_0 : i32, i32
  }
  func.func @transform_2(%arg0: i32) -> (i32, i32) {
    %c0_i32 = arith.constant 0 : i32
    %c0_i32_0 = arith.constant 0 : i32
    %c0_i32_1 = arith.constant 0 : i32
    return %c0_i32, %c0_i32_0 : i32, i32
  }
  func.func @transform_3(%arg0: i32) -> (i32, i32) {
    %c0_i32 = arith.constant 0 : i32
    %c0_i32_0 = arith.constant 0 : i32
    return %arg0, %c0_i32 : i32, i32
  }
}

module attributes {stable_mosaic.version = 11 : i64} {
  func.func @_max_reduce_kernel(%arg0: i32, %arg1: memref<9x16x128xbf16, #tpu.memory_space<vmem>>, %arg2: memref<16x128xbf16, #tpu.memory_space<vmem>>) attributes {dimension_semantics = [#tpu.dimension_semantics<parallel>], iteration_bounds = array<i64: 2>, scalar_prefetch = 0 : i64, scratch_operands = 0 : i64, tpu.core_type = #tpu.core_type<tc>, window_params = [{transform_indices = @transform_0, window_bounds = array<i64: 9, 16, 128>}, {transform_indices = @transform_1, window_bounds = array<i64: 16, 128>}]} {
    %c0 = arith.constant 0 : index
    %c0_0 = arith.constant 0 : index
    %c0_1 = arith.constant 0 : index
    %0 = vector.load %arg1[%c0, %c0_0, %c0_1] : memref<9x16x128xbf16, #tpu.memory_space<vmem>>, vector<1x16x128xbf16>
    %1 = vector.shape_cast %0 : vector<1x16x128xbf16> to vector<16x128xbf16>
    %c1 = arith.constant 1 : index
    %c0_2 = arith.constant 0 : index
    %c0_3 = arith.constant 0 : index
    %2 = vector.load %arg1[%c1, %c0_2, %c0_3] : memref<9x16x128xbf16, #tpu.memory_space<vmem>>, vector<1x16x128xbf16>
    %3 = vector.shape_cast %2 : vector<1x16x128xbf16> to vector<16x128xbf16>
    %4 = arith.maximumf %1, %3 : vector<16x128xbf16>
    %c2 = arith.constant 2 : index
    %c0_4 = arith.constant 0 : index
    %c0_5 = arith.constant 0 : index
    %5 = vector.load %arg1[%c2, %c0_4, %c0_5] : memref<9x16x128xbf16, #tpu.memory_space<vmem>>, vector<1x16x128xbf16>
    %6 = vector.shape_cast %5 : vector<1x16x128xbf16> to vector<16x128xbf16>
    %7 = arith.maximumf %4, %6 : vector<16x128xbf16>
    %c3 = arith.constant 3 : index
    %c0_6 = arith.constant 0 : index
    %c0_7 = arith.constant 0 : index
    %8 = vector.load %arg1[%c3, %c0_6, %c0_7] : memref<9x16x128xbf16, #tpu.memory_space<vmem>>, vector<1x16x128xbf16>
    %9 = vector.shape_cast %8 : vector<1x16x128xbf16> to vector<16x128xbf16>
    %10 = arith.maximumf %7, %9 : vector<16x128xbf16>
    %c4 = arith.constant 4 : index
    %c0_8 = arith.constant 0 : index
    %c0_9 = arith.constant 0 : index
    %11 = vector.load %arg1[%c4, %c0_8, %c0_9] : memref<9x16x128xbf16, #tpu.memory_space<vmem>>, vector<1x16x128xbf16>
    %12 = vector.shape_cast %11 : vector<1x16x128xbf16> to vector<16x128xbf16>
    %13 = arith.maximumf %10, %12 : vector<16x128xbf16>
    %c5 = arith.constant 5 : index
    %c0_10 = arith.constant 0 : index
    %c0_11 = arith.constant 0 : index
    %14 = vector.load %arg1[%c5, %c0_10, %c0_11] : memref<9x16x128xbf16, #tpu.memory_space<vmem>>, vector<1x16x128xbf16>
    %15 = vector.shape_cast %14 : vector<1x16x128xbf16> to vector<16x128xbf16>
    %16 = arith.maximumf %13, %15 : vector<16x128xbf16>
    %c6 = arith.constant 6 : index
    %c0_12 = arith.constant 0 : index
    %c0_13 = arith.constant 0 : index
    %17 = vector.load %arg1[%c6, %c0_12, %c0_13] : memref<9x16x128xbf16, #tpu.memory_space<vmem>>, vector<1x16x128xbf16>
    %18 = vector.shape_cast %17 : vector<1x16x128xbf16> to vector<16x128xbf16>
    %19 = arith.maximumf %16, %18 : vector<16x128xbf16>
    %c7 = arith.constant 7 : index
    %c0_14 = arith.constant 0 : index
    %c0_15 = arith.constant 0 : index
    %20 = vector.load %arg1[%c7, %c0_14, %c0_15] : memref<9x16x128xbf16, #tpu.memory_space<vmem>>, vector<1x16x128xbf16>
    %21 = vector.shape_cast %20 : vector<1x16x128xbf16> to vector<16x128xbf16>
    %22 = arith.maximumf %19, %21 : vector<16x128xbf16>
    %c8 = arith.constant 8 : index
    %c0_16 = arith.constant 0 : index
    %c0_17 = arith.constant 0 : index
    %23 = vector.load %arg1[%c8, %c0_16, %c0_17] : memref<9x16x128xbf16, #tpu.memory_space<vmem>>, vector<1x16x128xbf16>
    %24 = vector.shape_cast %23 : vector<1x16x128xbf16> to vector<16x128xbf16>
    %25 = arith.maximumf %22, %24 : vector<16x128xbf16>
    %c0_18 = arith.constant 0 : index
    %c0_19 = arith.constant 0 : index
    %26 = vector.load %arg2[%c0_18, %c0_19] : memref<16x128xbf16, #tpu.memory_space<vmem>>, vector<16x128xbf16>
    tpu.vector_store %arg2[%c0_18, %c0_19], %25 {strides = array<i32>} : memref<16x128xbf16, #tpu.memory_space<vmem>>, vector<16x128xbf16>,
    return
  }
  func.func @transform_0(%arg0: i32) -> (i32, i32, i32) {
    %c0_i32 = arith.constant 0 : i32
    %c0_i32_0 = arith.constant 0 : i32
    %c0_i32_1 = arith.constant 0 : i32
    return %c0_i32, %arg0, %c0_i32_0 : i32, i32, i32
  }
  func.func @transform_1(%arg0: i32) -> (i32, i32) {
    %c0_i32 = arith.constant 0 : i32
    %c0_i32_0 = arith.constant 0 : i32
    return %arg0, %c0_i32 : i32, i32
  }
}

module attributes {stable_mosaic.version = 11 : i64} {
  func.func @kernel(%arg0: i32, %arg1: memref<256x128xbf16, #tpu.memory_space<vmem>>, %arg2: memref<128x128xbf16, #tpu.memory_space<vmem>>, %arg3: memref<1x128xf32, #tpu.memory_space<vmem>>, %arg4: memref<256x128xbf16, #tpu.memory_space<vmem>>) attributes {dimension_semantics = [#tpu.dimension_semantics<parallel>], iteration_bounds = array<i64: 2>, scalar_prefetch = 0 : i64, scratch_operands = 0 : i64, tpu.core_type = #tpu.core_type<tc>, window_params = [{transform_indices = @transform_0, window_bounds = array<i64: 256, 128>}, {pipeline_mode = #tpu.pipeline_mode<synchronous>, transform_indices = @transform_1, window_bounds = array<i64: 128, 128>}, {pipeline_mode = #tpu.pipeline_mode<synchronous>, transform_indices = @transform_2, window_bounds = array<i64: 1, 128>}, {transform_indices = @transform_3, window_bounds = array<i64: 256, 128>}]} {
    %c0 = arith.constant 0 : index
    %c0_0 = arith.constant 0 : index
    %0 = vector.load %arg1[%c0, %c0_0] : memref<256x128xbf16, #tpu.memory_space<vmem>>, vector<256x128xbf16>
    %c0_1 = arith.constant 0 : index
    %c0_2 = arith.constant 0 : index
    %1 = vector.load %arg2[%c0_1, %c0_2] : memref<128x128xbf16, #tpu.memory_space<vmem>>, vector<128x128xbf16>
    %cst = arith.constant dense<0.000000e+00> : vector<256x128xf32>
    %2 = tpu.matmul %0, %1, %cst {dimension_numbers = #tpu.dot_dimension_numbers<[1], [0], [0], [1], [0, 0, 1, 1], [], []>} : vector<256x128xbf16>, vector<128x128xbf16>, vector<256x128xf32> -> vector<256x128xf32>
    %c0_3 = arith.constant 0 : index
    %c0_4 = arith.constant 0 : index
    %3 = vector.load %arg3[%c0_3, %c0_4] : memref<1x128xf32, #tpu.memory_space<vmem>>, vector<1x128xf32>
    %4 = vector.broadcast %3 : vector<1x128xf32> to vector<256x128xf32>
    %5 = arith.addf %2, %4 : vector<256x128xf32>
    %cst_5 = arith.constant 0.000000e+00 : f32
    %6 = vector.broadcast %cst_5 : f32 to vector<256x128xf32>
    %7 = arith.maximumf %5, %6 : vector<256x128xf32>
    %8 = arith.truncf %7 : vector<256x128xf32> to vector<256x128xbf16>
    %c0_6 = arith.constant 0 : index
    %c0_7 = arith.constant 0 : index
    %9 = vector.load %arg4[%c0_6, %c0_7] : memref<256x128xbf16, #tpu.memory_space<vmem>>, vector<256x128xbf16>
    tpu.vector_store %arg4[%c0_6, %c0_7], %8 {strides = array<i32>} : memref<256x128xbf16, #tpu.memory_space<vmem>>, vector<256x128xbf16>,
    return
  }
  func.func @transform_0(%arg0: i32) -> (i32, i32) {
    %c0_i32 = arith.constant 0 : i32
    %c0_i32_0 = arith.constant 0 : i32
    return %arg0, %c0_i32 : i32, i32
  }
  func.func @transform_1(%arg0: i32) -> (i32, i32) {
    %c0_i32 = arith.constant 0 : i32
    %c0_i32_0 = arith.constant 0 : i32
    %c0_i32_1 = arith.constant 0 : i32
    return %c0_i32, %c0_i32_0 : i32, i32
  }
  func.func @transform_2(%arg0: i32) -> (i32, i32) {
    %c0_i32 = arith.constant 0 : i32
    %c0_i32_0 = arith.constant 0 : i32
    %c0_i32_1 = arith.constant 0 : i32
    return %c0_i32, %c0_i32_0 : i32, i32
  }
  func.func @transform_3(%arg0: i32) -> (i32, i32) {
    %c0_i32 = arith.constant 0 : i32
    %c0_i32_0 = arith.constant 0 : i32
    return %arg0, %c0_i32 : i32, i32
  }
}

module attributes {stable_mosaic.version = 11 : i64} {
  func.func @kernel(%arg0: i32, %arg1: memref<256x128xbf16, #tpu.memory_space<vmem>>, %arg2: memref<128x128xbf16, #tpu.memory_space<vmem>>, %arg3: memref<1x128xf32, #tpu.memory_space<vmem>>, %arg4: memref<256x128xbf16, #tpu.memory_space<vmem>>, %arg5: memref<256x128xbf16, #tpu.memory_space<vmem>>) attributes {dimension_semantics = [#tpu.dimension_semantics<parallel>], iteration_bounds = array<i64: 2>, scalar_prefetch = 0 : i64, scratch_operands = 0 : i64, tpu.core_type = #tpu.core_type<tc>, window_params = [{transform_indices = @transform_0, window_bounds = array<i64: 256, 128>}, {pipeline_mode = #tpu.pipeline_mode<synchronous>, transform_indices = @transform_1, window_bounds = array<i64: 128, 128>}, {pipeline_mode = #tpu.pipeline_mode<synchronous>, transform_indices = @transform_2, window_bounds = array<i64: 1, 128>}, {transform_indices = @transform_3, window_bounds = array<i64: 256, 128>}, {transform_indices = @transform_4, window_bounds = array<i64: 256, 128>}]} {
    %c0 = arith.constant 0 : index
    %c0_0 = arith.constant 0 : index
    %0 = vector.load %arg1[%c0, %c0_0] : memref<256x128xbf16, #tpu.memory_space<vmem>>, vector<256x128xbf16>
    %c0_1 = arith.constant 0 : index
    %c0_2 = arith.constant 0 : index
    %1 = vector.load %arg2[%c0_1, %c0_2] : memref<128x128xbf16, #tpu.memory_space<vmem>>, vector<128x128xbf16>
    %cst = arith.constant dense<0.000000e+00> : vector<256x128xf32>
    %2 = tpu.matmul %0, %1, %cst {dimension_numbers = #tpu.dot_dimension_numbers<[1], [0], [0], [1], [0, 0, 1, 1], [], []>} : vector<256x128xbf16>, vector<128x128xbf16>, vector<256x128xf32> -> vector<256x128xf32>
    %c0_3 = arith.constant 0 : index
    %c0_4 = arith.constant 0 : index
    %3 = vector.load %arg3[%c0_3, %c0_4] : memref<1x128xf32, #tpu.memory_space<vmem>>, vector<1x128xf32>
    %4 = vector.broadcast %3 : vector<1x128xf32> to vector<256x128xf32>
    %5 = arith.addf %2, %4 : vector<256x128xf32>
    %c0_5 = arith.constant 0 : index
    %c0_6 = arith.constant 0 : index
    %6 = vector.load %arg4[%c0_5, %c0_6] : memref<256x128xbf16, #tpu.memory_space<vmem>>, vector<256x128xbf16>
    %7 = arith.extf %6 : vector<256x128xbf16> to vector<256x128xf32>
    %8 = arith.addf %5, %7 : vector<256x128xf32>
    %cst_7 = arith.constant 0.000000e+00 : f32
    %9 = vector.broadcast %cst_7 : f32 to vector<256x128xf32>
    %10 = arith.maximumf %8, %9 : vector<256x128xf32>
    %11 = arith.truncf %10 : vector<256x128xf32> to vector<256x128xbf16>
    %c0_8 = arith.constant 0 : index
    %c0_9 = arith.constant 0 : index
    %12 = vector.load %arg5[%c0_8, %c0_9] : memref<256x128xbf16, #tpu.memory_space<vmem>>, vector<256x128xbf16>
    tpu.vector_store %arg5[%c0_8, %c0_9], %11 {strides = array<i32>} : memref<256x128xbf16, #tpu.memory_space<vmem>>, vector<256x128xbf16>,
    return
  }
  func.func @transform_0(%arg0: i32) -> (i32, i32) {
    %c0_i32 = arith.constant 0 : i32
    %c0_i32_0 = arith.constant 0 : i32
    return %arg0, %c0_i32 : i32, i32
  }
  func.func @transform_1(%arg0: i32) -> (i32, i32) {
    %c0_i32 = arith.constant 0 : i32
    %c0_i32_0 = arith.constant 0 : i32
    %c0_i32_1 = arith.constant 0 : i32
    return %c0_i32, %c0_i32_0 : i32, i32
  }
  func.func @transform_2(%arg0: i32) -> (i32, i32) {
    %c0_i32 = arith.constant 0 : i32
    %c0_i32_0 = arith.constant 0 : i32
    %c0_i32_1 = arith.constant 0 : i32
    return %c0_i32, %c0_i32_0 : i32, i32
  }
  func.func @transform_3(%arg0: i32) -> (i32, i32) {
    %c0_i32 = arith.constant 0 : i32
    %c0_i32_0 = arith.constant 0 : i32
    return %arg0, %c0_i32 : i32, i32
  }
  func.func @transform_4(%arg0: i32) -> (i32, i32) {
    %c0_i32 = arith.constant 0 : i32
    %c0_i32_0 = arith.constant 0 : i32
    return %arg0, %c0_i32 : i32, i32
  }
}

module attributes {stable_mosaic.version = 11 : i64} {
  func.func @kernel(%arg0: i32, %arg1: memref<64x128xbf16, #tpu.memory_space<vmem>>, %arg2: memref<128x128xbf16, #tpu.memory_space<vmem>>, %arg3: memref<1x128xf32, #tpu.memory_space<vmem>>, %arg4: memref<64x128xbf16, #tpu.memory_space<vmem>>) attributes {dimension_semantics = [#tpu.dimension_semantics<parallel>], iteration_bounds = array<i64: 2>, scalar_prefetch = 0 : i64, scratch_operands = 0 : i64, tpu.core_type = #tpu.core_type<tc>, window_params = [{transform_indices = @transform_0, window_bounds = array<i64: 64, 128>}, {pipeline_mode = #tpu.pipeline_mode<synchronous>, transform_indices = @transform_1, window_bounds = array<i64: 128, 128>}, {pipeline_mode = #tpu.pipeline_mode<synchronous>, transform_indices = @transform_2, window_bounds = array<i64: 1, 128>}, {transform_indices = @transform_3, window_bounds = array<i64: 64, 128>}]} {
    %c0 = arith.constant 0 : index
    %c0_0 = arith.constant 0 : index
    %0 = vector.load %arg1[%c0, %c0_0] : memref<64x128xbf16, #tpu.memory_space<vmem>>, vector<64x128xbf16>
    %c0_1 = arith.constant 0 : index
    %c0_2 = arith.constant 0 : index
    %1 = vector.load %arg2[%c0_1, %c0_2] : memref<128x128xbf16, #tpu.memory_space<vmem>>, vector<128x128xbf16>
    %cst = arith.constant dense<0.000000e+00> : vector<64x128xf32>
    %2 = tpu.matmul %0, %1, %cst {dimension_numbers = #tpu.dot_dimension_numbers<[1], [0], [0], [1], [0, 0, 1, 1], [], []>} : vector<64x128xbf16>, vector<128x128xbf16>, vector<64x128xf32> -> vector<64x128xf32>
    %c0_3 = arith.constant 0 : index
    %c0_4 = arith.constant 0 : index
    %3 = vector.load %arg3[%c0_3, %c0_4] : memref<1x128xf32, #tpu.memory_space<vmem>>, vector<1x128xf32>
    %4 = vector.broadcast %3 : vector<1x128xf32> to vector<64x128xf32>
    %5 = arith.addf %2, %4 : vector<64x128xf32>
    %cst_5 = arith.constant 0.000000e+00 : f32
    %6 = vector.broadcast %cst_5 : f32 to vector<64x128xf32>
    %7 = arith.maximumf %5, %6 : vector<64x128xf32>
    %8 = arith.truncf %7 : vector<64x128xf32> to vector<64x128xbf16>
    %c0_6 = arith.constant 0 : index
    %c0_7 = arith.constant 0 : index
    %9 = vector.load %arg4[%c0_6, %c0_7] : memref<64x128xbf16, #tpu.memory_space<vmem>>, vector<64x128xbf16>
    tpu.vector_store %arg4[%c0_6, %c0_7], %8 {strides = array<i32>} : memref<64x128xbf16, #tpu.memory_space<vmem>>, vector<64x128xbf16>,
    return
  }
  func.func @transform_0(%arg0: i32) -> (i32, i32) {
    %c0_i32 = arith.constant 0 : i32
    %c0_i32_0 = arith.constant 0 : i32
    return %arg0, %c0_i32 : i32, i32
  }
  func.func @transform_1(%arg0: i32) -> (i32, i32) {
    %c0_i32 = arith.constant 0 : i32
    %c0_i32_0 = arith.constant 0 : i32
    %c0_i32_1 = arith.constant 0 : i32
    return %c0_i32, %c0_i32_0 : i32, i32
  }
  func.func @transform_2(%arg0: i32) -> (i32, i32) {
    %c0_i32 = arith.constant 0 : i32
    %c0_i32_0 = arith.constant 0 : i32
    %c0_i32_1 = arith.constant 0 : i32
    return %c0_i32, %c0_i32_0 : i32, i32
  }
  func.func @transform_3(%arg0: i32) -> (i32, i32) {
    %c0_i32 = arith.constant 0 : i32
    %c0_i32_0 = arith.constant 0 : i32
    return %arg0, %c0_i32 : i32, i32
  }
}

module attributes {stable_mosaic.version = 11 : i64} {
  func.func @kernel(%arg0: i32, %arg1: memref<64x128xbf16, #tpu.memory_space<vmem>>, %arg2: memref<128x128xbf16, #tpu.memory_space<vmem>>, %arg3: memref<1x128xf32, #tpu.memory_space<vmem>>, %arg4: memref<64x128xbf16, #tpu.memory_space<vmem>>) attributes {dimension_semantics = [#tpu.dimension_semantics<parallel>], iteration_bounds = array<i64: 2>, scalar_prefetch = 0 : i64, scratch_operands = 0 : i64, tpu.core_type = #tpu.core_type<tc>, window_params = [{transform_indices = @transform_0, window_bounds = array<i64: 64, 128>}, {pipeline_mode = #tpu.pipeline_mode<synchronous>, transform_indices = @transform_1, window_bounds = array<i64: 128, 128>}, {pipeline_mode = #tpu.pipeline_mode<synchronous>, transform_indices = @transform_2, window_bounds = array<i64: 1, 128>}, {transform_indices = @transform_3, window_bounds = array<i64: 64, 128>}]} {
    %c0 = arith.constant 0 : index
    %c0_0 = arith.constant 0 : index
    %0 = vector.load %arg1[%c0, %c0_0] : memref<64x128xbf16, #tpu.memory_space<vmem>>, vector<64x128xbf16>
    %c0_1 = arith.constant 0 : index
    %c0_2 = arith.constant 0 : index
    %1 = vector.load %arg2[%c0_1, %c0_2] : memref<128x128xbf16, #tpu.memory_space<vmem>>, vector<128x128xbf16>
    %cst = arith.constant dense<0.000000e+00> : vector<64x128xf32>
    %2 = tpu.matmul %0, %1, %cst {dimension_numbers = #tpu.dot_dimension_numbers<[1], [0], [0], [1], [0, 0, 1, 1], [], []>} : vector<64x128xbf16>, vector<128x128xbf16>, vector<64x128xf32> -> vector<64x128xf32>
    %c0_3 = arith.constant 0 : index
    %c0_4 = arith.constant 0 : index
    %3 = vector.load %arg3[%c0_3, %c0_4] : memref<1x128xf32, #tpu.memory_space<vmem>>, vector<1x128xf32>
    %4 = vector.broadcast %3 : vector<1x128xf32> to vector<64x128xf32>
    %5 = arith.addf %2, %4 : vector<64x128xf32>
    %6 = arith.truncf %5 : vector<64x128xf32> to vector<64x128xbf16>
    %c0_5 = arith.constant 0 : index
    %c0_6 = arith.constant 0 : index
    %7 = vector.load %arg4[%c0_5, %c0_6] : memref<64x128xbf16, #tpu.memory_space<vmem>>, vector<64x128xbf16>
    tpu.vector_store %arg4[%c0_5, %c0_6], %6 {strides = array<i32>} : memref<64x128xbf16, #tpu.memory_space<vmem>>, vector<64x128xbf16>,
    return
  }
  func.func @transform_0(%arg0: i32) -> (i32, i32) {
    %c0_i32 = arith.constant 0 : i32
    %c0_i32_0 = arith.constant 0 : i32
    return %arg0, %c0_i32 : i32, i32
  }
  func.func @transform_1(%arg0: i32) -> (i32, i32) {
    %c0_i32 = arith.constant 0 : i32
    %c0_i32_0 = arith.constant 0 : i32
    %c0_i32_1 = arith.constant 0 : i32
    return %c0_i32, %c0_i32_0 : i32, i32
  }
  func.func @transform_2(%arg0: i32) -> (i32, i32) {
    %c0_i32 = arith.constant 0 : i32
    %c0_i32_0 = arith.constant 0 : i32
    %c0_i32_1 = arith.constant 0 : i32
    return %c0_i32, %c0_i32_0 : i32, i32
  }
  func.func @transform_3(%arg0: i32) -> (i32, i32) {
    %c0_i32 = arith.constant 0 : i32
    %c0_i32_0 = arith.constant 0 : i32
    return %arg0, %c0_i32 : i32, i32
  }
}

module attributes {stable_mosaic.version = 11 : i64} {
  func.func @kernel(%arg0: i32, %arg1: memref<64x256xbf16, #tpu.memory_space<vmem>>, %arg2: memref<256x128xbf16, #tpu.memory_space<vmem>>, %arg3: memref<1x128xf32, #tpu.memory_space<vmem>>, %arg4: memref<64x128xbf16, #tpu.memory_space<vmem>>) attributes {dimension_semantics = [#tpu.dimension_semantics<parallel>], iteration_bounds = array<i64: 2>, scalar_prefetch = 0 : i64, scratch_operands = 0 : i64, tpu.core_type = #tpu.core_type<tc>, window_params = [{transform_indices = @transform_0, window_bounds = array<i64: 64, 256>}, {pipeline_mode = #tpu.pipeline_mode<synchronous>, transform_indices = @transform_1, window_bounds = array<i64: 256, 128>}, {pipeline_mode = #tpu.pipeline_mode<synchronous>, transform_indices = @transform_2, window_bounds = array<i64: 1, 128>}, {transform_indices = @transform_3, window_bounds = array<i64: 64, 128>}]} {
    %c0 = arith.constant 0 : index
    %c0_0 = arith.constant 0 : index
    %0 = vector.load %arg1[%c0, %c0_0] : memref<64x256xbf16, #tpu.memory_space<vmem>>, vector<64x256xbf16>
    %c0_1 = arith.constant 0 : index
    %c0_2 = arith.constant 0 : index
    %1 = vector.load %arg2[%c0_1, %c0_2] : memref<256x128xbf16, #tpu.memory_space<vmem>>, vector<256x128xbf16>
    %cst = arith.constant dense<0.000000e+00> : vector<64x128xf32>
    %2 = tpu.matmul %0, %1, %cst {dimension_numbers = #tpu.dot_dimension_numbers<[1], [0], [0], [1], [0, 0, 1, 1], [], []>} : vector<64x256xbf16>, vector<256x128xbf16>, vector<64x128xf32> -> vector<64x128xf32>
    %c0_3 = arith.constant 0 : index
    %c0_4 = arith.constant 0 : index
    %3 = vector.load %arg3[%c0_3, %c0_4] : memref<1x128xf32, #tpu.memory_space<vmem>>, vector<1x128xf32>
    %4 = vector.broadcast %3 : vector<1x128xf32> to vector<64x128xf32>
    %5 = arith.addf %2, %4 : vector<64x128xf32>
    %cst_5 = arith.constant 0.000000e+00 : f32
    %6 = vector.broadcast %cst_5 : f32 to vector<64x128xf32>
    %7 = arith.maximumf %5, %6 : vector<64x128xf32>
    %8 = arith.truncf %7 : vector<64x128xf32> to vector<64x128xbf16>
    %c0_6 = arith.constant 0 : index
    %c0_7 = arith.constant 0 : index
    %9 = vector.load %arg4[%c0_6, %c0_7] : memref<64x128xbf16, #tpu.memory_space<vmem>>, vector<64x128xbf16>
    tpu.vector_store %arg4[%c0_6, %c0_7], %8 {strides = array<i32>} : memref<64x128xbf16, #tpu.memory_space<vmem>>, vector<64x128xbf16>,
    return
  }
  func.func @transform_0(%arg0: i32) -> (i32, i32) {
    %c0_i32 = arith.constant 0 : i32
    %c0_i32_0 = arith.constant 0 : i32
    return %arg0, %c0_i32 : i32, i32
  }
  func.func @transform_1(%arg0: i32) -> (i32, i32) {
    %c0_i32 = arith.constant 0 : i32
    %c0_i32_0 = arith.constant 0 : i32
    %c0_i32_1 = arith.constant 0 : i32
    return %c0_i32, %c0_i32_0 : i32, i32
  }
  func.func @transform_2(%arg0: i32) -> (i32, i32) {
    %c0_i32 = arith.constant 0 : i32
    %c0_i32_0 = arith.constant 0 : i32
    %c0_i32_1 = arith.constant 0 : i32
    return %c0_i32, %c0_i32_0 : i32, i32
  }
  func.func @transform_3(%arg0: i32) -> (i32, i32) {
    %c0_i32 = arith.constant 0 : i32
    %c0_i32_0 = arith.constant 0 : i32
    return %arg0, %c0_i32 : i32, i32
  }
}

module attributes {stable_mosaic.version = 11 : i64} {
  func.func @kernel(%arg0: i32, %arg1: memref<64x256xbf16, #tpu.memory_space<vmem>>, %arg2: memref<256x128xbf16, #tpu.memory_space<vmem>>, %arg3: memref<1x128xf32, #tpu.memory_space<vmem>>, %arg4: memref<64x128xbf16, #tpu.memory_space<vmem>>, %arg5: memref<64x128xbf16, #tpu.memory_space<vmem>>) attributes {dimension_semantics = [#tpu.dimension_semantics<parallel>], iteration_bounds = array<i64: 2>, scalar_prefetch = 0 : i64, scratch_operands = 0 : i64, tpu.core_type = #tpu.core_type<tc>, window_params = [{transform_indices = @transform_0, window_bounds = array<i64: 64, 256>}, {pipeline_mode = #tpu.pipeline_mode<synchronous>, transform_indices = @transform_1, window_bounds = array<i64: 256, 128>}, {pipeline_mode = #tpu.pipeline_mode<synchronous>, transform_indices = @transform_2, window_bounds = array<i64: 1, 128>}, {transform_indices = @transform_3, window_bounds = array<i64: 64, 128>}, {transform_indices = @transform_4, window_bounds = array<i64: 64, 128>}]} {
    %c0 = arith.constant 0 : index
    %c0_0 = arith.constant 0 : index
    %0 = vector.load %arg1[%c0, %c0_0] : memref<64x256xbf16, #tpu.memory_space<vmem>>, vector<64x256xbf16>
    %c0_1 = arith.constant 0 : index
    %c0_2 = arith.constant 0 : index
    %1 = vector.load %arg2[%c0_1, %c0_2] : memref<256x128xbf16, #tpu.memory_space<vmem>>, vector<256x128xbf16>
    %cst = arith.constant dense<0.000000e+00> : vector<64x128xf32>
    %2 = tpu.matmul %0, %1, %cst {dimension_numbers = #tpu.dot_dimension_numbers<[1], [0], [0], [1], [0, 0, 1, 1], [], []>} : vector<64x256xbf16>, vector<256x128xbf16>, vector<64x128xf32> -> vector<64x128xf32>
    %c0_3 = arith.constant 0 : index
    %c0_4 = arith.constant 0 : index
    %3 = vector.load %arg3[%c0_3, %c0_4] : memref<1x128xf32, #tpu.memory_space<vmem>>, vector<1x128xf32>
    %4 = vector.broadcast %3 : vector<1x128xf32> to vector<64x128xf32>
    %5 = arith.addf %2, %4 : vector<64x128xf32>
    %c0_5 = arith.constant 0 : index
    %c0_6 = arith.constant 0 : index
    %6 = vector.load %arg4[%c0_5, %c0_6] : memref<64x128xbf16, #tpu.memory_space<vmem>>, vector<64x128xbf16>
    %7 = arith.extf %6 : vector<64x128xbf16> to vector<64x128xf32>
    %8 = arith.addf %5, %7 : vector<64x128xf32>
    %cst_7 = arith.constant 0.000000e+00 : f32
    %9 = vector.broadcast %cst_7 : f32 to vector<64x128xf32>
    %10 = arith.maximumf %8, %9 : vector<64x128xf32>
    %11 = arith.truncf %10 : vector<64x128xf32> to vector<64x128xbf16>
    %c0_8 = arith.constant 0 : index
    %c0_9 = arith.constant 0 : index
    %12 = vector.load %arg5[%c0_8, %c0_9] : memref<64x128xbf16, #tpu.memory_space<vmem>>, vector<64x128xbf16>
    tpu.vector_store %arg5[%c0_8, %c0_9], %11 {strides = array<i32>} : memref<64x128xbf16, #tpu.memory_space<vmem>>, vector<64x128xbf16>,
    return
  }
  func.func @transform_0(%arg0: i32) -> (i32, i32) {
    %c0_i32 = arith.constant 0 : i32
    %c0_i32_0 = arith.constant 0 : i32
    return %arg0, %c0_i32 : i32, i32
  }
  func.func @transform_1(%arg0: i32) -> (i32, i32) {
    %c0_i32 = arith.constant 0 : i32
    %c0_i32_0 = arith.constant 0 : i32
    %c0_i32_1 = arith.constant 0 : i32
    return %c0_i32, %c0_i32_0 : i32, i32
  }
  func.func @transform_2(%arg0: i32) -> (i32, i32) {
    %c0_i32 = arith.constant 0 : i32
    %c0_i32_0 = arith.constant 0 : i32
    %c0_i32_1 = arith.constant 0 : i32
    return %c0_i32, %c0_i32_0 : i32, i32
  }
  func.func @transform_3(%arg0: i32) -> (i32, i32) {
    %c0_i32 = arith.constant 0 : i32
    %c0_i32_0 = arith.constant 0 : i32
    return %arg0, %c0_i32 : i32, i32
  }
  func.func @transform_4(%arg0: i32) -> (i32, i32) {
    %c0_i32 = arith.constant 0 : i32
    %c0_i32_0 = arith.constant 0 : i32
    return %arg0, %c0_i32 : i32, i32
  }
}

module attributes {stable_mosaic.version = 11 : i64} {
  func.func @kernel(%arg0: i32, %arg1: memref<16x256xbf16, #tpu.memory_space<vmem>>, %arg2: memref<256x128xbf16, #tpu.memory_space<vmem>>, %arg3: memref<1x128xf32, #tpu.memory_space<vmem>>, %arg4: memref<16x128xbf16, #tpu.memory_space<vmem>>) attributes {dimension_semantics = [#tpu.dimension_semantics<parallel>], iteration_bounds = array<i64: 2>, scalar_prefetch = 0 : i64, scratch_operands = 0 : i64, tpu.core_type = #tpu.core_type<tc>, window_params = [{transform_indices = @transform_0, window_bounds = array<i64: 16, 256>}, {pipeline_mode = #tpu.pipeline_mode<synchronous>, transform_indices = @transform_1, window_bounds = array<i64: 256, 128>}, {pipeline_mode = #tpu.pipeline_mode<synchronous>, transform_indices = @transform_2, window_bounds = array<i64: 1, 128>}, {transform_indices = @transform_3, window_bounds = array<i64: 16, 128>}]} {
    %c0 = arith.constant 0 : index
    %c0_0 = arith.constant 0 : index
    %0 = vector.load %arg1[%c0, %c0_0] : memref<16x256xbf16, #tpu.memory_space<vmem>>, vector<16x256xbf16>
    %c0_1 = arith.constant 0 : index
    %c0_2 = arith.constant 0 : index
    %1 = vector.load %arg2[%c0_1, %c0_2] : memref<256x128xbf16, #tpu.memory_space<vmem>>, vector<256x128xbf16>
    %cst = arith.constant dense<0.000000e+00> : vector<16x128xf32>
    %2 = tpu.matmul %0, %1, %cst {dimension_numbers = #tpu.dot_dimension_numbers<[1], [0], [0], [1], [0, 0, 1, 1], [], []>} : vector<16x256xbf16>, vector<256x128xbf16>, vector<16x128xf32> -> vector<16x128xf32>
    %c0_3 = arith.constant 0 : index
    %c0_4 = arith.constant 0 : index
    %3 = vector.load %arg3[%c0_3, %c0_4] : memref<1x128xf32, #tpu.memory_space<vmem>>, vector<1x128xf32>
    %4 = vector.broadcast %3 : vector<1x128xf32> to vector<16x128xf32>
    %5 = arith.addf %2, %4 : vector<16x128xf32>
    %cst_5 = arith.constant 0.000000e+00 : f32
    %6 = vector.broadcast %cst_5 : f32 to vector<16x128xf32>
    %7 = arith.maximumf %5, %6 : vector<16x128xf32>
    %8 = arith.truncf %7 : vector<16x128xf32> to vector<16x128xbf16>
    %c0_6 = arith.constant 0 : index
    %c0_7 = arith.constant 0 : index
    %9 = vector.load %arg4[%c0_6, %c0_7] : memref<16x128xbf16, #tpu.memory_space<vmem>>, vector<16x128xbf16>
    tpu.vector_store %arg4[%c0_6, %c0_7], %8 {strides = array<i32>} : memref<16x128xbf16, #tpu.memory_space<vmem>>, vector<16x128xbf16>,
    return
  }
  func.func @transform_0(%arg0: i32) -> (i32, i32) {
    %c0_i32 = arith.constant 0 : i32
    %c0_i32_0 = arith.constant 0 : i32
    return %arg0, %c0_i32 : i32, i32
  }
  func.func @transform_1(%arg0: i32) -> (i32, i32) {
    %c0_i32 = arith.constant 0 : i32
    %c0_i32_0 = arith.constant 0 : i32
    %c0_i32_1 = arith.constant 0 : i32
    return %c0_i32, %c0_i32_0 : i32, i32
  }
  func.func @transform_2(%arg0: i32) -> (i32, i32) {
    %c0_i32 = arith.constant 0 : i32
    %c0_i32_0 = arith.constant 0 : i32
    %c0_i32_1 = arith.constant 0 : i32
    return %c0_i32, %c0_i32_0 : i32, i32
  }
  func.func @transform_3(%arg0: i32) -> (i32, i32) {
    %c0_i32 = arith.constant 0 : i32
    %c0_i32_0 = arith.constant 0 : i32
    return %arg0, %c0_i32 : i32, i32
  }
}

module attributes {stable_mosaic.version = 11 : i64} {
  func.func @kernel(%arg0: i32, %arg1: memref<16x128xbf16, #tpu.memory_space<vmem>>, %arg2: memref<128x128xbf16, #tpu.memory_space<vmem>>, %arg3: memref<1x128xf32, #tpu.memory_space<vmem>>, %arg4: memref<16x128xbf16, #tpu.memory_space<vmem>>) attributes {dimension_semantics = [#tpu.dimension_semantics<parallel>], iteration_bounds = array<i64: 2>, scalar_prefetch = 0 : i64, scratch_operands = 0 : i64, tpu.core_type = #tpu.core_type<tc>, window_params = [{transform_indices = @transform_0, window_bounds = array<i64: 16, 128>}, {pipeline_mode = #tpu.pipeline_mode<synchronous>, transform_indices = @transform_1, window_bounds = array<i64: 128, 128>}, {pipeline_mode = #tpu.pipeline_mode<synchronous>, transform_indices = @transform_2, window_bounds = array<i64: 1, 128>}, {transform_indices = @transform_3, window_bounds = array<i64: 16, 128>}]} {
    %c0 = arith.constant 0 : index
    %c0_0 = arith.constant 0 : index
    %0 = vector.load %arg1[%c0, %c0_0] : memref<16x128xbf16, #tpu.memory_space<vmem>>, vector<16x128xbf16>
    %c0_1 = arith.constant 0 : index
    %c0_2 = arith.constant 0 : index
    %1 = vector.load %arg2[%c0_1, %c0_2] : memref<128x128xbf16, #tpu.memory_space<vmem>>, vector<128x128xbf16>
    %cst = arith.constant dense<0.000000e+00> : vector<16x128xf32>
    %2 = tpu.matmul %0, %1, %cst {dimension_numbers = #tpu.dot_dimension_numbers<[1], [0], [0], [1], [0, 0, 1, 1], [], []>} : vector<16x128xbf16>, vector<128x128xbf16>, vector<16x128xf32> -> vector<16x128xf32>
    %c0_3 = arith.constant 0 : index
    %c0_4 = arith.constant 0 : index
    %3 = vector.load %arg3[%c0_3, %c0_4] : memref<1x128xf32, #tpu.memory_space<vmem>>, vector<1x128xf32>
    %4 = vector.broadcast %3 : vector<1x128xf32> to vector<16x128xf32>
    %5 = arith.addf %2, %4 : vector<16x128xf32>
    %6 = arith.truncf %5 : vector<16x128xf32> to vector<16x128xbf16>
    %c0_5 = arith.constant 0 : index
    %c0_6 = arith.constant 0 : index
    %7 = vector.load %arg4[%c0_5, %c0_6] : memref<16x128xbf16, #tpu.memory_space<vmem>>, vector<16x128xbf16>
    tpu.vector_store %arg4[%c0_5, %c0_6], %6 {strides = array<i32>} : memref<16x128xbf16, #tpu.memory_space<vmem>>, vector<16x128xbf16>,
    return
  }
  func.func @transform_0(%arg0: i32) -> (i32, i32) {
    %c0_i32 = arith.constant 0 : i32
    %c0_i32_0 = arith.constant 0 : i32
    return %arg0, %c0_i32 : i32, i32
  }
  func.func @transform_1(%arg0: i32) -> (i32, i32) {
    %c0_i32 = arith.constant 0 : i32
    %c0_i32_0 = arith.constant 0 : i32
    %c0_i32_1 = arith.constant 0 : i32
    return %c0_i32, %c0_i32_0 : i32, i32
  }
  func.func @transform_2(%arg0: i32) -> (i32, i32) {
    %c0_i32 = arith.constant 0 : i32
    %c0_i32_0 = arith.constant 0 : i32
    %c0_i32_1 = arith.constant 0 : i32
    return %c0_i32, %c0_i32_0 : i32, i32
  }
  func.func @transform_3(%arg0: i32) -> (i32, i32) {
    %c0_i32 = arith.constant 0 : i32
    %c0_i32_0 = arith.constant 0 : i32
    return %arg0, %c0_i32 : i32, i32
  }
}

module attributes {stable_mosaic.version = 11 : i64} {
  func.func @kernel(%arg0: i32, %arg1: memref<16x384xbf16, #tpu.memory_space<vmem>>, %arg2: memref<384x128xbf16, #tpu.memory_space<vmem>>, %arg3: memref<1x128xf32, #tpu.memory_space<vmem>>, %arg4: memref<16x128xbf16, #tpu.memory_space<vmem>>) attributes {dimension_semantics = [#tpu.dimension_semantics<parallel>], iteration_bounds = array<i64: 2>, scalar_prefetch = 0 : i64, scratch_operands = 0 : i64, tpu.core_type = #tpu.core_type<tc>, window_params = [{transform_indices = @transform_0, window_bounds = array<i64: 16, 384>}, {pipeline_mode = #tpu.pipeline_mode<synchronous>, transform_indices = @transform_1, window_bounds = array<i64: 384, 128>}, {pipeline_mode = #tpu.pipeline_mode<synchronous>, transform_indices = @transform_2, window_bounds = array<i64: 1, 128>}, {transform_indices = @transform_3, window_bounds = array<i64: 16, 128>}]} {
    %c0 = arith.constant 0 : index
    %c0_0 = arith.constant 0 : index
    %0 = vector.load %arg1[%c0, %c0_0] : memref<16x384xbf16, #tpu.memory_space<vmem>>, vector<16x384xbf16>
    %c0_1 = arith.constant 0 : index
    %c0_2 = arith.constant 0 : index
    %1 = vector.load %arg2[%c0_1, %c0_2] : memref<384x128xbf16, #tpu.memory_space<vmem>>, vector<384x128xbf16>
    %cst = arith.constant dense<0.000000e+00> : vector<16x128xf32>
    %2 = tpu.matmul %0, %1, %cst {dimension_numbers = #tpu.dot_dimension_numbers<[1], [0], [0], [1], [0, 0, 1, 1], [], []>} : vector<16x384xbf16>, vector<384x128xbf16>, vector<16x128xf32> -> vector<16x128xf32>
    %c0_3 = arith.constant 0 : index
    %c0_4 = arith.constant 0 : index
    %3 = vector.load %arg3[%c0_3, %c0_4] : memref<1x128xf32, #tpu.memory_space<vmem>>, vector<1x128xf32>
    %4 = vector.broadcast %3 : vector<1x128xf32> to vector<16x128xf32>
    %5 = arith.addf %2, %4 : vector<16x128xf32>
    %cst_5 = arith.constant 0.000000e+00 : f32
    %6 = vector.broadcast %cst_5 : f32 to vector<16x128xf32>
    %7 = arith.maximumf %5, %6 : vector<16x128xf32>
    %8 = arith.truncf %7 : vector<16x128xf32> to vector<16x128xbf16>
    %c0_6 = arith.constant 0 : index
    %c0_7 = arith.constant 0 : index
    %9 = vector.load %arg4[%c0_6, %c0_7] : memref<16x128xbf16, #tpu.memory_space<vmem>>, vector<16x128xbf16>
    tpu.vector_store %arg4[%c0_6, %c0_7], %8 {strides = array<i32>} : memref<16x128xbf16, #tpu.memory_space<vmem>>, vector<16x128xbf16>,
    return
  }
  func.func @transform_0(%arg0: i32) -> (i32, i32) {
    %c0_i32 = arith.constant 0 : i32
    %c0_i32_0 = arith.constant 0 : i32
    return %arg0, %c0_i32 : i32, i32
  }
  func.func @transform_1(%arg0: i32) -> (i32, i32) {
    %c0_i32 = arith.constant 0 : i32
    %c0_i32_0 = arith.constant 0 : i32
    %c0_i32_1 = arith.constant 0 : i32
    return %c0_i32, %c0_i32_0 : i32, i32
  }
  func.func @transform_2(%arg0: i32) -> (i32, i32) {
    %c0_i32 = arith.constant 0 : i32
    %c0_i32_0 = arith.constant 0 : i32
    %c0_i32_1 = arith.constant 0 : i32
    return %c0_i32, %c0_i32_0 : i32, i32
  }
  func.func @transform_3(%arg0: i32) -> (i32, i32) {
    %c0_i32 = arith.constant 0 : i32
    %c0_i32_0 = arith.constant 0 : i32
    return %arg0, %c0_i32 : i32, i32
  }
}

module attributes {stable_mosaic.version = 11 : i64} {
  func.func @kernel(%arg0: i32, %arg1: memref<16x384xbf16, #tpu.memory_space<vmem>>, %arg2: memref<384x128xbf16, #tpu.memory_space<vmem>>, %arg3: memref<1x128xf32, #tpu.memory_space<vmem>>, %arg4: memref<16x128xbf16, #tpu.memory_space<vmem>>, %arg5: memref<16x128xbf16, #tpu.memory_space<vmem>>) attributes {dimension_semantics = [#tpu.dimension_semantics<parallel>], iteration_bounds = array<i64: 2>, scalar_prefetch = 0 : i64, scratch_operands = 0 : i64, tpu.core_type = #tpu.core_type<tc>, window_params = [{transform_indices = @transform_0, window_bounds = array<i64: 16, 384>}, {pipeline_mode = #tpu.pipeline_mode<synchronous>, transform_indices = @transform_1, window_bounds = array<i64: 384, 128>}, {pipeline_mode = #tpu.pipeline_mode<synchronous>, transform_indices = @transform_2, window_bounds = array<i64: 1, 128>}, {transform_indices = @transform_3, window_bounds = array<i64: 16, 128>}, {transform_indices = @transform_4, window_bounds = array<i64: 16, 128>}]} {
    %c0 = arith.constant 0 : index
    %c0_0 = arith.constant 0 : index
    %0 = vector.load %arg1[%c0, %c0_0] : memref<16x384xbf16, #tpu.memory_space<vmem>>, vector<16x384xbf16>
    %c0_1 = arith.constant 0 : index
    %c0_2 = arith.constant 0 : index
    %1 = vector.load %arg2[%c0_1, %c0_2] : memref<384x128xbf16, #tpu.memory_space<vmem>>, vector<384x128xbf16>
    %cst = arith.constant dense<0.000000e+00> : vector<16x128xf32>
    %2 = tpu.matmul %0, %1, %cst {dimension_numbers = #tpu.dot_dimension_numbers<[1], [0], [0], [1], [0, 0, 1, 1], [], []>} : vector<16x384xbf16>, vector<384x128xbf16>, vector<16x128xf32> -> vector<16x128xf32>
    %c0_3 = arith.constant 0 : index
    %c0_4 = arith.constant 0 : index
    %3 = vector.load %arg3[%c0_3, %c0_4] : memref<1x128xf32, #tpu.memory_space<vmem>>, vector<1x128xf32>
    %4 = vector.broadcast %3 : vector<1x128xf32> to vector<16x128xf32>
    %5 = arith.addf %2, %4 : vector<16x128xf32>
    %c0_5 = arith.constant 0 : index
    %c0_6 = arith.constant 0 : index
    %6 = vector.load %arg4[%c0_5, %c0_6] : memref<16x128xbf16, #tpu.memory_space<vmem>>, vector<16x128xbf16>
    %7 = arith.extf %6 : vector<16x128xbf16> to vector<16x128xf32>
    %8 = arith.addf %5, %7 : vector<16x128xf32>
    %cst_7 = arith.constant 0.000000e+00 : f32
    %9 = vector.broadcast %cst_7 : f32 to vector<16x128xf32>
    %10 = arith.maximumf %8, %9 : vector<16x128xf32>
    %11 = arith.truncf %10 : vector<16x128xf32> to vector<16x128xbf16>
    %c0_8 = arith.constant 0 : index
    %c0_9 = arith.constant 0 : index
    %12 = vector.load %arg5[%c0_8, %c0_9] : memref<16x128xbf16, #tpu.memory_space<vmem>>, vector<16x128xbf16>
    tpu.vector_store %arg5[%c0_8, %c0_9], %11 {strides = array<i32>} : memref<16x128xbf16, #tpu.memory_space<vmem>>, vector<16x128xbf16>,
    return
  }
  func.func @transform_0(%arg0: i32) -> (i32, i32) {
    %c0_i32 = arith.constant 0 : i32
    %c0_i32_0 = arith.constant 0 : i32
    return %arg0, %c0_i32 : i32, i32
  }
  func.func @transform_1(%arg0: i32) -> (i32, i32) {
    %c0_i32 = arith.constant 0 : i32
    %c0_i32_0 = arith.constant 0 : i32
    %c0_i32_1 = arith.constant 0 : i32
    return %c0_i32, %c0_i32_0 : i32, i32
  }
  func.func @transform_2(%arg0: i32) -> (i32, i32) {
    %c0_i32 = arith.constant 0 : i32
    %c0_i32_0 = arith.constant 0 : i32
    %c0_i32_1 = arith.constant 0 : i32
    return %c0_i32, %c0_i32_0 : i32, i32
  }
  func.func @transform_3(%arg0: i32) -> (i32, i32) {
    %c0_i32 = arith.constant 0 : i32
    %c0_i32_0 = arith.constant 0 : i32
    return %arg0, %c0_i32 : i32, i32
  }
  func.func @transform_4(%arg0: i32) -> (i32, i32) {
    %c0_i32 = arith.constant 0 : i32
    %c0_i32_0 = arith.constant 0 : i32
    return %arg0, %c0_i32 : i32, i32
  }
}

module attributes {stable_mosaic.version = 11 : i64} {
  func.func @kernel(%arg0: i32, %arg1: memref<8x384xbf16, #tpu.memory_space<vmem>>, %arg2: memref<384x128xbf16, #tpu.memory_space<vmem>>, %arg3: memref<1x128xf32, #tpu.memory_space<vmem>>, %arg4: memref<8x128xbf16, #tpu.memory_space<vmem>>) attributes {dimension_semantics = [#tpu.dimension_semantics<parallel>], iteration_bounds = array<i64: 1>, scalar_prefetch = 0 : i64, scratch_operands = 0 : i64, tpu.core_type = #tpu.core_type<tc>, window_params = [{transform_indices = @transform_0, window_bounds = array<i64: 8, 384>}, {pipeline_mode = #tpu.pipeline_mode<synchronous>, transform_indices = @transform_1, window_bounds = array<i64: 384, 128>}, {pipeline_mode = #tpu.pipeline_mode<synchronous>, transform_indices = @transform_2, window_bounds = array<i64: 1, 128>}, {transform_indices = @transform_3, window_bounds = array<i64: 8, 128>}]} {
    %c0 = arith.constant 0 : index
    %c0_0 = arith.constant 0 : index
    %0 = vector.load %arg1[%c0, %c0_0] : memref<8x384xbf16, #tpu.memory_space<vmem>>, vector<8x384xbf16>
    %c0_1 = arith.constant 0 : index
    %c0_2 = arith.constant 0 : index
    %1 = vector.load %arg2[%c0_1, %c0_2] : memref<384x128xbf16, #tpu.memory_space<vmem>>, vector<384x128xbf16>
    %cst = arith.constant dense<0.000000e+00> : vector<8x128xf32>
    %2 = tpu.matmul %0, %1, %cst {dimension_numbers = #tpu.dot_dimension_numbers<[1], [0], [0], [1], [0, 0, 1, 1], [], []>} : vector<8x384xbf16>, vector<384x128xbf16>, vector<8x128xf32> -> vector<8x128xf32>
    %c0_3 = arith.constant 0 : index
    %c0_4 = arith.constant 0 : index
    %3 = vector.load %arg3[%c0_3, %c0_4] : memref<1x128xf32, #tpu.memory_space<vmem>>, vector<1x128xf32>
    %4 = vector.broadcast %3 : vector<1x128xf32> to vector<8x128xf32>
    %5 = arith.addf %2, %4 : vector<8x128xf32>
    %cst_5 = arith.constant 0.000000e+00 : f32
    %6 = vector.broadcast %cst_5 : f32 to vector<8x128xf32>
    %7 = arith.maximumf %5, %6 : vector<8x128xf32>
    %8 = arith.truncf %7 : vector<8x128xf32> to vector<8x128xbf16>
    %c0_6 = arith.constant 0 : index
    %c0_7 = arith.constant 0 : index
    %9 = vector.load %arg4[%c0_6, %c0_7] : memref<8x128xbf16, #tpu.memory_space<vmem>>, vector<8x128xbf16>
    tpu.vector_store %arg4[%c0_6, %c0_7], %8 {strides = array<i32>} : memref<8x128xbf16, #tpu.memory_space<vmem>>, vector<8x128xbf16>,
    return
  }
  func.func @transform_0(%arg0: i32) -> (i32, i32) {
    %c0_i32 = arith.constant 0 : i32
    %c0_i32_0 = arith.constant 0 : i32
    return %arg0, %c0_i32 : i32, i32
  }
  func.func @transform_1(%arg0: i32) -> (i32, i32) {
    %c0_i32 = arith.constant 0 : i32
    %c0_i32_0 = arith.constant 0 : i32
    %c0_i32_1 = arith.constant 0 : i32
    return %c0_i32, %c0_i32_0 : i32, i32
  }
  func.func @transform_2(%arg0: i32) -> (i32, i32) {
    %c0_i32 = arith.constant 0 : i32
    %c0_i32_0 = arith.constant 0 : i32
    %c0_i32_1 = arith.constant 0 : i32
    return %c0_i32, %c0_i32_0 : i32, i32
  }
  func.func @transform_3(%arg0: i32) -> (i32, i32) {
    %c0_i32 = arith.constant 0 : i32
    %c0_i32_0 = arith.constant 0 : i32
    return %arg0, %c0_i32 : i32, i32
  }
}

module attributes {stable_mosaic.version = 11 : i64} {
  func.func @kernel(%arg0: i32, %arg1: memref<8x128xbf16, #tpu.memory_space<vmem>>, %arg2: memref<128x128xbf16, #tpu.memory_space<vmem>>, %arg3: memref<1x128xf32, #tpu.memory_space<vmem>>, %arg4: memref<8x128xbf16, #tpu.memory_space<vmem>>) attributes {dimension_semantics = [#tpu.dimension_semantics<parallel>], iteration_bounds = array<i64: 1>, scalar_prefetch = 0 : i64, scratch_operands = 0 : i64, tpu.core_type = #tpu.core_type<tc>, window_params = [{transform_indices = @transform_0, window_bounds = array<i64: 8, 128>}, {pipeline_mode = #tpu.pipeline_mode<synchronous>, transform_indices = @transform_1, window_bounds = array<i64: 128, 128>}, {pipeline_mode = #tpu.pipeline_mode<synchronous>, transform_indices = @transform_2, window_bounds = array<i64: 1, 128>}, {transform_indices = @transform_3, window_bounds = array<i64: 8, 128>}]} {
    %c0 = arith.constant 0 : index
    %c0_0 = arith.constant 0 : index
    %0 = vector.load %arg1[%c0, %c0_0] : memref<8x128xbf16, #tpu.memory_space<vmem>>, vector<8x128xbf16>
    %c0_1 = arith.constant 0 : index
    %c0_2 = arith.constant 0 : index
    %1 = vector.load %arg2[%c0_1, %c0_2] : memref<128x128xbf16, #tpu.memory_space<vmem>>, vector<128x128xbf16>
    %cst = arith.constant dense<0.000000e+00> : vector<8x128xf32>
    %2 = tpu.matmul %0, %1, %cst {dimension_numbers = #tpu.dot_dimension_numbers<[1], [0], [0], [1], [0, 0, 1, 1], [], []>} : vector<8x128xbf16>, vector<128x128xbf16>, vector<8x128xf32> -> vector<8x128xf32>
    %c0_3 = arith.constant 0 : index
    %c0_4 = arith.constant 0 : index
    %3 = vector.load %arg3[%c0_3, %c0_4] : memref<1x128xf32, #tpu.memory_space<vmem>>, vector<1x128xf32>
    %4 = vector.broadcast %3 : vector<1x128xf32> to vector<8x128xf32>
    %5 = arith.addf %2, %4 : vector<8x128xf32>
    %6 = arith.truncf %5 : vector<8x128xf32> to vector<8x128xbf16>
    %c0_5 = arith.constant 0 : index
    %c0_6 = arith.constant 0 : index
    %7 = vector.load %arg4[%c0_5, %c0_6] : memref<8x128xbf16, #tpu.memory_space<vmem>>, vector<8x128xbf16>
    tpu.vector_store %arg4[%c0_5, %c0_6], %6 {strides = array<i32>} : memref<8x128xbf16, #tpu.memory_space<vmem>>, vector<8x128xbf16>,
    return
  }
  func.func @transform_0(%arg0: i32) -> (i32, i32) {
    %c0_i32 = arith.constant 0 : i32
    %c0_i32_0 = arith.constant 0 : i32
    return %arg0, %c0_i32 : i32, i32
  }
  func.func @transform_1(%arg0: i32) -> (i32, i32) {
    %c0_i32 = arith.constant 0 : i32
    %c0_i32_0 = arith.constant 0 : i32
    %c0_i32_1 = arith.constant 0 : i32
    return %c0_i32, %c0_i32_0 : i32, i32
  }
  func.func @transform_2(%arg0: i32) -> (i32, i32) {
    %c0_i32 = arith.constant 0 : i32
    %c0_i32_0 = arith.constant 0 : i32
    %c0_i32_1 = arith.constant 0 : i32
    return %c0_i32, %c0_i32_0 : i32, i32
  }
  func.func @transform_3(%arg0: i32) -> (i32, i32) {
    %c0_i32 = arith.constant 0 : i32
    %c0_i32_0 = arith.constant 0 : i32
    return %arg0, %c0_i32 : i32, i32
  }
}

module attributes {stable_mosaic.version = 11 : i64} {
  func.func @kernel(%arg0: i32, %arg1: memref<8x640xbf16, #tpu.memory_space<vmem>>, %arg2: memref<640x128xbf16, #tpu.memory_space<vmem>>, %arg3: memref<1x128xf32, #tpu.memory_space<vmem>>, %arg4: memref<8x128xbf16, #tpu.memory_space<vmem>>, %arg5: memref<8x128xbf16, #tpu.memory_space<vmem>>) attributes {dimension_semantics = [#tpu.dimension_semantics<parallel>], iteration_bounds = array<i64: 1>, scalar_prefetch = 0 : i64, scratch_operands = 0 : i64, tpu.core_type = #tpu.core_type<tc>, window_params = [{transform_indices = @transform_0, window_bounds = array<i64: 8, 640>}, {pipeline_mode = #tpu.pipeline_mode<synchronous>, transform_indices = @transform_1, window_bounds = array<i64: 640, 128>}, {pipeline_mode = #tpu.pipeline_mode<synchronous>, transform_indices = @transform_2, window_bounds = array<i64: 1, 128>}, {transform_indices = @transform_3, window_bounds = array<i64: 8, 128>}, {transform_indices = @transform_4, window_bounds = array<i64: 8, 128>}]} {
    %c0 = arith.constant 0 : index
    %c0_0 = arith.constant 0 : index
    %0 = vector.load %arg1[%c0, %c0_0] : memref<8x640xbf16, #tpu.memory_space<vmem>>, vector<8x640xbf16>
    %c0_1 = arith.constant 0 : index
    %c0_2 = arith.constant 0 : index
    %1 = vector.load %arg2[%c0_1, %c0_2] : memref<640x128xbf16, #tpu.memory_space<vmem>>, vector<640x128xbf16>
    %cst = arith.constant dense<0.000000e+00> : vector<8x128xf32>
    %2 = tpu.matmul %0, %1, %cst {dimension_numbers = #tpu.dot_dimension_numbers<[1], [0], [0], [1], [0, 0, 1, 1], [], []>} : vector<8x640xbf16>, vector<640x128xbf16>, vector<8x128xf32> -> vector<8x128xf32>
    %c0_3 = arith.constant 0 : index
    %c0_4 = arith.constant 0 : index
    %3 = vector.load %arg3[%c0_3, %c0_4] : memref<1x128xf32, #tpu.memory_space<vmem>>, vector<1x128xf32>
    %4 = vector.broadcast %3 : vector<1x128xf32> to vector<8x128xf32>
    %5 = arith.addf %2, %4 : vector<8x128xf32>
    %c0_5 = arith.constant 0 : index
    %c0_6 = arith.constant 0 : index
    %6 = vector.load %arg4[%c0_5, %c0_6] : memref<8x128xbf16, #tpu.memory_space<vmem>>, vector<8x128xbf16>
    %7 = arith.extf %6 : vector<8x128xbf16> to vector<8x128xf32>
    %8 = arith.addf %5, %7 : vector<8x128xf32>
    %cst_7 = arith.constant 0.000000e+00 : f32
    %9 = vector.broadcast %cst_7 : f32 to vector<8x128xf32>
    %10 = arith.maximumf %8, %9 : vector<8x128xf32>
    %11 = arith.truncf %10 : vector<8x128xf32> to vector<8x128xbf16>
    %c0_8 = arith.constant 0 : index
    %c0_9 = arith.constant 0 : index
    %12 = vector.load %arg5[%c0_8, %c0_9] : memref<8x128xbf16, #tpu.memory_space<vmem>>, vector<8x128xbf16>
    tpu.vector_store %arg5[%c0_8, %c0_9], %11 {strides = array<i32>} : memref<8x128xbf16, #tpu.memory_space<vmem>>, vector<8x128xbf16>,
    return
  }
  func.func @transform_0(%arg0: i32) -> (i32, i32) {
    %c0_i32 = arith.constant 0 : i32
    %c0_i32_0 = arith.constant 0 : i32
    return %arg0, %c0_i32 : i32, i32
  }
  func.func @transform_1(%arg0: i32) -> (i32, i32) {
    %c0_i32 = arith.constant 0 : i32
    %c0_i32_0 = arith.constant 0 : i32
    %c0_i32_1 = arith.constant 0 : i32
    return %c0_i32, %c0_i32_0 : i32, i32
  }
  func.func @transform_2(%arg0: i32) -> (i32, i32) {
    %c0_i32 = arith.constant 0 : i32
    %c0_i32_0 = arith.constant 0 : i32
    %c0_i32_1 = arith.constant 0 : i32
    return %c0_i32, %c0_i32_0 : i32, i32
  }
  func.func @transform_3(%arg0: i32) -> (i32, i32) {
    %c0_i32 = arith.constant 0 : i32
    %c0_i32_0 = arith.constant 0 : i32
    return %arg0, %c0_i32 : i32, i32
  }
  func.func @transform_4(%arg0: i32) -> (i32, i32) {
    %c0_i32 = arith.constant 0 : i32
    %c0_i32_0 = arith.constant 0 : i32
    return %arg0, %c0_i32 : i32, i32
  }
}

module attributes {stable_mosaic.version = 11 : i64} {
  func.func @kernel(%arg0: i32, %arg1: memref<8x640xbf16, #tpu.memory_space<vmem>>, %arg2: memref<640x128xbf16, #tpu.memory_space<vmem>>, %arg3: memref<1x128xf32, #tpu.memory_space<vmem>>, %arg4: memref<8x128xbf16, #tpu.memory_space<vmem>>) attributes {dimension_semantics = [#tpu.dimension_semantics<parallel>], iteration_bounds = array<i64: 1>, scalar_prefetch = 0 : i64, scratch_operands = 0 : i64, tpu.core_type = #tpu.core_type<tc>, window_params = [{transform_indices = @transform_0, window_bounds = array<i64: 8, 640>}, {pipeline_mode = #tpu.pipeline_mode<synchronous>, transform_indices = @transform_1, window_bounds = array<i64: 640, 128>}, {pipeline_mode = #tpu.pipeline_mode<synchronous>, transform_indices = @transform_2, window_bounds = array<i64: 1, 128>}, {transform_indices = @transform_3, window_bounds = array<i64: 8, 128>}]} {
    %c0 = arith.constant 0 : index
    %c0_0 = arith.constant 0 : index
    %0 = vector.load %arg1[%c0, %c0_0] : memref<8x640xbf16, #tpu.memory_space<vmem>>, vector<8x640xbf16>
    %c0_1 = arith.constant 0 : index
    %c0_2 = arith.constant 0 : index
    %1 = vector.load %arg2[%c0_1, %c0_2] : memref<640x128xbf16, #tpu.memory_space<vmem>>, vector<640x128xbf16>
    %cst = arith.constant dense<0.000000e+00> : vector<8x128xf32>
    %2 = tpu.matmul %0, %1, %cst {dimension_numbers = #tpu.dot_dimension_numbers<[1], [0], [0], [1], [0, 0, 1, 1], [], []>} : vector<8x640xbf16>, vector<640x128xbf16>, vector<8x128xf32> -> vector<8x128xf32>
    %c0_3 = arith.constant 0 : index
    %c0_4 = arith.constant 0 : index
    %3 = vector.load %arg3[%c0_3, %c0_4] : memref<1x128xf32, #tpu.memory_space<vmem>>, vector<1x128xf32>
    %4 = vector.broadcast %3 : vector<1x128xf32> to vector<8x128xf32>
    %5 = arith.addf %2, %4 : vector<8x128xf32>
    %cst_5 = arith.constant 0.000000e+00 : f32
    %6 = vector.broadcast %cst_5 : f32 to vector<8x128xf32>
    %7 = arith.maximumf %5, %6 : vector<8x128xf32>
    %8 = arith.truncf %7 : vector<8x128xf32> to vector<8x128xbf16>
    %c0_6 = arith.constant 0 : index
    %c0_7 = arith.constant 0 : index
    %9 = vector.load %arg4[%c0_6, %c0_7] : memref<8x128xbf16, #tpu.memory_space<vmem>>, vector<8x128xbf16>
    tpu.vector_store %arg4[%c0_6, %c0_7], %8 {strides = array<i32>} : memref<8x128xbf16, #tpu.memory_space<vmem>>, vector<8x128xbf16>,
    return
  }
  func.func @transform_0(%arg0: i32) -> (i32, i32) {
    %c0_i32 = arith.constant 0 : i32
    %c0_i32_0 = arith.constant 0 : i32
    return %arg0, %c0_i32 : i32, i32
  }
  func.func @transform_1(%arg0: i32) -> (i32, i32) {
    %c0_i32 = arith.constant 0 : i32
    %c0_i32_0 = arith.constant 0 : i32
    %c0_i32_1 = arith.constant 0 : i32
    return %c0_i32, %c0_i32_0 : i32, i32
  }
  func.func @transform_2(%arg0: i32) -> (i32, i32) {
    %c0_i32 = arith.constant 0 : i32
    %c0_i32_0 = arith.constant 0 : i32
    %c0_i32_1 = arith.constant 0 : i32
    return %c0_i32, %c0_i32_0 : i32, i32
  }
  func.func @transform_3(%arg0: i32) -> (i32, i32) {
    %c0_i32 = arith.constant 0 : i32
    %c0_i32_0 = arith.constant 0 : i32
    return %arg0, %c0_i32 : i32, i32
  }
}

</mosaic_0001>

<llo_original>
// kernel: feature_extractor_forward.21
$region0: #{feature_extractor_forward.21}
  #allocation0 [shape = 'u32[]', space=smem, size = 0x4, offset = 0x4, fixed_abs, tag = 'smem constant byte address 0x4 - core index']
  #allocation1 [shape = 'u32[144,128]{1,0:T(1,128)}', space=vmem, size = 0x12000, scoped, tag = 'internal scratch']
  %s0 = inlined_call_operand.vmem [shape: bf16[2048,256], index: 0, kind: input, shape index: {}]
  %s1 = inlined_call_operand.vmem [shape: bf16[256,128], index: 1, kind: input, shape index: {}]
  %s2 = inlined_call_operand.vmem [shape: f32[1,128], index: 2, kind: input, shape index: {}]
  %s3 = inlined_call_operand.vmem [shape: bf16[2048,128], index: 3, kind: output, shape index: {}]
  %s4 = sld [smem:[#allocation0]]
  $region45: #{feature_extractor_forward.21} parent=0
    _
  %s6 = ssub.s32 1, %s4
  %s7 = scalar_select 0, %s6, %s4
  loop: start=0, step=1, limit=6
  $region2: #{feature_extractor_forward.21} parent=0 // loop_pre_header
    _
  $region3: #{feature_extractor_forward.21} parent=0 // loop_header
    %s9 = sphi 0, %s13
    %p10 = scmp.ge.s32.totalorder %s9, 6
    %s19 = sphi 0, %s21
    %s22 = sphi 0, %s19
    %s23 = sphi 0, %s22
    %s39 = sphi 0, %s23
    %s43 = sphi 0, %s43
    %s45 = sphi 0, %s43
    %s46 = sphi 0, %s45
    %s60 = sphi 0, %s46
    %s64 = sphi 0, %s64
    %s66 = sphi 0, %s64
    %s67 = sphi 0, %s66
    %s81 = sphi 0, %s67
    %s87 = sphi 0, %s89
    %s90 = sphi 0, %s87
    %s91 = sphi 0, %s90
    %s107 = sphi 0, %s91
  $region4: #{feature_extractor_forward.21} parent=0 // loop_header_branch
    %12 = sbr.rel (%p10) target = $region8
  $region5: #{feature_extractor_forward.21} parent=0 // loop_body
    %s14 = ssub.s32 %s9, 1
    %s15 = ssub.s32 %s9, 2
    %s16 = sadd.s32 %s9, 1
    %s17 = ssub.s32 %s9, %s16
    %p18 = scmp.eq.s32.totalorder %s17, 0
    %s20 = sadd.s32 %s19, 1
    %s21 = scalar_select %p18, %s19, %s20
    %p24 = pneg %p18
    %p25 = scmp.eq.s32.totalorder %s9, 3
    %p26 = por %p24, %p25
    %p27 = scmp.ne.s32.totalorder %s19, %s22
    %p28 = scmp.eq.s32.totalorder %s9, 0
    %p29 = por %p27, %p28
    %p30 = scmp.ne.s32.totalorder %s19, %s22
    %p31 = scmp.eq.s32.totalorder %s14, 3
    %p32 = por %p30, %p31
    %p33 = scmp.ne.s32.totalorder %s22, %s23
    %p34 = scmp.eq.s32.totalorder %s14, 0
    %p35 = por %p33, %p34
    %p36 = scmp.ne.s32.totalorder %s22, %s23
    %p37 = scmp.eq.s32.totalorder %s15, 3
    %p38 = por %p36, %p37
    %p40 = scmp.ne.s32.totalorder %s23, %s39
    %p41 = scmp.eq.s32.totalorder %s15, 0
    %p42 = por %p40, %p41
    %s44 = sadd.s32 %s43, 1
    %p47 = scmp.eq.s32.totalorder %s9, 3
    %p48 = scmp.ne.s32.totalorder %s43, %s45
    %p49 = scmp.eq.s32.totalorder %s9, 0
    %p50 = por %p48, %p49
    %p51 = scmp.ne.s32.totalorder %s43, %s45
    %p52 = scmp.eq.s32.totalorder %s14, 3
    %p53 = por %p51, %p52
    %p54 = scmp.ne.s32.totalorder %s45, %s46
    %p55 = scmp.eq.s32.totalorder %s14, 0
    %p56 = por %p54, %p55
    %p57 = scmp.ne.s32.totalorder %s45, %s46
    %p58 = scmp.eq.s32.totalorder %s15, 3
    %p59 = por %p57, %p58
    %p61 = scmp.ne.s32.totalorder %s46, %s60
    %p62 = scmp.eq.s32.totalorder %s15, 0
    %p63 = por %p61, %p62
    %s65 = sadd.s32 %s64, 1
    %p68 = scmp.eq.s32.totalorder %s9, 3
    %p69 = scmp.ne.s32.totalorder %s64, %s66
    %p70 = scmp.eq.s32.totalorder %s9, 0
    %p71 = por %p69, %p70
    %p72 = scmp.ne.s32.totalorder %s64, %s66
    %p73 = scmp.eq.s32.totalorder %s14, 3
    %p74 = por %p72, %p73
    %p75 = scmp.ne.s32.totalorder %s66, %s67
    %p76 = scmp.eq.s32.totalorder %s14, 0
    %p77 = por %p75, %p76
    %p78 = scmp.ne.s32.totalorder %s66, %s67
    %p79 = scmp.eq.s32.totalorder %s15, 3
    %p80 = por %p78, %p79
    %p82 = scmp.ne.s32.totalorder %s67, %s81
    %p83 = scmp.eq.s32.totalorder %s15, 0
    %p84 = por %p82, %p83
    %s85 = ssub.s32 %s9, %s16
    %p86 = scmp.eq.s32.totalorder %s85, 0
    %s88 = sadd.s32 %s87, 1
    %s89 = scalar_select %p86, %s87, %s88
    %p92 = pneg %p86
    %p93 = scmp.eq.s32.totalorder %s9, 3
    %p94 = por %p92, %p93
    %p95 = scmp.ne.s32.totalorder %s87, %s90
    %p96 = scmp.eq.s32.totalorder %s9, 0
    %p97 = por %p95, %p96
    %p98 = scmp.ne.s32.totalorder %s87, %s90
    %p99 = scmp.eq.s32.totalorder %s14, 3
    %p100 = por %p98, %p99
    %p101 = scmp.ne.s32.totalorder %s90, %s91
    %p102 = scmp.eq.s32.totalorder %s14, 0
    %p103 = por %p101, %p102
    %p104 = scmp.ne.s32.totalorder %s90, %s91
    %p105 = scmp.eq.s32.totalorder %s15, 3
    %p106 = por %p104, %p105
    %p108 = scmp.ne.s32.totalorder %s91, %s107
    %p109 = scmp.eq.s32.totalorder %s15, 0
    %p110 = por %p108, %p109
    %p111 = scmp.le.s32.totalorder 1, %s9
    %p112 = scmp.lt.s32.totalorder %s9, 5
    %p113 = pnand %p111, %p112
    %p114 = pneg %p113
    // Predicated region
    $region9: #{feature_extractor_forward.21} parent=5 // pred_check
      _
    $region10: #{feature_extractor_forward.21} parent=5 // pred_check_branch
      %116 = sbr.rel (%p113) target = $region12
    $region11: #{feature_extractor_forward.21} parent=5 // pred_region
      %s117 = ssub.s32 %s9, 1
      // Predicated region
      $region13: #{feature_extractor_forward.21} parent=11 // pred_check
        %p118 = pneg %p56
      $region14: #{feature_extractor_forward.21} parent=11 // pred_check_branch
        %120 = sbr.rel (%p118) target = $region16
      $region15: #{feature_extractor_forward.21} parent=11 // pred_region
        _
      $region16: #{feature_extractor_forward.21} parent=11 // pred_fallthru
        _
      // Predicated region
      $region17: #{feature_extractor_forward.21} parent=11 // pred_check
        %p121 = pneg %p77
      $region18: #{feature_extractor_forward.21} parent=11 // pred_check_branch
        %123 = sbr.rel (%p121) target = $region20
      $region19: #{feature_extractor_forward.21} parent=11 // pred_region
        _
      $region20: #{feature_extractor_forward.21} parent=11 // pred_fallthru
        _
    $region12: #{feature_extractor_forward.21} parent=5 // pred_fallthru
      _
    %p124 = scmp.lt.s32.totalorder %s9, 4
    // Predicated region
    $region21: #{feature_extractor_forward.21} parent=5 // pred_check
      %p125 = pneg %p124
    $region22: #{feature_extractor_forward.21} parent=5 // pred_check_branch
      %127 = sbr.rel (%p125) target = $region24
    $region23: #{feature_extractor_forward.21} parent=5 // pred_region
      // Predicated region
      $region25: #{feature_extractor_forward.21} parent=23 // pred_check
        %p128 = pneg %p29
      $region26: #{feature_extractor_forward.21} parent=23 // pred_check_branch
        %130 = sbr.rel (%p128) target = $region28
      $region27: #{feature_extractor_forward.21} parent=23 // pred_region
        %s131 = smul.u32 64, %s9
        %p132 = scmp.lt.s32.totalorder %s131, 255
        %s133 = scalar_select %p132, %s131, 255
        %s134 = smul.addr %s133, 2
        %s135 = smul.addr %s134, 4
        %s136 = scalar_lea.vmem %s0, %s135
        %s137 = smul.u32 64, %s9
      $region28: #{feature_extractor_forward.21} parent=23 // pred_fallthru
        _
    $region24: #{feature_extractor_forward.21} parent=5 // pred_fallthru
      _
    %p138 = scmp.le.s32.totalorder 1, %s9
    %p139 = scmp.lt.s32.totalorder %s9, 5
    %p140 = pnand %p138, %p139
    %p141 = pneg %p140
    // Predicated region
    $region29: #{feature_extractor_forward.21} parent=5 // pred_check
      _
    $region30: #{feature_extractor_forward.21} parent=5 // pred_check_branch
      %143 = sbr.rel (%p140) target = $region32
    $region31: #{feature_extractor_forward.21} parent=5 // pred_region
      %s144 = ssub.s32 %s9, 1
      %s145 = smul.u32 64, %s14
      %p146 = scmp.lt.s32.totalorder %s145, 255
      %s147 = scalar_select %p146, %s145, 255
      %s148 = smul.addr %s147, 2
      %s149 = smul.addr %s148, 4
      %s150 = scalar_lea.vmem %s0, %s149
      %p151 = pneg %p35
      %p152 = pneg %p32
      %p153 = pneg %p56
      %p154 = pneg %p53
      %p155 = pneg %p77
      %p156 = pneg %p74
      %p157 = pneg %p103
      %p158 = pneg %p100
      %s159 = smul.u32 64, %s14
      %p160 = scmp.lt.s32.totalorder %s159, 255
      %s161 = scalar_select %p160, %s159, 255
      %s162 = smul.addr %s161, 4
      %s163 = scalar_lea.vmem %s3, %s162
      %s164 = smul.u32 64, %s14
      %p165 = scmp.lt.s32.totalorder %s164, 255
      %s166 = scalar_select %p165, %s164, 255
      %s167 = smul.addr %s166, 2
      %s168 = smul.addr %s167, 4
      %s169 = scalar_lea.vmem %s0, %s168
      %s170 = smul.u32 64, %s14
      %s171 = smul.u32 64, %s14
      %p172 = scmp.lt.s32.totalorder %s171, 255
      %s173 = scalar_select %p172, %s171, 255
      %s174 = smul.addr %s173, 4
      %s175 = scalar_lea.vmem %s3, %s174
      %s176 = smul.u32 64, %s14
      %v178 = vld [vmem:[%s169] sm:$0xff]
      %v179 = vld [vmem:[%s169 + $0x8] sm:$0xff]
      %v180 = vld [vmem:[%s169 + $0x10] sm:$0xff]
      %v181 = vld [vmem:[%s169 + $0x18] sm:$0xff]
      %v182 = vld [vmem:[%s169 + $0x20] sm:$0xff]
      %v183 = vld [vmem:[%s169 + $0x28] sm:$0xff]
      %v184 = vld [vmem:[%s169 + $0x30] sm:$0xff]
      %v185 = vld [vmem:[%s169 + $0x38] sm:$0xff]
      %v186 = vld [vmem:[%s169 + $0x40] sm:$0xff]
      %v187 = vld [vmem:[%s169 + $0x48] sm:$0xff]
      %v188 = vld [vmem:[%s169 + $0x50] sm:$0xff]
      %v189 = vld [vmem:[%s169 + $0x58] sm:$0xff]
      %v190 = vld [vmem:[%s169 + $0x60] sm:$0xff]
      %v191 = vld [vmem:[%s169 + $0x68] sm:$0xff]
      %v192 = vld [vmem:[%s169 + $0x70] sm:$0xff]
      %v193 = vld [vmem:[%s169 + $0x78] sm:$0xff]
      %v194 = vld [vmem:[%s169 + $0x80] sm:$0xff]
      %v195 = vld [vmem:[%s169 + $0x88] sm:$0xff]
      %v196 = vld [vmem:[%s169 + $0x90] sm:$0xff]
      %v197 = vld [vmem:[%s169 + $0x98] sm:$0xff]
      %v198 = vld [vmem:[%s169 + $0xa0] sm:$0xff]
      %v199 = vld [vmem:[%s169 + $0xa8] sm:$0xff]
      %v200 = vld [vmem:[%s169 + $0xb0] sm:$0xff]
      %v201 = vld [vmem:[%s169 + $0xb8] sm:$0xff]
      %v202 = vld [vmem:[%s169 + $0xc0] sm:$0xff]
      %v203 = vld [vmem:[%s169 + $0xc8] sm:$0xff]
      %v204 = vld [vmem:[%s169 + $0xd0] sm:$0xff]
      %v205 = vld [vmem:[%s169 + $0xd8] sm:$0xff]
      %v206 = vld [vmem:[%s169 + $0xe0] sm:$0xff]
      %v207 = vld [vmem:[%s169 + $0xe8] sm:$0xff]
      %v208 = vld [vmem:[%s169 + $0xf0] sm:$0xff]
      %v209 = vld [vmem:[%s169 + $0xf8] sm:$0xff]
      %v210 = vld [vmem:[%s169 + $0x100] sm:$0xff]
      %v211 = vld [vmem:[%s169 + $0x108] sm:$0xff]
      %v212 = vld [vmem:[%s169 + $0x110] sm:$0xff]
      %v213 = vld [vmem:[%s169 + $0x118] sm:$0xff]
      %v214 = vld [vmem:[%s169 + $0x120] sm:$0xff]
      %v215 = vld [vmem:[%s169 + $0x128] sm:$0xff]
      %v216 = vld [vmem:[%s169 + $0x130] sm:$0xff]
      %v217 = vld [vmem:[%s169 + $0x138] sm:$0xff]
      %v218 = vld [vmem:[%s169 + $0x140] sm:$0xff]
      %v219 = vld [vmem:[%s169 + $0x148] sm:$0xff]
      %v220 = vld [vmem:[%s169 + $0x150] sm:$0xff]
      %v221 = vld [vmem:[%s169 + $0x158] sm:$0xff]
      %v222 = vld [vmem:[%s169 + $0x160] sm:$0xff]
      %v223 = vld [vmem:[%s169 + $0x168] sm:$0xff]
      %v224 = vld [vmem:[%s169 + $0x170] sm:$0xff]
      %v225 = vld [vmem:[%s169 + $0x178] sm:$0xff]
      %v226 = vld [vmem:[%s169 + $0x180] sm:$0xff]
      %v227 = vld [vmem:[%s169 + $0x188] sm:$0xff]
      %v228 = vld [vmem:[%s169 + $0x190] sm:$0xff]
      %v229 = vld [vmem:[%s169 + $0x198] sm:$0xff]
      %v230 = vld [vmem:[%s169 + $0x1a0] sm:$0xff]
      %v231 = vld [vmem:[%s169 + $0x1a8] sm:$0xff]
      %v232 = vld [vmem:[%s169 + $0x1b0] sm:$0xff]
      %v233 = vld [vmem:[%s169 + $0x1b8] sm:$0xff]
      %v234 = vld [vmem:[%s169 + $0x1c0] sm:$0xff]
      %v235 = vld [vmem:[%s169 + $0x1c8] sm:$0xff]
      %v236 = vld [vmem:[%s169 + $0x1d0] sm:$0xff]
      %v237 = vld [vmem:[%s169 + $0x1d8] sm:$0xff]
      %v238 = vld [vmem:[%s169 + $0x1e0] sm:$0xff]
      %v239 = vld [vmem:[%s169 + $0x1e8] sm:$0xff]
      %v240 = vld [vmem:[%s169 + $0x1f0] sm:$0xff]
      %v241 = vld [vmem:[%s169 + $0x1f8] sm:$0xff]
      %v242 = vld [vmem:[%s1] sm:$0xf]
      %v243 = vld [vmem:[%s1 + $0x4] sm:$0xf]
      %v244 = vld [vmem:[%s1 + $0x8] sm:$0xf]
      %v245 = vld [vmem:[%s1 + $0xc] sm:$0xf]
      %v246 = vld [vmem:[%s1 + $0x10] sm:$0xf]
      %v247 = vld [vmem:[%s1 + $0x14] sm:$0xf]
      %v248 = vld [vmem:[%s1 + $0x18] sm:$0xf]
      %v249 = vld [vmem:[%s1 + $0x1c] sm:$0xf]
      %v250 = vld [vmem:[%s1 + $0x20] sm:$0xf]
      %v251 = vld [vmem:[%s1 + $0x24] sm:$0xf]
      %v252 = vld [vmem:[%s1 + $0x28] sm:$0xf]
      %v253 = vld [vmem:[%s1 + $0x2c] sm:$0xf]
      %v254 = vld [vmem:[%s1 + $0x30] sm:$0xf]
      %v255 = vld [vmem:[%s1 + $0x34] sm:$0xf]
      %v256 = vld [vmem:[%s1 + $0x38] sm:$0xf]
      %v257 = vld [vmem:[%s1 + $0x3c] sm:$0xf]
      %v258 = vld [vmem:[%s1 + $0x40] sm:$0xf]
      %v259 = vld [vmem:[%s1 + $0x44] sm:$0xf]
      %v260 = vld [vmem:[%s1 + $0x48] sm:$0xf]
      %v261 = vld [vmem:[%s1 + $0x4c] sm:$0xf]
      %v262 = vld [vmem:[%s1 + $0x50] sm:$0xf]
      %v263 = vld [vmem:[%s1 + $0x54] sm:$0xf]
      %v264 = vld [vmem:[%s1 + $0x58] sm:$0xf]
      %v265 = vld [vmem:[%s1 + $0x5c] sm:$0xf]
      %v266 = vld [vmem:[%s1 + $0x60] sm:$0xf]
      %v267 = vld [vmem:[%s1 + $0x64] sm:$0xf]
      %v268 = vld [vmem:[%s1 + $0x68] sm:$0xf]
      %v269 = vld [vmem:[%s1 + $0x6c] sm:$0xf]
      %v270 = vld [vmem:[%s1 + $0x70] sm:$0xf]
      %v271 = vld [vmem:[%s1 + $0x74] sm:$0xf]
      %v272 = vld [vmem:[%s1 + $0x78] sm:$0xf]
      %v273 = vld [vmem:[%s1 + $0x7c] sm:$0xf]
      %v274 = vld [vmem:[%s2] sm:$0x1]
      %v276 = vlaneseq
      %v277 = vshrl.u32 %v276, 7
      %v278 = vsub.s32 0, %v277
      %v279 = vrot.slane %v274, %v278
      %v345 = vunpack.c.l.b16 %v178
      %v346 = vunpack.c.h.b16 %v178
      %v347 = vunpack.c.l.b16 %v179
      %v348 = vunpack.c.h.b16 %v179
      %v349 = vunpack.c.l.b16 %v180
      %v350 = vunpack.c.h.b16 %v180
      %v351 = vunpack.c.l.b16 %v181
      %v352 = vunpack.c.h.b16 %v181
      %v353 = vunpack.c.l.b16 %v182
      %v354 = vunpack.c.h.b16 %v182
      %v355 = vunpack.c.l.b16 %v183
      %v356 = vunpack.c.h.b16 %v183
      %v357 = vunpack.c.l.b16 %v184
      %v358 = vunpack.c.h.b16 %v184
      %v359 = vunpack.c.l.b16 %v185
      %v360 = vunpack.c.h.b16 %v185
      %v361 = vunpack.c.l.b16 %v186
      %v362 = vunpack.c.h.b16 %v186
      %v363 = vunpack.c.l.b16 %v187
      %v364 = vunpack.c.h.b16 %v187
      %v365 = vunpack.c.l.b16 %v188
      %v366 = vunpack.c.h.b16 %v188
      %v367 = vunpack.c.l.b16 %v189
      %v368 = vunpack.c.h.b16 %v189
      %v369 = vunpack.c.l.b16 %v190
      %v370 = vunpack.c.h.b16 %v190
      %v371 = vunpack.c.l.b16 %v191
      %v372 = vunpack.c.h.b16 %v191
      %v373 = vunpack.c.l.b16 %v192
      %v374 = vunpack.c.h.b16 %v192
      %v375 = vunpack.c.l.b16 %v193
      %v376 = vunpack.c.h.b16 %v193
      %v377 = vunpack.c.l.b16 %v194
      %v378 = vunpack.c.h.b16 %v194
      %v379 = vunpack.c.l.b16 %v195
      %v380 = vunpack.c.h.b16 %v195
      %v381 = vunpack.c.l.b16 %v196
      %v382 = vunpack.c.h.b16 %v196
      %v383 = vunpack.c.l.b16 %v197
      %v384 = vunpack.c.h.b16 %v197
      %v385 = vunpack.c.l.b16 %v198
      %v386 = vunpack.c.h.b16 %v198
      %v387 = vunpack.c.l.b16 %v199
      %v388 = vunpack.c.h.b16 %v199
      %v389 = vunpack.c.l.b16 %v200
      %v390 = vunpack.c.h.b16 %v200
      %v391 = vunpack.c.l.b16 %v201
      %v392 = vunpack.c.h.b16 %v201
      %v393 = vunpack.c.l.b16 %v202
      %v394 = vunpack.c.h.b16 %v202
      %v395 = vunpack.c.l.b16 %v203
      %v396 = vunpack.c.h.b16 %v203
      %v397 = vunpack.c.l.b16 %v204
      %v398 = vunpack.c.h.b16 %v204
      %v399 = vunpack.c.l.b16 %v205
      %v400 = vunpack.c.h.b16 %v205
      %v401 = vunpack.c.l.b16 %v206
      %v402 = vunpack.c.h.b16 %v206
      %v403 = vunpack.c.l.b16 %v207
      %v404 = vunpack.c.h.b16 %v207
      %v405 = vunpack.c.l.b16 %v208
      %v406 = vunpack.c.h.b16 %v208
      %v407 = vunpack.c.l.b16 %v209
      %v408 = vunpack.c.h.b16 %v209
      %v409 = vunpack.c.l.b16 %v210
      %v410 = vunpack.c.h.b16 %v210
      %v411 = vunpack.c.l.b16 %v211
      %v412 = vunpack.c.h.b16 %v211
      %v413 = vunpack.c.l.b16 %v212
      %v414 = vunpack.c.h.b16 %v212
      %v415 = vunpack.c.l.b16 %v213
      %v416 = vunpack.c.h.b16 %v213
      %v417 = vunpack.c.l.b16 %v214
      %v418 = vunpack.c.h.b16 %v214
      %v419 = vunpack.c.l.b16 %v215
      %v420 = vunpack.c.h.b16 %v215
      %v421 = vunpack.c.l.b16 %v216
      %v422 = vunpack.c.h.b16 %v216
      %v423 = vunpack.c.l.b16 %v217
      %v424 = vunpack.c.h.b16 %v217
      %v425 = vunpack.c.l.b16 %v218
      %v426 = vunpack.c.h.b16 %v218
      %v427 = vunpack.c.l.b16 %v219
      %v428 = vunpack.c.h.b16 %v219
      %v429 = vunpack.c.l.b16 %v220
      %v430 = vunpack.c.h.b16 %v220
      %v431 = vunpack.c.l.b16 %v221
      %v432 = vunpack.c.h.b16 %v221
      %v433 = vunpack.c.l.b16 %v222
      %v434 = vunpack.c.h.b16 %v222
      %v435 = vunpack.c.l.b16 %v223
      %v436 = vunpack.c.h.b16 %v223
      %v437 = vunpack.c.l.b16 %v224
      %v438 = vunpack.c.h.b16 %v224
      %v439 = vunpack.c.l.b16 %v225
      %v440 = vunpack.c.h.b16 %v225
      %v441 = vunpack.c.l.b16 %v226
      %v442 = vunpack.c.h.b16 %v226
      %v443 = vunpack.c.l.b16 %v227
      %v444 = vunpack.c.h.b16 %v227
      %v445 = vunpack.c.l.b16 %v228
      %v446 = vunpack.c.h.b16 %v228
      %v447 = vunpack.c.l.b16 %v229
      %v448 = vunpack.c.h.b16 %v229
      %v449 = vunpack.c.l.b16 %v230
      %v450 = vunpack.c.h.b16 %v230
      %v451 = vunpack.c.l.b16 %v231
      %v452 = vunpack.c.h.b16 %v231
      %v453 = vunpack.c.l.b16 %v232
      %v454 = vunpack.c.h.b16 %v232
      %v455 = vunpack.c.l.b16 %v233
      %v456 = vunpack.c.h.b16 %v233
      %v457 = vunpack.c.l.b16 %v234
      %v458 = vunpack.c.h.b16 %v234
      %v459 = vunpack.c.l.b16 %v235
      %v460 = vunpack.c.h.b16 %v235
      %v461 = vunpack.c.l.b16 %v236
      %v462 = vunpack.c.h.b16 %v236
      %v463 = vunpack.c.l.b16 %v237
      %v464 = vunpack.c.h.b16 %v237
      %v465 = vunpack.c.l.b16 %v238
      %v466 = vunpack.c.h.b16 %v238
      %v467 = vunpack.c.l.b16 %v239
      %v468 = vunpack.c.h.b16 %v239
      %v469 = vunpack.c.l.b16 %v240
      %v470 = vunpack.c.h.b16 %v240
      %v471 = vunpack.c.l.b16 %v241
      %v472 = vunpack.c.h.b16 %v241
      %v473 = vpack.c.b16 %v347, %v345
      %v474 = vpack.c.b16 %v348, %v346
      %v475 = vpack.c.b16 %v351, %v349
      %v476 = vpack.c.b16 %v352, %v350
      %v477 = vpack.c.b16 %v355, %v353
      %v478 = vpack.c.b16 %v356, %v354
      %v479 = vpack.c.b16 %v359, %v357
      %v480 = vpack.c.b16 %v360, %v358
      %v481 = vpack.c.b16 %v363, %v361
      %v482 = vpack.c.b16 %v364, %v362
      %v483 = vpack.c.b16 %v367, %v365
      %v484 = vpack.c.b16 %v368, %v366
      %v485 = vpack.c.b16 %v371, %v369
      %v486 = vpack.c.b16 %v372, %v370
      %v487 = vpack.c.b16 %v375, %v373
      %v488 = vpack.c.b16 %v376, %v374
      %v489 = vpack.c.b16 %v379, %v377
      %v490 = vpack.c.b16 %v380, %v378
      %v491 = vpack.c.b16 %v383, %v381
      %v492 = vpack.c.b16 %v384, %v382
      %v493 = vpack.c.b16 %v387, %v385
      %v494 = vpack.c.b16 %v388, %v386
      %v495 = vpack.c.b16 %v391, %v389
      %v496 = vpack.c.b16 %v392, %v390
      %v497 = vpack.c.b16 %v395, %v393
      %v498 = vpack.c.b16 %v396, %v394
      %v499 = vpack.c.b16 %v399, %v397
      %v500 = vpack.c.b16 %v400, %v398
      %v501 = vpack.c.b16 %v403, %v401
      %v502 = vpack.c.b16 %v404, %v402
      %v503 = vpack.c.b16 %v407, %v405
      %v504 = vpack.c.b16 %v408, %v406
      %v505 = vpack.c.b16 %v411, %v409
      %v506 = vpack.c.b16 %v412, %v410
      %v507 = vpack.c.b16 %v415, %v413
      %v508 = vpack.c.b16 %v416, %v414
      %v509 = vpack.c.b16 %v419, %v417
      %v510 = vpack.c.b16 %v420, %v418
      %v511 = vpack.c.b16 %v423, %v421
      %v512 = vpack.c.b16 %v424, %v422
      %v513 = vpack.c.b16 %v427, %v425
      %v514 = vpack.c.b16 %v428, %v426
      %v515 = vpack.c.b16 %v431, %v429
      %v516 = vpack.c.b16 %v432, %v430
      %v517 = vpack.c.b16 %v435, %v433
      %v518 = vpack.c.b16 %v436, %v434
      %v519 = vpack.c.b16 %v439, %v437
      %v520 = vpack.c.b16 %v440, %v438
      %v521 = vpack.c.b16 %v443, %v441
      %v522 = vpack.c.b16 %v444, %v442
      %v523 = vpack.c.b16 %v447, %v445
      %v524 = vpack.c.b16 %v448, %v446
      %v525 = vpack.c.b16 %v451, %v449
      %v526 = vpack.c.b16 %v452, %v450
      %v527 = vpack.c.b16 %v455, %v453
      %v528 = vpack.c.b16 %v456, %v454
      %v529 = vpack.c.b16 %v459, %v457
      %v530 = vpack.c.b16 %v460, %v458
      %v531 = vpack.c.b16 %v463, %v461
      %v532 = vpack.c.b16 %v464, %v462
      %v533 = vpack.c.b16 %v467, %v465
      %v534 = vpack.c.b16 %v468, %v466
      %v535 = vpack.c.b16 %v471, %v469
      %v536 = vpack.c.b16 %v472, %v470
      %v633 = vunpack.c.l.b16 %v242
      %v634 = vunpack.c.l.b16 %v243
      %v635 = vunpack.c.l.b16 %v244
      %v636 = vunpack.c.l.b16 %v245
      %v637 = vunpack.c.l.b16 %v246
      %v638 = vunpack.c.l.b16 %v247
      %v639 = vunpack.c.l.b16 %v248
      %v640 = vunpack.c.l.b16 %v249
      %v641 = vunpack.c.l.b16 %v250
      %v642 = vunpack.c.l.b16 %v251
      %v643 = vunpack.c.l.b16 %v252
      %v644 = vunpack.c.l.b16 %v253
      %v645 = vunpack.c.l.b16 %v254
      %v646 = vunpack.c.l.b16 %v255
      %v647 = vunpack.c.l.b16 %v256
      %v648 = vunpack.c.l.b16 %v257
      %v649 = vunpack.c.l.b16 %v258
      %v650 = vunpack.c.l.b16 %v259
      %v651 = vunpack.c.l.b16 %v260
      %v652 = vunpack.c.l.b16 %v261
      %v653 = vunpack.c.l.b16 %v262
      %v654 = vunpack.c.l.b16 %v263
      %v655 = vunpack.c.l.b16 %v264
      %v656 = vunpack.c.l.b16 %v265
      %v657 = vunpack.c.l.b16 %v266
      %v658 = vunpack.c.l.b16 %v267
      %v659 = vunpack.c.l.b16 %v268
      %v660 = vunpack.c.l.b16 %v269
      %v661 = vunpack.c.l.b16 %v270
      %v662 = vunpack.c.l.b16 %v271
      %v663 = vunpack.c.l.b16 %v272
      %v664 = vunpack.c.l.b16 %v273
      %v665 = vpack.c.b16 %v634, %v633
      %v666 = vpack.c.b16 %v636, %v635
      %v667 = vpack.c.b16 %v638, %v637
      %v668 = vpack.c.b16 %v640, %v639
      %v669 = vpack.c.b16 %v642, %v641
      %v670 = vpack.c.b16 %v644, %v643
      %v671 = vpack.c.b16 %v646, %v645
      %v672 = vpack.c.b16 %v648, %v647
      %v673 = vpack.c.b16 %v650, %v649
      %v674 = vpack.c.b16 %v652, %v651
      %v675 = vpack.c.b16 %v654, %v653
      %v676 = vpack.c.b16 %v656, %v655
      %v677 = vpack.c.b16 %v658, %v657
      %v678 = vpack.c.b16 %v660, %v659
      %v679 = vpack.c.b16 %v662, %v661
      %v680 = vpack.c.b16 %v664, %v663
      %697 = vmatprep.subr.bf16.mxu0 0
      %698 = vmatpush1.bf16.msra.mxu0 %v672
      %699 = vmatprep.subr.bf16.mxu0 0
      %700 = vmatpush1.bf16.msra.mxu0 %v671
      %701 = vmatprep.subr.bf16.mxu0 0
      %702 = vmatpush1.bf16.msra.mxu0 %v670
      %703 = vmatprep.subr.bf16.mxu0 0
      %704 = vmatpush1.bf16.msra.mxu0 %v669
      %705 = vmatprep.subr.bf16.mxu0 0
      %706 = vmatpush1.bf16.msra.mxu0 %v668
      %707 = vmatprep.subr.bf16.mxu0 0
      %708 = vmatpush1.bf16.msra.mxu0 %v667
      %709 = vmatprep.subr.bf16.mxu0 0
      %710 = vmatpush1.bf16.msra.mxu0 %v666
      %711 = vmatprep.subr.bf16.mxu0 0
      %712 = vmatpush1.bf16.msra.mxu0 %v665
      %713 = vmatprep.subr.bf16.mxu0 0
      %714 = vmatpush2.bf16.msra.mxu0 %v680
      %715 = vmatprep.subr.bf16.mxu0 0
      %716 = vmatpush2.bf16.msra.mxu0 %v679
      %717 = vmatprep.subr.bf16.mxu0 0
      %718 = vmatpush2.bf16.msra.mxu0 %v678
      %719 = vmatprep.subr.bf16.mxu0 0
      %720 = vmatpush2.bf16.msra.mxu0 %v677
      %721 = vmatprep.subr.bf16.mxu0 0
      %722 = vmatpush2.bf16.msra.mxu0 %v676
      %723 = vmatprep.subr.bf16.mxu0 0
      %724 = vmatpush2.bf16.msra.mxu0 %v675
      %725 = vmatprep.subr.bf16.mxu0 0
      %726 = vmatpush2.bf16.msra.mxu0 %v674
      %727 = vmatprep.subr.bf16.mxu0 0
      %728 = vmatpush2.bf16.msra.mxu0 %v673
      %729 = vmatprep.mubr.bf16.mxu0 %v474
      %730 = vmatmul.mubr.bf16.gmra.mxu0 %v473
      %v731 = vpop.f32.mrf.mxu0
      %v732 = vadd.f32 %v279, %v731
      %v733 = vpop.f32.mrf.mxu0
      %v734 = vpop.f32.mrf.mxu0
      %v735 = vadd.f32 %v279, %v734
      %v736 = vpop.f32.mrf.mxu0
      %737 = vmatprep.mubr.bf16.mxu0 %v476
      %738 = vmatmul.mubr.bf16.gmra.mxu0 %v475
      %v739 = vpop.f32.mrf.mxu0
      %v740 = vadd.f32 %v279, %v739
      %v741 = vpop.f32.mrf.mxu0
      %v742 = vpop.f32.mrf.mxu0
      %v743 = vadd.f32 %v279, %v742
      %v744 = vpop.f32.mrf.mxu0
      %745 = vmatprep.mubr.bf16.mxu0 %v478
      %746 = vmatmul.mubr.bf16.gmra.mxu0 %v477
      %v747 = vpop.f32.mrf.mxu0
      %v748 = vadd.f32 %v279, %v747
      %v749 = vpop.f32.mrf.mxu0
      %v750 = vpop.f32.mrf.mxu0
      %v751 = vadd.f32 %v279, %v750
      %v752 = vpop.f32.mrf.mxu0
      %753 = vmatprep.mubr.bf16.mxu0 %v480
      %754 = vmatmul.mubr.bf16.gmra.mxu0 %v479
      %v755 = vpop.f32.mrf.mxu0
      %v756 = vadd.f32 %v279, %v755
      %v757 = vpop.f32.mrf.mxu0
      %v758 = vpop.f32.mrf.mxu0
      %v759 = vadd.f32 %v279, %v758
      %v760 = vpop.f32.mrf.mxu0
      %761 = vmatprep.mubr.bf16.mxu0 %v482
      %762 = vmatmul.mubr.bf16.gmra.mxu0 %v481
      %v763 = vpop.f32.mrf.mxu0
      %v764 = vadd.f32 %v279, %v763
      %v765 = vpop.f32.mrf.mxu0
      %v766 = vpop.f32.mrf.mxu0
      %v767 = vadd.f32 %v279, %v766
      %v768 = vpop.f32.mrf.mxu0
      %769 = vmatprep.mubr.bf16.mxu0 %v484
      %770 = vmatmul.mubr.bf16.gmra.mxu0 %v483
      %v771 = vpop.f32.mrf.mxu0
      %v772 = vadd.f32 %v279, %v771
      %v773 = vpop.f32.mrf.mxu0
      %v774 = vpop.f32.mrf.mxu0
      %v775 = vadd.f32 %v279, %v774
      %v776 = vpop.f32.mrf.mxu0
      %777 = vmatprep.mubr.bf16.mxu0 %v486
      %778 = vmatmul.mubr.bf16.gmra.mxu0 %v485
      %v779 = vpop.f32.mrf.mxu0
      %v780 = vadd.f32 %v279, %v779
      %v781 = vpop.f32.mrf.mxu0
      %v782 = vpop.f32.mrf.mxu0
      %v783 = vadd.f32 %v279, %v782
      %v784 = vpop.f32.mrf.mxu0
      %785 = vmatprep.mubr.bf16.mxu0 %v488
      %786 = vmatmul.mubr.bf16.gmra.mxu0 %v487
      %v787 = vpop.f32.mrf.mxu0
      %v788 = vadd.f32 %v279, %v787
      %v789 = vpop.f32.mrf.mxu0
      %v790 = vpop.f32.mrf.mxu0
      %v791 = vadd.f32 %v279, %v790
      %v792 = vpop.f32.mrf.mxu0
      %793 = vmatprep.mubr.bf16.mxu0 %v490
      %794 = vmatmul.mubr.bf16.gmra.mxu0 %v489
      %v795 = vpop.f32.mrf.mxu0
      %v796 = vadd.f32 %v279, %v795
      %v797 = vpop.f32.mrf.mxu0
      %v798 = vpop.f32.mrf.mxu0
      %v799 = vadd.f32 %v279, %v798
      %v800 = vpop.f32.mrf.mxu0
      %801 = vmatprep.mubr.bf16.mxu0 %v492
      %802 = vmatmul.mubr.bf16.gmra.mxu0 %v491
      %v803 = vpop.f32.mrf.mxu0
      %v804 = vadd.f32 %v279, %v803
      %v805 = vpop.f32.mrf.mxu0
      %v806 = vpop.f32.mrf.mxu0
      %v807 = vadd.f32 %v279, %v806
      %v808 = vpop.f32.mrf.mxu0
      %809 = vmatprep.mubr.bf16.mxu0 %v494
      %810 = vmatmul.mubr.bf16.gmra.mxu0 %v493
      %v811 = vpop.f32.mrf.mxu0
      %v812 = vadd.f32 %v279, %v811
      %v813 = vpop.f32.mrf.mxu0
      %v814 = vpop.f32.mrf.mxu0
      %v815 = vadd.f32 %v279, %v814
      %v816 = vpop.f32.mrf.mxu0
      %817 = vmatprep.mubr.bf16.mxu0 %v496
      %818 = vmatmul.mubr.bf16.gmra.mxu0 %v495
      %v819 = vpop.f32.mrf.mxu0
      %v820 = vadd.f32 %v279, %v819
      %v821 = vpop.f32.mrf.mxu0
      %v822 = vpop.f32.mrf.mxu0
      %v823 = vadd.f32 %v279, %v822
      %v824 = vpop.f32.mrf.mxu0
      %825 = vmatprep.mubr.bf16.mxu0 %v498
      %826 = vmatmul.mubr.bf16.gmra.mxu0 %v497
      %v827 = vpop.f32.mrf.mxu0
      %v828 = vadd.f32 %v279, %v827
      %v829 = vpop.f32.mrf.mxu0
      %v830 = vpop.f32.mrf.mxu0
      %v831 = vadd.f32 %v279, %v830
      %v832 = vpop.f32.mrf.mxu0
      %833 = vmatprep.mubr.bf16.mxu0 %v500
      %834 = vmatmul.mubr.bf16.gmra.mxu0 %v499
      %v835 = vpop.f32.mrf.mxu0
      %v836 = vadd.f32 %v279, %v835
      %v837 = vpop.f32.mrf.mxu0
      %v838 = vpop.f32.mrf.mxu0
      %v839 = vadd.f32 %v279, %v838
      %v840 = vpop.f32.mrf.mxu0
      %841 = vmatprep.mubr.bf16.mxu0 %v502
      %842 = vmatmul.mubr.bf16.gmra.mxu0 %v501
      %v843 = vpop.f32.mrf.mxu0
      %v844 = vadd.f32 %v279, %v843
      %v845 = vpop.f32.mrf.mxu0
      %v846 = vpop.f32.mrf.mxu0
      %v847 = vadd.f32 %v279, %v846
      %v848 = vpop.f32.mrf.mxu0
      %849 = vmatprep.mubr.bf16.mxu0 %v504
      %850 = vmatmul.mubr.bf16.gmra.mxu0 %v503
      %v851 = vpop.f32.mrf.mxu0
      %v852 = vadd.f32 %v279, %v851
      %v853 = vpop.f32.mrf.mxu0
      %v854 = vpop.f32.mrf.mxu0
      %v855 = vadd.f32 %v279, %v854
      %v856 = vpop.f32.mrf.mxu0
      %857 = vmatprep.mubr.bf16.mxu0 %v506
      %858 = vmatmul.mubr.bf16.gmra.mxu0 %v505
      %v859 = vpop.f32.mrf.mxu0
      %v860 = vadd.f32 %v279, %v859
      %v861 = vpop.f32.mrf.mxu0
      %v862 = vpop.f32.mrf.mxu0
      %v863 = vadd.f32 %v279, %v862
      %v864 = vpop.f32.mrf.mxu0
      %865 = vmatprep.mubr.bf16.mxu0 %v508
      %866 = vmatmul.mubr.bf16.gmra.mxu0 %v507
      %v867 = vpop.f32.mrf.mxu0
      %v868 = vadd.f32 %v279, %v867
      %v869 = vpop.f32.mrf.mxu0
      %v870 = vpop.f32.mrf.mxu0
      %v871 = vadd.f32 %v279, %v870
      %v872 = vpop.f32.mrf.mxu0
      %873 = vmatprep.mubr.bf16.mxu0 %v510
      %874 = vmatmul.mubr.bf16.gmra.mxu0 %v509
      %v875 = vpop.f32.mrf.mxu0
      %v876 = vadd.f32 %v279, %v875
      %v877 = vpop.f32.mrf.mxu0
      %v878 = vpop.f32.mrf.mxu0
      %v879 = vadd.f32 %v279, %v878
      %v880 = vpop.f32.mrf.mxu0
      %881 = vmatprep.mubr.bf16.mxu0 %v512
      %882 = vmatmul.mubr.bf16.gmra.mxu0 %v511
      %v883 = vpop.f32.mrf.mxu0
      %v884 = vadd.f32 %v279, %v883
      %v885 = vpop.f32.mrf.mxu0
      %v886 = vpop.f32.mrf.mxu0
      %v887 = vadd.f32 %v279, %v886
      %v888 = vpop.f32.mrf.mxu0
      %889 = vmatprep.mubr.bf16.mxu0 %v514
      %890 = vmatmul.mubr.bf16.gmra.mxu0 %v513
      %v891 = vpop.f32.mrf.mxu0
      %v892 = vadd.f32 %v279, %v891
      %v893 = vpop.f32.mrf.mxu0
      %v894 = vpop.f32.mrf.mxu0
      %v895 = vadd.f32 %v279, %v894
      %v896 = vpop.f32.mrf.mxu0
      %897 = vmatprep.mubr.bf16.mxu0 %v516
      %898 = vmatmul.mubr.bf16.gmra.mxu0 %v515
      %v899 = vpop.f32.mrf.mxu0
      %v900 = vadd.f32 %v279, %v899
      %v901 = vpop.f32.mrf.mxu0
      %v902 = vpop.f32.mrf.mxu0
      %v903 = vadd.f32 %v279, %v902
      %v904 = vpop.f32.mrf.mxu0
      %905 = vmatprep.mubr.bf16.mxu0 %v518
      %906 = vmatmul.mubr.bf16.gmra.mxu0 %v517
      %v907 = vpop.f32.mrf.mxu0
      %v908 = vadd.f32 %v279, %v907
      %v909 = vpop.f32.mrf.mxu0
      %v910 = vpop.f32.mrf.mxu0
      %v911 = vadd.f32 %v279, %v910
      %v912 = vpop.f32.mrf.mxu0
      %913 = vmatprep.mubr.bf16.mxu0 %v520
      %914 = vmatmul.mubr.bf16.gmra.mxu0 %v519
      %v915 = vpop.f32.mrf.mxu0
      %v916 = vadd.f32 %v279, %v915
      %v917 = vpop.f32.mrf.mxu0
      %v918 = vpop.f32.mrf.mxu0
      %v919 = vadd.f32 %v279, %v918
      %v920 = vpop.f32.mrf.mxu0
      %921 = vmatprep.mubr.bf16.mxu0 %v522
      %922 = vmatmul.mubr.bf16.gmra.mxu0 %v521
      %v923 = vpop.f32.mrf.mxu0
      %v924 = vadd.f32 %v279, %v923
      %v925 = vpop.f32.mrf.mxu0
      %v926 = vpop.f32.mrf.mxu0
      %v927 = vadd.f32 %v279, %v926
      %v928 = vpop.f32.mrf.mxu0
      %929 = vmatprep.mubr.bf16.mxu0 %v524
      %930 = vmatmul.mubr.bf16.gmra.mxu0 %v523
      %v931 = vpop.f32.mrf.mxu0
      %v932 = vadd.f32 %v279, %v931
      %v933 = vpop.f32.mrf.mxu0
      %v934 = vpop.f32.mrf.mxu0
      %v935 = vadd.f32 %v279, %v934
      %v936 = vpop.f32.mrf.mxu0
      %937 = vmatprep.mubr.bf16.mxu0 %v526
      %938 = vmatmul.mubr.bf16.gmra.mxu0 %v525
      %v939 = vpop.f32.mrf.mxu0
      %v940 = vadd.f32 %v279, %v939
      %v941 = vpop.f32.mrf.mxu0
      %v942 = vpop.f32.mrf.mxu0
      %v943 = vadd.f32 %v279, %v942
      %v944 = vpop.f32.mrf.mxu0
      %945 = vmatprep.mubr.bf16.mxu0 %v528
      %946 = vmatmul.mubr.bf16.gmra.mxu0 %v527
      %v947 = vpop.f32.mrf.mxu0
      %v948 = vadd.f32 %v279, %v947
      %v949 = vpop.f32.mrf.mxu0
      %v950 = vpop.f32.mrf.mxu0
      %v951 = vadd.f32 %v279, %v950
      %v952 = vpop.f32.mrf.mxu0
      %953 = vmatprep.mubr.bf16.mxu0 %v530
      %954 = vmatmul.mubr.bf16.gmra.mxu0 %v529
      %v955 = vpop.f32.mrf.mxu0
      %v956 = vadd.f32 %v279, %v955
      %v957 = vpop.f32.mrf.mxu0
      %v958 = vpop.f32.mrf.mxu0
      %v959 = vadd.f32 %v279, %v958
      %v960 = vpop.f32.mrf.mxu0
      %961 = vmatprep.mubr.bf16.mxu0 %v532
      %962 = vmatmul.mubr.bf16.gmra.mxu0 %v531
      %v963 = vpop.f32.mrf.mxu0
      %v964 = vadd.f32 %v279, %v963
      %v965 = vpop.f32.mrf.mxu0
      %v966 = vpop.f32.mrf.mxu0
      %v967 = vadd.f32 %v279, %v966
      %v968 = vpop.f32.mrf.mxu0
      %969 = vmatprep.mubr.bf16.mxu0 %v534
      %970 = vmatmul.mubr.bf16.gmra.mxu0 %v533
      %v971 = vpop.f32.mrf.mxu0
      %v972 = vadd.f32 %v279, %v971
      %v973 = vpop.f32.mrf.mxu0
      %v974 = vpop.f32.mrf.mxu0
      %v975 = vadd.f32 %v279, %v974
      %v976 = vpop.f32.mrf.mxu0
      %977 = vmatprep.mubr.bf16.mxu0 %v536
      %978 = vmatmul.mubr.bf16.gmra.mxu0 %v535
      %v979 = vpop.f32.mrf.mxu0
      %v980 = vadd.f32 %v279, %v979
      %v981 = vpop.f32.mrf.mxu0
      %v982 = vpop.f32.mrf.mxu0
      %v983 = vadd.f32 %v279, %v982
      %v984 = vpop.f32.mrf.mxu0
      %985 = vdwg.mxu0
      %v986 = vmax.f32 %v732, 0.0
      %v987 = vmax.f32 %v735, 0.0
      %v988 = vmax.f32 %v740, 0.0
      %v989 = vmax.f32 %v743, 0.0
      %v990 = vmax.f32 %v748, 0.0
      %v991 = vmax.f32 %v751, 0.0
      %v992 = vmax.f32 %v756, 0.0
      %v993 = vmax.f32 %v759, 0.0
      %v994 = vmax.f32 %v764, 0.0
      %v995 = vmax.f32 %v767, 0.0
      %v996 = vmax.f32 %v772, 0.0
      %v997 = vmax.f32 %v775, 0.0
      %v998 = vmax.f32 %v780, 0.0
      %v999 = vmax.f32 %v783, 0.0
      %v1000 = vmax.f32 %v788, 0.0
      %v1001 = vmax.f32 %v791, 0.0
      %v1002 = vmax.f32 %v796, 0.0
      %v1003 = vmax.f32 %v799, 0.0
      %v1004 = vmax.f32 %v804, 0.0
      %v1005 = vmax.f32 %v807, 0.0
      %v1006 = vmax.f32 %v812, 0.0
      %v1007 = vmax.f32 %v815, 0.0
      %v1008 = vmax.f32 %v820, 0.0
      %v1009 = vmax.f32 %v823, 0.0
      %v1010 = vmax.f32 %v828, 0.0
      %v1011 = vmax.f32 %v831, 0.0
      %v1012 = vmax.f32 %v836, 0.0
      %v1013 = vmax.f32 %v839, 0.0
      %v1014 = vmax.f32 %v844, 0.0
      %v1015 = vmax.f32 %v847, 0.0
      %v1016 = vmax.f32 %v852, 0.0
      %v1017 = vmax.f32 %v855, 0.0
      %v1018 = vmax.f32 %v860, 0.0
      %v1019 = vmax.f32 %v863, 0.0
      %v1020 = vmax.f32 %v868, 0.0
      %v1021 = vmax.f32 %v871, 0.0
      %v1022 = vmax.f32 %v876, 0.0
      %v1023 = vmax.f32 %v879, 0.0
      %v1024 = vmax.f32 %v884, 0.0
      %v1025 = vmax.f32 %v887, 0.0
      %v1026 = vmax.f32 %v892, 0.0
      %v1027 = vmax.f32 %v895, 0.0
      %v1028 = vmax.f32 %v900, 0.0
      %v1029 = vmax.f32 %v903, 0.0
      %v1030 = vmax.f32 %v908, 0.0
      %v1031 = vmax.f32 %v911, 0.0
      %v1032 = vmax.f32 %v916, 0.0
      %v1033 = vmax.f32 %v919, 0.0
      %v1034 = vmax.f32 %v924, 0.0
      %v1035 = vmax.f32 %v927, 0.0
      %v1036 = vmax.f32 %v932, 0.0
      %v1037 = vmax.f32 %v935, 0.0
      %v1038 = vmax.f32 %v940, 0.0
      %v1039 = vmax.f32 %v943, 0.0
      %v1040 = vmax.f32 %v948, 0.0
      %v1041 = vmax.f32 %v951, 0.0
      %v1042 = vmax.f32 %v956, 0.0
      %v1043 = vmax.f32 %v959, 0.0
      %v1044 = vmax.f32 %v964, 0.0
      %v1045 = vmax.f32 %v967, 0.0
      %v1046 = vmax.f32 %v972, 0.0
      %v1047 = vmax.f32 %v975, 0.0
      %v1048 = vmax.f32 %v980, 0.0
      %v1049 = vmax.f32 %v983, 0.0
      %v1050 = vpack.c.bf16 %v987, %v986
      %v1051 = vpack.c.bf16 %v989, %v988
      %v1052 = vpack.c.bf16 %v991, %v990
      %v1053 = vpack.c.bf16 %v993, %v992
      %v1054 = vpack.c.bf16 %v995, %v994
      %v1055 = vpack.c.bf16 %v997, %v996
      %v1056 = vpack.c.bf16 %v999, %v998
      %v1057 = vpack.c.bf16 %v1001, %v1000
      %v1058 = vpack.c.bf16 %v1003, %v1002
      %v1059 = vpack.c.bf16 %v1005, %v1004
      %v1060 = vpack.c.bf16 %v1007, %v1006
      %v1061 = vpack.c.bf16 %v1009, %v1008
      %v1062 = vpack.c.bf16 %v1011, %v1010
      %v1063 = vpack.c.bf16 %v1013, %v1012
      %v1064 = vpack.c.bf16 %v1015, %v1014
      %v1065 = vpack.c.bf16 %v1017, %v1016
      %v1066 = vpack.c.bf16 %v1019, %v1018
      %v1067 = vpack.c.bf16 %v1021, %v1020
      %v1068 = vpack.c.bf16 %v1023, %v1022
      %v1069 = vpack.c.bf16 %v1025, %v1024
      %v1070 = vpack.c.bf16 %v1027, %v1026
      %v1071 = vpack.c.bf16 %v1029, %v1028
      %v1072 = vpack.c.bf16 %v1031, %v1030
      %v1073 = vpack.c.bf16 %v1033, %v1032
      %v1074 = vpack.c.bf16 %v1035, %v1034
      %v1075 = vpack.c.bf16 %v1037, %v1036
      %v1076 = vpack.c.bf16 %v1039, %v1038
      %v1077 = vpack.c.bf16 %v1041, %v1040
      %v1078 = vpack.c.bf16 %v1043, %v1042
      %v1079 = vpack.c.bf16 %v1045, %v1044
      %v1080 = vpack.c.bf16 %v1047, %v1046
      %v1081 = vpack.c.bf16 %v1049, %v1048
      %v1114 = vunpack.c.l.b16 %v1050
      %v1115 = vunpack.c.h.b16 %v1050
      %v1116 = vunpack.c.l.b16 %v1051
      %v1117 = vunpack.c.h.b16 %v1051
      %v1118 = vunpack.c.l.b16 %v1052
      %v1119 = vunpack.c.h.b16 %v1052
      %v1120 = vunpack.c.l.b16 %v1053
      %v1121 = vunpack.c.h.b16 %v1053
      %v1122 = vunpack.c.l.b16 %v1054
      %v1123 = vunpack.c.h.b16 %v1054
      %v1124 = vunpack.c.l.b16 %v1055
      %v1125 = vunpack.c.h.b16 %v1055
      %v1126 = vunpack.c.l.b16 %v1056
      %v1127 = vunpack.c.h.b16 %v1056
      %v1128 = vunpack.c.l.b16 %v1057
      %v1129 = vunpack.c.h.b16 %v1057
      %v1130 = vunpack.c.l.b16 %v1058
      %v1131 = vunpack.c.h.b16 %v1058
      %v1132 = vunpack.c.l.b16 %v1059
      %v1133 = vunpack.c.h.b16 %v1059
      %v1134 = vunpack.c.l.b16 %v1060
      %v1135 = vunpack.c.h.b16 %v1060
      %v1136 = vunpack.c.l.b16 %v1061
      %v1137 = vunpack.c.h.b16 %v1061
      %v1138 = vunpack.c.l.b16 %v1062
      %v1139 = vunpack.c.h.b16 %v1062
      %v1140 = vunpack.c.l.b16 %v1063
      %v1141 = vunpack.c.h.b16 %v1063
      %v1142 = vunpack.c.l.b16 %v1064
      %v1143 = vunpack.c.h.b16 %v1064
      %v1144 = vunpack.c.l.b16 %v1065
      %v1145 = vunpack.c.h.b16 %v1065
      %v1146 = vunpack.c.l.b16 %v1066
      %v1147 = vunpack.c.h.b16 %v1066
      %v1148 = vunpack.c.l.b16 %v1067
      %v1149 = vunpack.c.h.b16 %v1067
      %v1150 = vunpack.c.l.b16 %v1068
      %v1151 = vunpack.c.h.b16 %v1068
      %v1152 = vunpack.c.l.b16 %v1069
      %v1153 = vunpack.c.h.b16 %v1069
      %v1154 = vunpack.c.l.b16 %v1070
      %v1155 = vunpack.c.h.b16 %v1070
      %v1156 = vunpack.c.l.b16 %v1071
      %v1157 = vunpack.c.h.b16 %v1071
      %v1158 = vunpack.c.l.b16 %v1072
      %v1159 = vunpack.c.h.b16 %v1072
      %v1160 = vunpack.c.l.b16 %v1073
      %v1161 = vunpack.c.h.b16 %v1073
      %v1162 = vunpack.c.l.b16 %v1074
      %v1163 = vunpack.c.h.b16 %v1074
      %v1164 = vunpack.c.l.b16 %v1075
      %v1165 = vunpack.c.h.b16 %v1075
      %v1166 = vunpack.c.l.b16 %v1076
      %v1167 = vunpack.c.h.b16 %v1076
      %v1168 = vunpack.c.l.b16 %v1077
      %v1169 = vunpack.c.h.b16 %v1077
      %v1170 = vunpack.c.l.b16 %v1078
      %v1171 = vunpack.c.h.b16 %v1078
      %v1172 = vunpack.c.l.b16 %v1079
      %v1173 = vunpack.c.h.b16 %v1079
      %v1174 = vunpack.c.l.b16 %v1080
      %v1175 = vunpack.c.h.b16 %v1080
      %v1176 = vunpack.c.l.b16 %v1081
      %v1177 = vunpack.c.h.b16 %v1081
      %v1178 = vpack.c.b16 %v1114, %v1114
      %v1179 = vpack.c.b16 %v1115, %v1115
      %v1180 = vpack.c.b16 %v1116, %v1116
      %v1181 = vpack.c.b16 %v1117, %v1117
      %v1182 = vpack.c.b16 %v1118, %v1118
      %v1183 = vpack.c.b16 %v1119, %v1119
      %v1184 = vpack.c.b16 %v1120, %v1120
      %v1185 = vpack.c.b16 %v1121, %v1121
      %v1186 = vpack.c.b16 %v1122, %v1122
      %v1187 = vpack.c.b16 %v1123, %v1123
      %v1188 = vpack.c.b16 %v1124, %v1124
      %v1189 = vpack.c.b16 %v1125, %v1125
      %v1190 = vpack.c.b16 %v1126, %v1126
      %v1191 = vpack.c.b16 %v1127, %v1127
      %v1192 = vpack.c.b16 %v1128, %v1128
      %v1193 = vpack.c.b16 %v1129, %v1129
      %v1194 = vpack.c.b16 %v1130, %v1130
      %v1195 = vpack.c.b16 %v1131, %v1131
      %v1196 = vpack.c.b16 %v1132, %v1132
      %v1197 = vpack.c.b16 %v1133, %v1133
      %v1198 = vpack.c.b16 %v1134, %v1134
      %v1199 = vpack.c.b16 %v1135, %v1135
      %v1200 = vpack.c.b16 %v1136, %v1136
      %v1201 = vpack.c.b16 %v1137, %v1137
      %v1202 = vpack.c.b16 %v1138, %v1138
      %v1203 = vpack.c.b16 %v1139, %v1139
      %v1204 = vpack.c.b16 %v1140, %v1140
      %v1205 = vpack.c.b16 %v1141, %v1141
      %v1206 = vpack.c.b16 %v1142, %v1142
      %v1207 = vpack.c.b16 %v1143, %v1143
      %v1208 = vpack.c.b16 %v1144, %v1144
      %v1209 = vpack.c.b16 %v1145, %v1145
      %v1210 = vpack.c.b16 %v1146, %v1146
      %v1211 = vpack.c.b16 %v1147, %v1147
      %v1212 = vpack.c.b16 %v1148, %v1148
      %v1213 = vpack.c.b16 %v1149, %v1149
      %v1214 = vpack.c.b16 %v1150, %v1150
      %v1215 = vpack.c.b16 %v1151, %v1151
      %v1216 = vpack.c.b16 %v1152, %v1152
      %v1217 = vpack.c.b16 %v1153, %v1153
      %v1218 = vpack.c.b16 %v1154, %v1154
      %v1219 = vpack.c.b16 %v1155, %v1155
      %v1220 = vpack.c.b16 %v1156, %v1156
      %v1221 = vpack.c.b16 %v1157, %v1157
      %v1222 = vpack.c.b16 %v1158, %v1158
      %v1223 = vpack.c.b16 %v1159, %v1159
      %v1224 = vpack.c.b16 %v1160, %v1160
      %v1225 = vpack.c.b16 %v1161, %v1161
      %v1226 = vpack.c.b16 %v1162, %v1162
      %v1227 = vpack.c.b16 %v1163, %v1163
      %v1228 = vpack.c.b16 %v1164, %v1164
      %v1229 = vpack.c.b16 %v1165, %v1165
      %v1230 = vpack.c.b16 %v1166, %v1166
      %v1231 = vpack.c.b16 %v1167, %v1167
      %v1232 = vpack.c.b16 %v1168, %v1168
      %v1233 = vpack.c.b16 %v1169, %v1169
      %v1234 = vpack.c.b16 %v1170, %v1170
      %v1235 = vpack.c.b16 %v1171, %v1171
      %v1236 = vpack.c.b16 %v1172, %v1172
      %v1237 = vpack.c.b16 %v1173, %v1173
      %v1238 = vpack.c.b16 %v1174, %v1174
      %v1239 = vpack.c.b16 %v1175, %v1175
      %v1240 = vpack.c.b16 %v1176, %v1176
      %v1241 = vpack.c.b16 %v1177, %v1177
      %1306 = vst [vmem:[%s175] sm:$0xf] %v1178
      %1307 = vst [vmem:[%s175 + $0x4] sm:$0xf] %v1179
      %1308 = vst [vmem:[%s175 + $0x8] sm:$0xf] %v1180
      %1309 = vst [vmem:[%s175 + $0xc] sm:$0xf] %v1181
      %1310 = vst [vmem:[%s175 + $0x10] sm:$0xf] %v1182
      %1311 = vst [vmem:[%s175 + $0x14] sm:$0xf] %v1183
      %1312 = vst [vmem:[%s175 + $0x18] sm:$0xf] %v1184
      %1313 = vst [vmem:[%s175 + $0x1c] sm:$0xf] %v1185
      %1314 = vst [vmem:[%s175 + $0x20] sm:$0xf] %v1186
      %1315 = vst [vmem:[%s175 + $0x24] sm:$0xf] %v1187
      %1316 = vst [vmem:[%s175 + $0x28] sm:$0xf] %v1188
      %1317 = vst [vmem:[%s175 + $0x2c] sm:$0xf] %v1189
      %1318 = vst [vmem:[%s175 + $0x30] sm:$0xf] %v1190
      %1319 = vst [vmem:[%s175 + $0x34] sm:$0xf] %v1191
      %1320 = vst [vmem:[%s175 + $0x38] sm:$0xf] %v1192
      %1321 = vst [vmem:[%s175 + $0x3c] sm:$0xf] %v1193
      %1322 = vst [vmem:[%s175 + $0x40] sm:$0xf] %v1194
      %1323 = vst [vmem:[%s175 + $0x44] sm:$0xf] %v1195
      %1324 = vst [vmem:[%s175 + $0x48] sm:$0xf] %v1196
      %1325 = vst [vmem:[%s175 + $0x4c] sm:$0xf] %v1197
      %1326 = vst [vmem:[%s175 + $0x50] sm:$0xf] %v1198
      %1327 = vst [vmem:[%s175 + $0x54] sm:$0xf] %v1199
      %1328 = vst [vmem:[%s175 + $0x58] sm:$0xf] %v1200
      %1329 = vst [vmem:[%s175 + $0x5c] sm:$0xf] %v1201
      %1330 = vst [vmem:[%s175 + $0x60] sm:$0xf] %v1202
      %1331 = vst [vmem:[%s175 + $0x64] sm:$0xf] %v1203
      %1332 = vst [vmem:[%s175 + $0x68] sm:$0xf] %v1204
      %1333 = vst [vmem:[%s175 + $0x6c] sm:$0xf] %v1205
      %1334 = vst [vmem:[%s175 + $0x70] sm:$0xf] %v1206
      %1335 = vst [vmem:[%s175 + $0x74] sm:$0xf] %v1207
      %1336 = vst [vmem:[%s175 + $0x78] sm:$0xf] %v1208
      %1337 = vst [vmem:[%s175 + $0x7c] sm:$0xf] %v1209
      %1338 = vst [vmem:[%s175 + $0x80] sm:$0xf] %v1210
      %1339 = vst [vmem:[%s175 + $0x84] sm:$0xf] %v1211
      %1340 = vst [vmem:[%s175 + $0x88] sm:$0xf] %v1212
      %1341 = vst [vmem:[%s175 + $0x8c] sm:$0xf] %v1213
      %1342 = vst [vmem:[%s175 + $0x90] sm:$0xf] %v1214
      %1343 = vst [vmem:[%s175 + $0x94] sm:$0xf] %v1215
      %1344 = vst [vmem:[%s175 + $0x98] sm:$0xf] %v1216
      %1345 = vst [vmem:[%s175 + $0x9c] sm:$0xf] %v1217
      %1346 = vst [vmem:[%s175 + $0xa0] sm:$0xf] %v1218
      %1347 = vst [vmem:[%s175 + $0xa4] sm:$0xf] %v1219
      %1348 = vst [vmem:[%s175 + $0xa8] sm:$0xf] %v1220
      %1349 = vst [vmem:[%s175 + $0xac] sm:$0xf] %v1221
      %1350 = vst [vmem:[%s175 + $0xb0] sm:$0xf] %v1222
      %1351 = vst [vmem:[%s175 + $0xb4] sm:$0xf] %v1223
      %1352 = vst [vmem:[%s175 + $0xb8] sm:$0xf] %v1224
      %1353 = vst [vmem:[%s175 + $0xbc] sm:$0xf] %v1225
      %1354 = vst [vmem:[%s175 + $0xc0] sm:$0xf] %v1226
      %1355 = vst [vmem:[%s175 + $0xc4] sm:$0xf] %v1227
      %1356 = vst [vmem:[%s175 + $0xc8] sm:$0xf] %v1228
      %1357 = vst [vmem:[%s175 + $0xcc] sm:$0xf] %v1229
      %1358 = vst [vmem:[%s175 + $0xd0] sm:$0xf] %v1230
      %1359 = vst [vmem:[%s175 + $0xd4] sm:$0xf] %v1231
      %1360 = vst [vmem:[%s175 + $0xd8] sm:$0xf] %v1232
      %1361 = vst [vmem:[%s175 + $0xdc] sm:$0xf] %v1233
      %1362 = vst [vmem:[%s175 + $0xe0] sm:$0xf] %v1234
      %1363 = vst [vmem:[%s175 + $0xe4] sm:$0xf] %v1235
      %1364 = vst [vmem:[%s175 + $0xe8] sm:$0xf] %v1236
      %1365 = vst [vmem:[%s175 + $0xec] sm:$0xf] %v1237
      %1366 = vst [vmem:[%s175 + $0xf0] sm:$0xf] %v1238
      %1367 = vst [vmem:[%s175 + $0xf4] sm:$0xf] %v1239
      %1368 = vst [vmem:[%s175 + $0xf8] sm:$0xf] %v1240
      %1369 = vst [vmem:[%s175 + $0xfc] sm:$0xf] %v1241
      %s1370 = smul.u32 64, %s14
      %p1371 = scmp.lt.s32.totalorder %s1370, 255
      %s1372 = scalar_select %p1371, %s1370, 255
      %s1373 = smul.addr %s1372, 4
      %s1374 = scalar_lea.vmem %s3, %s1373
      // Predicated region
      $region33: #{feature_extractor_forward.21} parent=31 // pred_check
        %p1375 = pneg %p100
      $region34: #{feature_extractor_forward.21} parent=31 // pred_check_branch
        %1377 = sbr.rel (%p1375) target = $region36
      $region35: #{feature_extractor_forward.21} parent=31 // pred_region
        %s1378 = smul.u32 64, %s14
      $region36: #{feature_extractor_forward.21} parent=31 // pred_fallthru
        _
    $region32: #{feature_extractor_forward.21} parent=5 // pred_fallthru
      _
    %p1379 = scmp.le.s32.totalorder 2, %s9
    // Predicated region
    $region37: #{feature_extractor_forward.21} parent=5 // pred_check
      %p1380 = pneg %p1379
    $region38: #{feature_extractor_forward.21} parent=5 // pred_check_branch
      %1382 = sbr.rel (%p1380) target = $region40
    $region39: #{feature_extractor_forward.21} parent=5 // pred_region
      %s1383 = ssub.s32 %s9, 2
      // Predicated region
      $region41: #{feature_extractor_forward.21} parent=39 // pred_check
        %p1384 = pneg %p106
      $region42: #{feature_extractor_forward.21} parent=39 // pred_check_branch
        %1386 = sbr.rel (%p1384) target = $region44
      $region43: #{feature_extractor_forward.21} parent=39 // pred_region
        %s1387 = smul.u32 64, %s15
        %p1388 = scmp.lt.s32.totalorder %s1387, 255
        %s1389 = scalar_select %p1388, %s1387, 255
        %s1390 = smul.addr %s1389, 4
        %s1391 = scalar_lea.vmem %s3, %s1390
      $region44: #{feature_extractor_forward.21} parent=39 // pred_fallthru
        _
    $region40: #{feature_extractor_forward.21} parent=5 // pred_fallthru
      _
  $region6: #{feature_extractor_forward.21} parent=0 // loop_footer
    %s13 = sadd.s32 1, %s9
  $region7: #{feature_extractor_forward.21} parent=0 // loop_footer_branch
    %8 = sbr.rel target = $region3
  $region8: #{feature_extractor_forward.21} parent=0 // loop_exit
    _

// kernel: feature_extractor_forward.22
$region0: #{feature_extractor_forward.22}
  #allocation0 [shape = 'u32[]', space=smem, size = 0x4, offset = 0x4, fixed_abs, tag = 'smem constant byte address 0x4 - core index']
  #allocation1 [shape = 'u32[144,128]{1,0:T(1,128)}', space=vmem, size = 0x12000, scoped, tag = 'internal scratch']
  %s0 = inlined_call_operand.vmem [shape: bf16[9,32,128], index: 0, kind: input, shape index: {}]
  %s1 = inlined_call_operand.vmem [shape: bf16[32,128], index: 1, kind: output, shape index: {}]
  %s2 = sld [smem:[#allocation0]]
  $region78: #{feature_extractor_forward.22} parent=0
    _
  %s4 = ssub.s32 1, %s2
  %s5 = scalar_select 0, %s4, %s2
  $region1: #{feature_extractor_forward.22} parent=0
    #allocation2 [shape = 'u8[73728]{0}', space=vmem, size = 0x12000, scoped, tag = 'input window, operand 0']
    loop: start=0, step=1, limit=4
    $region2: #{feature_extractor_forward.22} parent=1 // loop_pre_header
      _
    $region3: #{feature_extractor_forward.22} parent=1 // loop_header
      %s7 = sphi 0, %s11
      %p8 = scmp.ge.s32.totalorder %s7, 4
      %s17 = sphi 0, %s19
      %s20 = sphi 0, %s17
      %s21 = sphi 0, %s20
      %s37 = sphi 0, %s21
      %s43 = sphi 0, %s45
      %s46 = sphi 0, %s43
      %s47 = sphi 0, %s46
      %s63 = sphi 0, %s47
    $region4: #{feature_extractor_forward.22} parent=1 // loop_header_branch
      %10 = sbr.rel (%p8) target = $region8
    $region5: #{feature_extractor_forward.22} parent=1 // loop_body
      %s12 = ssub.s32 %s7, 1
      %s13 = ssub.s32 %s7, 2
      %s14 = sadd.s32 %s7, 1
      %s15 = ssub.s32 %s7, %s14
      %p16 = scmp.eq.s32.totalorder %s15, 0
      %s18 = sadd.s32 %s17, 1
      %s19 = scalar_select %p16, %s17, %s18
      %p22 = pneg %p16
      %p23 = scmp.eq.s32.totalorder %s7, 1
      %p24 = por %p22, %p23
      %p25 = scmp.ne.s32.totalorder %s17, %s20
      %p26 = scmp.eq.s32.totalorder %s7, 0
      %p27 = por %p25, %p26
      %p28 = scmp.ne.s32.totalorder %s17, %s20
      %p29 = scmp.eq.s32.totalorder %s12, 1
      %p30 = por %p28, %p29
      %p31 = scmp.ne.s32.totalorder %s20, %s21
      %p32 = scmp.eq.s32.totalorder %s12, 0
      %p33 = por %p31, %p32
      %p34 = scmp.ne.s32.totalorder %s20, %s21
      %p35 = scmp.eq.s32.totalorder %s13, 1
      %p36 = por %p34, %p35
      %p38 = scmp.ne.s32.totalorder %s21, %s37
      %p39 = scmp.eq.s32.totalorder %s13, 0
      %p40 = por %p38, %p39
      %s41 = ssub.s32 %s7, %s14
      %p42 = scmp.eq.s32.totalorder %s41, 0
      %s44 = sadd.s32 %s43, 1
      %s45 = scalar_select %p42, %s43, %s44
      %p48 = pneg %p42
      %p49 = scmp.eq.s32.totalorder %s7, 1
      %p50 = por %p48, %p49
      %p51 = scmp.ne.s32.totalorder %s43, %s46
      %p52 = scmp.eq.s32.totalorder %s7, 0
      %p53 = por %p51, %p52
      %p54 = scmp.ne.s32.totalorder %s43, %s46
      %p55 = scmp.eq.s32.totalorder %s12, 1
      %p56 = por %p54, %p55
      %p57 = scmp.ne.s32.totalorder %s46, %s47
      %p58 = scmp.eq.s32.totalorder %s12, 0
      %p59 = por %p57, %p58
      %p60 = scmp.ne.s32.totalorder %s46, %s47
      %p61 = scmp.eq.s32.totalorder %s13, 1
      %p62 = por %p60, %p61
      %p64 = scmp.ne.s32.totalorder %s47, %s63
      %p65 = scmp.eq.s32.totalorder %s13, 0
      %p66 = por %p64, %p65
      %p67 = scmp.le.s32.totalorder 1, %s7
      %p68 = scmp.lt.s32.totalorder %s7, 3
      %p69 = pnand %p67, %p68
      %p70 = pneg %p69
      // Predicated region
      $region9: #{feature_extractor_forward.22} parent=5 // pred_check
        _
      $region10: #{feature_extractor_forward.22} parent=5 // pred_check_branch
        %72 = sbr.rel (%p69) target = $region12
      $region11: #{feature_extractor_forward.22} parent=5 // pred_region
        %s73 = ssub.s32 %s7, 1
      $region12: #{feature_extractor_forward.22} parent=5 // pred_fallthru
        _
      %p74 = scmp.lt.s32.totalorder %s7, 2
      // Predicated region
      $region13: #{feature_extractor_forward.22} parent=5 // pred_check
        %p75 = pneg %p74
      $region14: #{feature_extractor_forward.22} parent=5 // pred_check_branch
        %77 = sbr.rel (%p75) target = $region16
      $region15: #{feature_extractor_forward.22} parent=5 // pred_region
        // Predicated region
        $region17: #{feature_extractor_forward.22} parent=15 // pred_check
          %p78 = pneg %p27
        $region18: #{feature_extractor_forward.22} parent=15 // pred_check_branch
          %80 = sbr.rel (%p78) target = $region20
        $region19: #{feature_extractor_forward.22} parent=15 // pred_region
          %s81 = sand.u32 %s17, 1
          %s82 = sand.u32 %s17, 1
          %s83 = smul.addr %s82, 72
          %s84 = scalar_lea.vmem [#allocation2], %s83
          %s85 = smul.u32 2, %s7
          %s86 = smul.addr %s85, 4
          %s87 = scalar_lea.vmem %s0, %s86
          // Predicated region
          $region21: #{feature_extractor_forward.22} parent=19 // pred_check
            _
          $region22: #{feature_extractor_forward.22} parent=19 // pred_check_branch
            %89 = sbr.rel (0) target = $region24
          $region23: #{feature_extractor_forward.22} parent=19 // pred_region
            // Predicated region
            $region25: #{feature_extractor_forward.22} parent=23 // pred_check
              _
            $region26: #{feature_extractor_forward.22} parent=23 // pred_check_branch
              %91 = sbr.rel target = $region28
            $region27: #{feature_extractor_forward.22} parent=23 // pred_region
              // Predicated region
              $region40: #{feature_extractor_forward.22} parent=27 // pred_check
                _
              $region41: #{feature_extractor_forward.22} parent=27 // pred_check_branch
                %141 = sbr.rel (0) target = $region43
              $region42: #{feature_extractor_forward.22} parent=27 // pred_region
                loop: start=0, step=1, limit=1
                $region44: #{feature_extractor_forward.22} parent=42 // loop_pre_header
                  _
                $region45: #{feature_extractor_forward.22} parent=42 // loop_header
                  %s143 = sphi 0, %s147
                  %p144 = scmp.ge.s32.totalorder %s143, 1
                  %s148 = sphi %s87, %s87
                  %s149 = sphi %s84, %s84
                $region46: #{feature_extractor_forward.22} parent=42 // loop_header_branch
                  %146 = sbr.rel (%p144) target = $region50
                $region47: #{feature_extractor_forward.22} parent=42 // loop_body
                  _
                $region48: #{feature_extractor_forward.22} parent=42 // loop_footer
                  %s147 = sadd.s32 1, %s143
                $region49: #{feature_extractor_forward.22} parent=42 // loop_footer_branch
                  %142 = sbr.rel target = $region45
                $region50: #{feature_extractor_forward.22} parent=42 // loop_exit
                  _
                %s151 = ssub.s32 16, 1
                loop: start=0, step=1, limit=1
                $region51: #{feature_extractor_forward.22} parent=42 // loop_pre_header
                  _
                $region52: #{feature_extractor_forward.22} parent=42 // loop_header
                  %s153 = sphi 0, %s157
                  %p154 = scmp.ge.s32.totalorder %s153, 1
                  %s158 = sphi %s87, %s87
                  %s159 = sphi %s84, %s84
                $region53: #{feature_extractor_forward.22} parent=42 // loop_header_branch
                  %156 = sbr.rel (%p154) target = $region57
                $region54: #{feature_extractor_forward.22} parent=42 // loop_body
                  %v160 = vld [vmem:[%s158] sm:%s151]
                  %161 = vst [vmem:[%s159] sm:%s151] %v160
                  %v162 = vld [vmem:[%s158 + $0x4] sm:%s151]
                  %163 = vst [vmem:[%s159 + $0x4] sm:%s151] %v162
                  %v164 = vld [vmem:[%s158 + $0x10] sm:%s151]
                  %165 = vst [vmem:[%s159 + $0x8] sm:%s151] %v164
                  %v166 = vld [vmem:[%s158 + $0x14] sm:%s151]
                  %167 = vst [vmem:[%s159 + $0xc] sm:%s151] %v166
                  %v168 = vld [vmem:[%s158 + $0x20] sm:%s151]
                  %169 = vst [vmem:[%s159 + $0x10] sm:%s151] %v168
                  %v170 = vld [vmem:[%s158 + $0x24] sm:%s151]
                  %171 = vst [vmem:[%s159 + $0x14] sm:%s151] %v170
                  %v172 = vld [vmem:[%s158 + $0x30] sm:%s151]
                  %173 = vst [vmem:[%s159 + $0x18] sm:%s151] %v172
                  %v174 = vld [vmem:[%s158 + $0x34] sm:%s151]
                  %175 = vst [vmem:[%s159 + $0x1c] sm:%s151] %v174
                  %v176 = vld [vmem:[%s158 + $0x40] sm:%s151]
                  %177 = vst [vmem:[%s159 + $0x20] sm:%s151] %v176
                  %v178 = vld [vmem:[%s158 + $0x44] sm:%s151]
                  %179 = vst [vmem:[%s159 + $0x24] sm:%s151] %v178
                  %v180 = vld [vmem:[%s158 + $0x50] sm:%s151]
                  %181 = vst [vmem:[%s159 + $0x28] sm:%s151] %v180
                  %v182 = vld [vmem:[%s158 + $0x54] sm:%s151]
                  %183 = vst [vmem:[%s159 + $0x2c] sm:%s151] %v182
                  %v184 = vld [vmem:[%s158 + $0x60] sm:%s151]
                  %185 = vst [vmem:[%s159 + $0x30] sm:%s151] %v184
                  %v186 = vld [vmem:[%s158 + $0x64] sm:%s151]
                  %187 = vst [vmem:[%s159 + $0x34] sm:%s151] %v186
                  %v188 = vld [vmem:[%s158 + $0x70] sm:%s151]
                  %189 = vst [vmem:[%s159 + $0x38] sm:%s151] %v188
                  %v190 = vld [vmem:[%s158 + $0x74] sm:%s151]
                  %191 = vst [vmem:[%s159 + $0x3c] sm:%s151] %v190
                  %v192 = vld [vmem:[%s158 + $0x80] sm:%s151]
                  %193 = vst [vmem:[%s159 + $0x40] sm:%s151] %v192
                  %v194 = vld [vmem:[%s158 + $0x84] sm:%s151]
                  %195 = vst [vmem:[%s159 + $0x44] sm:%s151] %v194
                $region55: #{feature_extractor_forward.22} parent=42 // loop_footer
                  %s157 = sadd.s32 1, %s153
                $region56: #{feature_extractor_forward.22} parent=42 // loop_footer_branch
                  %152 = sbr.rel target = $region52
                $region57: #{feature_extractor_forward.22} parent=42 // loop_exit
                  _
              $region43: #{feature_extractor_forward.22} parent=27 // pred_fallthru
                _
            $region28: #{feature_extractor_forward.22} parent=23 // pred_fallthru
              _
            // Predicated region
            $region29: #{feature_extractor_forward.22} parent=23 // pred_check
              _
            $region30: #{feature_extractor_forward.22} parent=23 // pred_check_branch
              %93 = sbr.rel (0) target = $region32
            $region31: #{feature_extractor_forward.22} parent=23 // pred_region
              %s95 = ssub.s32 16, 1
              loop: start=0, step=1, limit=1
              $region33: #{feature_extractor_forward.22} parent=31 // loop_pre_header
                _
              $region34: #{feature_extractor_forward.22} parent=31 // loop_header
                %s97 = sphi 0, %s101
                %p98 = scmp.ge.s32.totalorder %s97, 1
                %s102 = sphi %s87, %s87
                %s103 = sphi %s84, %s84
              $region35: #{feature_extractor_forward.22} parent=31 // loop_header_branch
                %100 = sbr.rel (%p98) target = $region39
              $region36: #{feature_extractor_forward.22} parent=31 // loop_body
                %v104 = vld [vmem:[%s102] sm:%s95]
                %105 = vst [vmem:[%s103] sm:%s95] %v104
                %v106 = vld [vmem:[%s102 + $0x4] sm:%s95]
                %107 = vst [vmem:[%s103 + $0x4] sm:%s95] %v106
                %v108 = vld [vmem:[%s102 + $0x10] sm:%s95]
                %109 = vst [vmem:[%s103 + $0x8] sm:%s95] %v108
                %v110 = vld [vmem:[%s102 + $0x14] sm:%s95]
                %111 = vst [vmem:[%s103 + $0xc] sm:%s95] %v110
                %v112 = vld [vmem:[%s102 + $0x20] sm:%s95]
                %113 = vst [vmem:[%s103 + $0x10] sm:%s95] %v112
                %v114 = vld [vmem:[%s102 + $0x24] sm:%s95]
                %115 = vst [vmem:[%s103 + $0x14] sm:%s95] %v114
                %v116 = vld [vmem:[%s102 + $0x30] sm:%s95]
                %117 = vst [vmem:[%s103 + $0x18] sm:%s95] %v116
                %v118 = vld [vmem:[%s102 + $0x34] sm:%s95]
                %119 = vst [vmem:[%s103 + $0x1c] sm:%s95] %v118
                %v120 = vld [vmem:[%s102 + $0x40] sm:%s95]
                %121 = vst [vmem:[%s103 + $0x20] sm:%s95] %v120
                %v122 = vld [vmem:[%s102 + $0x44] sm:%s95]
                %123 = vst [vmem:[%s103 + $0x24] sm:%s95] %v122
                %v124 = vld [vmem:[%s102 + $0x50] sm:%s95]
                %125 = vst [vmem:[%s103 + $0x28] sm:%s95] %v124
                %v126 = vld [vmem:[%s102 + $0x54] sm:%s95]
                %127 = vst [vmem:[%s103 + $0x2c] sm:%s95] %v126
                %v128 = vld [vmem:[%s102 + $0x60] sm:%s95]
                %129 = vst [vmem:[%s103 + $0x30] sm:%s95] %v128
                %v130 = vld [vmem:[%s102 + $0x64] sm:%s95]
                %131 = vst [vmem:[%s103 + $0x34] sm:%s95] %v130
                %v132 = vld [vmem:[%s102 + $0x70] sm:%s95]
                %133 = vst [vmem:[%s103 + $0x38] sm:%s95] %v132
                %v134 = vld [vmem:[%s102 + $0x74] sm:%s95]
                %135 = vst [vmem:[%s103 + $0x3c] sm:%s95] %v134
                %v136 = vld [vmem:[%s102 + $0x80] sm:%s95]
                %137 = vst [vmem:[%s103 + $0x40] sm:%s95] %v136
                %v138 = vld [vmem:[%s102 + $0x84] sm:%s95]
                %139 = vst [vmem:[%s103 + $0x44] sm:%s95] %v138
              $region37: #{feature_extractor_forward.22} parent=31 // loop_footer
                %s101 = sadd.s32 1, %s97
              $region38: #{feature_extractor_forward.22} parent=31 // loop_footer_branch
                %96 = sbr.rel target = $region34
              $region39: #{feature_extractor_forward.22} parent=31 // loop_exit
                _
            $region32: #{feature_extractor_forward.22} parent=23 // pred_fallthru
              _
          $region24: #{feature_extractor_forward.22} parent=19 // pred_fallthru
            _
          %196 = vnop
        $region20: #{feature_extractor_forward.22} parent=15 // pred_fallthru
          _
      $region16: #{feature_extractor_forward.22} parent=5 // pred_fallthru
        _
      %p197 = scmp.le.s32.totalorder 1, %s7
      %p198 = scmp.lt.s32.totalorder %s7, 3
      %p199 = pnand %p197, %p198
      %p200 = pneg %p199
      // Predicated region
      $region58: #{feature_extractor_forward.22} parent=5 // pred_check
        _
      $region59: #{feature_extractor_forward.22} parent=5 // pred_check_branch
        %202 = sbr.rel (%p199) target = $region61
      $region60: #{feature_extractor_forward.22} parent=5 // pred_region
        %s203 = ssub.s32 %s7, 1
        %s204 = sand.u32 %s20, 1
        %s205 = sand.u32 %s20, 1
        %s206 = smul.addr %s205, 72
        %s207 = scalar_lea.vmem [#allocation2], %s206
        // Predicated region
        $region62: #{feature_extractor_forward.22} parent=60 // pred_check
          %p208 = pneg %p33
        $region63: #{feature_extractor_forward.22} parent=60 // pred_check_branch
          %210 = sbr.rel (%p208) target = $region65
        $region64: #{feature_extractor_forward.22} parent=60 // pred_region
          _
        $region65: #{feature_extractor_forward.22} parent=60 // pred_fallthru
          _
        %s211 = sand.u32 %s20, 1
        %s212 = sand.u32 %s20, 1
        %s213 = smul.addr %s212, 72
        %s214 = scalar_lea.vmem [#allocation2], %s213
        %p215 = pneg %p33
        %p216 = pneg %p30
        %p217 = pneg %p59
        %p218 = pneg %p56
        %s219 = smul.u32 2, %s12
        %p220 = scmp.lt.s32.totalorder %s219, 3
        %s221 = scalar_select %p220, %s219, 3
        %s222 = smul.addr %s221, 4
        %s223 = scalar_lea.vmem %s1, %s222
        %s224 = smul.u32 2, %s12
        %s225 = smul.u32 2, %s12
        %p226 = scmp.lt.s32.totalorder %s225, 3
        %s227 = scalar_select %p226, %s225, 3
        %s228 = smul.addr %s227, 4
        %s229 = scalar_lea.vmem %s1, %s228
        %s230 = smul.u32 2, %s12
        %v231 = vld [vmem:[%s207] sm:$0xf]
        %v232 = vld [vmem:[%s207 + $0x4] sm:$0xf]
        %s233 = scalar_lea.vmem %s207, 8 [#allocation2]
        %v234 = vld [vmem:[%s233] sm:$0xf]
        %v235 = vld [vmem:[%s233 + $0x4] sm:$0xf]
        %v236 = vmax.bf16 %v231, %v234
        %v237 = vmax.bf16 %v232, %v235
        %s238 = scalar_lea.vmem %s207, 16 [#allocation2]
        %v239 = vld [vmem:[%s238] sm:$0xf]
        %v240 = vld [vmem:[%s238 + $0x4] sm:$0xf]
        %v241 = vmax.bf16 %v236, %v239
        %v242 = vmax.bf16 %v237, %v240
        %s243 = scalar_lea.vmem %s207, 24 [#allocation2]
        %v244 = vld [vmem:[%s243] sm:$0xf]
        %v245 = vld [vmem:[%s243 + $0x4] sm:$0xf]
        %v246 = vmax.bf16 %v241, %v244
        %v247 = vmax.bf16 %v242, %v245
        %s248 = scalar_lea.vmem %s207, 32 [#allocation2]
        %v249 = vld [vmem:[%s248] sm:$0xf]
        %v250 = vld [vmem:[%s248 + $0x4] sm:$0xf]
        %v251 = vmax.bf16 %v246, %v249
        %v252 = vmax.bf16 %v247, %v250
        %s253 = scalar_lea.vmem %s207, 40 [#allocation2]
        %v254 = vld [vmem:[%s253] sm:$0xf]
        %v255 = vld [vmem:[%s253 + $0x4] sm:$0xf]
        %v256 = vmax.bf16 %v251, %v254
        %v257 = vmax.bf16 %v252, %v255
        %s258 = scalar_lea.vmem %s207, 48 [#allocation2]
        %v259 = vld [vmem:[%s258] sm:$0xf]
        %v260 = vld [vmem:[%s258 + $0x4] sm:$0xf]
        %v261 = vmax.bf16 %v256, %v259
        %v262 = vmax.bf16 %v257, %v260
        %s263 = scalar_lea.vmem %s207, 56 [#allocation2]
        %v264 = vld [vmem:[%s263] sm:$0xf]
        %v265 = vld [vmem:[%s263 + $0x4] sm:$0xf]
        %v266 = vmax.bf16 %v261, %v264
        %v267 = vmax.bf16 %v262, %v265
        %s268 = scalar_lea.vmem %s207, 64 [#allocation2]
        %v269 = vld [vmem:[%s268] sm:$0xf]
        %v270 = vld [vmem:[%s268 + $0x4] sm:$0xf]
        %v271 = vmax.bf16 %v266, %v269
        %v272 = vmax.bf16 %v267, %v270
        %273 = vst [vmem:[%s229] sm:$0xf] %v271
        %274 = vst [vmem:[%s229 + $0x4] sm:$0xf] %v272
        %s275 = smul.u32 2, %s12
        %p276 = scmp.lt.s32.totalorder %s275, 3
        %s277 = scalar_select %p276, %s275, 3
        %s278 = smul.addr %s277, 4
        %s279 = scalar_lea.vmem %s1, %s278
        // Predicated region
        $region66: #{feature_extractor_forward.22} parent=60 // pred_check
          %p280 = pneg %p56
        $region67: #{feature_extractor_forward.22} parent=60 // pred_check_branch
          %282 = sbr.rel (%p280) target = $region69
        $region68: #{feature_extractor_forward.22} parent=60 // pred_region
          %s283 = smul.u32 2, %s12
        $region69: #{feature_extractor_forward.22} parent=60 // pred_fallthru
          _
      $region61: #{feature_extractor_forward.22} parent=5 // pred_fallthru
        _
      %p284 = scmp.le.s32.totalorder 2, %s7
      // Predicated region
      $region70: #{feature_extractor_forward.22} parent=5 // pred_check
        %p285 = pneg %p284
      $region71: #{feature_extractor_forward.22} parent=5 // pred_check_branch
        %287 = sbr.rel (%p285) target = $region73
      $region72: #{feature_extractor_forward.22} parent=5 // pred_region
        %s288 = ssub.s32 %s7, 2
        // Predicated region
        $region74: #{feature_extractor_forward.22} parent=72 // pred_check
          %p289 = pneg %p62
        $region75: #{feature_extractor_forward.22} parent=72 // pred_check_branch
          %291 = sbr.rel (%p289) target = $region77
        $region76: #{feature_extractor_forward.22} parent=72 // pred_region
          %s292 = smul.u32 2, %s13
          %p293 = scmp.lt.s32.totalorder %s292, 3
          %s294 = scalar_select %p293, %s292, 3
          %s295 = smul.addr %s294, 4
          %s296 = scalar_lea.vmem %s1, %s295
        $region77: #{feature_extractor_forward.22} parent=72 // pred_fallthru
          _
      $region73: #{feature_extractor_forward.22} parent=5 // pred_fallthru
        _
    $region6: #{feature_extractor_forward.22} parent=1 // loop_footer
      %s11 = sadd.s32 1, %s7
    $region7: #{feature_extractor_forward.22} parent=1 // loop_footer_branch
      %6 = sbr.rel target = $region3
    $region8: #{feature_extractor_forward.22} parent=1 // loop_exit
      _

// kernel: feature_extractor_forward.23
$region0: #{feature_extractor_forward.23}
  #allocation0 [shape = 'u32[]', space=smem, size = 0x4, offset = 0x4, fixed_abs, tag = 'smem constant byte address 0x4 - core index']
  #allocation1 [shape = 'u32[144,128]{1,0:T(1,128)}', space=vmem, size = 0x12000, scoped, tag = 'internal scratch']
  %s0 = inlined_call_operand.vmem [shape: bf16[512,128], index: 0, kind: input, shape index: {}]
  %s1 = inlined_call_operand.vmem [shape: bf16[128,128], index: 1, kind: input, shape index: {}]
  %s2 = inlined_call_operand.vmem [shape: f32[1,128], index: 2, kind: input, shape index: {}]
  %s3 = inlined_call_operand.vmem [shape: bf16[512,128], index: 3, kind: output, shape index: {}]
  %s4 = sld [smem:[#allocation0]]
  $region45: #{feature_extractor_forward.23} parent=0
    _
  %s6 = ssub.s32 1, %s4
  %s7 = scalar_select 0, %s6, %s4
  loop: start=0, step=1, limit=4
  $region2: #{feature_extractor_forward.23} parent=0 // loop_pre_header
    _
  $region3: #{feature_extractor_forward.23} parent=0 // loop_header
    %s9 = sphi 0, %s13
    %p10 = scmp.ge.s32.totalorder %s9, 4
    %s19 = sphi 0, %s21
    %s22 = sphi 0, %s19
    %s23 = sphi 0, %s22
    %s39 = sphi 0, %s23
    %s43 = sphi 0, %s43
    %s45 = sphi 0, %s43
    %s46 = sphi 0, %s45
    %s60 = sphi 0, %s46
    %s64 = sphi 0, %s64
    %s66 = sphi 0, %s64
    %s67 = sphi 0, %s66
    %s81 = sphi 0, %s67
    %s87 = sphi 0, %s89
    %s90 = sphi 0, %s87
    %s91 = sphi 0, %s90
    %s107 = sphi 0, %s91
  $region4: #{feature_extractor_forward.23} parent=0 // loop_header_branch
    %12 = sbr.rel (%p10) target = $region8
  $region5: #{feature_extractor_forward.23} parent=0 // loop_body
    %s14 = ssub.s32 %s9, 1
    %s15 = ssub.s32 %s9, 2
    %s16 = sadd.s32 %s9, 1
    %s17 = ssub.s32 %s9, %s16
    %p18 = scmp.eq.s32.totalorder %s17, 0
    %s20 = sadd.s32 %s19, 1
    %s21 = scalar_select %p18, %s19, %s20
    %p24 = pneg %p18
    %p25 = scmp.eq.s32.totalorder %s9, 1
    %p26 = por %p24, %p25
    %p27 = scmp.ne.s32.totalorder %s19, %s22
    %p28 = scmp.eq.s32.totalorder %s9, 0
    %p29 = por %p27, %p28
    %p30 = scmp.ne.s32.totalorder %s19, %s22
    %p31 = scmp.eq.s32.totalorder %s14, 1
    %p32 = por %p30, %p31
    %p33 = scmp.ne.s32.totalorder %s22, %s23
    %p34 = scmp.eq.s32.totalorder %s14, 0
    %p35 = por %p33, %p34
    %p36 = scmp.ne.s32.totalorder %s22, %s23
    %p37 = scmp.eq.s32.totalorder %s15, 1
    %p38 = por %p36, %p37
    %p40 = scmp.ne.s32.totalorder %s23, %s39
    %p41 = scmp.eq.s32.totalorder %s15, 0
    %p42 = por %p40, %p41
    %s44 = sadd.s32 %s43, 1
    %p47 = scmp.eq.s32.totalorder %s9, 1
    %p48 = scmp.ne.s32.totalorder %s43, %s45
    %p49 = scmp.eq.s32.totalorder %s9, 0
    %p50 = por %p48, %p49
    %p51 = scmp.ne.s32.totalorder %s43, %s45
    %p52 = scmp.eq.s32.totalorder %s14, 1
    %p53 = por %p51, %p52
    %p54 = scmp.ne.s32.totalorder %s45, %s46
    %p55 = scmp.eq.s32.totalorder %s14, 0
    %p56 = por %p54, %p55
    %p57 = scmp.ne.s32.totalorder %s45, %s46
    %p58 = scmp.eq.s32.totalorder %s15, 1
    %p59 = por %p57, %p58
    %p61 = scmp.ne.s32.totalorder %s46, %s60
    %p62 = scmp.eq.s32.totalorder %s15, 0
    %p63 = por %p61, %p62
    %s65 = sadd.s32 %s64, 1
    %p68 = scmp.eq.s32.totalorder %s9, 1
    %p69 = scmp.ne.s32.totalorder %s64, %s66
    %p70 = scmp.eq.s32.totalorder %s9, 0
    %p71 = por %p69, %p70
    %p72 = scmp.ne.s32.totalorder %s64, %s66
    %p73 = scmp.eq.s32.totalorder %s14, 1
    %p74 = por %p72, %p73
    %p75 = scmp.ne.s32.totalorder %s66, %s67
    %p76 = scmp.eq.s32.totalorder %s14, 0
    %p77 = por %p75, %p76
    %p78 = scmp.ne.s32.totalorder %s66, %s67
    %p79 = scmp.eq.s32.totalorder %s15, 1
    %p80 = por %p78, %p79
    %p82 = scmp.ne.s32.totalorder %s67, %s81
    %p83 = scmp.eq.s32.totalorder %s15, 0
    %p84 = por %p82, %p83
    %s85 = ssub.s32 %s9, %s16
    %p86 = scmp.eq.s32.totalorder %s85, 0
    %s88 = sadd.s32 %s87, 1
    %s89 = scalar_select %p86, %s87, %s88
    %p92 = pneg %p86
    %p93 = scmp.eq.s32.totalorder %s9, 1
    %p94 = por %p92, %p93
    %p95 = scmp.ne.s32.totalorder %s87, %s90
    %p96 = scmp.eq.s32.totalorder %s9, 0
    %p97 = por %p95, %p96
    %p98 = scmp.ne.s32.totalorder %s87, %s90
    %p99 = scmp.eq.s32.totalorder %s14, 1
    %p100 = por %p98, %p99
    %p101 = scmp.ne.s32.totalorder %s90, %s91
    %p102 = scmp.eq.s32.totalorder %s14, 0
    %p103 = por %p101, %p102
    %p104 = scmp.ne.s32.totalorder %s90, %s91
    %p105 = scmp.eq.s32.totalorder %s15, 1
    %p106 = por %p104, %p105
    %p108 = scmp.ne.s32.totalorder %s91, %s107
    %p109 = scmp.eq.s32.totalorder %s15, 0
    %p110 = por %p108, %p109
    %p111 = scmp.le.s32.totalorder 1, %s9
    %p112 = scmp.lt.s32.totalorder %s9, 3
    %p113 = pnand %p111, %p112
    %p114 = pneg %p113
    // Predicated region
    $region9: #{feature_extractor_forward.23} parent=5 // pred_check
      _
    $region10: #{feature_extractor_forward.23} parent=5 // pred_check_branch
      %116 = sbr.rel (%p113) target = $region12
    $region11: #{feature_extractor_forward.23} parent=5 // pred_region
      %s117 = ssub.s32 %s9, 1
      // Predicated region
      $region13: #{feature_extractor_forward.23} parent=11 // pred_check
        %p118 = pneg %p56
      $region14: #{feature_extractor_forward.23} parent=11 // pred_check_branch
        %120 = sbr.rel (%p118) target = $region16
      $region15: #{feature_extractor_forward.23} parent=11 // pred_region
        _
      $region16: #{feature_extractor_forward.23} parent=11 // pred_fallthru
        _
      // Predicated region
      $region17: #{feature_extractor_forward.23} parent=11 // pred_check
        %p121 = pneg %p77
      $region18: #{feature_extractor_forward.23} parent=11 // pred_check_branch
        %123 = sbr.rel (%p121) target = $region20
      $region19: #{feature_extractor_forward.23} parent=11 // pred_region
        _
      $region20: #{feature_extractor_forward.23} parent=11 // pred_fallthru
        _
    $region12: #{feature_extractor_forward.23} parent=5 // pred_fallthru
      _
    %p124 = scmp.lt.s32.totalorder %s9, 2
    // Predicated region
    $region21: #{feature_extractor_forward.23} parent=5 // pred_check
      %p125 = pneg %p124
    $region22: #{feature_extractor_forward.23} parent=5 // pred_check_branch
      %127 = sbr.rel (%p125) target = $region24
    $region23: #{feature_extractor_forward.23} parent=5 // pred_region
      // Predicated region
      $region25: #{feature_extractor_forward.23} parent=23 // pred_check
        %p128 = pneg %p29
      $region26: #{feature_extractor_forward.23} parent=23 // pred_check_branch
        %130 = sbr.rel (%p128) target = $region28
      $region27: #{feature_extractor_forward.23} parent=23 // pred_region
        %s131 = smul.u32 32, %s9
        %p132 = scmp.lt.s32.totalorder %s131, 63
        %s133 = scalar_select %p132, %s131, 63
        %s134 = smul.addr %s133, 4
        %s135 = scalar_lea.vmem %s0, %s134
        %s136 = smul.u32 32, %s9
      $region28: #{feature_extractor_forward.23} parent=23 // pred_fallthru
        _
    $region24: #{feature_extractor_forward.23} parent=5 // pred_fallthru
      _
    %p137 = scmp.le.s32.totalorder 1, %s9
    %p138 = scmp.lt.s32.totalorder %s9, 3
    %p139 = pnand %p137, %p138
    %p140 = pneg %p139
    // Predicated region
    $region29: #{feature_extractor_forward.23} parent=5 // pred_check
      _
    $region30: #{feature_extractor_forward.23} parent=5 // pred_check_branch
      %142 = sbr.rel (%p139) target = $region32
    $region31: #{feature_extractor_forward.23} parent=5 // pred_region
      %s143 = ssub.s32 %s9, 1
      %s144 = smul.u32 32, %s14
      %p145 = scmp.lt.s32.totalorder %s144, 63
      %s146 = scalar_select %p145, %s144, 63
      %s147 = smul.addr %s146, 4
      %s148 = scalar_lea.vmem %s0, %s147
      %p149 = pneg %p35
      %p150 = pneg %p32
      %p151 = pneg %p56
      %p152 = pneg %p53
      %p153 = pneg %p77
      %p154 = pneg %p74
      %p155 = pneg %p103
      %p156 = pneg %p100
      %s157 = smul.u32 32, %s14
      %p158 = scmp.lt.s32.totalorder %s157, 63
      %s159 = scalar_select %p158, %s157, 63
      %s160 = smul.addr %s159, 4
      %s161 = scalar_lea.vmem %s3, %s160
      %s162 = smul.u32 32, %s14
      %p163 = scmp.lt.s32.totalorder %s162, 63
      %s164 = scalar_select %p163, %s162, 63
      %s165 = smul.addr %s164, 4
      %s166 = scalar_lea.vmem %s0, %s165
      %s167 = smul.u32 32, %s14
      %s168 = smul.u32 32, %s14
      %p169 = scmp.lt.s32.totalorder %s168, 63
      %s170 = scalar_select %p169, %s168, 63
      %s171 = smul.addr %s170, 4
      %s172 = scalar_lea.vmem %s3, %s171
      %s173 = smul.u32 32, %s14
      %v175 = vld [vmem:[%s166] sm:$0xf]
      %v176 = vld [vmem:[%s166 + $0x4] sm:$0xf]
      %v177 = vld [vmem:[%s166 + $0x8] sm:$0xf]
      %v178 = vld [vmem:[%s166 + $0xc] sm:$0xf]
      %v179 = vld [vmem:[%s166 + $0x10] sm:$0xf]
      %v180 = vld [vmem:[%s166 + $0x14] sm:$0xf]
      %v181 = vld [vmem:[%s166 + $0x18] sm:$0xf]
      %v182 = vld [vmem:[%s166 + $0x1c] sm:$0xf]
      %v183 = vld [vmem:[%s166 + $0x20] sm:$0xf]
      %v184 = vld [vmem:[%s166 + $0x24] sm:$0xf]
      %v185 = vld [vmem:[%s166 + $0x28] sm:$0xf]
      %v186 = vld [vmem:[%s166 + $0x2c] sm:$0xf]
      %v187 = vld [vmem:[%s166 + $0x30] sm:$0xf]
      %v188 = vld [vmem:[%s166 + $0x34] sm:$0xf]
      %v189 = vld [vmem:[%s166 + $0x38] sm:$0xf]
      %v190 = vld [vmem:[%s166 + $0x3c] sm:$0xf]
      %v191 = vld [vmem:[%s166 + $0x40] sm:$0xf]
      %v192 = vld [vmem:[%s166 + $0x44] sm:$0xf]
      %v193 = vld [vmem:[%s166 + $0x48] sm:$0xf]
      %v194 = vld [vmem:[%s166 + $0x4c] sm:$0xf]
      %v195 = vld [vmem:[%s166 + $0x50] sm:$0xf]
      %v196 = vld [vmem:[%s166 + $0x54] sm:$0xf]
      %v197 = vld [vmem:[%s166 + $0x58] sm:$0xf]
      %v198 = vld [vmem:[%s166 + $0x5c] sm:$0xf]
      %v199 = vld [vmem:[%s166 + $0x60] sm:$0xf]
      %v200 = vld [vmem:[%s166 + $0x64] sm:$0xf]
      %v201 = vld [vmem:[%s166 + $0x68] sm:$0xf]
      %v202 = vld [vmem:[%s166 + $0x6c] sm:$0xf]
      %v203 = vld [vmem:[%s166 + $0x70] sm:$0xf]
      %v204 = vld [vmem:[%s166 + $0x74] sm:$0xf]
      %v205 = vld [vmem:[%s166 + $0x78] sm:$0xf]
      %v206 = vld [vmem:[%s166 + $0x7c] sm:$0xf]
      %v207 = vld [vmem:[%s1] sm:$0xf]
      %v208 = vld [vmem:[%s1 + $0x4] sm:$0xf]
      %v209 = vld [vmem:[%s1 + $0x8] sm:$0xf]
      %v210 = vld [vmem:[%s1 + $0xc] sm:$0xf]
      %v211 = vld [vmem:[%s1 + $0x10] sm:$0xf]
      %v212 = vld [vmem:[%s1 + $0x14] sm:$0xf]
      %v213 = vld [vmem:[%s1 + $0x18] sm:$0xf]
      %v214 = vld [vmem:[%s1 + $0x1c] sm:$0xf]
      %v215 = vld [vmem:[%s1 + $0x20] sm:$0xf]
      %v216 = vld [vmem:[%s1 + $0x24] sm:$0xf]
      %v217 = vld [vmem:[%s1 + $0x28] sm:$0xf]
      %v218 = vld [vmem:[%s1 + $0x2c] sm:$0xf]
      %v219 = vld [vmem:[%s1 + $0x30] sm:$0xf]
      %v220 = vld [vmem:[%s1 + $0x34] sm:$0xf]
      %v221 = vld [vmem:[%s1 + $0x38] sm:$0xf]
      %v222 = vld [vmem:[%s1 + $0x3c] sm:$0xf]
      %v223 = vld [vmem:[%s2] sm:$0x1]
      %v225 = vlaneseq
      %v226 = vshrl.u32 %v225, 7
      %v227 = vsub.s32 0, %v226
      %v228 = vrot.slane %v223, %v227
      %v262 = vunpack.c.l.b16 %v175
      %v263 = vunpack.c.l.b16 %v176
      %v264 = vunpack.c.l.b16 %v177
      %v265 = vunpack.c.l.b16 %v178
      %v266 = vunpack.c.l.b16 %v179
      %v267 = vunpack.c.l.b16 %v180
      %v268 = vunpack.c.l.b16 %v181
      %v269 = vunpack.c.l.b16 %v182
      %v270 = vunpack.c.l.b16 %v183
      %v271 = vunpack.c.l.b16 %v184
      %v272 = vunpack.c.l.b16 %v185
      %v273 = vunpack.c.l.b16 %v186
      %v274 = vunpack.c.l.b16 %v187
      %v275 = vunpack.c.l.b16 %v188
      %v276 = vunpack.c.l.b16 %v189
      %v277 = vunpack.c.l.b16 %v190
      %v278 = vunpack.c.l.b16 %v191
      %v279 = vunpack.c.l.b16 %v192
      %v280 = vunpack.c.l.b16 %v193
      %v281 = vunpack.c.l.b16 %v194
      %v282 = vunpack.c.l.b16 %v195
      %v283 = vunpack.c.l.b16 %v196
      %v284 = vunpack.c.l.b16 %v197
      %v285 = vunpack.c.l.b16 %v198
      %v286 = vunpack.c.l.b16 %v199
      %v287 = vunpack.c.l.b16 %v200
      %v288 = vunpack.c.l.b16 %v201
      %v289 = vunpack.c.l.b16 %v202
      %v290 = vunpack.c.l.b16 %v203
      %v291 = vunpack.c.l.b16 %v204
      %v292 = vunpack.c.l.b16 %v205
      %v293 = vunpack.c.l.b16 %v206
      %v294 = vpack.c.b16 %v263, %v262
      %v295 = vpack.c.b16 %v265, %v264
      %v296 = vpack.c.b16 %v267, %v266
      %v297 = vpack.c.b16 %v269, %v268
      %v298 = vpack.c.b16 %v271, %v270
      %v299 = vpack.c.b16 %v273, %v272
      %v300 = vpack.c.b16 %v275, %v274
      %v301 = vpack.c.b16 %v277, %v276
      %v302 = vpack.c.b16 %v279, %v278
      %v303 = vpack.c.b16 %v281, %v280
      %v304 = vpack.c.b16 %v283, %v282
      %v305 = vpack.c.b16 %v285, %v284
      %v306 = vpack.c.b16 %v287, %v286
      %v307 = vpack.c.b16 %v289, %v288
      %v308 = vpack.c.b16 %v291, %v290
      %v309 = vpack.c.b16 %v293, %v292
      %v342 = vunpack.c.l.b16 %v207
      %v343 = vunpack.c.l.b16 %v208
      %v344 = vunpack.c.l.b16 %v209
      %v345 = vunpack.c.l.b16 %v210
      %v346 = vunpack.c.l.b16 %v211
      %v347 = vunpack.c.l.b16 %v212
      %v348 = vunpack.c.l.b16 %v213
      %v349 = vunpack.c.l.b16 %v214
      %v350 = vunpack.c.l.b16 %v215
      %v351 = vunpack.c.l.b16 %v216
      %v352 = vunpack.c.l.b16 %v217
      %v353 = vunpack.c.l.b16 %v218
      %v354 = vunpack.c.l.b16 %v219
      %v355 = vunpack.c.l.b16 %v220
      %v356 = vunpack.c.l.b16 %v221
      %v357 = vunpack.c.l.b16 %v222
      %v358 = vpack.c.b16 %v343, %v342
      %v359 = vpack.c.b16 %v345, %v344
      %v360 = vpack.c.b16 %v347, %v346
      %v361 = vpack.c.b16 %v349, %v348
      %v362 = vpack.c.b16 %v351, %v350
      %v363 = vpack.c.b16 %v353, %v352
      %v364 = vpack.c.b16 %v355, %v354
      %v365 = vpack.c.b16 %v357, %v356
      %374 = vmatprep.subr.bf16.mxu0 0
      %375 = vmatpush1.bf16.msra.mxu0 %v365
      %376 = vmatprep.subr.bf16.mxu0 0
      %377 = vmatpush1.bf16.msra.mxu0 %v364
      %378 = vmatprep.subr.bf16.mxu0 0
      %379 = vmatpush1.bf16.msra.mxu0 %v363
      %380 = vmatprep.subr.bf16.mxu0 0
      %381 = vmatpush1.bf16.msra.mxu0 %v362
      %382 = vmatprep.subr.bf16.mxu0 0
      %383 = vmatpush1.bf16.msra.mxu0 %v361
      %384 = vmatprep.subr.bf16.mxu0 0
      %385 = vmatpush1.bf16.msra.mxu0 %v360
      %386 = vmatprep.subr.bf16.mxu0 0
      %387 = vmatpush1.bf16.msra.mxu0 %v359
      %388 = vmatprep.subr.bf16.mxu0 0
      %389 = vmatpush1.bf16.msra.mxu0 %v358
      %390 = vmatprep.subr.bf16.mxu0 0
      %391 = vmatpush2.bf16.msra.mxu0 0
      %392 = vmatprep.subr.bf16.mxu0 0
      %393 = vmatpush2.bf16.msra.mxu0 0
      %394 = vmatprep.subr.bf16.mxu0 0
      %395 = vmatpush2.bf16.msra.mxu0 0
      %396 = vmatprep.subr.bf16.mxu0 0
      %397 = vmatpush2.bf16.msra.mxu0 0
      %398 = vmatprep.subr.bf16.mxu0 0
      %399 = vmatpush2.bf16.msra.mxu0 0
      %400 = vmatprep.subr.bf16.mxu0 0
      %401 = vmatpush2.bf16.msra.mxu0 0
      %402 = vmatprep.subr.bf16.mxu0 0
      %403 = vmatpush2.bf16.msra.mxu0 0
      %404 = vmatprep.subr.bf16.mxu0 0
      %405 = vmatpush2.bf16.msra.mxu0 0
      %406 = vmatprep.mubr.bf16.mxu0 0
      %407 = vmatmul.mubr.bf16.gmra.mxu0 %v294
      %v408 = vpop.f32.mrf.mxu0
      %v409 = vadd.f32 %v228, %v408
      %v410 = vpop.f32.mrf.mxu0
      %v411 = vpop.f32.mrf.mxu0
      %v412 = vadd.f32 %v228, %v411
      %v413 = vpop.f32.mrf.mxu0
      %414 = vmatprep.mubr.bf16.mxu0 0
      %415 = vmatmul.mubr.bf16.gmra.mxu0 %v295
      %v416 = vpop.f32.mrf.mxu0
      %v417 = vadd.f32 %v228, %v416
      %v418 = vpop.f32.mrf.mxu0
      %v419 = vpop.f32.mrf.mxu0
      %v420 = vadd.f32 %v228, %v419
      %v421 = vpop.f32.mrf.mxu0
      %422 = vmatprep.mubr.bf16.mxu0 0
      %423 = vmatmul.mubr.bf16.gmra.mxu0 %v296
      %v424 = vpop.f32.mrf.mxu0
      %v425 = vadd.f32 %v228, %v424
      %v426 = vpop.f32.mrf.mxu0
      %v427 = vpop.f32.mrf.mxu0
      %v428 = vadd.f32 %v228, %v427
      %v429 = vpop.f32.mrf.mxu0
      %430 = vmatprep.mubr.bf16.mxu0 0
      %431 = vmatmul.mubr.bf16.gmra.mxu0 %v297
      %v432 = vpop.f32.mrf.mxu0
      %v433 = vadd.f32 %v228, %v432
      %v434 = vpop.f32.mrf.mxu0
      %v435 = vpop.f32.mrf.mxu0
      %v436 = vadd.f32 %v228, %v435
      %v437 = vpop.f32.mrf.mxu0
      %438 = vmatprep.mubr.bf16.mxu0 0
      %439 = vmatmul.mubr.bf16.gmra.mxu0 %v298
      %v440 = vpop.f32.mrf.mxu0
      %v441 = vadd.f32 %v228, %v440
      %v442 = vpop.f32.mrf.mxu0
      %v443 = vpop.f32.mrf.mxu0
      %v444 = vadd.f32 %v228, %v443
      %v445 = vpop.f32.mrf.mxu0
      %446 = vmatprep.mubr.bf16.mxu0 0
      %447 = vmatmul.mubr.bf16.gmra.mxu0 %v299
      %v448 = vpop.f32.mrf.mxu0
      %v449 = vadd.f32 %v228, %v448
      %v450 = vpop.f32.mrf.mxu0
      %v451 = vpop.f32.mrf.mxu0
      %v452 = vadd.f32 %v228, %v451
      %v453 = vpop.f32.mrf.mxu0
      %454 = vmatprep.mubr.bf16.mxu0 0
      %455 = vmatmul.mubr.bf16.gmra.mxu0 %v300
      %v456 = vpop.f32.mrf.mxu0
      %v457 = vadd.f32 %v228, %v456
      %v458 = vpop.f32.mrf.mxu0
      %v459 = vpop.f32.mrf.mxu0
      %v460 = vadd.f32 %v228, %v459
      %v461 = vpop.f32.mrf.mxu0
      %462 = vmatprep.mubr.bf16.mxu0 0
      %463 = vmatmul.mubr.bf16.gmra.mxu0 %v301
      %v464 = vpop.f32.mrf.mxu0
      %v465 = vadd.f32 %v228, %v464
      %v466 = vpop.f32.mrf.mxu0
      %v467 = vpop.f32.mrf.mxu0
      %v468 = vadd.f32 %v228, %v467
      %v469 = vpop.f32.mrf.mxu0
      %470 = vmatprep.mubr.bf16.mxu0 0
      %471 = vmatmul.mubr.bf16.gmra.mxu0 %v302
      %v472 = vpop.f32.mrf.mxu0
      %v473 = vadd.f32 %v228, %v472
      %v474 = vpop.f32.mrf.mxu0
      %v475 = vpop.f32.mrf.mxu0
      %v476 = vadd.f32 %v228, %v475
      %v477 = vpop.f32.mrf.mxu0
      %478 = vmatprep.mubr.bf16.mxu0 0
      %479 = vmatmul.mubr.bf16.gmra.mxu0 %v303
      %v480 = vpop.f32.mrf.mxu0
      %v481 = vadd.f32 %v228, %v480
      %v482 = vpop.f32.mrf.mxu0
      %v483 = vpop.f32.mrf.mxu0
      %v484 = vadd.f32 %v228, %v483
      %v485 = vpop.f32.mrf.mxu0
      %486 = vmatprep.mubr.bf16.mxu0 0
      %487 = vmatmul.mubr.bf16.gmra.mxu0 %v304
      %v488 = vpop.f32.mrf.mxu0
      %v489 = vadd.f32 %v228, %v488
      %v490 = vpop.f32.mrf.mxu0
      %v491 = vpop.f32.mrf.mxu0
      %v492 = vadd.f32 %v228, %v491
      %v493 = vpop.f32.mrf.mxu0
      %494 = vmatprep.mubr.bf16.mxu0 0
      %495 = vmatmul.mubr.bf16.gmra.mxu0 %v305
      %v496 = vpop.f32.mrf.mxu0
      %v497 = vadd.f32 %v228, %v496
      %v498 = vpop.f32.mrf.mxu0
      %v499 = vpop.f32.mrf.mxu0
      %v500 = vadd.f32 %v228, %v499
      %v501 = vpop.f32.mrf.mxu0
      %502 = vmatprep.mubr.bf16.mxu0 0
      %503 = vmatmul.mubr.bf16.gmra.mxu0 %v306
      %v504 = vpop.f32.mrf.mxu0
      %v505 = vadd.f32 %v228, %v504
      %v506 = vpop.f32.mrf.mxu0
      %v507 = vpop.f32.mrf.mxu0
      %v508 = vadd.f32 %v228, %v507
      %v509 = vpop.f32.mrf.mxu0
      %510 = vmatprep.mubr.bf16.mxu0 0
      %511 = vmatmul.mubr.bf16.gmra.mxu0 %v307
      %v512 = vpop.f32.mrf.mxu0
      %v513 = vadd.f32 %v228, %v512
      %v514 = vpop.f32.mrf.mxu0
      %v515 = vpop.f32.mrf.mxu0
      %v516 = vadd.f32 %v228, %v515
      %v517 = vpop.f32.mrf.mxu0
      %518 = vmatprep.mubr.bf16.mxu0 0
      %519 = vmatmul.mubr.bf16.gmra.mxu0 %v308
      %v520 = vpop.f32.mrf.mxu0
      %v521 = vadd.f32 %v228, %v520
      %v522 = vpop.f32.mrf.mxu0
      %v523 = vpop.f32.mrf.mxu0
      %v524 = vadd.f32 %v228, %v523
      %v525 = vpop.f32.mrf.mxu0
      %526 = vmatprep.mubr.bf16.mxu0 0
      %527 = vmatmul.mubr.bf16.gmra.mxu0 %v309
      %v528 = vpop.f32.mrf.mxu0
      %v529 = vadd.f32 %v228, %v528
      %v530 = vpop.f32.mrf.mxu0
      %v531 = vpop.f32.mrf.mxu0
      %v532 = vadd.f32 %v228, %v531
      %v533 = vpop.f32.mrf.mxu0
      %534 = vdwg.mxu0
      %v535 = vmax.f32 %v409, 0.0
      %v536 = vmax.f32 %v412, 0.0
      %v537 = vmax.f32 %v417, 0.0
      %v538 = vmax.f32 %v420, 0.0
      %v539 = vmax.f32 %v425, 0.0
      %v540 = vmax.f32 %v428, 0.0
      %v541 = vmax.f32 %v433, 0.0
      %v542 = vmax.f32 %v436, 0.0
      %v543 = vmax.f32 %v441, 0.0
      %v544 = vmax.f32 %v444, 0.0
      %v545 = vmax.f32 %v449, 0.0
      %v546 = vmax.f32 %v452, 0.0
      %v547 = vmax.f32 %v457, 0.0
      %v548 = vmax.f32 %v460, 0.0
      %v549 = vmax.f32 %v465, 0.0
      %v550 = vmax.f32 %v468, 0.0
      %v551 = vmax.f32 %v473, 0.0
      %v552 = vmax.f32 %v476, 0.0
      %v553 = vmax.f32 %v481, 0.0
      %v554 = vmax.f32 %v484, 0.0
      %v555 = vmax.f32 %v489, 0.0
      %v556 = vmax.f32 %v492, 0.0
      %v557 = vmax.f32 %v497, 0.0
      %v558 = vmax.f32 %v500, 0.0
      %v559 = vmax.f32 %v505, 0.0
      %v560 = vmax.f32 %v508, 0.0
      %v561 = vmax.f32 %v513, 0.0
      %v562 = vmax.f32 %v516, 0.0
      %v563 = vmax.f32 %v521, 0.0
      %v564 = vmax.f32 %v524, 0.0
      %v565 = vmax.f32 %v529, 0.0
      %v566 = vmax.f32 %v532, 0.0
      %v567 = vpack.c.bf16 %v536, %v535
      %v568 = vpack.c.bf16 %v538, %v537
      %v569 = vpack.c.bf16 %v540, %v539
      %v570 = vpack.c.bf16 %v542, %v541
      %v571 = vpack.c.bf16 %v544, %v543
      %v572 = vpack.c.bf16 %v546, %v545
      %v573 = vpack.c.bf16 %v548, %v547
      %v574 = vpack.c.bf16 %v550, %v549
      %v575 = vpack.c.bf16 %v552, %v551
      %v576 = vpack.c.bf16 %v554, %v553
      %v577 = vpack.c.bf16 %v556, %v555
      %v578 = vpack.c.bf16 %v558, %v557
      %v579 = vpack.c.bf16 %v560, %v559
      %v580 = vpack.c.bf16 %v562, %v561
      %v581 = vpack.c.bf16 %v564, %v563
      %v582 = vpack.c.bf16 %v566, %v565
      %v599 = vunpack.c.l.b16 %v567
      %v600 = vunpack.c.h.b16 %v567
      %v601 = vunpack.c.l.b16 %v568
      %v602 = vunpack.c.h.b16 %v568
      %v603 = vunpack.c.l.b16 %v569
      %v604 = vunpack.c.h.b16 %v569
      %v605 = vunpack.c.l.b16 %v570
      %v606 = vunpack.c.h.b16 %v570
      %v607 = vunpack.c.l.b16 %v571
      %v608 = vunpack.c.h.b16 %v571
      %v609 = vunpack.c.l.b16 %v572
      %v610 = vunpack.c.h.b16 %v572
      %v611 = vunpack.c.l.b16 %v573
      %v612 = vunpack.c.h.b16 %v573
      %v613 = vunpack.c.l.b16 %v574
      %v614 = vunpack.c.h.b16 %v574
      %v615 = vunpack.c.l.b16 %v575
      %v616 = vunpack.c.h.b16 %v575
      %v617 = vunpack.c.l.b16 %v576
      %v618 = vunpack.c.h.b16 %v576
      %v619 = vunpack.c.l.b16 %v577
      %v620 = vunpack.c.h.b16 %v577
      %v621 = vunpack.c.l.b16 %v578
      %v622 = vunpack.c.h.b16 %v578
      %v623 = vunpack.c.l.b16 %v579
      %v624 = vunpack.c.h.b16 %v579
      %v625 = vunpack.c.l.b16 %v580
      %v626 = vunpack.c.h.b16 %v580
      %v627 = vunpack.c.l.b16 %v581
      %v628 = vunpack.c.h.b16 %v581
      %v629 = vunpack.c.l.b16 %v582
      %v630 = vunpack.c.h.b16 %v582
      %v631 = vpack.c.b16 %v599, %v599
      %v632 = vpack.c.b16 %v600, %v600
      %v633 = vpack.c.b16 %v601, %v601
      %v634 = vpack.c.b16 %v602, %v602
      %v635 = vpack.c.b16 %v603, %v603
      %v636 = vpack.c.b16 %v604, %v604
      %v637 = vpack.c.b16 %v605, %v605
      %v638 = vpack.c.b16 %v606, %v606
      %v639 = vpack.c.b16 %v607, %v607
      %v640 = vpack.c.b16 %v608, %v608
      %v641 = vpack.c.b16 %v609, %v609
      %v642 = vpack.c.b16 %v610, %v610
      %v643 = vpack.c.b16 %v611, %v611
      %v644 = vpack.c.b16 %v612, %v612
      %v645 = vpack.c.b16 %v613, %v613
      %v646 = vpack.c.b16 %v614, %v614
      %v647 = vpack.c.b16 %v615, %v615
      %v648 = vpack.c.b16 %v616, %v616
      %v649 = vpack.c.b16 %v617, %v617
      %v650 = vpack.c.b16 %v618, %v618
      %v651 = vpack.c.b16 %v619, %v619
      %v652 = vpack.c.b16 %v620, %v620
      %v653 = vpack.c.b16 %v621, %v621
      %v654 = vpack.c.b16 %v622, %v622
      %v655 = vpack.c.b16 %v623, %v623
      %v656 = vpack.c.b16 %v624, %v624
      %v657 = vpack.c.b16 %v625, %v625
      %v658 = vpack.c.b16 %v626, %v626
      %v659 = vpack.c.b16 %v627, %v627
      %v660 = vpack.c.b16 %v628, %v628
      %v661 = vpack.c.b16 %v629, %v629
      %v662 = vpack.c.b16 %v630, %v630
      %695 = vst [vmem:[%s172] sm:$0xf] %v631
      %696 = vst [vmem:[%s172 + $0x4] sm:$0xf] %v632
      %697 = vst [vmem:[%s172 + $0x8] sm:$0xf] %v633
      %698 = vst [vmem:[%s172 + $0xc] sm:$0xf] %v634
      %699 = vst [vmem:[%s172 + $0x10] sm:$0xf] %v635
      %700 = vst [vmem:[%s172 + $0x14] sm:$0xf] %v636
      %701 = vst [vmem:[%s172 + $0x18] sm:$0xf] %v637
      %702 = vst [vmem:[%s172 + $0x1c] sm:$0xf] %v638
      %703 = vst [vmem:[%s172 + $0x20] sm:$0xf] %v639
      %704 = vst [vmem:[%s172 + $0x24] sm:$0xf] %v640
      %705 = vst [vmem:[%s172 + $0x28] sm:$0xf] %v641
      %706 = vst [vmem:[%s172 + $0x2c] sm:$0xf] %v642
      %707 = vst [vmem:[%s172 + $0x30] sm:$0xf] %v643
      %708 = vst [vmem:[%s172 + $0x34] sm:$0xf] %v644
      %709 = vst [vmem:[%s172 + $0x38] sm:$0xf] %v645
      %710 = vst [vmem:[%s172 + $0x3c] sm:$0xf] %v646
      %711 = vst [vmem:[%s172 + $0x40] sm:$0xf] %v647
      %712 = vst [vmem:[%s172 + $0x44] sm:$0xf] %v648
      %713 = vst [vmem:[%s172 + $0x48] sm:$0xf] %v649
      %714 = vst [vmem:[%s172 + $0x4c] sm:$0xf] %v650
      %715 = vst [vmem:[%s172 + $0x50] sm:$0xf] %v651
      %716 = vst [vmem:[%s172 + $0x54] sm:$0xf] %v652
      %717 = vst [vmem:[%s172 + $0x58] sm:$0xf] %v653
      %718 = vst [vmem:[%s172 + $0x5c] sm:$0xf] %v654
      %719 = vst [vmem:[%s172 + $0x60] sm:$0xf] %v655
      %720 = vst [vmem:[%s172 + $0x64] sm:$0xf] %v656
      %721 = vst [vmem:[%s172 + $0x68] sm:$0xf] %v657
      %722 = vst [vmem:[%s172 + $0x6c] sm:$0xf] %v658
      %723 = vst [vmem:[%s172 + $0x70] sm:$0xf] %v659
      %724 = vst [vmem:[%s172 + $0x74] sm:$0xf] %v660
      %725 = vst [vmem:[%s172 + $0x78] sm:$0xf] %v661
      %726 = vst [vmem:[%s172 + $0x7c] sm:$0xf] %v662
      %s727 = smul.u32 32, %s14
      %p728 = scmp.lt.s32.totalorder %s727, 63
      %s729 = scalar_select %p728, %s727, 63
      %s730 = smul.addr %s729, 4
      %s731 = scalar_lea.vmem %s3, %s730
      // Predicated region
      $region33: #{feature_extractor_forward.23} parent=31 // pred_check
        %p732 = pneg %p100
      $region34: #{feature_extractor_forward.23} parent=31 // pred_check_branch
        %734 = sbr.rel (%p732) target = $region36
      $region35: #{feature_extractor_forward.23} parent=31 // pred_region
        %s735 = smul.u32 32, %s14
      $region36: #{feature_extractor_forward.23} parent=31 // pred_fallthru
        _
    $region32: #{feature_extractor_forward.23} parent=5 // pred_fallthru
      _
    %p736 = scmp.le.s32.totalorder 2, %s9
    // Predicated region
    $region37: #{feature_extractor_forward.23} parent=5 // pred_check
      %p737 = pneg %p736
    $region38: #{feature_extractor_forward.23} parent=5 // pred_check_branch
      %739 = sbr.rel (%p737) target = $region40
    $region39: #{feature_extractor_forward.23} parent=5 // pred_region
      %s740 = ssub.s32 %s9, 2
      // Predicated region
      $region41: #{feature_extractor_forward.23} parent=39 // pred_check
        %p741 = pneg %p106
      $region42: #{feature_extractor_forward.23} parent=39 // pred_check_branch
        %743 = sbr.rel (%p741) target = $region44
      $region43: #{feature_extractor_forward.23} parent=39 // pred_region
        %s744 = smul.u32 32, %s15
        %p745 = scmp.lt.s32.totalorder %s744, 63
        %s746 = scalar_select %p745, %s744, 63
        %s747 = smul.addr %s746, 4
        %s748 = scalar_lea.vmem %s3, %s747
      $region44: #{feature_extractor_forward.23} parent=39 // pred_fallthru
        _
    $region40: #{feature_extractor_forward.23} parent=5 // pred_fallthru
      _
  $region6: #{feature_extractor_forward.23} parent=0 // loop_footer
    %s13 = sadd.s32 1, %s9
  $region7: #{feature_extractor_forward.23} parent=0 // loop_footer_branch
    %8 = sbr.rel target = $region3
  $region8: #{feature_extractor_forward.23} parent=0 // loop_exit
    _

// kernel: feature_extractor_forward.24
$region0: #{feature_extractor_forward.24}
  #allocation0 [shape = 'u32[]', space=smem, size = 0x4, offset = 0x4, fixed_abs, tag = 'smem constant byte address 0x4 - core index']
  #allocation1 [shape = 'u32[144,128]{1,0:T(1,128)}', space=vmem, size = 0x12000, scoped, tag = 'internal scratch']
  %s0 = inlined_call_operand.vmem [shape: bf16[512,128], index: 0, kind: input, shape index: {}]
  %s1 = inlined_call_operand.vmem [shape: bf16[128,128], index: 1, kind: input, shape index: {}]
  %s2 = inlined_call_operand.vmem [shape: f32[1,128], index: 2, kind: input, shape index: {}]
  %s3 = inlined_call_operand.vmem [shape: bf16[512,128], index: 3, kind: input, shape index: {}]
  %s4 = inlined_call_operand.vmem [shape: bf16[512,128], index: 4, kind: output, shape index: {}]
  %s5 = sld [smem:[#allocation0]]
  $region49: #{feature_extractor_forward.24} parent=0
    _
  %s7 = ssub.s32 1, %s5
  %s8 = scalar_select 0, %s7, %s5
  loop: start=0, step=1, limit=4
  $region2: #{feature_extractor_forward.24} parent=0 // loop_pre_header
    _
  $region3: #{feature_extractor_forward.24} parent=0 // loop_header
    %s10 = sphi 0, %s14
    %p11 = scmp.ge.s32.totalorder %s10, 4
    %s20 = sphi 0, %s22
    %s23 = sphi 0, %s20
    %s24 = sphi 0, %s23
    %s40 = sphi 0, %s24
    %s44 = sphi 0, %s44
    %s46 = sphi 0, %s44
    %s47 = sphi 0, %s46
    %s61 = sphi 0, %s47
    %s65 = sphi 0, %s65
    %s67 = sphi 0, %s65
    %s68 = sphi 0, %s67
    %s82 = sphi 0, %s68
    %s88 = sphi 0, %s90
    %s91 = sphi 0, %s88
    %s92 = sphi 0, %s91
    %s108 = sphi 0, %s92
    %s114 = sphi 0, %s116
    %s117 = sphi 0, %s114
    %s118 = sphi 0, %s117
    %s134 = sphi 0, %s118
  $region4: #{feature_extractor_forward.24} parent=0 // loop_header_branch
    %13 = sbr.rel (%p11) target = $region8
  $region5: #{feature_extractor_forward.24} parent=0 // loop_body
    %s15 = ssub.s32 %s10, 1
    %s16 = ssub.s32 %s10, 2
    %s17 = sadd.s32 %s10, 1
    %s18 = ssub.s32 %s10, %s17
    %p19 = scmp.eq.s32.totalorder %s18, 0
    %s21 = sadd.s32 %s20, 1
    %s22 = scalar_select %p19, %s20, %s21
    %p25 = pneg %p19
    %p26 = scmp.eq.s32.totalorder %s10, 1
    %p27 = por %p25, %p26
    %p28 = scmp.ne.s32.totalorder %s20, %s23
    %p29 = scmp.eq.s32.totalorder %s10, 0
    %p30 = por %p28, %p29
    %p31 = scmp.ne.s32.totalorder %s20, %s23
    %p32 = scmp.eq.s32.totalorder %s15, 1
    %p33 = por %p31, %p32
    %p34 = scmp.ne.s32.totalorder %s23, %s24
    %p35 = scmp.eq.s32.totalorder %s15, 0
    %p36 = por %p34, %p35
    %p37 = scmp.ne.s32.totalorder %s23, %s24
    %p38 = scmp.eq.s32.totalorder %s16, 1
    %p39 = por %p37, %p38
    %p41 = scmp.ne.s32.totalorder %s24, %s40
    %p42 = scmp.eq.s32.totalorder %s16, 0
    %p43 = por %p41, %p42
    %s45 = sadd.s32 %s44, 1
    %p48 = scmp.eq.s32.totalorder %s10, 1
    %p49 = scmp.ne.s32.totalorder %s44, %s46
    %p50 = scmp.eq.s32.totalorder %s10, 0
    %p51 = por %p49, %p50
    %p52 = scmp.ne.s32.totalorder %s44, %s46
    %p53 = scmp.eq.s32.totalorder %s15, 1
    %p54 = por %p52, %p53
    %p55 = scmp.ne.s32.totalorder %s46, %s47
    %p56 = scmp.eq.s32.totalorder %s15, 0
    %p57 = por %p55, %p56
    %p58 = scmp.ne.s32.totalorder %s46, %s47
    %p59 = scmp.eq.s32.totalorder %s16, 1
    %p60 = por %p58, %p59
    %p62 = scmp.ne.s32.totalorder %s47, %s61
    %p63 = scmp.eq.s32.totalorder %s16, 0
    %p64 = por %p62, %p63
    %s66 = sadd.s32 %s65, 1
    %p69 = scmp.eq.s32.totalorder %s10, 1
    %p70 = scmp.ne.s32.totalorder %s65, %s67
    %p71 = scmp.eq.s32.totalorder %s10, 0
    %p72 = por %p70, %p71
    %p73 = scmp.ne.s32.totalorder %s65, %s67
    %p74 = scmp.eq.s32.totalorder %s15, 1
    %p75 = por %p73, %p74
    %p76 = scmp.ne.s32.totalorder %s67, %s68
    %p77 = scmp.eq.s32.totalorder %s15, 0
    %p78 = por %p76, %p77
    %p79 = scmp.ne.s32.totalorder %s67, %s68
    %p80 = scmp.eq.s32.totalorder %s16, 1
    %p81 = por %p79, %p80
    %p83 = scmp.ne.s32.totalorder %s68, %s82
    %p84 = scmp.eq.s32.totalorder %s16, 0
    %p85 = por %p83, %p84
    %s86 = ssub.s32 %s10, %s17
    %p87 = scmp.eq.s32.totalorder %s86, 0
    %s89 = sadd.s32 %s88, 1
    %s90 = scalar_select %p87, %s88, %s89
    %p93 = pneg %p87
    %p94 = scmp.eq.s32.totalorder %s10, 1
    %p95 = por %p93, %p94
    %p96 = scmp.ne.s32.totalorder %s88, %s91
    %p97 = scmp.eq.s32.totalorder %s10, 0
    %p98 = por %p96, %p97
    %p99 = scmp.ne.s32.totalorder %s88, %s91
    %p100 = scmp.eq.s32.totalorder %s15, 1
    %p101 = por %p99, %p100
    %p102 = scmp.ne.s32.totalorder %s91, %s92
    %p103 = scmp.eq.s32.totalorder %s15, 0
    %p104 = por %p102, %p103
    %p105 = scmp.ne.s32.totalorder %s91, %s92
    %p106 = scmp.eq.s32.totalorder %s16, 1
    %p107 = por %p105, %p106
    %p109 = scmp.ne.s32.totalorder %s92, %s108
    %p110 = scmp.eq.s32.totalorder %s16, 0
    %p111 = por %p109, %p110
    %s112 = ssub.s32 %s10, %s17
    %p113 = scmp.eq.s32.totalorder %s112, 0
    %s115 = sadd.s32 %s114, 1
    %s116 = scalar_select %p113, %s114, %s115
    %p119 = pneg %p113
    %p120 = scmp.eq.s32.totalorder %s10, 1
    %p121 = por %p119, %p120
    %p122 = scmp.ne.s32.totalorder %s114, %s117
    %p123 = scmp.eq.s32.totalorder %s10, 0
    %p124 = por %p122, %p123
    %p125 = scmp.ne.s32.totalorder %s114, %s117
    %p126 = scmp.eq.s32.totalorder %s15, 1
    %p127 = por %p125, %p126
    %p128 = scmp.ne.s32.totalorder %s117, %s118
    %p129 = scmp.eq.s32.totalorder %s15, 0
    %p130 = por %p128, %p129
    %p131 = scmp.ne.s32.totalorder %s117, %s118
    %p132 = scmp.eq.s32.totalorder %s16, 1
    %p133 = por %p131, %p132
    %p135 = scmp.ne.s32.totalorder %s118, %s134
    %p136 = scmp.eq.s32.totalorder %s16, 0
    %p137 = por %p135, %p136
    %p138 = scmp.le.s32.totalorder 1, %s10
    %p139 = scmp.lt.s32.totalorder %s10, 3
    %p140 = pnand %p138, %p139
    %p141 = pneg %p140
    // Predicated region
    $region9: #{feature_extractor_forward.24} parent=5 // pred_check
      _
    $region10: #{feature_extractor_forward.24} parent=5 // pred_check_branch
      %143 = sbr.rel (%p140) target = $region12
    $region11: #{feature_extractor_forward.24} parent=5 // pred_region
      %s144 = ssub.s32 %s10, 1
      // Predicated region
      $region13: #{feature_extractor_forward.24} parent=11 // pred_check
        %p145 = pneg %p57
      $region14: #{feature_extractor_forward.24} parent=11 // pred_check_branch
        %147 = sbr.rel (%p145) target = $region16
      $region15: #{feature_extractor_forward.24} parent=11 // pred_region
        _
      $region16: #{feature_extractor_forward.24} parent=11 // pred_fallthru
        _
      // Predicated region
      $region17: #{feature_extractor_forward.24} parent=11 // pred_check
        %p148 = pneg %p78
      $region18: #{feature_extractor_forward.24} parent=11 // pred_check_branch
        %150 = sbr.rel (%p148) target = $region20
      $region19: #{feature_extractor_forward.24} parent=11 // pred_region
        _
      $region20: #{feature_extractor_forward.24} parent=11 // pred_fallthru
        _
    $region12: #{feature_extractor_forward.24} parent=5 // pred_fallthru
      _
    %p151 = scmp.lt.s32.totalorder %s10, 2
    // Predicated region
    $region21: #{feature_extractor_forward.24} parent=5 // pred_check
      %p152 = pneg %p151
    $region22: #{feature_extractor_forward.24} parent=5 // pred_check_branch
      %154 = sbr.rel (%p152) target = $region24
    $region23: #{feature_extractor_forward.24} parent=5 // pred_region
      // Predicated region
      $region25: #{feature_extractor_forward.24} parent=23 // pred_check
        %p155 = pneg %p30
      $region26: #{feature_extractor_forward.24} parent=23 // pred_check_branch
        %157 = sbr.rel (%p155) target = $region28
      $region27: #{feature_extractor_forward.24} parent=23 // pred_region
        %s158 = smul.u32 32, %s10
        %p159 = scmp.lt.s32.totalorder %s158, 63
        %s160 = scalar_select %p159, %s158, 63
        %s161 = smul.addr %s160, 4
        %s162 = scalar_lea.vmem %s0, %s161
        %s163 = smul.u32 32, %s10
      $region28: #{feature_extractor_forward.24} parent=23 // pred_fallthru
        _
      // Predicated region
      $region29: #{feature_extractor_forward.24} parent=23 // pred_check
        %p164 = pneg %p98
      $region30: #{feature_extractor_forward.24} parent=23 // pred_check_branch
        %166 = sbr.rel (%p164) target = $region32
      $region31: #{feature_extractor_forward.24} parent=23 // pred_region
        %s167 = smul.u32 32, %s10
        %p168 = scmp.lt.s32.totalorder %s167, 63
        %s169 = scalar_select %p168, %s167, 63
        %s170 = smul.addr %s169, 4
        %s171 = scalar_lea.vmem %s3, %s170
        %s172 = smul.u32 32, %s10
      $region32: #{feature_extractor_forward.24} parent=23 // pred_fallthru
        _
    $region24: #{feature_extractor_forward.24} parent=5 // pred_fallthru
      _
    %p173 = scmp.le.s32.totalorder 1, %s10
    %p174 = scmp.lt.s32.totalorder %s10, 3
    %p175 = pnand %p173, %p174
    %p176 = pneg %p175
    // Predicated region
    $region33: #{feature_extractor_forward.24} parent=5 // pred_check
      _
    $region34: #{feature_extractor_forward.24} parent=5 // pred_check_branch
      %178 = sbr.rel (%p175) target = $region36
    $region35: #{feature_extractor_forward.24} parent=5 // pred_region
      %s179 = ssub.s32 %s10, 1
      %s180 = smul.u32 32, %s15
      %p181 = scmp.lt.s32.totalorder %s180, 63
      %s182 = scalar_select %p181, %s180, 63
      %s183 = smul.addr %s182, 4
      %s184 = scalar_lea.vmem %s0, %s183
      %p185 = pneg %p36
      %p186 = pneg %p33
      %p187 = pneg %p57
      %p188 = pneg %p54
      %p189 = pneg %p78
      %p190 = pneg %p75
      %s191 = smul.u32 32, %s15
      %p192 = scmp.lt.s32.totalorder %s191, 63
      %s193 = scalar_select %p192, %s191, 63
      %s194 = smul.addr %s193, 4
      %s195 = scalar_lea.vmem %s3, %s194
      %p196 = pneg %p104
      %p197 = pneg %p101
      %p198 = pneg %p130
      %p199 = pneg %p127
      %s200 = smul.u32 32, %s15
      %p201 = scmp.lt.s32.totalorder %s200, 63
      %s202 = scalar_select %p201, %s200, 63
      %s203 = smul.addr %s202, 4
      %s204 = scalar_lea.vmem %s4, %s203
      %s205 = smul.u32 32, %s15
      %p206 = scmp.lt.s32.totalorder %s205, 63
      %s207 = scalar_select %p206, %s205, 63
      %s208 = smul.addr %s207, 4
      %s209 = scalar_lea.vmem %s0, %s208
      %s210 = smul.u32 32, %s15
      %s211 = smul.u32 32, %s15
      %p212 = scmp.lt.s32.totalorder %s211, 63
      %s213 = scalar_select %p212, %s211, 63
      %s214 = smul.addr %s213, 4
      %s215 = scalar_lea.vmem %s3, %s214
      %s216 = smul.u32 32, %s15
      %s217 = smul.u32 32, %s15
      %p218 = scmp.lt.s32.totalorder %s217, 63
      %s219 = scalar_select %p218, %s217, 63
      %s220 = smul.addr %s219, 4
      %s221 = scalar_lea.vmem %s4, %s220
      %s222 = smul.u32 32, %s15
      %v224 = vld [vmem:[%s209] sm:$0xf]
      %v225 = vld [vmem:[%s209 + $0x4] sm:$0xf]
      %v226 = vld [vmem:[%s209 + $0x8] sm:$0xf]
      %v227 = vld [vmem:[%s209 + $0xc] sm:$0xf]
      %v228 = vld [vmem:[%s209 + $0x10] sm:$0xf]
      %v229 = vld [vmem:[%s209 + $0x14] sm:$0xf]
      %v230 = vld [vmem:[%s209 + $0x18] sm:$0xf]
      %v231 = vld [vmem:[%s209 + $0x1c] sm:$0xf]
      %v232 = vld [vmem:[%s209 + $0x20] sm:$0xf]
      %v233 = vld [vmem:[%s209 + $0x24] sm:$0xf]
      %v234 = vld [vmem:[%s209 + $0x28] sm:$0xf]
      %v235 = vld [vmem:[%s209 + $0x2c] sm:$0xf]
      %v236 = vld [vmem:[%s209 + $0x30] sm:$0xf]
      %v237 = vld [vmem:[%s209 + $0x34] sm:$0xf]
      %v238 = vld [vmem:[%s209 + $0x38] sm:$0xf]
      %v239 = vld [vmem:[%s209 + $0x3c] sm:$0xf]
      %v240 = vld [vmem:[%s209 + $0x40] sm:$0xf]
      %v241 = vld [vmem:[%s209 + $0x44] sm:$0xf]
      %v242 = vld [vmem:[%s209 + $0x48] sm:$0xf]
      %v243 = vld [vmem:[%s209 + $0x4c] sm:$0xf]
      %v244 = vld [vmem:[%s209 + $0x50] sm:$0xf]
      %v245 = vld [vmem:[%s209 + $0x54] sm:$0xf]
      %v246 = vld [vmem:[%s209 + $0x58] sm:$0xf]
      %v247 = vld [vmem:[%s209 + $0x5c] sm:$0xf]
      %v248 = vld [vmem:[%s209 + $0x60] sm:$0xf]
      %v249 = vld [vmem:[%s209 + $0x64] sm:$0xf]
      %v250 = vld [vmem:[%s209 + $0x68] sm:$0xf]
      %v251 = vld [vmem:[%s209 + $0x6c] sm:$0xf]
      %v252 = vld [vmem:[%s209 + $0x70] sm:$0xf]
      %v253 = vld [vmem:[%s209 + $0x74] sm:$0xf]
      %v254 = vld [vmem:[%s209 + $0x78] sm:$0xf]
      %v255 = vld [vmem:[%s209 + $0x7c] sm:$0xf]
      %v256 = vld [vmem:[%s1] sm:$0xf]
      %v257 = vld [vmem:[%s1 + $0x4] sm:$0xf]
      %v258 = vld [vmem:[%s1 + $0x8] sm:$0xf]
      %v259 = vld [vmem:[%s1 + $0xc] sm:$0xf]
      %v260 = vld [vmem:[%s1 + $0x10] sm:$0xf]
      %v261 = vld [vmem:[%s1 + $0x14] sm:$0xf]
      %v262 = vld [vmem:[%s1 + $0x18] sm:$0xf]
      %v263 = vld [vmem:[%s1 + $0x1c] sm:$0xf]
      %v264 = vld [vmem:[%s1 + $0x20] sm:$0xf]
      %v265 = vld [vmem:[%s1 + $0x24] sm:$0xf]
      %v266 = vld [vmem:[%s1 + $0x28] sm:$0xf]
      %v267 = vld [vmem:[%s1 + $0x2c] sm:$0xf]
      %v268 = vld [vmem:[%s1 + $0x30] sm:$0xf]
      %v269 = vld [vmem:[%s1 + $0x34] sm:$0xf]
      %v270 = vld [vmem:[%s1 + $0x38] sm:$0xf]
      %v271 = vld [vmem:[%s1 + $0x3c] sm:$0xf]
      %v272 = vld [vmem:[%s2] sm:$0x1]
      %v274 = vlaneseq
      %v275 = vshrl.u32 %v274, 7
      %v276 = vsub.s32 0, %v275
      %v277 = vrot.slane %v272, %v276
      %v311 = vunpack.c.l.b16 %v224
      %v312 = vunpack.c.l.b16 %v225
      %v313 = vunpack.c.l.b16 %v226
      %v314 = vunpack.c.l.b16 %v227
      %v315 = vunpack.c.l.b16 %v228
      %v316 = vunpack.c.l.b16 %v229
      %v317 = vunpack.c.l.b16 %v230
      %v318 = vunpack.c.l.b16 %v231
      %v319 = vunpack.c.l.b16 %v232
      %v320 = vunpack.c.l.b16 %v233
      %v321 = vunpack.c.l.b16 %v234
      %v322 = vunpack.c.l.b16 %v235
      %v323 = vunpack.c.l.b16 %v236
      %v324 = vunpack.c.l.b16 %v237
      %v325 = vunpack.c.l.b16 %v238
      %v326 = vunpack.c.l.b16 %v239
      %v327 = vunpack.c.l.b16 %v240
      %v328 = vunpack.c.l.b16 %v241
      %v329 = vunpack.c.l.b16 %v242
      %v330 = vunpack.c.l.b16 %v243
      %v331 = vunpack.c.l.b16 %v244
      %v332 = vunpack.c.l.b16 %v245
      %v333 = vunpack.c.l.b16 %v246
      %v334 = vunpack.c.l.b16 %v247
      %v335 = vunpack.c.l.b16 %v248
      %v336 = vunpack.c.l.b16 %v249
      %v337 = vunpack.c.l.b16 %v250
      %v338 = vunpack.c.l.b16 %v251
      %v339 = vunpack.c.l.b16 %v252
      %v340 = vunpack.c.l.b16 %v253
      %v341 = vunpack.c.l.b16 %v254
      %v342 = vunpack.c.l.b16 %v255
      %v343 = vpack.c.b16 %v312, %v311
      %v344 = vpack.c.b16 %v314, %v313
      %v345 = vpack.c.b16 %v316, %v315
      %v346 = vpack.c.b16 %v318, %v317
      %v347 = vpack.c.b16 %v320, %v319
      %v348 = vpack.c.b16 %v322, %v321
      %v349 = vpack.c.b16 %v324, %v323
      %v350 = vpack.c.b16 %v326, %v325
      %v351 = vpack.c.b16 %v328, %v327
      %v352 = vpack.c.b16 %v330, %v329
      %v353 = vpack.c.b16 %v332, %v331
      %v354 = vpack.c.b16 %v334, %v333
      %v355 = vpack.c.b16 %v336, %v335
      %v356 = vpack.c.b16 %v338, %v337
      %v357 = vpack.c.b16 %v340, %v339
      %v358 = vpack.c.b16 %v342, %v341
      %v391 = vunpack.c.l.b16 %v256
      %v392 = vunpack.c.l.b16 %v257
      %v393 = vunpack.c.l.b16 %v258
      %v394 = vunpack.c.l.b16 %v259
      %v395 = vunpack.c.l.b16 %v260
      %v396 = vunpack.c.l.b16 %v261
      %v397 = vunpack.c.l.b16 %v262
      %v398 = vunpack.c.l.b16 %v263
      %v399 = vunpack.c.l.b16 %v264
      %v400 = vunpack.c.l.b16 %v265
      %v401 = vunpack.c.l.b16 %v266
      %v402 = vunpack.c.l.b16 %v267
      %v403 = vunpack.c.l.b16 %v268
      %v404 = vunpack.c.l.b16 %v269
      %v405 = vunpack.c.l.b16 %v270
      %v406 = vunpack.c.l.b16 %v271
      %v407 = vpack.c.b16 %v392, %v391
      %v408 = vpack.c.b16 %v394, %v393
      %v409 = vpack.c.b16 %v396, %v395
      %v410 = vpack.c.b16 %v398, %v397
      %v411 = vpack.c.b16 %v400, %v399
      %v412 = vpack.c.b16 %v402, %v401
      %v413 = vpack.c.b16 %v404, %v403
      %v414 = vpack.c.b16 %v406, %v405
      %423 = vmatprep.subr.bf16.mxu0 0
      %424 = vmatpush1.bf16.msra.mxu0 %v414
      %425 = vmatprep.subr.bf16.mxu0 0
      %426 = vmatpush1.bf16.msra.mxu0 %v413
      %427 = vmatprep.subr.bf16.mxu0 0
      %428 = vmatpush1.bf16.msra.mxu0 %v412
      %429 = vmatprep.subr.bf16.mxu0 0
      %430 = vmatpush1.bf16.msra.mxu0 %v411
      %431 = vmatprep.subr.bf16.mxu0 0
      %432 = vmatpush1.bf16.msra.mxu0 %v410
      %433 = vmatprep.subr.bf16.mxu0 0
      %434 = vmatpush1.bf16.msra.mxu0 %v409
      %435 = vmatprep.subr.bf16.mxu0 0
      %436 = vmatpush1.bf16.msra.mxu0 %v408
      %437 = vmatprep.subr.bf16.mxu0 0
      %438 = vmatpush1.bf16.msra.mxu0 %v407
      %439 = vmatprep.subr.bf16.mxu0 0
      %440 = vmatpush2.bf16.msra.mxu0 0
      %441 = vmatprep.subr.bf16.mxu0 0
      %442 = vmatpush2.bf16.msra.mxu0 0
      %443 = vmatprep.subr.bf16.mxu0 0
      %444 = vmatpush2.bf16.msra.mxu0 0
      %445 = vmatprep.subr.bf16.mxu0 0
      %446 = vmatpush2.bf16.msra.mxu0 0
      %447 = vmatprep.subr.bf16.mxu0 0
      %448 = vmatpush2.bf16.msra.mxu0 0
      %449 = vmatprep.subr.bf16.mxu0 0
      %450 = vmatpush2.bf16.msra.mxu0 0
      %451 = vmatprep.subr.bf16.mxu0 0
      %452 = vmatpush2.bf16.msra.mxu0 0
      %453 = vmatprep.subr.bf16.mxu0 0
      %454 = vmatpush2.bf16.msra.mxu0 0
      %455 = vmatprep.mubr.bf16.mxu0 0
      %456 = vmatmul.mubr.bf16.gmra.mxu0 %v343
      %v457 = vpop.f32.mrf.mxu0
      %v458 = vadd.f32 %v277, %v457
      %v459 = vpop.f32.mrf.mxu0
      %v460 = vpop.f32.mrf.mxu0
      %v461 = vadd.f32 %v277, %v460
      %v462 = vpop.f32.mrf.mxu0
      %463 = vmatprep.mubr.bf16.mxu0 0
      %464 = vmatmul.mubr.bf16.gmra.mxu0 %v344
      %v465 = vpop.f32.mrf.mxu0
      %v466 = vadd.f32 %v277, %v465
      %v467 = vpop.f32.mrf.mxu0
      %v468 = vpop.f32.mrf.mxu0
      %v469 = vadd.f32 %v277, %v468
      %v470 = vpop.f32.mrf.mxu0
      %471 = vmatprep.mubr.bf16.mxu0 0
      %472 = vmatmul.mubr.bf16.gmra.mxu0 %v345
      %v473 = vpop.f32.mrf.mxu0
      %v474 = vadd.f32 %v277, %v473
      %v475 = vpop.f32.mrf.mxu0
      %v476 = vpop.f32.mrf.mxu0
      %v477 = vadd.f32 %v277, %v476
      %v478 = vpop.f32.mrf.mxu0
      %479 = vmatprep.mubr.bf16.mxu0 0
      %480 = vmatmul.mubr.bf16.gmra.mxu0 %v346
      %v481 = vpop.f32.mrf.mxu0
      %v482 = vadd.f32 %v277, %v481
      %v483 = vpop.f32.mrf.mxu0
      %v484 = vpop.f32.mrf.mxu0
      %v485 = vadd.f32 %v277, %v484
      %v486 = vpop.f32.mrf.mxu0
      %487 = vmatprep.mubr.bf16.mxu0 0
      %488 = vmatmul.mubr.bf16.gmra.mxu0 %v347
      %v489 = vpop.f32.mrf.mxu0
      %v490 = vadd.f32 %v277, %v489
      %v491 = vpop.f32.mrf.mxu0
      %v492 = vpop.f32.mrf.mxu0
      %v493 = vadd.f32 %v277, %v492
      %v494 = vpop.f32.mrf.mxu0
      %495 = vmatprep.mubr.bf16.mxu0 0
      %496 = vmatmul.mubr.bf16.gmra.mxu0 %v348
      %v497 = vpop.f32.mrf.mxu0
      %v498 = vadd.f32 %v277, %v497
      %v499 = vpop.f32.mrf.mxu0
      %v500 = vpop.f32.mrf.mxu0
      %v501 = vadd.f32 %v277, %v500
      %v502 = vpop.f32.mrf.mxu0
      %503 = vmatprep.mubr.bf16.mxu0 0
      %504 = vmatmul.mubr.bf16.gmra.mxu0 %v349
      %v505 = vpop.f32.mrf.mxu0
      %v506 = vadd.f32 %v277, %v505
      %v507 = vpop.f32.mrf.mxu0
      %v508 = vpop.f32.mrf.mxu0
      %v509 = vadd.f32 %v277, %v508
      %v510 = vpop.f32.mrf.mxu0
      %511 = vmatprep.mubr.bf16.mxu0 0
      %512 = vmatmul.mubr.bf16.gmra.mxu0 %v350
      %v513 = vpop.f32.mrf.mxu0
      %v514 = vadd.f32 %v277, %v513
      %v515 = vpop.f32.mrf.mxu0
      %v516 = vpop.f32.mrf.mxu0
      %v517 = vadd.f32 %v277, %v516
      %v518 = vpop.f32.mrf.mxu0
      %519 = vmatprep.mubr.bf16.mxu0 0
      %520 = vmatmul.mubr.bf16.gmra.mxu0 %v351
      %v521 = vpop.f32.mrf.mxu0
      %v522 = vadd.f32 %v277, %v521
      %v523 = vpop.f32.mrf.mxu0
      %v524 = vpop.f32.mrf.mxu0
      %v525 = vadd.f32 %v277, %v524
      %v526 = vpop.f32.mrf.mxu0
      %527 = vmatprep.mubr.bf16.mxu0 0
      %528 = vmatmul.mubr.bf16.gmra.mxu0 %v352
      %v529 = vpop.f32.mrf.mxu0
      %v530 = vadd.f32 %v277, %v529
      %v531 = vpop.f32.mrf.mxu0
      %v532 = vpop.f32.mrf.mxu0
      %v533 = vadd.f32 %v277, %v532
      %v534 = vpop.f32.mrf.mxu0
      %535 = vmatprep.mubr.bf16.mxu0 0
      %536 = vmatmul.mubr.bf16.gmra.mxu0 %v353
      %v537 = vpop.f32.mrf.mxu0
      %v538 = vadd.f32 %v277, %v537
      %v539 = vpop.f32.mrf.mxu0
      %v540 = vpop.f32.mrf.mxu0
      %v541 = vadd.f32 %v277, %v540
      %v542 = vpop.f32.mrf.mxu0
      %543 = vmatprep.mubr.bf16.mxu0 0
      %544 = vmatmul.mubr.bf16.gmra.mxu0 %v354
      %v545 = vpop.f32.mrf.mxu0
      %v546 = vadd.f32 %v277, %v545
      %v547 = vpop.f32.mrf.mxu0
      %v548 = vpop.f32.mrf.mxu0
      %v549 = vadd.f32 %v277, %v548
      %v550 = vpop.f32.mrf.mxu0
      %551 = vmatprep.mubr.bf16.mxu0 0
      %552 = vmatmul.mubr.bf16.gmra.mxu0 %v355
      %v553 = vpop.f32.mrf.mxu0
      %v554 = vadd.f32 %v277, %v553
      %v555 = vpop.f32.mrf.mxu0
      %v556 = vpop.f32.mrf.mxu0
      %v557 = vadd.f32 %v277, %v556
      %v558 = vpop.f32.mrf.mxu0
      %559 = vmatprep.mubr.bf16.mxu0 0
      %560 = vmatmul.mubr.bf16.gmra.mxu0 %v356
      %v561 = vpop.f32.mrf.mxu0
      %v562 = vadd.f32 %v277, %v561
      %v563 = vpop.f32.mrf.mxu0
      %v564 = vpop.f32.mrf.mxu0
      %v565 = vadd.f32 %v277, %v564
      %v566 = vpop.f32.mrf.mxu0
      %567 = vmatprep.mubr.bf16.mxu0 0
      %568 = vmatmul.mubr.bf16.gmra.mxu0 %v357
      %v569 = vpop.f32.mrf.mxu0
      %v570 = vadd.f32 %v277, %v569
      %v571 = vpop.f32.mrf.mxu0
      %v572 = vpop.f32.mrf.mxu0
      %v573 = vadd.f32 %v277, %v572
      %v574 = vpop.f32.mrf.mxu0
      %575 = vmatprep.mubr.bf16.mxu0 0
      %576 = vmatmul.mubr.bf16.gmra.mxu0 %v358
      %v577 = vpop.f32.mrf.mxu0
      %v578 = vadd.f32 %v277, %v577
      %v579 = vpop.f32.mrf.mxu0
      %v580 = vpop.f32.mrf.mxu0
      %v581 = vadd.f32 %v277, %v580
      %v582 = vpop.f32.mrf.mxu0
      %583 = vdwg.mxu0
      %v584 = vld [vmem:[%s215] sm:$0xf]
      %v585 = vld [vmem:[%s215 + $0x4] sm:$0xf]
      %v586 = vld [vmem:[%s215 + $0x8] sm:$0xf]
      %v587 = vld [vmem:[%s215 + $0xc] sm:$0xf]
      %v588 = vld [vmem:[%s215 + $0x10] sm:$0xf]
      %v589 = vld [vmem:[%s215 + $0x14] sm:$0xf]
      %v590 = vld [vmem:[%s215 + $0x18] sm:$0xf]
      %v591 = vld [vmem:[%s215 + $0x1c] sm:$0xf]
      %v592 = vld [vmem:[%s215 + $0x20] sm:$0xf]
      %v593 = vld [vmem:[%s215 + $0x24] sm:$0xf]
      %v594 = vld [vmem:[%s215 + $0x28] sm:$0xf]
      %v595 = vld [vmem:[%s215 + $0x2c] sm:$0xf]
      %v596 = vld [vmem:[%s215 + $0x30] sm:$0xf]
      %v597 = vld [vmem:[%s215 + $0x34] sm:$0xf]
      %v598 = vld [vmem:[%s215 + $0x38] sm:$0xf]
      %v599 = vld [vmem:[%s215 + $0x3c] sm:$0xf]
      %v600 = vld [vmem:[%s215 + $0x40] sm:$0xf]
      %v601 = vld [vmem:[%s215 + $0x44] sm:$0xf]
      %v602 = vld [vmem:[%s215 + $0x48] sm:$0xf]
      %v603 = vld [vmem:[%s215 + $0x4c] sm:$0xf]
      %v604 = vld [vmem:[%s215 + $0x50] sm:$0xf]
      %v605 = vld [vmem:[%s215 + $0x54] sm:$0xf]
      %v606 = vld [vmem:[%s215 + $0x58] sm:$0xf]
      %v607 = vld [vmem:[%s215 + $0x5c] sm:$0xf]
      %v608 = vld [vmem:[%s215 + $0x60] sm:$0xf]
      %v609 = vld [vmem:[%s215 + $0x64] sm:$0xf]
      %v610 = vld [vmem:[%s215 + $0x68] sm:$0xf]
      %v611 = vld [vmem:[%s215 + $0x6c] sm:$0xf]
      %v612 = vld [vmem:[%s215 + $0x70] sm:$0xf]
      %v613 = vld [vmem:[%s215 + $0x74] sm:$0xf]
      %v614 = vld [vmem:[%s215 + $0x78] sm:$0xf]
      %v615 = vld [vmem:[%s215 + $0x7c] sm:$0xf]
      %v616 = vunpack.c.l.bf16 %v584
      %v617 = vunpack.c.l.bf16 %v585
      %v618 = vunpack.c.l.bf16 %v586
      %v619 = vunpack.c.l.bf16 %v587
      %v620 = vunpack.c.l.bf16 %v588
      %v621 = vunpack.c.l.bf16 %v589
      %v622 = vunpack.c.l.bf16 %v590
      %v623 = vunpack.c.l.bf16 %v591
      %v624 = vunpack.c.l.bf16 %v592
      %v625 = vunpack.c.l.bf16 %v593
      %v626 = vunpack.c.l.bf16 %v594
      %v627 = vunpack.c.l.bf16 %v595
      %v628 = vunpack.c.l.bf16 %v596
      %v629 = vunpack.c.l.bf16 %v597
      %v630 = vunpack.c.l.bf16 %v598
      %v631 = vunpack.c.l.bf16 %v599
      %v632 = vunpack.c.l.bf16 %v600
      %v633 = vunpack.c.l.bf16 %v601
      %v634 = vunpack.c.l.bf16 %v602
      %v635 = vunpack.c.l.bf16 %v603
      %v636 = vunpack.c.l.bf16 %v604
      %v637 = vunpack.c.l.bf16 %v605
      %v638 = vunpack.c.l.bf16 %v606
      %v639 = vunpack.c.l.bf16 %v607
      %v640 = vunpack.c.l.bf16 %v608
      %v641 = vunpack.c.l.bf16 %v609
      %v642 = vunpack.c.l.bf16 %v610
      %v643 = vunpack.c.l.bf16 %v611
      %v644 = vunpack.c.l.bf16 %v612
      %v645 = vunpack.c.l.bf16 %v613
      %v646 = vunpack.c.l.bf16 %v614
      %v647 = vunpack.c.l.bf16 %v615
      %v648 = vadd.f32 %v458, %v616
      %v649 = vadd.f32 %v461, %v617
      %v650 = vadd.f32 %v466, %v618
      %v651 = vadd.f32 %v469, %v619
      %v652 = vadd.f32 %v474, %v620
      %v653 = vadd.f32 %v477, %v621
      %v654 = vadd.f32 %v482, %v622
      %v655 = vadd.f32 %v485, %v623
      %v656 = vadd.f32 %v490, %v624
      %v657 = vadd.f32 %v493, %v625
      %v658 = vadd.f32 %v498, %v626
      %v659 = vadd.f32 %v501, %v627
      %v660 = vadd.f32 %v506, %v628
      %v661 = vadd.f32 %v509, %v629
      %v662 = vadd.f32 %v514, %v630
      %v663 = vadd.f32 %v517, %v631
      %v664 = vadd.f32 %v522, %v632
      %v665 = vadd.f32 %v525, %v633
      %v666 = vadd.f32 %v530, %v634
      %v667 = vadd.f32 %v533, %v635
      %v668 = vadd.f32 %v538, %v636
      %v669 = vadd.f32 %v541, %v637
      %v670 = vadd.f32 %v546, %v638
      %v671 = vadd.f32 %v549, %v639
      %v672 = vadd.f32 %v554, %v640
      %v673 = vadd.f32 %v557, %v641
      %v674 = vadd.f32 %v562, %v642
      %v675 = vadd.f32 %v565, %v643
      %v676 = vadd.f32 %v570, %v644
      %v677 = vadd.f32 %v573, %v645
      %v678 = vadd.f32 %v578, %v646
      %v679 = vadd.f32 %v581, %v647
      %v680 = vmax.f32 %v648, 0.0
      %v681 = vmax.f32 %v649, 0.0
      %v682 = vmax.f32 %v650, 0.0
      %v683 = vmax.f32 %v651, 0.0
      %v684 = vmax.f32 %v652, 0.0
      %v685 = vmax.f32 %v653, 0.0
      %v686 = vmax.f32 %v654, 0.0
      %v687 = vmax.f32 %v655, 0.0
      %v688 = vmax.f32 %v656, 0.0
      %v689 = vmax.f32 %v657, 0.0
      %v690 = vmax.f32 %v658, 0.0
      %v691 = vmax.f32 %v659, 0.0
      %v692 = vmax.f32 %v660, 0.0
      %v693 = vmax.f32 %v661, 0.0
      %v694 = vmax.f32 %v662, 0.0
      %v695 = vmax.f32 %v663, 0.0
      %v696 = vmax.f32 %v664, 0.0
      %v697 = vmax.f32 %v665, 0.0
      %v698 = vmax.f32 %v666, 0.0
      %v699 = vmax.f32 %v667, 0.0
      %v700 = vmax.f32 %v668, 0.0
      %v701 = vmax.f32 %v669, 0.0
      %v702 = vmax.f32 %v670, 0.0
      %v703 = vmax.f32 %v671, 0.0
      %v704 = vmax.f32 %v672, 0.0
      %v705 = vmax.f32 %v673, 0.0
      %v706 = vmax.f32 %v674, 0.0
      %v707 = vmax.f32 %v675, 0.0
      %v708 = vmax.f32 %v676, 0.0
      %v709 = vmax.f32 %v677, 0.0
      %v710 = vmax.f32 %v678, 0.0
      %v711 = vmax.f32 %v679, 0.0
      %v712 = vpack.c.bf16 %v681, %v680
      %v713 = vpack.c.bf16 %v683, %v682
      %v714 = vpack.c.bf16 %v685, %v684
      %v715 = vpack.c.bf16 %v687, %v686
      %v716 = vpack.c.bf16 %v689, %v688
      %v717 = vpack.c.bf16 %v691, %v690
      %v718 = vpack.c.bf16 %v693, %v692
      %v719 = vpack.c.bf16 %v695, %v694
      %v720 = vpack.c.bf16 %v697, %v696
      %v721 = vpack.c.bf16 %v699, %v698
      %v722 = vpack.c.bf16 %v701, %v700
      %v723 = vpack.c.bf16 %v703, %v702
      %v724 = vpack.c.bf16 %v705, %v704
      %v725 = vpack.c.bf16 %v707, %v706
      %v726 = vpack.c.bf16 %v709, %v708
      %v727 = vpack.c.bf16 %v711, %v710
      %v744 = vunpack.c.l.b16 %v712
      %v745 = vunpack.c.h.b16 %v712
      %v746 = vunpack.c.l.b16 %v713
      %v747 = vunpack.c.h.b16 %v713
      %v748 = vunpack.c.l.b16 %v714
      %v749 = vunpack.c.h.b16 %v714
      %v750 = vunpack.c.l.b16 %v715
      %v751 = vunpack.c.h.b16 %v715
      %v752 = vunpack.c.l.b16 %v716
      %v753 = vunpack.c.h.b16 %v716
      %v754 = vunpack.c.l.b16 %v717
      %v755 = vunpack.c.h.b16 %v717
      %v756 = vunpack.c.l.b16 %v718
      %v757 = vunpack.c.h.b16 %v718
      %v758 = vunpack.c.l.b16 %v719
      %v759 = vunpack.c.h.b16 %v719
      %v760 = vunpack.c.l.b16 %v720
      %v761 = vunpack.c.h.b16 %v720
      %v762 = vunpack.c.l.b16 %v721
      %v763 = vunpack.c.h.b16 %v721
      %v764 = vunpack.c.l.b16 %v722
      %v765 = vunpack.c.h.b16 %v722
      %v766 = vunpack.c.l.b16 %v723
      %v767 = vunpack.c.h.b16 %v723
      %v768 = vunpack.c.l.b16 %v724
      %v769 = vunpack.c.h.b16 %v724
      %v770 = vunpack.c.l.b16 %v725
      %v771 = vunpack.c.h.b16 %v725
      %v772 = vunpack.c.l.b16 %v726
      %v773 = vunpack.c.h.b16 %v726
      %v774 = vunpack.c.l.b16 %v727
      %v775 = vunpack.c.h.b16 %v727
      %v776 = vpack.c.b16 %v744, %v744
      %v777 = vpack.c.b16 %v745, %v745
      %v778 = vpack.c.b16 %v746, %v746
      %v779 = vpack.c.b16 %v747, %v747
      %v780 = vpack.c.b16 %v748, %v748
      %v781 = vpack.c.b16 %v749, %v749
      %v782 = vpack.c.b16 %v750, %v750
      %v783 = vpack.c.b16 %v751, %v751
      %v784 = vpack.c.b16 %v752, %v752
      %v785 = vpack.c.b16 %v753, %v753
      %v786 = vpack.c.b16 %v754, %v754
      %v787 = vpack.c.b16 %v755, %v755
      %v788 = vpack.c.b16 %v756, %v756
      %v789 = vpack.c.b16 %v757, %v757
      %v790 = vpack.c.b16 %v758, %v758
      %v791 = vpack.c.b16 %v759, %v759
      %v792 = vpack.c.b16 %v760, %v760
      %v793 = vpack.c.b16 %v761, %v761
      %v794 = vpack.c.b16 %v762, %v762
      %v795 = vpack.c.b16 %v763, %v763
      %v796 = vpack.c.b16 %v764, %v764
      %v797 = vpack.c.b16 %v765, %v765
      %v798 = vpack.c.b16 %v766, %v766
      %v799 = vpack.c.b16 %v767, %v767
      %v800 = vpack.c.b16 %v768, %v768
      %v801 = vpack.c.b16 %v769, %v769
      %v802 = vpack.c.b16 %v770, %v770
      %v803 = vpack.c.b16 %v771, %v771
      %v804 = vpack.c.b16 %v772, %v772
      %v805 = vpack.c.b16 %v773, %v773
      %v806 = vpack.c.b16 %v774, %v774
      %v807 = vpack.c.b16 %v775, %v775
      %840 = vst [vmem:[%s221] sm:$0xf] %v776
      %841 = vst [vmem:[%s221 + $0x4] sm:$0xf] %v777
      %842 = vst [vmem:[%s221 + $0x8] sm:$0xf] %v778
      %843 = vst [vmem:[%s221 + $0xc] sm:$0xf] %v779
      %844 = vst [vmem:[%s221 + $0x10] sm:$0xf] %v780
      %845 = vst [vmem:[%s221 + $0x14] sm:$0xf] %v781
      %846 = vst [vmem:[%s221 + $0x18] sm:$0xf] %v782
      %847 = vst [vmem:[%s221 + $0x1c] sm:$0xf] %v783
      %848 = vst [vmem:[%s221 + $0x20] sm:$0xf] %v784
      %849 = vst [vmem:[%s221 + $0x24] sm:$0xf] %v785
      %850 = vst [vmem:[%s221 + $0x28] sm:$0xf] %v786
      %851 = vst [vmem:[%s221 + $0x2c] sm:$0xf] %v787
      %852 = vst [vmem:[%s221 + $0x30] sm:$0xf] %v788
      %853 = vst [vmem:[%s221 + $0x34] sm:$0xf] %v789
      %854 = vst [vmem:[%s221 + $0x38] sm:$0xf] %v790
      %855 = vst [vmem:[%s221 + $0x3c] sm:$0xf] %v791
      %856 = vst [vmem:[%s221 + $0x40] sm:$0xf] %v792
      %857 = vst [vmem:[%s221 + $0x44] sm:$0xf] %v793
      %858 = vst [vmem:[%s221 + $0x48] sm:$0xf] %v794
      %859 = vst [vmem:[%s221 + $0x4c] sm:$0xf] %v795
      %860 = vst [vmem:[%s221 + $0x50] sm:$0xf] %v796
      %861 = vst [vmem:[%s221 + $0x54] sm:$0xf] %v797
      %862 = vst [vmem:[%s221 + $0x58] sm:$0xf] %v798
      %863 = vst [vmem:[%s221 + $0x5c] sm:$0xf] %v799
      %864 = vst [vmem:[%s221 + $0x60] sm:$0xf] %v800
      %865 = vst [vmem:[%s221 + $0x64] sm:$0xf] %v801
      %866 = vst [vmem:[%s221 + $0x68] sm:$0xf] %v802
      %867 = vst [vmem:[%s221 + $0x6c] sm:$0xf] %v803
      %868 = vst [vmem:[%s221 + $0x70] sm:$0xf] %v804
      %869 = vst [vmem:[%s221 + $0x74] sm:$0xf] %v805
      %870 = vst [vmem:[%s221 + $0x78] sm:$0xf] %v806
      %871 = vst [vmem:[%s221 + $0x7c] sm:$0xf] %v807
      %s872 = smul.u32 32, %s15
      %p873 = scmp.lt.s32.totalorder %s872, 63
      %s874 = scalar_select %p873, %s872, 63
      %s875 = smul.addr %s874, 4
      %s876 = scalar_lea.vmem %s4, %s875
      // Predicated region
      $region37: #{feature_extractor_forward.24} parent=35 // pred_check
        %p877 = pneg %p127
      $region38: #{feature_extractor_forward.24} parent=35 // pred_check_branch
        %879 = sbr.rel (%p877) target = $region40
      $region39: #{feature_extractor_forward.24} parent=35 // pred_region
        %s880 = smul.u32 32, %s15
      $region40: #{feature_extractor_forward.24} parent=35 // pred_fallthru
        _
    $region36: #{feature_extractor_forward.24} parent=5 // pred_fallthru
      _
    %p881 = scmp.le.s32.totalorder 2, %s10
    // Predicated region
    $region41: #{feature_extractor_forward.24} parent=5 // pred_check
      %p882 = pneg %p881
    $region42: #{feature_extractor_forward.24} parent=5 // pred_check_branch
      %884 = sbr.rel (%p882) target = $region44
    $region43: #{feature_extractor_forward.24} parent=5 // pred_region
      %s885 = ssub.s32 %s10, 2
      // Predicated region
      $region45: #{feature_extractor_forward.24} parent=43 // pred_check
        %p886 = pneg %p133
      $region46: #{feature_extractor_forward.24} parent=43 // pred_check_branch
        %888 = sbr.rel (%p886) target = $region48
      $region47: #{feature_extractor_forward.24} parent=43 // pred_region
        %s889 = smul.u32 32, %s16
        %p890 = scmp.lt.s32.totalorder %s889, 63
        %s891 = scalar_select %p890, %s889, 63
        %s892 = smul.addr %s891, 4
        %s893 = scalar_lea.vmem %s4, %s892
      $region48: #{feature_extractor_forward.24} parent=43 // pred_fallthru
        _
    $region44: #{feature_extractor_forward.24} parent=5 // pred_fallthru
      _
  $region6: #{feature_extractor_forward.24} parent=0 // loop_footer
    %s14 = sadd.s32 1, %s10
  $region7: #{feature_extractor_forward.24} parent=0 // loop_footer_branch
    %9 = sbr.rel target = $region3
  $region8: #{feature_extractor_forward.24} parent=0 // loop_exit
    _

// kernel: feature_extractor_forward.27
$region0: #{feature_extractor_forward.27}
  #allocation0 [shape = 'u32[]', space=smem, size = 0x4, offset = 0x4, fixed_abs, tag = 'smem constant byte address 0x4 - core index']
  #allocation1 [shape = 'u32[144,128]{1,0:T(1,128)}', space=vmem, size = 0x12000, scoped, tag = 'internal scratch']
  %s0 = inlined_call_operand.vmem [shape: bf16[128,128], index: 0, kind: input, shape index: {}]
  %s1 = inlined_call_operand.vmem [shape: bf16[128,128], index: 1, kind: input, shape index: {}]
  %s2 = inlined_call_operand.vmem [shape: f32[1,128], index: 2, kind: input, shape index: {}]
  %s3 = inlined_call_operand.vmem [shape: bf16[128,128], index: 3, kind: output, shape index: {}]
  %s4 = sld [smem:[#allocation0]]
  $region45: #{feature_extractor_forward.27} parent=0
    _
  %s6 = ssub.s32 1, %s4
  %s7 = scalar_select 0, %s6, %s4
  loop: start=0, step=1, limit=4
  $region2: #{feature_extractor_forward.27} parent=0 // loop_pre_header
    _
  $region3: #{feature_extractor_forward.27} parent=0 // loop_header
    %s9 = sphi 0, %s13
    %p10 = scmp.ge.s32.totalorder %s9, 4
    %s19 = sphi 0, %s21
    %s22 = sphi 0, %s19
    %s23 = sphi 0, %s22
    %s39 = sphi 0, %s23
    %s43 = sphi 0, %s43
    %s45 = sphi 0, %s43
    %s46 = sphi 0, %s45
    %s60 = sphi 0, %s46
    %s64 = sphi 0, %s64
    %s66 = sphi 0, %s64
    %s67 = sphi 0, %s66
    %s81 = sphi 0, %s67
    %s87 = sphi 0, %s89
    %s90 = sphi 0, %s87
    %s91 = sphi 0, %s90
    %s107 = sphi 0, %s91
  $region4: #{feature_extractor_forward.27} parent=0 // loop_header_branch
    %12 = sbr.rel (%p10) target = $region8
  $region5: #{feature_extractor_forward.27} parent=0 // loop_body
    %s14 = ssub.s32 %s9, 1
    %s15 = ssub.s32 %s9, 2
    %s16 = sadd.s32 %s9, 1
    %s17 = ssub.s32 %s9, %s16
    %p18 = scmp.eq.s32.totalorder %s17, 0
    %s20 = sadd.s32 %s19, 1
    %s21 = scalar_select %p18, %s19, %s20
    %p24 = pneg %p18
    %p25 = scmp.eq.s32.totalorder %s9, 1
    %p26 = por %p24, %p25
    %p27 = scmp.ne.s32.totalorder %s19, %s22
    %p28 = scmp.eq.s32.totalorder %s9, 0
    %p29 = por %p27, %p28
    %p30 = scmp.ne.s32.totalorder %s19, %s22
    %p31 = scmp.eq.s32.totalorder %s14, 1
    %p32 = por %p30, %p31
    %p33 = scmp.ne.s32.totalorder %s22, %s23
    %p34 = scmp.eq.s32.totalorder %s14, 0
    %p35 = por %p33, %p34
    %p36 = scmp.ne.s32.totalorder %s22, %s23
    %p37 = scmp.eq.s32.totalorder %s15, 1
    %p38 = por %p36, %p37
    %p40 = scmp.ne.s32.totalorder %s23, %s39
    %p41 = scmp.eq.s32.totalorder %s15, 0
    %p42 = por %p40, %p41
    %s44 = sadd.s32 %s43, 1
    %p47 = scmp.eq.s32.totalorder %s9, 1
    %p48 = scmp.ne.s32.totalorder %s43, %s45
    %p49 = scmp.eq.s32.totalorder %s9, 0
    %p50 = por %p48, %p49
    %p51 = scmp.ne.s32.totalorder %s43, %s45
    %p52 = scmp.eq.s32.totalorder %s14, 1
    %p53 = por %p51, %p52
    %p54 = scmp.ne.s32.totalorder %s45, %s46
    %p55 = scmp.eq.s32.totalorder %s14, 0
    %p56 = por %p54, %p55
    %p57 = scmp.ne.s32.totalorder %s45, %s46
    %p58 = scmp.eq.s32.totalorder %s15, 1
    %p59 = por %p57, %p58
    %p61 = scmp.ne.s32.totalorder %s46, %s60
    %p62 = scmp.eq.s32.totalorder %s15, 0
    %p63 = por %p61, %p62
    %s65 = sadd.s32 %s64, 1
    %p68 = scmp.eq.s32.totalorder %s9, 1
    %p69 = scmp.ne.s32.totalorder %s64, %s66
    %p70 = scmp.eq.s32.totalorder %s9, 0
    %p71 = por %p69, %p70
    %p72 = scmp.ne.s32.totalorder %s64, %s66
    %p73 = scmp.eq.s32.totalorder %s14, 1
    %p74 = por %p72, %p73
    %p75 = scmp.ne.s32.totalorder %s66, %s67
    %p76 = scmp.eq.s32.totalorder %s14, 0
    %p77 = por %p75, %p76
    %p78 = scmp.ne.s32.totalorder %s66, %s67
    %p79 = scmp.eq.s32.totalorder %s15, 1
    %p80 = por %p78, %p79
    %p82 = scmp.ne.s32.totalorder %s67, %s81
    %p83 = scmp.eq.s32.totalorder %s15, 0
    %p84 = por %p82, %p83
    %s85 = ssub.s32 %s9, %s16
    %p86 = scmp.eq.s32.totalorder %s85, 0
    %s88 = sadd.s32 %s87, 1
    %s89 = scalar_select %p86, %s87, %s88
    %p92 = pneg %p86
    %p93 = scmp.eq.s32.totalorder %s9, 1
    %p94 = por %p92, %p93
    %p95 = scmp.ne.s32.totalorder %s87, %s90
    %p96 = scmp.eq.s32.totalorder %s9, 0
    %p97 = por %p95, %p96
    %p98 = scmp.ne.s32.totalorder %s87, %s90
    %p99 = scmp.eq.s32.totalorder %s14, 1
    %p100 = por %p98, %p99
    %p101 = scmp.ne.s32.totalorder %s90, %s91
    %p102 = scmp.eq.s32.totalorder %s14, 0
    %p103 = por %p101, %p102
    %p104 = scmp.ne.s32.totalorder %s90, %s91
    %p105 = scmp.eq.s32.totalorder %s15, 1
    %p106 = por %p104, %p105
    %p108 = scmp.ne.s32.totalorder %s91, %s107
    %p109 = scmp.eq.s32.totalorder %s15, 0
    %p110 = por %p108, %p109
    %p111 = scmp.le.s32.totalorder 1, %s9
    %p112 = scmp.lt.s32.totalorder %s9, 3
    %p113 = pnand %p111, %p112
    %p114 = pneg %p113
    // Predicated region
    $region9: #{feature_extractor_forward.27} parent=5 // pred_check
      _
    $region10: #{feature_extractor_forward.27} parent=5 // pred_check_branch
      %116 = sbr.rel (%p113) target = $region12
    $region11: #{feature_extractor_forward.27} parent=5 // pred_region
      %s117 = ssub.s32 %s9, 1
      // Predicated region
      $region13: #{feature_extractor_forward.27} parent=11 // pred_check
        %p118 = pneg %p56
      $region14: #{feature_extractor_forward.27} parent=11 // pred_check_branch
        %120 = sbr.rel (%p118) target = $region16
      $region15: #{feature_extractor_forward.27} parent=11 // pred_region
        _
      $region16: #{feature_extractor_forward.27} parent=11 // pred_fallthru
        _
      // Predicated region
      $region17: #{feature_extractor_forward.27} parent=11 // pred_check
        %p121 = pneg %p77
      $region18: #{feature_extractor_forward.27} parent=11 // pred_check_branch
        %123 = sbr.rel (%p121) target = $region20
      $region19: #{feature_extractor_forward.27} parent=11 // pred_region
        _
      $region20: #{feature_extractor_forward.27} parent=11 // pred_fallthru
        _
    $region12: #{feature_extractor_forward.27} parent=5 // pred_fallthru
      _
    %p124 = scmp.lt.s32.totalorder %s9, 2
    // Predicated region
    $region21: #{feature_extractor_forward.27} parent=5 // pred_check
      %p125 = pneg %p124
    $region22: #{feature_extractor_forward.27} parent=5 // pred_check_branch
      %127 = sbr.rel (%p125) target = $region24
    $region23: #{feature_extractor_forward.27} parent=5 // pred_region
      // Predicated region
      $region25: #{feature_extractor_forward.27} parent=23 // pred_check
        %p128 = pneg %p29
      $region26: #{feature_extractor_forward.27} parent=23 // pred_check_branch
        %130 = sbr.rel (%p128) target = $region28
      $region27: #{feature_extractor_forward.27} parent=23 // pred_region
        %s131 = smul.u32 8, %s9
        %p132 = scmp.lt.s32.totalorder %s131, 15
        %s133 = scalar_select %p132, %s131, 15
        %s134 = smul.addr %s133, 4
        %s135 = scalar_lea.vmem %s0, %s134
        %s136 = smul.u32 8, %s9
      $region28: #{feature_extractor_forward.27} parent=23 // pred_fallthru
        _
    $region24: #{feature_extractor_forward.27} parent=5 // pred_fallthru
      _
    %p137 = scmp.le.s32.totalorder 1, %s9
    %p138 = scmp.lt.s32.totalorder %s9, 3
    %p139 = pnand %p137, %p138
    %p140 = pneg %p139
    // Predicated region
    $region29: #{feature_extractor_forward.27} parent=5 // pred_check
      _
    $region30: #{feature_extractor_forward.27} parent=5 // pred_check_branch
      %142 = sbr.rel (%p139) target = $region32
    $region31: #{feature_extractor_forward.27} parent=5 // pred_region
      %s143 = ssub.s32 %s9, 1
      %s144 = smul.u32 8, %s14
      %p145 = scmp.lt.s32.totalorder %s144, 15
      %s146 = scalar_select %p145, %s144, 15
      %s147 = smul.addr %s146, 4
      %s148 = scalar_lea.vmem %s0, %s147
      %p149 = pneg %p35
      %p150 = pneg %p32
      %p151 = pneg %p56
      %p152 = pneg %p53
      %p153 = pneg %p77
      %p154 = pneg %p74
      %p155 = pneg %p103
      %p156 = pneg %p100
      %s157 = smul.u32 8, %s14
      %p158 = scmp.lt.s32.totalorder %s157, 15
      %s159 = scalar_select %p158, %s157, 15
      %s160 = smul.addr %s159, 4
      %s161 = scalar_lea.vmem %s3, %s160
      %s162 = smul.u32 8, %s14
      %p163 = scmp.lt.s32.totalorder %s162, 15
      %s164 = scalar_select %p163, %s162, 15
      %s165 = smul.addr %s164, 4
      %s166 = scalar_lea.vmem %s0, %s165
      %s167 = smul.u32 8, %s14
      %s168 = smul.u32 8, %s14
      %p169 = scmp.lt.s32.totalorder %s168, 15
      %s170 = scalar_select %p169, %s168, 15
      %s171 = smul.addr %s170, 4
      %s172 = scalar_lea.vmem %s3, %s171
      %s173 = smul.u32 8, %s14
      %v175 = vld [vmem:[%s166] sm:$0xf]
      %v176 = vld [vmem:[%s166 + $0x4] sm:$0xf]
      %v177 = vld [vmem:[%s166 + $0x8] sm:$0xf]
      %v178 = vld [vmem:[%s166 + $0xc] sm:$0xf]
      %v179 = vld [vmem:[%s166 + $0x10] sm:$0xf]
      %v180 = vld [vmem:[%s166 + $0x14] sm:$0xf]
      %v181 = vld [vmem:[%s166 + $0x18] sm:$0xf]
      %v182 = vld [vmem:[%s166 + $0x1c] sm:$0xf]
      %v183 = vld [vmem:[%s1] sm:$0xf]
      %v184 = vld [vmem:[%s1 + $0x4] sm:$0xf]
      %v185 = vld [vmem:[%s1 + $0x8] sm:$0xf]
      %v186 = vld [vmem:[%s1 + $0xc] sm:$0xf]
      %v187 = vld [vmem:[%s1 + $0x10] sm:$0xf]
      %v188 = vld [vmem:[%s1 + $0x14] sm:$0xf]
      %v189 = vld [vmem:[%s1 + $0x18] sm:$0xf]
      %v190 = vld [vmem:[%s1 + $0x1c] sm:$0xf]
      %v191 = vld [vmem:[%s1 + $0x20] sm:$0xf]
      %v192 = vld [vmem:[%s1 + $0x24] sm:$0xf]
      %v193 = vld [vmem:[%s1 + $0x28] sm:$0xf]
      %v194 = vld [vmem:[%s1 + $0x2c] sm:$0xf]
      %v195 = vld [vmem:[%s1 + $0x30] sm:$0xf]
      %v196 = vld [vmem:[%s1 + $0x34] sm:$0xf]
      %v197 = vld [vmem:[%s1 + $0x38] sm:$0xf]
      %v198 = vld [vmem:[%s1 + $0x3c] sm:$0xf]
      %v199 = vld [vmem:[%s2] sm:$0x1]
      %v201 = vlaneseq
      %v202 = vshrl.u32 %v201, 7
      %v203 = vsub.s32 0, %v202
      %v204 = vrot.slane %v199, %v203
      %v214 = vunpack.c.l.b16 %v175
      %v215 = vunpack.c.l.b16 %v176
      %v216 = vunpack.c.l.b16 %v177
      %v217 = vunpack.c.l.b16 %v178
      %v218 = vunpack.c.l.b16 %v179
      %v219 = vunpack.c.l.b16 %v180
      %v220 = vunpack.c.l.b16 %v181
      %v221 = vunpack.c.l.b16 %v182
      %v222 = vpack.c.b16 %v215, %v214
      %v223 = vpack.c.b16 %v217, %v216
      %v224 = vpack.c.b16 %v219, %v218
      %v225 = vpack.c.b16 %v221, %v220
      %v246 = vunpack.c.l.b16 %v183
      %v247 = vunpack.c.l.b16 %v184
      %v248 = vunpack.c.l.b16 %v185
      %v249 = vunpack.c.l.b16 %v186
      %v250 = vunpack.c.l.b16 %v187
      %v251 = vunpack.c.l.b16 %v188
      %v252 = vunpack.c.l.b16 %v189
      %v253 = vunpack.c.l.b16 %v190
      %v254 = vunpack.c.l.b16 %v191
      %v255 = vunpack.c.l.b16 %v192
      %v256 = vunpack.c.l.b16 %v193
      %v257 = vunpack.c.l.b16 %v194
      %v258 = vunpack.c.l.b16 %v195
      %v259 = vunpack.c.l.b16 %v196
      %v260 = vunpack.c.l.b16 %v197
      %v261 = vunpack.c.l.b16 %v198
      %v262 = vpack.c.b16 %v247, %v246
      %v263 = vpack.c.b16 %v249, %v248
      %v264 = vpack.c.b16 %v251, %v250
      %v265 = vpack.c.b16 %v253, %v252
      %v266 = vpack.c.b16 %v255, %v254
      %v267 = vpack.c.b16 %v257, %v256
      %v268 = vpack.c.b16 %v259, %v258
      %v269 = vpack.c.b16 %v261, %v260
      %278 = vmatprep.subr.bf16.mxu0 0
      %279 = vmatpush1.bf16.msra.mxu0 %v269
      %280 = vmatprep.subr.bf16.mxu0 0
      %281 = vmatpush1.bf16.msra.mxu0 %v268
      %282 = vmatprep.subr.bf16.mxu0 0
      %283 = vmatpush1.bf16.msra.mxu0 %v267
      %284 = vmatprep.subr.bf16.mxu0 0
      %285 = vmatpush1.bf16.msra.mxu0 %v266
      %286 = vmatprep.subr.bf16.mxu0 0
      %287 = vmatpush1.bf16.msra.mxu0 %v265
      %288 = vmatprep.subr.bf16.mxu0 0
      %289 = vmatpush1.bf16.msra.mxu0 %v264
      %290 = vmatprep.subr.bf16.mxu0 0
      %291 = vmatpush1.bf16.msra.mxu0 %v263
      %292 = vmatprep.subr.bf16.mxu0 0
      %293 = vmatpush1.bf16.msra.mxu0 %v262
      %294 = vmatprep.subr.bf16.mxu0 0
      %295 = vmatpush2.bf16.msra.mxu0 0
      %296 = vmatprep.subr.bf16.mxu0 0
      %297 = vmatpush2.bf16.msra.mxu0 0
      %298 = vmatprep.subr.bf16.mxu0 0
      %299 = vmatpush2.bf16.msra.mxu0 0
      %300 = vmatprep.subr.bf16.mxu0 0
      %301 = vmatpush2.bf16.msra.mxu0 0
      %302 = vmatprep.subr.bf16.mxu0 0
      %303 = vmatpush2.bf16.msra.mxu0 0
      %304 = vmatprep.subr.bf16.mxu0 0
      %305 = vmatpush2.bf16.msra.mxu0 0
      %306 = vmatprep.subr.bf16.mxu0 0
      %307 = vmatpush2.bf16.msra.mxu0 0
      %308 = vmatprep.subr.bf16.mxu0 0
      %309 = vmatpush2.bf16.msra.mxu0 0
      %310 = vmatprep.mubr.bf16.mxu0 0
      %311 = vmatmul.mubr.bf16.gmra.mxu0 %v222
      %v312 = vpop.f32.mrf.mxu0
      %v313 = vadd.f32 %v204, %v312
      %v314 = vpop.f32.mrf.mxu0
      %v315 = vpop.f32.mrf.mxu0
      %v316 = vadd.f32 %v204, %v315
      %v317 = vpop.f32.mrf.mxu0
      %318 = vmatprep.mubr.bf16.mxu0 0
      %319 = vmatmul.mubr.bf16.gmra.mxu0 %v223
      %v320 = vpop.f32.mrf.mxu0
      %v321 = vadd.f32 %v204, %v320
      %v322 = vpop.f32.mrf.mxu0
      %v323 = vpop.f32.mrf.mxu0
      %v324 = vadd.f32 %v204, %v323
      %v325 = vpop.f32.mrf.mxu0
      %326 = vmatprep.mubr.bf16.mxu0 0
      %327 = vmatmul.mubr.bf16.gmra.mxu0 %v224
      %v328 = vpop.f32.mrf.mxu0
      %v329 = vadd.f32 %v204, %v328
      %v330 = vpop.f32.mrf.mxu0
      %v331 = vpop.f32.mrf.mxu0
      %v332 = vadd.f32 %v204, %v331
      %v333 = vpop.f32.mrf.mxu0
      %334 = vmatprep.mubr.bf16.mxu0 0
      %335 = vmatmul.mubr.bf16.gmra.mxu0 %v225
      %v336 = vpop.f32.mrf.mxu0
      %v337 = vadd.f32 %v204, %v336
      %v338 = vpop.f32.mrf.mxu0
      %v339 = vpop.f32.mrf.mxu0
      %v340 = vadd.f32 %v204, %v339
      %v341 = vpop.f32.mrf.mxu0
      %342 = vdwg.mxu0
      %v343 = vmax.f32 %v313, 0.0
      %v344 = vmax.f32 %v316, 0.0
      %v345 = vmax.f32 %v321, 0.0
      %v346 = vmax.f32 %v324, 0.0
      %v347 = vmax.f32 %v329, 0.0
      %v348 = vmax.f32 %v332, 0.0
      %v349 = vmax.f32 %v337, 0.0
      %v350 = vmax.f32 %v340, 0.0
      %v351 = vpack.c.bf16 %v344, %v343
      %v352 = vpack.c.bf16 %v346, %v345
      %v353 = vpack.c.bf16 %v348, %v347
      %v354 = vpack.c.bf16 %v350, %v349
      %v359 = vunpack.c.l.b16 %v351
      %v360 = vunpack.c.h.b16 %v351
      %v361 = vunpack.c.l.b16 %v352
      %v362 = vunpack.c.h.b16 %v352
      %v363 = vunpack.c.l.b16 %v353
      %v364 = vunpack.c.h.b16 %v353
      %v365 = vunpack.c.l.b16 %v354
      %v366 = vunpack.c.h.b16 %v354
      %v367 = vpack.c.b16 %v359, %v359
      %v368 = vpack.c.b16 %v360, %v360
      %v369 = vpack.c.b16 %v361, %v361
      %v370 = vpack.c.b16 %v362, %v362
      %v371 = vpack.c.b16 %v363, %v363
      %v372 = vpack.c.b16 %v364, %v364
      %v373 = vpack.c.b16 %v365, %v365
      %v374 = vpack.c.b16 %v366, %v366
      %383 = vst [vmem:[%s172] sm:$0xf] %v367
      %384 = vst [vmem:[%s172 + $0x4] sm:$0xf] %v368
      %385 = vst [vmem:[%s172 + $0x8] sm:$0xf] %v369
      %386 = vst [vmem:[%s172 + $0xc] sm:$0xf] %v370
      %387 = vst [vmem:[%s172 + $0x10] sm:$0xf] %v371
      %388 = vst [vmem:[%s172 + $0x14] sm:$0xf] %v372
      %389 = vst [vmem:[%s172 + $0x18] sm:$0xf] %v373
      %390 = vst [vmem:[%s172 + $0x1c] sm:$0xf] %v374
      %s391 = smul.u32 8, %s14
      %p392 = scmp.lt.s32.totalorder %s391, 15
      %s393 = scalar_select %p392, %s391, 15
      %s394 = smul.addr %s393, 4
      %s395 = scalar_lea.vmem %s3, %s394
      // Predicated region
      $region33: #{feature_extractor_forward.27} parent=31 // pred_check
        %p396 = pneg %p100
      $region34: #{feature_extractor_forward.27} parent=31 // pred_check_branch
        %398 = sbr.rel (%p396) target = $region36
      $region35: #{feature_extractor_forward.27} parent=31 // pred_region
        %s399 = smul.u32 8, %s14
      $region36: #{feature_extractor_forward.27} parent=31 // pred_fallthru
        _
    $region32: #{feature_extractor_forward.27} parent=5 // pred_fallthru
      _
    %p400 = scmp.le.s32.totalorder 2, %s9
    // Predicated region
    $region37: #{feature_extractor_forward.27} parent=5 // pred_check
      %p401 = pneg %p400
    $region38: #{feature_extractor_forward.27} parent=5 // pred_check_branch
      %403 = sbr.rel (%p401) target = $region40
    $region39: #{feature_extractor_forward.27} parent=5 // pred_region
      %s404 = ssub.s32 %s9, 2
      // Predicated region
      $region41: #{feature_extractor_forward.27} parent=39 // pred_check
        %p405 = pneg %p106
      $region42: #{feature_extractor_forward.27} parent=39 // pred_check_branch
        %407 = sbr.rel (%p405) target = $region44
      $region43: #{feature_extractor_forward.27} parent=39 // pred_region
        %s408 = smul.u32 8, %s15
        %p409 = scmp.lt.s32.totalorder %s408, 15
        %s410 = scalar_select %p409, %s408, 15
        %s411 = smul.addr %s410, 4
        %s412 = scalar_lea.vmem %s3, %s411
      $region44: #{feature_extractor_forward.27} parent=39 // pred_fallthru
        _
    $region40: #{feature_extractor_forward.27} parent=5 // pred_fallthru
      _
  $region6: #{feature_extractor_forward.27} parent=0 // loop_footer
    %s13 = sadd.s32 1, %s9
  $region7: #{feature_extractor_forward.27} parent=0 // loop_footer_branch
    %8 = sbr.rel target = $region3
  $region8: #{feature_extractor_forward.27} parent=0 // loop_exit
    _

// kernel: feature_extractor_forward.28
$region0: #{feature_extractor_forward.28}
  #allocation0 [shape = 'u32[]', space=smem, size = 0x4, offset = 0x4, fixed_abs, tag = 'smem constant byte address 0x4 - core index']
  #allocation1 [shape = 'u32[144,128]{1,0:T(1,128)}', space=vmem, size = 0x12000, scoped, tag = 'internal scratch']
  %s0 = inlined_call_operand.vmem [shape: bf16[128,128], index: 0, kind: input, shape index: {}]
  %s1 = inlined_call_operand.vmem [shape: bf16[128,128], index: 1, kind: input, shape index: {}]
  %s2 = inlined_call_operand.vmem [shape: f32[1,128], index: 2, kind: input, shape index: {}]
  %s3 = inlined_call_operand.vmem [shape: bf16[128,128], index: 3, kind: output, shape index: {}]
  %s4 = sld [smem:[#allocation0]]
  $region45: #{feature_extractor_forward.28} parent=0
    _
  %s6 = ssub.s32 1, %s4
  %s7 = scalar_select 0, %s6, %s4
  loop: start=0, step=1, limit=4
  $region2: #{feature_extractor_forward.28} parent=0 // loop_pre_header
    _
  $region3: #{feature_extractor_forward.28} parent=0 // loop_header
    %s9 = sphi 0, %s13
    %p10 = scmp.ge.s32.totalorder %s9, 4
    %s19 = sphi 0, %s21
    %s22 = sphi 0, %s19
    %s23 = sphi 0, %s22
    %s39 = sphi 0, %s23
    %s43 = sphi 0, %s43
    %s45 = sphi 0, %s43
    %s46 = sphi 0, %s45
    %s60 = sphi 0, %s46
    %s64 = sphi 0, %s64
    %s66 = sphi 0, %s64
    %s67 = sphi 0, %s66
    %s81 = sphi 0, %s67
    %s87 = sphi 0, %s89
    %s90 = sphi 0, %s87
    %s91 = sphi 0, %s90
    %s107 = sphi 0, %s91
  $region4: #{feature_extractor_forward.28} parent=0 // loop_header_branch
    %12 = sbr.rel (%p10) target = $region8
  $region5: #{feature_extractor_forward.28} parent=0 // loop_body
    %s14 = ssub.s32 %s9, 1
    %s15 = ssub.s32 %s9, 2
    %s16 = sadd.s32 %s9, 1
    %s17 = ssub.s32 %s9, %s16
    %p18 = scmp.eq.s32.totalorder %s17, 0
    %s20 = sadd.s32 %s19, 1
    %s21 = scalar_select %p18, %s19, %s20
    %p24 = pneg %p18
    %p25 = scmp.eq.s32.totalorder %s9, 1
    %p26 = por %p24, %p25
    %p27 = scmp.ne.s32.totalorder %s19, %s22
    %p28 = scmp.eq.s32.totalorder %s9, 0
    %p29 = por %p27, %p28
    %p30 = scmp.ne.s32.totalorder %s19, %s22
    %p31 = scmp.eq.s32.totalorder %s14, 1
    %p32 = por %p30, %p31
    %p33 = scmp.ne.s32.totalorder %s22, %s23
    %p34 = scmp.eq.s32.totalorder %s14, 0
    %p35 = por %p33, %p34
    %p36 = scmp.ne.s32.totalorder %s22, %s23
    %p37 = scmp.eq.s32.totalorder %s15, 1
    %p38 = por %p36, %p37
    %p40 = scmp.ne.s32.totalorder %s23, %s39
    %p41 = scmp.eq.s32.totalorder %s15, 0
    %p42 = por %p40, %p41
    %s44 = sadd.s32 %s43, 1
    %p47 = scmp.eq.s32.totalorder %s9, 1
    %p48 = scmp.ne.s32.totalorder %s43, %s45
    %p49 = scmp.eq.s32.totalorder %s9, 0
    %p50 = por %p48, %p49
    %p51 = scmp.ne.s32.totalorder %s43, %s45
    %p52 = scmp.eq.s32.totalorder %s14, 1
    %p53 = por %p51, %p52
    %p54 = scmp.ne.s32.totalorder %s45, %s46
    %p55 = scmp.eq.s32.totalorder %s14, 0
    %p56 = por %p54, %p55
    %p57 = scmp.ne.s32.totalorder %s45, %s46
    %p58 = scmp.eq.s32.totalorder %s15, 1
    %p59 = por %p57, %p58
    %p61 = scmp.ne.s32.totalorder %s46, %s60
    %p62 = scmp.eq.s32.totalorder %s15, 0
    %p63 = por %p61, %p62
    %s65 = sadd.s32 %s64, 1
    %p68 = scmp.eq.s32.totalorder %s9, 1
    %p69 = scmp.ne.s32.totalorder %s64, %s66
    %p70 = scmp.eq.s32.totalorder %s9, 0
    %p71 = por %p69, %p70
    %p72 = scmp.ne.s32.totalorder %s64, %s66
    %p73 = scmp.eq.s32.totalorder %s14, 1
    %p74 = por %p72, %p73
    %p75 = scmp.ne.s32.totalorder %s66, %s67
    %p76 = scmp.eq.s32.totalorder %s14, 0
    %p77 = por %p75, %p76
    %p78 = scmp.ne.s32.totalorder %s66, %s67
    %p79 = scmp.eq.s32.totalorder %s15, 1
    %p80 = por %p78, %p79
    %p82 = scmp.ne.s32.totalorder %s67, %s81
    %p83 = scmp.eq.s32.totalorder %s15, 0
    %p84 = por %p82, %p83
    %s85 = ssub.s32 %s9, %s16
    %p86 = scmp.eq.s32.totalorder %s85, 0
    %s88 = sadd.s32 %s87, 1
    %s89 = scalar_select %p86, %s87, %s88
    %p92 = pneg %p86
    %p93 = scmp.eq.s32.totalorder %s9, 1
    %p94 = por %p92, %p93
    %p95 = scmp.ne.s32.totalorder %s87, %s90
    %p96 = scmp.eq.s32.totalorder %s9, 0
    %p97 = por %p95, %p96
    %p98 = scmp.ne.s32.totalorder %s87, %s90
    %p99 = scmp.eq.s32.totalorder %s14, 1
    %p100 = por %p98, %p99
    %p101 = scmp.ne.s32.totalorder %s90, %s91
    %p102 = scmp.eq.s32.totalorder %s14, 0
    %p103 = por %p101, %p102
    %p104 = scmp.ne.s32.totalorder %s90, %s91
    %p105 = scmp.eq.s32.totalorder %s15, 1
    %p106 = por %p104, %p105
    %p108 = scmp.ne.s32.totalorder %s91, %s107
    %p109 = scmp.eq.s32.totalorder %s15, 0
    %p110 = por %p108, %p109
    %p111 = scmp.le.s32.totalorder 1, %s9
    %p112 = scmp.lt.s32.totalorder %s9, 3
    %p113 = pnand %p111, %p112
    %p114 = pneg %p113
    // Predicated region
    $region9: #{feature_extractor_forward.28} parent=5 // pred_check
      _
    $region10: #{feature_extractor_forward.28} parent=5 // pred_check_branch
      %116 = sbr.rel (%p113) target = $region12
    $region11: #{feature_extractor_forward.28} parent=5 // pred_region
      %s117 = ssub.s32 %s9, 1
      // Predicated region
      $region13: #{feature_extractor_forward.28} parent=11 // pred_check
        %p118 = pneg %p56
      $region14: #{feature_extractor_forward.28} parent=11 // pred_check_branch
        %120 = sbr.rel (%p118) target = $region16
      $region15: #{feature_extractor_forward.28} parent=11 // pred_region
        _
      $region16: #{feature_extractor_forward.28} parent=11 // pred_fallthru
        _
      // Predicated region
      $region17: #{feature_extractor_forward.28} parent=11 // pred_check
        %p121 = pneg %p77
      $region18: #{feature_extractor_forward.28} parent=11 // pred_check_branch
        %123 = sbr.rel (%p121) target = $region20
      $region19: #{feature_extractor_forward.28} parent=11 // pred_region
        _
      $region20: #{feature_extractor_forward.28} parent=11 // pred_fallthru
        _
    $region12: #{feature_extractor_forward.28} parent=5 // pred_fallthru
      _
    %p124 = scmp.lt.s32.totalorder %s9, 2
    // Predicated region
    $region21: #{feature_extractor_forward.28} parent=5 // pred_check
      %p125 = pneg %p124
    $region22: #{feature_extractor_forward.28} parent=5 // pred_check_branch
      %127 = sbr.rel (%p125) target = $region24
    $region23: #{feature_extractor_forward.28} parent=5 // pred_region
      // Predicated region
      $region25: #{feature_extractor_forward.28} parent=23 // pred_check
        %p128 = pneg %p29
      $region26: #{feature_extractor_forward.28} parent=23 // pred_check_branch
        %130 = sbr.rel (%p128) target = $region28
      $region27: #{feature_extractor_forward.28} parent=23 // pred_region
        %s131 = smul.u32 8, %s9
        %p132 = scmp.lt.s32.totalorder %s131, 15
        %s133 = scalar_select %p132, %s131, 15
        %s134 = smul.addr %s133, 4
        %s135 = scalar_lea.vmem %s0, %s134
        %s136 = smul.u32 8, %s9
      $region28: #{feature_extractor_forward.28} parent=23 // pred_fallthru
        _
    $region24: #{feature_extractor_forward.28} parent=5 // pred_fallthru
      _
    %p137 = scmp.le.s32.totalorder 1, %s9
    %p138 = scmp.lt.s32.totalorder %s9, 3
    %p139 = pnand %p137, %p138
    %p140 = pneg %p139
    // Predicated region
    $region29: #{feature_extractor_forward.28} parent=5 // pred_check
      _
    $region30: #{feature_extractor_forward.28} parent=5 // pred_check_branch
      %142 = sbr.rel (%p139) target = $region32
    $region31: #{feature_extractor_forward.28} parent=5 // pred_region
      %s143 = ssub.s32 %s9, 1
      %s144 = smul.u32 8, %s14
      %p145 = scmp.lt.s32.totalorder %s144, 15
      %s146 = scalar_select %p145, %s144, 15
      %s147 = smul.addr %s146, 4
      %s148 = scalar_lea.vmem %s0, %s147
      %p149 = pneg %p35
      %p150 = pneg %p32
      %p151 = pneg %p56
      %p152 = pneg %p53
      %p153 = pneg %p77
      %p154 = pneg %p74
      %p155 = pneg %p103
      %p156 = pneg %p100
      %s157 = smul.u32 8, %s14
      %p158 = scmp.lt.s32.totalorder %s157, 15
      %s159 = scalar_select %p158, %s157, 15
      %s160 = smul.addr %s159, 4
      %s161 = scalar_lea.vmem %s3, %s160
      %s162 = smul.u32 8, %s14
      %p163 = scmp.lt.s32.totalorder %s162, 15
      %s164 = scalar_select %p163, %s162, 15
      %s165 = smul.addr %s164, 4
      %s166 = scalar_lea.vmem %s0, %s165
      %s167 = smul.u32 8, %s14
      %s168 = smul.u32 8, %s14
      %p169 = scmp.lt.s32.totalorder %s168, 15
      %s170 = scalar_select %p169, %s168, 15
      %s171 = smul.addr %s170, 4
      %s172 = scalar_lea.vmem %s3, %s171
      %s173 = smul.u32 8, %s14
      %v175 = vld [vmem:[%s166] sm:$0xf]
      %v176 = vld [vmem:[%s166 + $0x4] sm:$0xf]
      %v177 = vld [vmem:[%s166 + $0x8] sm:$0xf]
      %v178 = vld [vmem:[%s166 + $0xc] sm:$0xf]
      %v179 = vld [vmem:[%s166 + $0x10] sm:$0xf]
      %v180 = vld [vmem:[%s166 + $0x14] sm:$0xf]
      %v181 = vld [vmem:[%s166 + $0x18] sm:$0xf]
      %v182 = vld [vmem:[%s166 + $0x1c] sm:$0xf]
      %v183 = vld [vmem:[%s1] sm:$0xf]
      %v184 = vld [vmem:[%s1 + $0x4] sm:$0xf]
      %v185 = vld [vmem:[%s1 + $0x8] sm:$0xf]
      %v186 = vld [vmem:[%s1 + $0xc] sm:$0xf]
      %v187 = vld [vmem:[%s1 + $0x10] sm:$0xf]
      %v188 = vld [vmem:[%s1 + $0x14] sm:$0xf]
      %v189 = vld [vmem:[%s1 + $0x18] sm:$0xf]
      %v190 = vld [vmem:[%s1 + $0x1c] sm:$0xf]
      %v191 = vld [vmem:[%s1 + $0x20] sm:$0xf]
      %v192 = vld [vmem:[%s1 + $0x24] sm:$0xf]
      %v193 = vld [vmem:[%s1 + $0x28] sm:$0xf]
      %v194 = vld [vmem:[%s1 + $0x2c] sm:$0xf]
      %v195 = vld [vmem:[%s1 + $0x30] sm:$0xf]
      %v196 = vld [vmem:[%s1 + $0x34] sm:$0xf]
      %v197 = vld [vmem:[%s1 + $0x38] sm:$0xf]
      %v198 = vld [vmem:[%s1 + $0x3c] sm:$0xf]
      %v199 = vld [vmem:[%s2] sm:$0x1]
      %v201 = vlaneseq
      %v202 = vshrl.u32 %v201, 7
      %v203 = vsub.s32 0, %v202
      %v204 = vrot.slane %v199, %v203
      %v214 = vunpack.c.l.b16 %v175
      %v215 = vunpack.c.l.b16 %v176
      %v216 = vunpack.c.l.b16 %v177
      %v217 = vunpack.c.l.b16 %v178
      %v218 = vunpack.c.l.b16 %v179
      %v219 = vunpack.c.l.b16 %v180
      %v220 = vunpack.c.l.b16 %v181
      %v221 = vunpack.c.l.b16 %v182
      %v222 = vpack.c.b16 %v215, %v214
      %v223 = vpack.c.b16 %v217, %v216
      %v224 = vpack.c.b16 %v219, %v218
      %v225 = vpack.c.b16 %v221, %v220
      %v246 = vunpack.c.l.b16 %v183
      %v247 = vunpack.c.l.b16 %v184
      %v248 = vunpack.c.l.b16 %v185
      %v249 = vunpack.c.l.b16 %v186
      %v250 = vunpack.c.l.b16 %v187
      %v251 = vunpack.c.l.b16 %v188
      %v252 = vunpack.c.l.b16 %v189
      %v253 = vunpack.c.l.b16 %v190
      %v254 = vunpack.c.l.b16 %v191
      %v255 = vunpack.c.l.b16 %v192
      %v256 = vunpack.c.l.b16 %v193
      %v257 = vunpack.c.l.b16 %v194
      %v258 = vunpack.c.l.b16 %v195
      %v259 = vunpack.c.l.b16 %v196
      %v260 = vunpack.c.l.b16 %v197
      %v261 = vunpack.c.l.b16 %v198
      %v262 = vpack.c.b16 %v247, %v246
      %v263 = vpack.c.b16 %v249, %v248
      %v264 = vpack.c.b16 %v251, %v250
      %v265 = vpack.c.b16 %v253, %v252
      %v266 = vpack.c.b16 %v255, %v254
      %v267 = vpack.c.b16 %v257, %v256
      %v268 = vpack.c.b16 %v259, %v258
      %v269 = vpack.c.b16 %v261, %v260
      %278 = vmatprep.subr.bf16.mxu0 0
      %279 = vmatpush1.bf16.msra.mxu0 %v269
      %280 = vmatprep.subr.bf16.mxu0 0
      %281 = vmatpush1.bf16.msra.mxu0 %v268
      %282 = vmatprep.subr.bf16.mxu0 0
      %283 = vmatpush1.bf16.msra.mxu0 %v267
      %284 = vmatprep.subr.bf16.mxu0 0
      %285 = vmatpush1.bf16.msra.mxu0 %v266
      %286 = vmatprep.subr.bf16.mxu0 0
      %287 = vmatpush1.bf16.msra.mxu0 %v265
      %288 = vmatprep.subr.bf16.mxu0 0
      %289 = vmatpush1.bf16.msra.mxu0 %v264
      %290 = vmatprep.subr.bf16.mxu0 0
      %291 = vmatpush1.bf16.msra.mxu0 %v263
      %292 = vmatprep.subr.bf16.mxu0 0
      %293 = vmatpush1.bf16.msra.mxu0 %v262
      %294 = vmatprep.subr.bf16.mxu0 0
      %295 = vmatpush2.bf16.msra.mxu0 0
      %296 = vmatprep.subr.bf16.mxu0 0
      %297 = vmatpush2.bf16.msra.mxu0 0
      %298 = vmatprep.subr.bf16.mxu0 0
      %299 = vmatpush2.bf16.msra.mxu0 0
      %300 = vmatprep.subr.bf16.mxu0 0
      %301 = vmatpush2.bf16.msra.mxu0 0
      %302 = vmatprep.subr.bf16.mxu0 0
      %303 = vmatpush2.bf16.msra.mxu0 0
      %304 = vmatprep.subr.bf16.mxu0 0
      %305 = vmatpush2.bf16.msra.mxu0 0
      %306 = vmatprep.subr.bf16.mxu0 0
      %307 = vmatpush2.bf16.msra.mxu0 0
      %308 = vmatprep.subr.bf16.mxu0 0
      %309 = vmatpush2.bf16.msra.mxu0 0
      %310 = vmatprep.mubr.bf16.mxu0 0
      %311 = vmatmul.mubr.bf16.gmra.mxu0 %v222
      %v312 = vpop.f32.mrf.mxu0
      %v313 = vadd.f32 %v204, %v312
      %v314 = vpop.f32.mrf.mxu0
      %v315 = vpop.f32.mrf.mxu0
      %v316 = vadd.f32 %v204, %v315
      %v317 = vpop.f32.mrf.mxu0
      %318 = vmatprep.mubr.bf16.mxu0 0
      %319 = vmatmul.mubr.bf16.gmra.mxu0 %v223
      %v320 = vpop.f32.mrf.mxu0
      %v321 = vadd.f32 %v204, %v320
      %v322 = vpop.f32.mrf.mxu0
      %v323 = vpop.f32.mrf.mxu0
      %v324 = vadd.f32 %v204, %v323
      %v325 = vpop.f32.mrf.mxu0
      %326 = vmatprep.mubr.bf16.mxu0 0
      %327 = vmatmul.mubr.bf16.gmra.mxu0 %v224
      %v328 = vpop.f32.mrf.mxu0
      %v329 = vadd.f32 %v204, %v328
      %v330 = vpop.f32.mrf.mxu0
      %v331 = vpop.f32.mrf.mxu0
      %v332 = vadd.f32 %v204, %v331
      %v333 = vpop.f32.mrf.mxu0
      %334 = vmatprep.mubr.bf16.mxu0 0
      %335 = vmatmul.mubr.bf16.gmra.mxu0 %v225
      %v336 = vpop.f32.mrf.mxu0
      %v337 = vadd.f32 %v204, %v336
      %v338 = vpop.f32.mrf.mxu0
      %v339 = vpop.f32.mrf.mxu0
      %v340 = vadd.f32 %v204, %v339
      %v341 = vpop.f32.mrf.mxu0
      %342 = vdwg.mxu0
      %v343 = vpack.c.bf16 %v316, %v313
      %v344 = vpack.c.bf16 %v324, %v321
      %v345 = vpack.c.bf16 %v332, %v329
      %v346 = vpack.c.bf16 %v340, %v337
      %v351 = vunpack.c.l.b16 %v343
      %v352 = vunpack.c.h.b16 %v343
      %v353 = vunpack.c.l.b16 %v344
      %v354 = vunpack.c.h.b16 %v344
      %v355 = vunpack.c.l.b16 %v345
      %v356 = vunpack.c.h.b16 %v345
      %v357 = vunpack.c.l.b16 %v346
      %v358 = vunpack.c.h.b16 %v346
      %v359 = vpack.c.b16 %v351, %v351
      %v360 = vpack.c.b16 %v352, %v352
      %v361 = vpack.c.b16 %v353, %v353
      %v362 = vpack.c.b16 %v354, %v354
      %v363 = vpack.c.b16 %v355, %v355
      %v364 = vpack.c.b16 %v356, %v356
      %v365 = vpack.c.b16 %v357, %v357
      %v366 = vpack.c.b16 %v358, %v358
      %375 = vst [vmem:[%s172] sm:$0xf] %v359
      %376 = vst [vmem:[%s172 + $0x4] sm:$0xf] %v360
      %377 = vst [vmem:[%s172 + $0x8] sm:$0xf] %v361
      %378 = vst [vmem:[%s172 + $0xc] sm:$0xf] %v362
      %379 = vst [vmem:[%s172 + $0x10] sm:$0xf] %v363
      %380 = vst [vmem:[%s172 + $0x14] sm:$0xf] %v364
      %381 = vst [vmem:[%s172 + $0x18] sm:$0xf] %v365
      %382 = vst [vmem:[%s172 + $0x1c] sm:$0xf] %v366
      %s383 = smul.u32 8, %s14
      %p384 = scmp.lt.s32.totalorder %s383, 15
      %s385 = scalar_select %p384, %s383, 15
      %s386 = smul.addr %s385, 4
      %s387 = scalar_lea.vmem %s3, %s386
      // Predicated region
      $region33: #{feature_extractor_forward.28} parent=31 // pred_check
        %p388 = pneg %p100
      $region34: #{feature_extractor_forward.28} parent=31 // pred_check_branch
        %390 = sbr.rel (%p388) target = $region36
      $region35: #{feature_extractor_forward.28} parent=31 // pred_region
        %s391 = smul.u32 8, %s14
      $region36: #{feature_extractor_forward.28} parent=31 // pred_fallthru
        _
    $region32: #{feature_extractor_forward.28} parent=5 // pred_fallthru
      _
    %p392 = scmp.le.s32.totalorder 2, %s9
    // Predicated region
    $region37: #{feature_extractor_forward.28} parent=5 // pred_check
      %p393 = pneg %p392
    $region38: #{feature_extractor_forward.28} parent=5 // pred_check_branch
      %395 = sbr.rel (%p393) target = $region40
    $region39: #{feature_extractor_forward.28} parent=5 // pred_region
      %s396 = ssub.s32 %s9, 2
      // Predicated region
      $region41: #{feature_extractor_forward.28} parent=39 // pred_check
        %p397 = pneg %p106
      $region42: #{feature_extractor_forward.28} parent=39 // pred_check_branch
        %399 = sbr.rel (%p397) target = $region44
      $region43: #{feature_extractor_forward.28} parent=39 // pred_region
        %s400 = smul.u32 8, %s15
        %p401 = scmp.lt.s32.totalorder %s400, 15
        %s402 = scalar_select %p401, %s400, 15
        %s403 = smul.addr %s402, 4
        %s404 = scalar_lea.vmem %s3, %s403
      $region44: #{feature_extractor_forward.28} parent=39 // pred_fallthru
        _
    $region40: #{feature_extractor_forward.28} parent=5 // pred_fallthru
      _
  $region6: #{feature_extractor_forward.28} parent=0 // loop_footer
    %s13 = sadd.s32 1, %s9
  $region7: #{feature_extractor_forward.28} parent=0 // loop_footer_branch
    %8 = sbr.rel target = $region3
  $region8: #{feature_extractor_forward.28} parent=0 // loop_exit
    _

// kernel: feature_extractor_forward.30
$region0: #{feature_extractor_forward.30}
  #allocation0 [shape = 'u32[]', space=smem, size = 0x4, offset = 0x4, fixed_abs, tag = 'smem constant byte address 0x4 - core index']
  #allocation1 [shape = 'u32[144,128]{1,0:T(1,128)}', space=vmem, size = 0x12000, scoped, tag = 'internal scratch']
  %s0 = inlined_call_operand.vmem [shape: bf16[128,256], index: 0, kind: input, shape index: {}]
  %s1 = inlined_call_operand.vmem [shape: bf16[256,128], index: 1, kind: input, shape index: {}]
  %s2 = inlined_call_operand.vmem [shape: f32[1,128], index: 2, kind: input, shape index: {}]
  %s3 = inlined_call_operand.vmem [shape: bf16[128,128], index: 3, kind: output, shape index: {}]
  %s4 = sld [smem:[#allocation0]]
  $region45: #{feature_extractor_forward.30} parent=0
    _
  %s6 = ssub.s32 1, %s4
  %s7 = scalar_select 0, %s6, %s4
  loop: start=0, step=1, limit=4
  $region2: #{feature_extractor_forward.30} parent=0 // loop_pre_header
    _
  $region3: #{feature_extractor_forward.30} parent=0 // loop_header
    %s9 = sphi 0, %s13
    %p10 = scmp.ge.s32.totalorder %s9, 4
    %s19 = sphi 0, %s21
    %s22 = sphi 0, %s19
    %s23 = sphi 0, %s22
    %s39 = sphi 0, %s23
    %s43 = sphi 0, %s43
    %s45 = sphi 0, %s43
    %s46 = sphi 0, %s45
    %s60 = sphi 0, %s46
    %s64 = sphi 0, %s64
    %s66 = sphi 0, %s64
    %s67 = sphi 0, %s66
    %s81 = sphi 0, %s67
    %s87 = sphi 0, %s89
    %s90 = sphi 0, %s87
    %s91 = sphi 0, %s90
    %s107 = sphi 0, %s91
  $region4: #{feature_extractor_forward.30} parent=0 // loop_header_branch
    %12 = sbr.rel (%p10) target = $region8
  $region5: #{feature_extractor_forward.30} parent=0 // loop_body
    %s14 = ssub.s32 %s9, 1
    %s15 = ssub.s32 %s9, 2
    %s16 = sadd.s32 %s9, 1
    %s17 = ssub.s32 %s9, %s16
    %p18 = scmp.eq.s32.totalorder %s17, 0
    %s20 = sadd.s32 %s19, 1
    %s21 = scalar_select %p18, %s19, %s20
    %p24 = pneg %p18
    %p25 = scmp.eq.s32.totalorder %s9, 1
    %p26 = por %p24, %p25
    %p27 = scmp.ne.s32.totalorder %s19, %s22
    %p28 = scmp.eq.s32.totalorder %s9, 0
    %p29 = por %p27, %p28
    %p30 = scmp.ne.s32.totalorder %s19, %s22
    %p31 = scmp.eq.s32.totalorder %s14, 1
    %p32 = por %p30, %p31
    %p33 = scmp.ne.s32.totalorder %s22, %s23
    %p34 = scmp.eq.s32.totalorder %s14, 0
    %p35 = por %p33, %p34
    %p36 = scmp.ne.s32.totalorder %s22, %s23
    %p37 = scmp.eq.s32.totalorder %s15, 1
    %p38 = por %p36, %p37
    %p40 = scmp.ne.s32.totalorder %s23, %s39
    %p41 = scmp.eq.s32.totalorder %s15, 0
    %p42 = por %p40, %p41
    %s44 = sadd.s32 %s43, 1
    %p47 = scmp.eq.s32.totalorder %s9, 1
    %p48 = scmp.ne.s32.totalorder %s43, %s45
    %p49 = scmp.eq.s32.totalorder %s9, 0
    %p50 = por %p48, %p49
    %p51 = scmp.ne.s32.totalorder %s43, %s45
    %p52 = scmp.eq.s32.totalorder %s14, 1
    %p53 = por %p51, %p52
    %p54 = scmp.ne.s32.totalorder %s45, %s46
    %p55 = scmp.eq.s32.totalorder %s14, 0
    %p56 = por %p54, %p55
    %p57 = scmp.ne.s32.totalorder %s45, %s46
    %p58 = scmp.eq.s32.totalorder %s15, 1
    %p59 = por %p57, %p58
    %p61 = scmp.ne.s32.totalorder %s46, %s60
    %p62 = scmp.eq.s32.totalorder %s15, 0
    %p63 = por %p61, %p62
    %s65 = sadd.s32 %s64, 1
    %p68 = scmp.eq.s32.totalorder %s9, 1
    %p69 = scmp.ne.s32.totalorder %s64, %s66
    %p70 = scmp.eq.s32.totalorder %s9, 0
    %p71 = por %p69, %p70
    %p72 = scmp.ne.s32.totalorder %s64, %s66
    %p73 = scmp.eq.s32.totalorder %s14, 1
    %p74 = por %p72, %p73
    %p75 = scmp.ne.s32.totalorder %s66, %s67
    %p76 = scmp.eq.s32.totalorder %s14, 0
    %p77 = por %p75, %p76
    %p78 = scmp.ne.s32.totalorder %s66, %s67
    %p79 = scmp.eq.s32.totalorder %s15, 1
    %p80 = por %p78, %p79
    %p82 = scmp.ne.s32.totalorder %s67, %s81
    %p83 = scmp.eq.s32.totalorder %s15, 0
    %p84 = por %p82, %p83
    %s85 = ssub.s32 %s9, %s16
    %p86 = scmp.eq.s32.totalorder %s85, 0
    %s88 = sadd.s32 %s87, 1
    %s89 = scalar_select %p86, %s87, %s88
    %p92 = pneg %p86
    %p93 = scmp.eq.s32.totalorder %s9, 1
    %p94 = por %p92, %p93
    %p95 = scmp.ne.s32.totalorder %s87, %s90
    %p96 = scmp.eq.s32.totalorder %s9, 0
    %p97 = por %p95, %p96
    %p98 = scmp.ne.s32.totalorder %s87, %s90
    %p99 = scmp.eq.s32.totalorder %s14, 1
    %p100 = por %p98, %p99
    %p101 = scmp.ne.s32.totalorder %s90, %s91
    %p102 = scmp.eq.s32.totalorder %s14, 0
    %p103 = por %p101, %p102
    %p104 = scmp.ne.s32.totalorder %s90, %s91
    %p105 = scmp.eq.s32.totalorder %s15, 1
    %p106 = por %p104, %p105
    %p108 = scmp.ne.s32.totalorder %s91, %s107
    %p109 = scmp.eq.s32.totalorder %s15, 0
    %p110 = por %p108, %p109
    %p111 = scmp.le.s32.totalorder 1, %s9
    %p112 = scmp.lt.s32.totalorder %s9, 3
    %p113 = pnand %p111, %p112
    %p114 = pneg %p113
    // Predicated region
    $region9: #{feature_extractor_forward.30} parent=5 // pred_check
      _
    $region10: #{feature_extractor_forward.30} parent=5 // pred_check_branch
      %116 = sbr.rel (%p113) target = $region12
    $region11: #{feature_extractor_forward.30} parent=5 // pred_region
      %s117 = ssub.s32 %s9, 1
      // Predicated region
      $region13: #{feature_extractor_forward.30} parent=11 // pred_check
        %p118 = pneg %p56
      $region14: #{feature_extractor_forward.30} parent=11 // pred_check_branch
        %120 = sbr.rel (%p118) target = $region16
      $region15: #{feature_extractor_forward.30} parent=11 // pred_region
        _
      $region16: #{feature_extractor_forward.30} parent=11 // pred_fallthru
        _
      // Predicated region
      $region17: #{feature_extractor_forward.30} parent=11 // pred_check
        %p121 = pneg %p77
      $region18: #{feature_extractor_forward.30} parent=11 // pred_check_branch
        %123 = sbr.rel (%p121) target = $region20
      $region19: #{feature_extractor_forward.30} parent=11 // pred_region
        _
      $region20: #{feature_extractor_forward.30} parent=11 // pred_fallthru
        _
    $region12: #{feature_extractor_forward.30} parent=5 // pred_fallthru
      _
    %p124 = scmp.lt.s32.totalorder %s9, 2
    // Predicated region
    $region21: #{feature_extractor_forward.30} parent=5 // pred_check
      %p125 = pneg %p124
    $region22: #{feature_extractor_forward.30} parent=5 // pred_check_branch
      %127 = sbr.rel (%p125) target = $region24
    $region23: #{feature_extractor_forward.30} parent=5 // pred_region
      // Predicated region
      $region25: #{feature_extractor_forward.30} parent=23 // pred_check
        %p128 = pneg %p29
      $region26: #{feature_extractor_forward.30} parent=23 // pred_check_branch
        %130 = sbr.rel (%p128) target = $region28
      $region27: #{feature_extractor_forward.30} parent=23 // pred_region
        %s131 = smul.u32 8, %s9
        %p132 = scmp.lt.s32.totalorder %s131, 15
        %s133 = scalar_select %p132, %s131, 15
        %s134 = smul.addr %s133, 2
        %s135 = smul.addr %s134, 4
        %s136 = scalar_lea.vmem %s0, %s135
        %s137 = smul.u32 8, %s9
      $region28: #{feature_extractor_forward.30} parent=23 // pred_fallthru
        _
    $region24: #{feature_extractor_forward.30} parent=5 // pred_fallthru
      _
    %p138 = scmp.le.s32.totalorder 1, %s9
    %p139 = scmp.lt.s32.totalorder %s9, 3
    %p140 = pnand %p138, %p139
    %p141 = pneg %p140
    // Predicated region
    $region29: #{feature_extractor_forward.30} parent=5 // pred_check
      _
    $region30: #{feature_extractor_forward.30} parent=5 // pred_check_branch
      %143 = sbr.rel (%p140) target = $region32
    $region31: #{feature_extractor_forward.30} parent=5 // pred_region
      %s144 = ssub.s32 %s9, 1
      %s145 = smul.u32 8, %s14
      %p146 = scmp.lt.s32.totalorder %s145, 15
      %s147 = scalar_select %p146, %s145, 15
      %s148 = smul.addr %s147, 2
      %s149 = smul.addr %s148, 4
      %s150 = scalar_lea.vmem %s0, %s149
      %p151 = pneg %p35
      %p152 = pneg %p32
      %p153 = pneg %p56
      %p154 = pneg %p53
      %p155 = pneg %p77
      %p156 = pneg %p74
      %p157 = pneg %p103
      %p158 = pneg %p100
      %s159 = smul.u32 8, %s14
      %p160 = scmp.lt.s32.totalorder %s159, 15
      %s161 = scalar_select %p160, %s159, 15
      %s162 = smul.addr %s161, 4
      %s163 = scalar_lea.vmem %s3, %s162
      %s164 = smul.u32 8, %s14
      %p165 = scmp.lt.s32.totalorder %s164, 15
      %s166 = scalar_select %p165, %s164, 15
      %s167 = smul.addr %s166, 2
      %s168 = smul.addr %s167, 4
      %s169 = scalar_lea.vmem %s0, %s168
      %s170 = smul.u32 8, %s14
      %s171 = smul.u32 8, %s14
      %p172 = scmp.lt.s32.totalorder %s171, 15
      %s173 = scalar_select %p172, %s171, 15
      %s174 = smul.addr %s173, 4
      %s175 = scalar_lea.vmem %s3, %s174
      %s176 = smul.u32 8, %s14
      %v178 = vld [vmem:[%s169] sm:$0xff]
      %v179 = vld [vmem:[%s169 + $0x8] sm:$0xff]
      %v180 = vld [vmem:[%s169 + $0x10] sm:$0xff]
      %v181 = vld [vmem:[%s169 + $0x18] sm:$0xff]
      %v182 = vld [vmem:[%s169 + $0x20] sm:$0xff]
      %v183 = vld [vmem:[%s169 + $0x28] sm:$0xff]
      %v184 = vld [vmem:[%s169 + $0x30] sm:$0xff]
      %v185 = vld [vmem:[%s169 + $0x38] sm:$0xff]
      %v186 = vld [vmem:[%s1] sm:$0xf]
      %v187 = vld [vmem:[%s1 + $0x4] sm:$0xf]
      %v188 = vld [vmem:[%s1 + $0x8] sm:$0xf]
      %v189 = vld [vmem:[%s1 + $0xc] sm:$0xf]
      %v190 = vld [vmem:[%s1 + $0x10] sm:$0xf]
      %v191 = vld [vmem:[%s1 + $0x14] sm:$0xf]
      %v192 = vld [vmem:[%s1 + $0x18] sm:$0xf]
      %v193 = vld [vmem:[%s1 + $0x1c] sm:$0xf]
      %v194 = vld [vmem:[%s1 + $0x20] sm:$0xf]
      %v195 = vld [vmem:[%s1 + $0x24] sm:$0xf]
      %v196 = vld [vmem:[%s1 + $0x28] sm:$0xf]
      %v197 = vld [vmem:[%s1 + $0x2c] sm:$0xf]
      %v198 = vld [vmem:[%s1 + $0x30] sm:$0xf]
      %v199 = vld [vmem:[%s1 + $0x34] sm:$0xf]
      %v200 = vld [vmem:[%s1 + $0x38] sm:$0xf]
      %v201 = vld [vmem:[%s1 + $0x3c] sm:$0xf]
      %v202 = vld [vmem:[%s1 + $0x40] sm:$0xf]
      %v203 = vld [vmem:[%s1 + $0x44] sm:$0xf]
      %v204 = vld [vmem:[%s1 + $0x48] sm:$0xf]
      %v205 = vld [vmem:[%s1 + $0x4c] sm:$0xf]
      %v206 = vld [vmem:[%s1 + $0x50] sm:$0xf]
      %v207 = vld [vmem:[%s1 + $0x54] sm:$0xf]
      %v208 = vld [vmem:[%s1 + $0x58] sm:$0xf]
      %v209 = vld [vmem:[%s1 + $0x5c] sm:$0xf]
      %v210 = vld [vmem:[%s1 + $0x60] sm:$0xf]
      %v211 = vld [vmem:[%s1 + $0x64] sm:$0xf]
      %v212 = vld [vmem:[%s1 + $0x68] sm:$0xf]
      %v213 = vld [vmem:[%s1 + $0x6c] sm:$0xf]
      %v214 = vld [vmem:[%s1 + $0x70] sm:$0xf]
      %v215 = vld [vmem:[%s1 + $0x74] sm:$0xf]
      %v216 = vld [vmem:[%s1 + $0x78] sm:$0xf]
      %v217 = vld [vmem:[%s1 + $0x7c] sm:$0xf]
      %v218 = vld [vmem:[%s2] sm:$0x1]
      %v220 = vlaneseq
      %v221 = vshrl.u32 %v220, 7
      %v222 = vsub.s32 0, %v221
      %v223 = vrot.slane %v218, %v222
      %v233 = vunpack.c.l.b16 %v178
      %v234 = vunpack.c.h.b16 %v178
      %v235 = vunpack.c.l.b16 %v179
      %v236 = vunpack.c.h.b16 %v179
      %v237 = vunpack.c.l.b16 %v180
      %v238 = vunpack.c.h.b16 %v180
      %v239 = vunpack.c.l.b16 %v181
      %v240 = vunpack.c.h.b16 %v181
      %v241 = vunpack.c.l.b16 %v182
      %v242 = vunpack.c.h.b16 %v182
      %v243 = vunpack.c.l.b16 %v183
      %v244 = vunpack.c.h.b16 %v183
      %v245 = vunpack.c.l.b16 %v184
      %v246 = vunpack.c.h.b16 %v184
      %v247 = vunpack.c.l.b16 %v185
      %v248 = vunpack.c.h.b16 %v185
      %v249 = vpack.c.b16 %v235, %v233
      %v250 = vpack.c.b16 %v236, %v234
      %v251 = vpack.c.b16 %v239, %v237
      %v252 = vpack.c.b16 %v240, %v238
      %v253 = vpack.c.b16 %v243, %v241
      %v254 = vpack.c.b16 %v244, %v242
      %v255 = vpack.c.b16 %v247, %v245
      %v256 = vpack.c.b16 %v248, %v246
      %v297 = vunpack.c.l.b16 %v186
      %v298 = vunpack.c.l.b16 %v187
      %v299 = vunpack.c.l.b16 %v188
      %v300 = vunpack.c.l.b16 %v189
      %v301 = vunpack.c.l.b16 %v190
      %v302 = vunpack.c.l.b16 %v191
      %v303 = vunpack.c.l.b16 %v192
      %v304 = vunpack.c.l.b16 %v193
      %v305 = vunpack.c.l.b16 %v194
      %v306 = vunpack.c.l.b16 %v195
      %v307 = vunpack.c.l.b16 %v196
      %v308 = vunpack.c.l.b16 %v197
      %v309 = vunpack.c.l.b16 %v198
      %v310 = vunpack.c.l.b16 %v199
      %v311 = vunpack.c.l.b16 %v200
      %v312 = vunpack.c.l.b16 %v201
      %v313 = vunpack.c.l.b16 %v202
      %v314 = vunpack.c.l.b16 %v203
      %v315 = vunpack.c.l.b16 %v204
      %v316 = vunpack.c.l.b16 %v205
      %v317 = vunpack.c.l.b16 %v206
      %v318 = vunpack.c.l.b16 %v207
      %v319 = vunpack.c.l.b16 %v208
      %v320 = vunpack.c.l.b16 %v209
      %v321 = vunpack.c.l.b16 %v210
      %v322 = vunpack.c.l.b16 %v211
      %v323 = vunpack.c.l.b16 %v212
      %v324 = vunpack.c.l.b16 %v213
      %v325 = vunpack.c.l.b16 %v214
      %v326 = vunpack.c.l.b16 %v215
      %v327 = vunpack.c.l.b16 %v216
      %v328 = vunpack.c.l.b16 %v217
      %v329 = vpack.c.b16 %v298, %v297
      %v330 = vpack.c.b16 %v300, %v299
      %v331 = vpack.c.b16 %v302, %v301
      %v332 = vpack.c.b16 %v304, %v303
      %v333 = vpack.c.b16 %v306, %v305
      %v334 = vpack.c.b16 %v308, %v307
      %v335 = vpack.c.b16 %v310, %v309
      %v336 = vpack.c.b16 %v312, %v311
      %v337 = vpack.c.b16 %v314, %v313
      %v338 = vpack.c.b16 %v316, %v315
      %v339 = vpack.c.b16 %v318, %v317
      %v340 = vpack.c.b16 %v320, %v319
      %v341 = vpack.c.b16 %v322, %v321
      %v342 = vpack.c.b16 %v324, %v323
      %v343 = vpack.c.b16 %v326, %v325
      %v344 = vpack.c.b16 %v328, %v327
      %361 = vmatprep.subr.bf16.mxu0 0
      %362 = vmatpush1.bf16.msra.mxu0 %v336
      %363 = vmatprep.subr.bf16.mxu0 0
      %364 = vmatpush1.bf16.msra.mxu0 %v335
      %365 = vmatprep.subr.bf16.mxu0 0
      %366 = vmatpush1.bf16.msra.mxu0 %v334
      %367 = vmatprep.subr.bf16.mxu0 0
      %368 = vmatpush1.bf16.msra.mxu0 %v333
      %369 = vmatprep.subr.bf16.mxu0 0
      %370 = vmatpush1.bf16.msra.mxu0 %v332
      %371 = vmatprep.subr.bf16.mxu0 0
      %372 = vmatpush1.bf16.msra.mxu0 %v331
      %373 = vmatprep.subr.bf16.mxu0 0
      %374 = vmatpush1.bf16.msra.mxu0 %v330
      %375 = vmatprep.subr.bf16.mxu0 0
      %376 = vmatpush1.bf16.msra.mxu0 %v329
      %377 = vmatprep.subr.bf16.mxu0 0
      %378 = vmatpush2.bf16.msra.mxu0 %v344
      %379 = vmatprep.subr.bf16.mxu0 0
      %380 = vmatpush2.bf16.msra.mxu0 %v343
      %381 = vmatprep.subr.bf16.mxu0 0
      %382 = vmatpush2.bf16.msra.mxu0 %v342
      %383 = vmatprep.subr.bf16.mxu0 0
      %384 = vmatpush2.bf16.msra.mxu0 %v341
      %385 = vmatprep.subr.bf16.mxu0 0
      %386 = vmatpush2.bf16.msra.mxu0 %v340
      %387 = vmatprep.subr.bf16.mxu0 0
      %388 = vmatpush2.bf16.msra.mxu0 %v339
      %389 = vmatprep.subr.bf16.mxu0 0
      %390 = vmatpush2.bf16.msra.mxu0 %v338
      %391 = vmatprep.subr.bf16.mxu0 0
      %392 = vmatpush2.bf16.msra.mxu0 %v337
      %393 = vmatprep.mubr.bf16.mxu0 %v250
      %394 = vmatmul.mubr.bf16.gmra.mxu0 %v249
      %v395 = vpop.f32.mrf.mxu0
      %v396 = vadd.f32 %v223, %v395
      %v397 = vpop.f32.mrf.mxu0
      %v398 = vpop.f32.mrf.mxu0
      %v399 = vadd.f32 %v223, %v398
      %v400 = vpop.f32.mrf.mxu0
      %401 = vmatprep.mubr.bf16.mxu0 %v252
      %402 = vmatmul.mubr.bf16.gmra.mxu0 %v251
      %v403 = vpop.f32.mrf.mxu0
      %v404 = vadd.f32 %v223, %v403
      %v405 = vpop.f32.mrf.mxu0
      %v406 = vpop.f32.mrf.mxu0
      %v407 = vadd.f32 %v223, %v406
      %v408 = vpop.f32.mrf.mxu0
      %409 = vmatprep.mubr.bf16.mxu0 %v254
      %410 = vmatmul.mubr.bf16.gmra.mxu0 %v253
      %v411 = vpop.f32.mrf.mxu0
      %v412 = vadd.f32 %v223, %v411
      %v413 = vpop.f32.mrf.mxu0
      %v414 = vpop.f32.mrf.mxu0
      %v415 = vadd.f32 %v223, %v414
      %v416 = vpop.f32.mrf.mxu0
      %417 = vmatprep.mubr.bf16.mxu0 %v256
      %418 = vmatmul.mubr.bf16.gmra.mxu0 %v255
      %v419 = vpop.f32.mrf.mxu0
      %v420 = vadd.f32 %v223, %v419
      %v421 = vpop.f32.mrf.mxu0
      %v422 = vpop.f32.mrf.mxu0
      %v423 = vadd.f32 %v223, %v422
      %v424 = vpop.f32.mrf.mxu0
      %425 = vdwg.mxu0
      %v426 = vmax.f32 %v396, 0.0
      %v427 = vmax.f32 %v399, 0.0
      %v428 = vmax.f32 %v404, 0.0
      %v429 = vmax.f32 %v407, 0.0
      %v430 = vmax.f32 %v412, 0.0
      %v431 = vmax.f32 %v415, 0.0
      %v432 = vmax.f32 %v420, 0.0
      %v433 = vmax.f32 %v423, 0.0
      %v434 = vpack.c.bf16 %v427, %v426
      %v435 = vpack.c.bf16 %v429, %v428
      %v436 = vpack.c.bf16 %v431, %v430
      %v437 = vpack.c.bf16 %v433, %v432
      %v442 = vunpack.c.l.b16 %v434
      %v443 = vunpack.c.h.b16 %v434
      %v444 = vunpack.c.l.b16 %v435
      %v445 = vunpack.c.h.b16 %v435
      %v446 = vunpack.c.l.b16 %v436
      %v447 = vunpack.c.h.b16 %v436
      %v448 = vunpack.c.l.b16 %v437
      %v449 = vunpack.c.h.b16 %v437
      %v450 = vpack.c.b16 %v442, %v442
      %v451 = vpack.c.b16 %v443, %v443
      %v452 = vpack.c.b16 %v444, %v444
      %v453 = vpack.c.b16 %v445, %v445
      %v454 = vpack.c.b16 %v446, %v446
      %v455 = vpack.c.b16 %v447, %v447
      %v456 = vpack.c.b16 %v448, %v448
      %v457 = vpack.c.b16 %v449, %v449
      %466 = vst [vmem:[%s175] sm:$0xf] %v450
      %467 = vst [vmem:[%s175 + $0x4] sm:$0xf] %v451
      %468 = vst [vmem:[%s175 + $0x8] sm:$0xf] %v452
      %469 = vst [vmem:[%s175 + $0xc] sm:$0xf] %v453
      %470 = vst [vmem:[%s175 + $0x10] sm:$0xf] %v454
      %471 = vst [vmem:[%s175 + $0x14] sm:$0xf] %v455
      %472 = vst [vmem:[%s175 + $0x18] sm:$0xf] %v456
      %473 = vst [vmem:[%s175 + $0x1c] sm:$0xf] %v457
      %s474 = smul.u32 8, %s14
      %p475 = scmp.lt.s32.totalorder %s474, 15
      %s476 = scalar_select %p475, %s474, 15
      %s477 = smul.addr %s476, 4
      %s478 = scalar_lea.vmem %s3, %s477
      // Predicated region
      $region33: #{feature_extractor_forward.30} parent=31 // pred_check
        %p479 = pneg %p100
      $region34: #{feature_extractor_forward.30} parent=31 // pred_check_branch
        %481 = sbr.rel (%p479) target = $region36
      $region35: #{feature_extractor_forward.30} parent=31 // pred_region
        %s482 = smul.u32 8, %s14
      $region36: #{feature_extractor_forward.30} parent=31 // pred_fallthru
        _
    $region32: #{feature_extractor_forward.30} parent=5 // pred_fallthru
      _
    %p483 = scmp.le.s32.totalorder 2, %s9
    // Predicated region
    $region37: #{feature_extractor_forward.30} parent=5 // pred_check
      %p484 = pneg %p483
    $region38: #{feature_extractor_forward.30} parent=5 // pred_check_branch
      %486 = sbr.rel (%p484) target = $region40
    $region39: #{feature_extractor_forward.30} parent=5 // pred_region
      %s487 = ssub.s32 %s9, 2
      // Predicated region
      $region41: #{feature_extractor_forward.30} parent=39 // pred_check
        %p488 = pneg %p106
      $region42: #{feature_extractor_forward.30} parent=39 // pred_check_branch
        %490 = sbr.rel (%p488) target = $region44
      $region43: #{feature_extractor_forward.30} parent=39 // pred_region
        %s491 = smul.u32 8, %s15
        %p492 = scmp.lt.s32.totalorder %s491, 15
        %s493 = scalar_select %p492, %s491, 15
        %s494 = smul.addr %s493, 4
        %s495 = scalar_lea.vmem %s3, %s494
      $region44: #{feature_extractor_forward.30} parent=39 // pred_fallthru
        _
    $region40: #{feature_extractor_forward.30} parent=5 // pred_fallthru
      _
  $region6: #{feature_extractor_forward.30} parent=0 // loop_footer
    %s13 = sadd.s32 1, %s9
  $region7: #{feature_extractor_forward.30} parent=0 // loop_footer_branch
    %8 = sbr.rel target = $region3
  $region8: #{feature_extractor_forward.30} parent=0 // loop_exit
    _

// kernel: feature_extractor_forward.29
$region0: #{feature_extractor_forward.29}
  #allocation0 [shape = 'u32[]', space=smem, size = 0x4, offset = 0x4, fixed_abs, tag = 'smem constant byte address 0x4 - core index']
  #allocation1 [shape = 'u32[144,128]{1,0:T(1,128)}', space=vmem, size = 0x12000, scoped, tag = 'internal scratch']
  %s0 = inlined_call_operand.vmem [shape: bf16[128,256], index: 0, kind: input, shape index: {}]
  %s1 = inlined_call_operand.vmem [shape: bf16[256,128], index: 1, kind: input, shape index: {}]
  %s2 = inlined_call_operand.vmem [shape: f32[1,128], index: 2, kind: input, shape index: {}]
  %s3 = inlined_call_operand.vmem [shape: bf16[128,128], index: 3, kind: input, shape index: {}]
  %s4 = inlined_call_operand.vmem [shape: bf16[128,128], index: 4, kind: output, shape index: {}]
  %s5 = sld [smem:[#allocation0]]
  $region49: #{feature_extractor_forward.29} parent=0
    _
  %s7 = ssub.s32 1, %s5
  %s8 = scalar_select 0, %s7, %s5
  loop: start=0, step=1, limit=4
  $region2: #{feature_extractor_forward.29} parent=0 // loop_pre_header
    _
  $region3: #{feature_extractor_forward.29} parent=0 // loop_header
    %s10 = sphi 0, %s14
    %p11 = scmp.ge.s32.totalorder %s10, 4
    %s20 = sphi 0, %s22
    %s23 = sphi 0, %s20
    %s24 = sphi 0, %s23
    %s40 = sphi 0, %s24
    %s44 = sphi 0, %s44
    %s46 = sphi 0, %s44
    %s47 = sphi 0, %s46
    %s61 = sphi 0, %s47
    %s65 = sphi 0, %s65
    %s67 = sphi 0, %s65
    %s68 = sphi 0, %s67
    %s82 = sphi 0, %s68
    %s88 = sphi 0, %s90
    %s91 = sphi 0, %s88
    %s92 = sphi 0, %s91
    %s108 = sphi 0, %s92
    %s114 = sphi 0, %s116
    %s117 = sphi 0, %s114
    %s118 = sphi 0, %s117
    %s134 = sphi 0, %s118
  $region4: #{feature_extractor_forward.29} parent=0 // loop_header_branch
    %13 = sbr.rel (%p11) target = $region8
  $region5: #{feature_extractor_forward.29} parent=0 // loop_body
    %s15 = ssub.s32 %s10, 1
    %s16 = ssub.s32 %s10, 2
    %s17 = sadd.s32 %s10, 1
    %s18 = ssub.s32 %s10, %s17
    %p19 = scmp.eq.s32.totalorder %s18, 0
    %s21 = sadd.s32 %s20, 1
    %s22 = scalar_select %p19, %s20, %s21
    %p25 = pneg %p19
    %p26 = scmp.eq.s32.totalorder %s10, 1
    %p27 = por %p25, %p26
    %p28 = scmp.ne.s32.totalorder %s20, %s23
    %p29 = scmp.eq.s32.totalorder %s10, 0
    %p30 = por %p28, %p29
    %p31 = scmp.ne.s32.totalorder %s20, %s23
    %p32 = scmp.eq.s32.totalorder %s15, 1
    %p33 = por %p31, %p32
    %p34 = scmp.ne.s32.totalorder %s23, %s24
    %p35 = scmp.eq.s32.totalorder %s15, 0
    %p36 = por %p34, %p35
    %p37 = scmp.ne.s32.totalorder %s23, %s24
    %p38 = scmp.eq.s32.totalorder %s16, 1
    %p39 = por %p37, %p38
    %p41 = scmp.ne.s32.totalorder %s24, %s40
    %p42 = scmp.eq.s32.totalorder %s16, 0
    %p43 = por %p41, %p42
    %s45 = sadd.s32 %s44, 1
    %p48 = scmp.eq.s32.totalorder %s10, 1
    %p49 = scmp.ne.s32.totalorder %s44, %s46
    %p50 = scmp.eq.s32.totalorder %s10, 0
    %p51 = por %p49, %p50
    %p52 = scmp.ne.s32.totalorder %s44, %s46
    %p53 = scmp.eq.s32.totalorder %s15, 1
    %p54 = por %p52, %p53
    %p55 = scmp.ne.s32.totalorder %s46, %s47
    %p56 = scmp.eq.s32.totalorder %s15, 0
    %p57 = por %p55, %p56
    %p58 = scmp.ne.s32.totalorder %s46, %s47
    %p59 = scmp.eq.s32.totalorder %s16, 1
    %p60 = por %p58, %p59
    %p62 = scmp.ne.s32.totalorder %s47, %s61
    %p63 = scmp.eq.s32.totalorder %s16, 0
    %p64 = por %p62, %p63
    %s66 = sadd.s32 %s65, 1
    %p69 = scmp.eq.s32.totalorder %s10, 1
    %p70 = scmp.ne.s32.totalorder %s65, %s67
    %p71 = scmp.eq.s32.totalorder %s10, 0
    %p72 = por %p70, %p71
    %p73 = scmp.ne.s32.totalorder %s65, %s67
    %p74 = scmp.eq.s32.totalorder %s15, 1
    %p75 = por %p73, %p74
    %p76 = scmp.ne.s32.totalorder %s67, %s68
    %p77 = scmp.eq.s32.totalorder %s15, 0
    %p78 = por %p76, %p77
    %p79 = scmp.ne.s32.totalorder %s67, %s68
    %p80 = scmp.eq.s32.totalorder %s16, 1
    %p81 = por %p79, %p80
    %p83 = scmp.ne.s32.totalorder %s68, %s82
    %p84 = scmp.eq.s32.totalorder %s16, 0
    %p85 = por %p83, %p84
    %s86 = ssub.s32 %s10, %s17
    %p87 = scmp.eq.s32.totalorder %s86, 0
    %s89 = sadd.s32 %s88, 1
    %s90 = scalar_select %p87, %s88, %s89
    %p93 = pneg %p87
    %p94 = scmp.eq.s32.totalorder %s10, 1
    %p95 = por %p93, %p94
    %p96 = scmp.ne.s32.totalorder %s88, %s91
    %p97 = scmp.eq.s32.totalorder %s10, 0
    %p98 = por %p96, %p97
    %p99 = scmp.ne.s32.totalorder %s88, %s91
    %p100 = scmp.eq.s32.totalorder %s15, 1
    %p101 = por %p99, %p100
    %p102 = scmp.ne.s32.totalorder %s91, %s92
    %p103 = scmp.eq.s32.totalorder %s15, 0
    %p104 = por %p102, %p103
    %p105 = scmp.ne.s32.totalorder %s91, %s92
    %p106 = scmp.eq.s32.totalorder %s16, 1
    %p107 = por %p105, %p106
    %p109 = scmp.ne.s32.totalorder %s92, %s108
    %p110 = scmp.eq.s32.totalorder %s16, 0
    %p111 = por %p109, %p110
    %s112 = ssub.s32 %s10, %s17
    %p113 = scmp.eq.s32.totalorder %s112, 0
    %s115 = sadd.s32 %s114, 1
    %s116 = scalar_select %p113, %s114, %s115
    %p119 = pneg %p113
    %p120 = scmp.eq.s32.totalorder %s10, 1
    %p121 = por %p119, %p120
    %p122 = scmp.ne.s32.totalorder %s114, %s117
    %p123 = scmp.eq.s32.totalorder %s10, 0
    %p124 = por %p122, %p123
    %p125 = scmp.ne.s32.totalorder %s114, %s117
    %p126 = scmp.eq.s32.totalorder %s15, 1
    %p127 = por %p125, %p126
    %p128 = scmp.ne.s32.totalorder %s117, %s118
    %p129 = scmp.eq.s32.totalorder %s15, 0
    %p130 = por %p128, %p129
    %p131 = scmp.ne.s32.totalorder %s117, %s118
    %p132 = scmp.eq.s32.totalorder %s16, 1
    %p133 = por %p131, %p132
    %p135 = scmp.ne.s32.totalorder %s118, %s134
    %p136 = scmp.eq.s32.totalorder %s16, 0
    %p137 = por %p135, %p136
    %p138 = scmp.le.s32.totalorder 1, %s10
    %p139 = scmp.lt.s32.totalorder %s10, 3
    %p140 = pnand %p138, %p139
    %p141 = pneg %p140
    // Predicated region
    $region9: #{feature_extractor_forward.29} parent=5 // pred_check
      _
    $region10: #{feature_extractor_forward.29} parent=5 // pred_check_branch
      %143 = sbr.rel (%p140) target = $region12
    $region11: #{feature_extractor_forward.29} parent=5 // pred_region
      %s144 = ssub.s32 %s10, 1
      // Predicated region
      $region13: #{feature_extractor_forward.29} parent=11 // pred_check
        %p145 = pneg %p57
      $region14: #{feature_extractor_forward.29} parent=11 // pred_check_branch
        %147 = sbr.rel (%p145) target = $region16
      $region15: #{feature_extractor_forward.29} parent=11 // pred_region
        _
      $region16: #{feature_extractor_forward.29} parent=11 // pred_fallthru
        _
      // Predicated region
      $region17: #{feature_extractor_forward.29} parent=11 // pred_check
        %p148 = pneg %p78
      $region18: #{feature_extractor_forward.29} parent=11 // pred_check_branch
        %150 = sbr.rel (%p148) target = $region20
      $region19: #{feature_extractor_forward.29} parent=11 // pred_region
        _
      $region20: #{feature_extractor_forward.29} parent=11 // pred_fallthru
        _
    $region12: #{feature_extractor_forward.29} parent=5 // pred_fallthru
      _
    %p151 = scmp.lt.s32.totalorder %s10, 2
    // Predicated region
    $region21: #{feature_extractor_forward.29} parent=5 // pred_check
      %p152 = pneg %p151
    $region22: #{feature_extractor_forward.29} parent=5 // pred_check_branch
      %154 = sbr.rel (%p152) target = $region24
    $region23: #{feature_extractor_forward.29} parent=5 // pred_region
      // Predicated region
      $region25: #{feature_extractor_forward.29} parent=23 // pred_check
        %p155 = pneg %p30
      $region26: #{feature_extractor_forward.29} parent=23 // pred_check_branch
        %157 = sbr.rel (%p155) target = $region28
      $region27: #{feature_extractor_forward.29} parent=23 // pred_region
        %s158 = smul.u32 8, %s10
        %p159 = scmp.lt.s32.totalorder %s158, 15
        %s160 = scalar_select %p159, %s158, 15
        %s161 = smul.addr %s160, 2
        %s162 = smul.addr %s161, 4
        %s163 = scalar_lea.vmem %s0, %s162
        %s164 = smul.u32 8, %s10
      $region28: #{feature_extractor_forward.29} parent=23 // pred_fallthru
        _
      // Predicated region
      $region29: #{feature_extractor_forward.29} parent=23 // pred_check
        %p165 = pneg %p98
      $region30: #{feature_extractor_forward.29} parent=23 // pred_check_branch
        %167 = sbr.rel (%p165) target = $region32
      $region31: #{feature_extractor_forward.29} parent=23 // pred_region
        %s168 = smul.u32 8, %s10
        %p169 = scmp.lt.s32.totalorder %s168, 15
        %s170 = scalar_select %p169, %s168, 15
        %s171 = smul.addr %s170, 4
        %s172 = scalar_lea.vmem %s3, %s171
        %s173 = smul.u32 8, %s10
      $region32: #{feature_extractor_forward.29} parent=23 // pred_fallthru
        _
    $region24: #{feature_extractor_forward.29} parent=5 // pred_fallthru
      _
    %p174 = scmp.le.s32.totalorder 1, %s10
    %p175 = scmp.lt.s32.totalorder %s10, 3
    %p176 = pnand %p174, %p175
    %p177 = pneg %p176
    // Predicated region
    $region33: #{feature_extractor_forward.29} parent=5 // pred_check
      _
    $region34: #{feature_extractor_forward.29} parent=5 // pred_check_branch
      %179 = sbr.rel (%p176) target = $region36
    $region35: #{feature_extractor_forward.29} parent=5 // pred_region
      %s180 = ssub.s32 %s10, 1
      %s181 = smul.u32 8, %s15
      %p182 = scmp.lt.s32.totalorder %s181, 15
      %s183 = scalar_select %p182, %s181, 15
      %s184 = smul.addr %s183, 2
      %s185 = smul.addr %s184, 4
      %s186 = scalar_lea.vmem %s0, %s185
      %p187 = pneg %p36
      %p188 = pneg %p33
      %p189 = pneg %p57
      %p190 = pneg %p54
      %p191 = pneg %p78
      %p192 = pneg %p75
      %s193 = smul.u32 8, %s15
      %p194 = scmp.lt.s32.totalorder %s193, 15
      %s195 = scalar_select %p194, %s193, 15
      %s196 = smul.addr %s195, 4
      %s197 = scalar_lea.vmem %s3, %s196
      %p198 = pneg %p104
      %p199 = pneg %p101
      %p200 = pneg %p130
      %p201 = pneg %p127
      %s202 = smul.u32 8, %s15
      %p203 = scmp.lt.s32.totalorder %s202, 15
      %s204 = scalar_select %p203, %s202, 15
      %s205 = smul.addr %s204, 4
      %s206 = scalar_lea.vmem %s4, %s205
      %s207 = smul.u32 8, %s15
      %p208 = scmp.lt.s32.totalorder %s207, 15
      %s209 = scalar_select %p208, %s207, 15
      %s210 = smul.addr %s209, 2
      %s211 = smul.addr %s210, 4
      %s212 = scalar_lea.vmem %s0, %s211
      %s213 = smul.u32 8, %s15
      %s214 = smul.u32 8, %s15
      %p215 = scmp.lt.s32.totalorder %s214, 15
      %s216 = scalar_select %p215, %s214, 15
      %s217 = smul.addr %s216, 4
      %s218 = scalar_lea.vmem %s3, %s217
      %s219 = smul.u32 8, %s15
      %s220 = smul.u32 8, %s15
      %p221 = scmp.lt.s32.totalorder %s220, 15
      %s222 = scalar_select %p221, %s220, 15
      %s223 = smul.addr %s222, 4
      %s224 = scalar_lea.vmem %s4, %s223
      %s225 = smul.u32 8, %s15
      %v227 = vld [vmem:[%s212] sm:$0xff]
      %v228 = vld [vmem:[%s212 + $0x8] sm:$0xff]
      %v229 = vld [vmem:[%s212 + $0x10] sm:$0xff]
      %v230 = vld [vmem:[%s212 + $0x18] sm:$0xff]
      %v231 = vld [vmem:[%s212 + $0x20] sm:$0xff]
      %v232 = vld [vmem:[%s212 + $0x28] sm:$0xff]
      %v233 = vld [vmem:[%s212 + $0x30] sm:$0xff]
      %v234 = vld [vmem:[%s212 + $0x38] sm:$0xff]
      %v235 = vld [vmem:[%s1] sm:$0xf]
      %v236 = vld [vmem:[%s1 + $0x4] sm:$0xf]
      %v237 = vld [vmem:[%s1 + $0x8] sm:$0xf]
      %v238 = vld [vmem:[%s1 + $0xc] sm:$0xf]
      %v239 = vld [vmem:[%s1 + $0x10] sm:$0xf]
      %v240 = vld [vmem:[%s1 + $0x14] sm:$0xf]
      %v241 = vld [vmem:[%s1 + $0x18] sm:$0xf]
      %v242 = vld [vmem:[%s1 + $0x1c] sm:$0xf]
      %v243 = vld [vmem:[%s1 + $0x20] sm:$0xf]
      %v244 = vld [vmem:[%s1 + $0x24] sm:$0xf]
      %v245 = vld [vmem:[%s1 + $0x28] sm:$0xf]
      %v246 = vld [vmem:[%s1 + $0x2c] sm:$0xf]
      %v247 = vld [vmem:[%s1 + $0x30] sm:$0xf]
      %v248 = vld [vmem:[%s1 + $0x34] sm:$0xf]
      %v249 = vld [vmem:[%s1 + $0x38] sm:$0xf]
      %v250 = vld [vmem:[%s1 + $0x3c] sm:$0xf]
      %v251 = vld [vmem:[%s1 + $0x40] sm:$0xf]
      %v252 = vld [vmem:[%s1 + $0x44] sm:$0xf]
      %v253 = vld [vmem:[%s1 + $0x48] sm:$0xf]
      %v254 = vld [vmem:[%s1 + $0x4c] sm:$0xf]
      %v255 = vld [vmem:[%s1 + $0x50] sm:$0xf]
      %v256 = vld [vmem:[%s1 + $0x54] sm:$0xf]
      %v257 = vld [vmem:[%s1 + $0x58] sm:$0xf]
      %v258 = vld [vmem:[%s1 + $0x5c] sm:$0xf]
      %v259 = vld [vmem:[%s1 + $0x60] sm:$0xf]
      %v260 = vld [vmem:[%s1 + $0x64] sm:$0xf]
      %v261 = vld [vmem:[%s1 + $0x68] sm:$0xf]
      %v262 = vld [vmem:[%s1 + $0x6c] sm:$0xf]
      %v263 = vld [vmem:[%s1 + $0x70] sm:$0xf]
      %v264 = vld [vmem:[%s1 + $0x74] sm:$0xf]
      %v265 = vld [vmem:[%s1 + $0x78] sm:$0xf]
      %v266 = vld [vmem:[%s1 + $0x7c] sm:$0xf]
      %v267 = vld [vmem:[%s2] sm:$0x1]
      %v269 = vlaneseq
      %v270 = vshrl.u32 %v269, 7
      %v271 = vsub.s32 0, %v270
      %v272 = vrot.slane %v267, %v271
      %v282 = vunpack.c.l.b16 %v227
      %v283 = vunpack.c.h.b16 %v227
      %v284 = vunpack.c.l.b16 %v228
      %v285 = vunpack.c.h.b16 %v228
      %v286 = vunpack.c.l.b16 %v229
      %v287 = vunpack.c.h.b16 %v229
      %v288 = vunpack.c.l.b16 %v230
      %v289 = vunpack.c.h.b16 %v230
      %v290 = vunpack.c.l.b16 %v231
      %v291 = vunpack.c.h.b16 %v231
      %v292 = vunpack.c.l.b16 %v232
      %v293 = vunpack.c.h.b16 %v232
      %v294 = vunpack.c.l.b16 %v233
      %v295 = vunpack.c.h.b16 %v233
      %v296 = vunpack.c.l.b16 %v234
      %v297 = vunpack.c.h.b16 %v234
      %v298 = vpack.c.b16 %v284, %v282
      %v299 = vpack.c.b16 %v285, %v283
      %v300 = vpack.c.b16 %v288, %v286
      %v301 = vpack.c.b16 %v289, %v287
      %v302 = vpack.c.b16 %v292, %v290
      %v303 = vpack.c.b16 %v293, %v291
      %v304 = vpack.c.b16 %v296, %v294
      %v305 = vpack.c.b16 %v297, %v295
      %v346 = vunpack.c.l.b16 %v235
      %v347 = vunpack.c.l.b16 %v236
      %v348 = vunpack.c.l.b16 %v237
      %v349 = vunpack.c.l.b16 %v238
      %v350 = vunpack.c.l.b16 %v239
      %v351 = vunpack.c.l.b16 %v240
      %v352 = vunpack.c.l.b16 %v241
      %v353 = vunpack.c.l.b16 %v242
      %v354 = vunpack.c.l.b16 %v243
      %v355 = vunpack.c.l.b16 %v244
      %v356 = vunpack.c.l.b16 %v245
      %v357 = vunpack.c.l.b16 %v246
      %v358 = vunpack.c.l.b16 %v247
      %v359 = vunpack.c.l.b16 %v248
      %v360 = vunpack.c.l.b16 %v249
      %v361 = vunpack.c.l.b16 %v250
      %v362 = vunpack.c.l.b16 %v251
      %v363 = vunpack.c.l.b16 %v252
      %v364 = vunpack.c.l.b16 %v253
      %v365 = vunpack.c.l.b16 %v254
      %v366 = vunpack.c.l.b16 %v255
      %v367 = vunpack.c.l.b16 %v256
      %v368 = vunpack.c.l.b16 %v257
      %v369 = vunpack.c.l.b16 %v258
      %v370 = vunpack.c.l.b16 %v259
      %v371 = vunpack.c.l.b16 %v260
      %v372 = vunpack.c.l.b16 %v261
      %v373 = vunpack.c.l.b16 %v262
      %v374 = vunpack.c.l.b16 %v263
      %v375 = vunpack.c.l.b16 %v264
      %v376 = vunpack.c.l.b16 %v265
      %v377 = vunpack.c.l.b16 %v266
      %v378 = vpack.c.b16 %v347, %v346
      %v379 = vpack.c.b16 %v349, %v348
      %v380 = vpack.c.b16 %v351, %v350
      %v381 = vpack.c.b16 %v353, %v352
      %v382 = vpack.c.b16 %v355, %v354
      %v383 = vpack.c.b16 %v357, %v356
      %v384 = vpack.c.b16 %v359, %v358
      %v385 = vpack.c.b16 %v361, %v360
      %v386 = vpack.c.b16 %v363, %v362
      %v387 = vpack.c.b16 %v365, %v364
      %v388 = vpack.c.b16 %v367, %v366
      %v389 = vpack.c.b16 %v369, %v368
      %v390 = vpack.c.b16 %v371, %v370
      %v391 = vpack.c.b16 %v373, %v372
      %v392 = vpack.c.b16 %v375, %v374
      %v393 = vpack.c.b16 %v377, %v376
      %410 = vmatprep.subr.bf16.mxu0 0
      %411 = vmatpush1.bf16.msra.mxu0 %v385
      %412 = vmatprep.subr.bf16.mxu0 0
      %413 = vmatpush1.bf16.msra.mxu0 %v384
      %414 = vmatprep.subr.bf16.mxu0 0
      %415 = vmatpush1.bf16.msra.mxu0 %v383
      %416 = vmatprep.subr.bf16.mxu0 0
      %417 = vmatpush1.bf16.msra.mxu0 %v382
      %418 = vmatprep.subr.bf16.mxu0 0
      %419 = vmatpush1.bf16.msra.mxu0 %v381
      %420 = vmatprep.subr.bf16.mxu0 0
      %421 = vmatpush1.bf16.msra.mxu0 %v380
      %422 = vmatprep.subr.bf16.mxu0 0
      %423 = vmatpush1.bf16.msra.mxu0 %v379
      %424 = vmatprep.subr.bf16.mxu0 0
      %425 = vmatpush1.bf16.msra.mxu0 %v378
      %426 = vmatprep.subr.bf16.mxu0 0
      %427 = vmatpush2.bf16.msra.mxu0 %v393
      %428 = vmatprep.subr.bf16.mxu0 0
      %429 = vmatpush2.bf16.msra.mxu0 %v392
      %430 = vmatprep.subr.bf16.mxu0 0
      %431 = vmatpush2.bf16.msra.mxu0 %v391
      %432 = vmatprep.subr.bf16.mxu0 0
      %433 = vmatpush2.bf16.msra.mxu0 %v390
      %434 = vmatprep.subr.bf16.mxu0 0
      %435 = vmatpush2.bf16.msra.mxu0 %v389
      %436 = vmatprep.subr.bf16.mxu0 0
      %437 = vmatpush2.bf16.msra.mxu0 %v388
      %438 = vmatprep.subr.bf16.mxu0 0
      %439 = vmatpush2.bf16.msra.mxu0 %v387
      %440 = vmatprep.subr.bf16.mxu0 0
      %441 = vmatpush2.bf16.msra.mxu0 %v386
      %442 = vmatprep.mubr.bf16.mxu0 %v299
      %443 = vmatmul.mubr.bf16.gmra.mxu0 %v298
      %v444 = vpop.f32.mrf.mxu0
      %v445 = vadd.f32 %v272, %v444
      %v446 = vpop.f32.mrf.mxu0
      %v447 = vpop.f32.mrf.mxu0
      %v448 = vadd.f32 %v272, %v447
      %v449 = vpop.f32.mrf.mxu0
      %450 = vmatprep.mubr.bf16.mxu0 %v301
      %451 = vmatmul.mubr.bf16.gmra.mxu0 %v300
      %v452 = vpop.f32.mrf.mxu0
      %v453 = vadd.f32 %v272, %v452
      %v454 = vpop.f32.mrf.mxu0
      %v455 = vpop.f32.mrf.mxu0
      %v456 = vadd.f32 %v272, %v455
      %v457 = vpop.f32.mrf.mxu0
      %458 = vmatprep.mubr.bf16.mxu0 %v303
      %459 = vmatmul.mubr.bf16.gmra.mxu0 %v302
      %v460 = vpop.f32.mrf.mxu0
      %v461 = vadd.f32 %v272, %v460
      %v462 = vpop.f32.mrf.mxu0
      %v463 = vpop.f32.mrf.mxu0
      %v464 = vadd.f32 %v272, %v463
      %v465 = vpop.f32.mrf.mxu0
      %466 = vmatprep.mubr.bf16.mxu0 %v305
      %467 = vmatmul.mubr.bf16.gmra.mxu0 %v304
      %v468 = vpop.f32.mrf.mxu0
      %v469 = vadd.f32 %v272, %v468
      %v470 = vpop.f32.mrf.mxu0
      %v471 = vpop.f32.mrf.mxu0
      %v472 = vadd.f32 %v272, %v471
      %v473 = vpop.f32.mrf.mxu0
      %474 = vdwg.mxu0
      %v475 = vld [vmem:[%s218] sm:$0xf]
      %v476 = vld [vmem:[%s218 + $0x4] sm:$0xf]
      %v477 = vld [vmem:[%s218 + $0x8] sm:$0xf]
      %v478 = vld [vmem:[%s218 + $0xc] sm:$0xf]
      %v479 = vld [vmem:[%s218 + $0x10] sm:$0xf]
      %v480 = vld [vmem:[%s218 + $0x14] sm:$0xf]
      %v481 = vld [vmem:[%s218 + $0x18] sm:$0xf]
      %v482 = vld [vmem:[%s218 + $0x1c] sm:$0xf]
      %v483 = vunpack.c.l.bf16 %v475
      %v484 = vunpack.c.l.bf16 %v476
      %v485 = vunpack.c.l.bf16 %v477
      %v486 = vunpack.c.l.bf16 %v478
      %v487 = vunpack.c.l.bf16 %v479
      %v488 = vunpack.c.l.bf16 %v480
      %v489 = vunpack.c.l.bf16 %v481
      %v490 = vunpack.c.l.bf16 %v482
      %v491 = vadd.f32 %v445, %v483
      %v492 = vadd.f32 %v448, %v484
      %v493 = vadd.f32 %v453, %v485
      %v494 = vadd.f32 %v456, %v486
      %v495 = vadd.f32 %v461, %v487
      %v496 = vadd.f32 %v464, %v488
      %v497 = vadd.f32 %v469, %v489
      %v498 = vadd.f32 %v472, %v490
      %v499 = vmax.f32 %v491, 0.0
      %v500 = vmax.f32 %v492, 0.0
      %v501 = vmax.f32 %v493, 0.0
      %v502 = vmax.f32 %v494, 0.0
      %v503 = vmax.f32 %v495, 0.0
      %v504 = vmax.f32 %v496, 0.0
      %v505 = vmax.f32 %v497, 0.0
      %v506 = vmax.f32 %v498, 0.0
      %v507 = vpack.c.bf16 %v500, %v499
      %v508 = vpack.c.bf16 %v502, %v501
      %v509 = vpack.c.bf16 %v504, %v503
      %v510 = vpack.c.bf16 %v506, %v505
      %v515 = vunpack.c.l.b16 %v507
      %v516 = vunpack.c.h.b16 %v507
      %v517 = vunpack.c.l.b16 %v508
      %v518 = vunpack.c.h.b16 %v508
      %v519 = vunpack.c.l.b16 %v509
      %v520 = vunpack.c.h.b16 %v509
      %v521 = vunpack.c.l.b16 %v510
      %v522 = vunpack.c.h.b16 %v510
      %v523 = vpack.c.b16 %v515, %v515
      %v524 = vpack.c.b16 %v516, %v516
      %v525 = vpack.c.b16 %v517, %v517
      %v526 = vpack.c.b16 %v518, %v518
      %v527 = vpack.c.b16 %v519, %v519
      %v528 = vpack.c.b16 %v520, %v520
      %v529 = vpack.c.b16 %v521, %v521
      %v530 = vpack.c.b16 %v522, %v522
      %539 = vst [vmem:[%s224] sm:$0xf] %v523
      %540 = vst [vmem:[%s224 + $0x4] sm:$0xf] %v524
      %541 = vst [vmem:[%s224 + $0x8] sm:$0xf] %v525
      %542 = vst [vmem:[%s224 + $0xc] sm:$0xf] %v526
      %543 = vst [vmem:[%s224 + $0x10] sm:$0xf] %v527
      %544 = vst [vmem:[%s224 + $0x14] sm:$0xf] %v528
      %545 = vst [vmem:[%s224 + $0x18] sm:$0xf] %v529
      %546 = vst [vmem:[%s224 + $0x1c] sm:$0xf] %v530
      %s547 = smul.u32 8, %s15
      %p548 = scmp.lt.s32.totalorder %s547, 15
      %s549 = scalar_select %p548, %s547, 15
      %s550 = smul.addr %s549, 4
      %s551 = scalar_lea.vmem %s4, %s550
      // Predicated region
      $region37: #{feature_extractor_forward.29} parent=35 // pred_check
        %p552 = pneg %p127
      $region38: #{feature_extractor_forward.29} parent=35 // pred_check_branch
        %554 = sbr.rel (%p552) target = $region40
      $region39: #{feature_extractor_forward.29} parent=35 // pred_region
        %s555 = smul.u32 8, %s15
      $region40: #{feature_extractor_forward.29} parent=35 // pred_fallthru
        _
    $region36: #{feature_extractor_forward.29} parent=5 // pred_fallthru
      _
    %p556 = scmp.le.s32.totalorder 2, %s10
    // Predicated region
    $region41: #{feature_extractor_forward.29} parent=5 // pred_check
      %p557 = pneg %p556
    $region42: #{feature_extractor_forward.29} parent=5 // pred_check_branch
      %559 = sbr.rel (%p557) target = $region44
    $region43: #{feature_extractor_forward.29} parent=5 // pred_region
      %s560 = ssub.s32 %s10, 2
      // Predicated region
      $region45: #{feature_extractor_forward.29} parent=43 // pred_check
        %p561 = pneg %p133
      $region46: #{feature_extractor_forward.29} parent=43 // pred_check_branch
        %563 = sbr.rel (%p561) target = $region48
      $region47: #{feature_extractor_forward.29} parent=43 // pred_region
        %s564 = smul.u32 8, %s16
        %p565 = scmp.lt.s32.totalorder %s564, 15
        %s566 = scalar_select %p565, %s564, 15
        %s567 = smul.addr %s566, 4
        %s568 = scalar_lea.vmem %s4, %s567
      $region48: #{feature_extractor_forward.29} parent=43 // pred_fallthru
        _
    $region44: #{feature_extractor_forward.29} parent=5 // pred_fallthru
      _
  $region6: #{feature_extractor_forward.29} parent=0 // loop_footer
    %s14 = sadd.s32 1, %s10
  $region7: #{feature_extractor_forward.29} parent=0 // loop_footer_branch
    %9 = sbr.rel target = $region3
  $region8: #{feature_extractor_forward.29} parent=0 // loop_exit
    _

// kernel: feature_extractor_forward.32
$region0: #{feature_extractor_forward.32}
  #allocation0 [shape = 'u32[]', space=smem, size = 0x4, offset = 0x4, fixed_abs, tag = 'smem constant byte address 0x4 - core index']
  #allocation1 [shape = 'u32[144,128]{1,0:T(1,128)}', space=vmem, size = 0x12000, scoped, tag = 'internal scratch']
  %s0 = inlined_call_operand.vmem [shape: bf16[32,256], index: 0, kind: input, shape index: {}]
  %s1 = inlined_call_operand.vmem [shape: bf16[256,128], index: 1, kind: input, shape index: {}]
  %s2 = inlined_call_operand.vmem [shape: f32[1,128], index: 2, kind: input, shape index: {}]
  %s3 = inlined_call_operand.vmem [shape: bf16[32,128], index: 3, kind: output, shape index: {}]
  %s4 = sld [smem:[#allocation0]]
  $region45: #{feature_extractor_forward.32} parent=0
    _
  %s6 = ssub.s32 1, %s4
  %s7 = scalar_select 0, %s6, %s4
  loop: start=0, step=1, limit=4
  $region2: #{feature_extractor_forward.32} parent=0 // loop_pre_header
    _
  $region3: #{feature_extractor_forward.32} parent=0 // loop_header
    %s9 = sphi 0, %s13
    %p10 = scmp.ge.s32.totalorder %s9, 4
    %s19 = sphi 0, %s21
    %s22 = sphi 0, %s19
    %s23 = sphi 0, %s22
    %s39 = sphi 0, %s23
    %s43 = sphi 0, %s43
    %s45 = sphi 0, %s43
    %s46 = sphi 0, %s45
    %s60 = sphi 0, %s46
    %s64 = sphi 0, %s64
    %s66 = sphi 0, %s64
    %s67 = sphi 0, %s66
    %s81 = sphi 0, %s67
    %s87 = sphi 0, %s89
    %s90 = sphi 0, %s87
    %s91 = sphi 0, %s90
    %s107 = sphi 0, %s91
  $region4: #{feature_extractor_forward.32} parent=0 // loop_header_branch
    %12 = sbr.rel (%p10) target = $region8
  $region5: #{feature_extractor_forward.32} parent=0 // loop_body
    %s14 = ssub.s32 %s9, 1
    %s15 = ssub.s32 %s9, 2
    %s16 = sadd.s32 %s9, 1
    %s17 = ssub.s32 %s9, %s16
    %p18 = scmp.eq.s32.totalorder %s17, 0
    %s20 = sadd.s32 %s19, 1
    %s21 = scalar_select %p18, %s19, %s20
    %p24 = pneg %p18
    %p25 = scmp.eq.s32.totalorder %s9, 1
    %p26 = por %p24, %p25
    %p27 = scmp.ne.s32.totalorder %s19, %s22
    %p28 = scmp.eq.s32.totalorder %s9, 0
    %p29 = por %p27, %p28
    %p30 = scmp.ne.s32.totalorder %s19, %s22
    %p31 = scmp.eq.s32.totalorder %s14, 1
    %p32 = por %p30, %p31
    %p33 = scmp.ne.s32.totalorder %s22, %s23
    %p34 = scmp.eq.s32.totalorder %s14, 0
    %p35 = por %p33, %p34
    %p36 = scmp.ne.s32.totalorder %s22, %s23
    %p37 = scmp.eq.s32.totalorder %s15, 1
    %p38 = por %p36, %p37
    %p40 = scmp.ne.s32.totalorder %s23, %s39
    %p41 = scmp.eq.s32.totalorder %s15, 0
    %p42 = por %p40, %p41
    %s44 = sadd.s32 %s43, 1
    %p47 = scmp.eq.s32.totalorder %s9, 1
    %p48 = scmp.ne.s32.totalorder %s43, %s45
    %p49 = scmp.eq.s32.totalorder %s9, 0
    %p50 = por %p48, %p49
    %p51 = scmp.ne.s32.totalorder %s43, %s45
    %p52 = scmp.eq.s32.totalorder %s14, 1
    %p53 = por %p51, %p52
    %p54 = scmp.ne.s32.totalorder %s45, %s46
    %p55 = scmp.eq.s32.totalorder %s14, 0
    %p56 = por %p54, %p55
    %p57 = scmp.ne.s32.totalorder %s45, %s46
    %p58 = scmp.eq.s32.totalorder %s15, 1
    %p59 = por %p57, %p58
    %p61 = scmp.ne.s32.totalorder %s46, %s60
    %p62 = scmp.eq.s32.totalorder %s15, 0
    %p63 = por %p61, %p62
    %s65 = sadd.s32 %s64, 1
    %p68 = scmp.eq.s32.totalorder %s9, 1
    %p69 = scmp.ne.s32.totalorder %s64, %s66
    %p70 = scmp.eq.s32.totalorder %s9, 0
    %p71 = por %p69, %p70
    %p72 = scmp.ne.s32.totalorder %s64, %s66
    %p73 = scmp.eq.s32.totalorder %s14, 1
    %p74 = por %p72, %p73
    %p75 = scmp.ne.s32.totalorder %s66, %s67
    %p76 = scmp.eq.s32.totalorder %s14, 0
    %p77 = por %p75, %p76
    %p78 = scmp.ne.s32.totalorder %s66, %s67
    %p79 = scmp.eq.s32.totalorder %s15, 1
    %p80 = por %p78, %p79
    %p82 = scmp.ne.s32.totalorder %s67, %s81
    %p83 = scmp.eq.s32.totalorder %s15, 0
    %p84 = por %p82, %p83
    %s85 = ssub.s32 %s9, %s16
    %p86 = scmp.eq.s32.totalorder %s85, 0
    %s88 = sadd.s32 %s87, 1
    %s89 = scalar_select %p86, %s87, %s88
    %p92 = pneg %p86
    %p93 = scmp.eq.s32.totalorder %s9, 1
    %p94 = por %p92, %p93
    %p95 = scmp.ne.s32.totalorder %s87, %s90
    %p96 = scmp.eq.s32.totalorder %s9, 0
    %p97 = por %p95, %p96
    %p98 = scmp.ne.s32.totalorder %s87, %s90
    %p99 = scmp.eq.s32.totalorder %s14, 1
    %p100 = por %p98, %p99
    %p101 = scmp.ne.s32.totalorder %s90, %s91
    %p102 = scmp.eq.s32.totalorder %s14, 0
    %p103 = por %p101, %p102
    %p104 = scmp.ne.s32.totalorder %s90, %s91
    %p105 = scmp.eq.s32.totalorder %s15, 1
    %p106 = por %p104, %p105
    %p108 = scmp.ne.s32.totalorder %s91, %s107
    %p109 = scmp.eq.s32.totalorder %s15, 0
    %p110 = por %p108, %p109
    %p111 = scmp.le.s32.totalorder 1, %s9
    %p112 = scmp.lt.s32.totalorder %s9, 3
    %p113 = pnand %p111, %p112
    %p114 = pneg %p113
    // Predicated region
    $region9: #{feature_extractor_forward.32} parent=5 // pred_check
      _
    $region10: #{feature_extractor_forward.32} parent=5 // pred_check_branch
      %116 = sbr.rel (%p113) target = $region12
    $region11: #{feature_extractor_forward.32} parent=5 // pred_region
      %s117 = ssub.s32 %s9, 1
      // Predicated region
      $region13: #{feature_extractor_forward.32} parent=11 // pred_check
        %p118 = pneg %p56
      $region14: #{feature_extractor_forward.32} parent=11 // pred_check_branch
        %120 = sbr.rel (%p118) target = $region16
      $region15: #{feature_extractor_forward.32} parent=11 // pred_region
        _
      $region16: #{feature_extractor_forward.32} parent=11 // pred_fallthru
        _
      // Predicated region
      $region17: #{feature_extractor_forward.32} parent=11 // pred_check
        %p121 = pneg %p77
      $region18: #{feature_extractor_forward.32} parent=11 // pred_check_branch
        %123 = sbr.rel (%p121) target = $region20
      $region19: #{feature_extractor_forward.32} parent=11 // pred_region
        _
      $region20: #{feature_extractor_forward.32} parent=11 // pred_fallthru
        _
    $region12: #{feature_extractor_forward.32} parent=5 // pred_fallthru
      _
    %p124 = scmp.lt.s32.totalorder %s9, 2
    // Predicated region
    $region21: #{feature_extractor_forward.32} parent=5 // pred_check
      %p125 = pneg %p124
    $region22: #{feature_extractor_forward.32} parent=5 // pred_check_branch
      %127 = sbr.rel (%p125) target = $region24
    $region23: #{feature_extractor_forward.32} parent=5 // pred_region
      // Predicated region
      $region25: #{feature_extractor_forward.32} parent=23 // pred_check
        %p128 = pneg %p29
      $region26: #{feature_extractor_forward.32} parent=23 // pred_check_branch
        %130 = sbr.rel (%p128) target = $region28
      $region27: #{feature_extractor_forward.32} parent=23 // pred_region
        %s131 = smul.u32 2, %s9
        %p132 = scmp.lt.s32.totalorder %s131, 3
        %s133 = scalar_select %p132, %s131, 3
        %s134 = smul.addr %s133, 2
        %s135 = smul.addr %s134, 4
        %s136 = scalar_lea.vmem %s0, %s135
        %s137 = smul.u32 2, %s9
      $region28: #{feature_extractor_forward.32} parent=23 // pred_fallthru
        _
    $region24: #{feature_extractor_forward.32} parent=5 // pred_fallthru
      _
    %p138 = scmp.le.s32.totalorder 1, %s9
    %p139 = scmp.lt.s32.totalorder %s9, 3
    %p140 = pnand %p138, %p139
    %p141 = pneg %p140
    // Predicated region
    $region29: #{feature_extractor_forward.32} parent=5 // pred_check
      _
    $region30: #{feature_extractor_forward.32} parent=5 // pred_check_branch
      %143 = sbr.rel (%p140) target = $region32
    $region31: #{feature_extractor_forward.32} parent=5 // pred_region
      %s144 = ssub.s32 %s9, 1
      %s145 = smul.u32 2, %s14
      %p146 = scmp.lt.s32.totalorder %s145, 3
      %s147 = scalar_select %p146, %s145, 3
      %s148 = smul.addr %s147, 2
      %s149 = smul.addr %s148, 4
      %s150 = scalar_lea.vmem %s0, %s149
      %p151 = pneg %p35
      %p152 = pneg %p32
      %p153 = pneg %p56
      %p154 = pneg %p53
      %p155 = pneg %p77
      %p156 = pneg %p74
      %p157 = pneg %p103
      %p158 = pneg %p100
      %s159 = smul.u32 2, %s14
      %p160 = scmp.lt.s32.totalorder %s159, 3
      %s161 = scalar_select %p160, %s159, 3
      %s162 = smul.addr %s161, 4
      %s163 = scalar_lea.vmem %s3, %s162
      %s164 = smul.u32 2, %s14
      %p165 = scmp.lt.s32.totalorder %s164, 3
      %s166 = scalar_select %p165, %s164, 3
      %s167 = smul.addr %s166, 2
      %s168 = smul.addr %s167, 4
      %s169 = scalar_lea.vmem %s0, %s168
      %s170 = smul.u32 2, %s14
      %s171 = smul.u32 2, %s14
      %p172 = scmp.lt.s32.totalorder %s171, 3
      %s173 = scalar_select %p172, %s171, 3
      %s174 = smul.addr %s173, 4
      %s175 = scalar_lea.vmem %s3, %s174
      %s176 = smul.u32 2, %s14
      %v178 = vld [vmem:[%s169] sm:$0xff]
      %v179 = vld [vmem:[%s169 + $0x8] sm:$0xff]
      %v180 = vld [vmem:[%s1] sm:$0xf]
      %v181 = vld [vmem:[%s1 + $0x4] sm:$0xf]
      %v182 = vld [vmem:[%s1 + $0x8] sm:$0xf]
      %v183 = vld [vmem:[%s1 + $0xc] sm:$0xf]
      %v184 = vld [vmem:[%s1 + $0x10] sm:$0xf]
      %v185 = vld [vmem:[%s1 + $0x14] sm:$0xf]
      %v186 = vld [vmem:[%s1 + $0x18] sm:$0xf]
      %v187 = vld [vmem:[%s1 + $0x1c] sm:$0xf]
      %v188 = vld [vmem:[%s1 + $0x20] sm:$0xf]
      %v189 = vld [vmem:[%s1 + $0x24] sm:$0xf]
      %v190 = vld [vmem:[%s1 + $0x28] sm:$0xf]
      %v191 = vld [vmem:[%s1 + $0x2c] sm:$0xf]
      %v192 = vld [vmem:[%s1 + $0x30] sm:$0xf]
      %v193 = vld [vmem:[%s1 + $0x34] sm:$0xf]
      %v194 = vld [vmem:[%s1 + $0x38] sm:$0xf]
      %v195 = vld [vmem:[%s1 + $0x3c] sm:$0xf]
      %v196 = vld [vmem:[%s1 + $0x40] sm:$0xf]
      %v197 = vld [vmem:[%s1 + $0x44] sm:$0xf]
      %v198 = vld [vmem:[%s1 + $0x48] sm:$0xf]
      %v199 = vld [vmem:[%s1 + $0x4c] sm:$0xf]
      %v200 = vld [vmem:[%s1 + $0x50] sm:$0xf]
      %v201 = vld [vmem:[%s1 + $0x54] sm:$0xf]
      %v202 = vld [vmem:[%s1 + $0x58] sm:$0xf]
      %v203 = vld [vmem:[%s1 + $0x5c] sm:$0xf]
      %v204 = vld [vmem:[%s1 + $0x60] sm:$0xf]
      %v205 = vld [vmem:[%s1 + $0x64] sm:$0xf]
      %v206 = vld [vmem:[%s1 + $0x68] sm:$0xf]
      %v207 = vld [vmem:[%s1 + $0x6c] sm:$0xf]
      %v208 = vld [vmem:[%s1 + $0x70] sm:$0xf]
      %v209 = vld [vmem:[%s1 + $0x74] sm:$0xf]
      %v210 = vld [vmem:[%s1 + $0x78] sm:$0xf]
      %v211 = vld [vmem:[%s1 + $0x7c] sm:$0xf]
      %v212 = vld [vmem:[%s2] sm:$0x1]
      %v214 = vlaneseq
      %v215 = vshrl.u32 %v214, 7
      %v216 = vsub.s32 0, %v215
      %v217 = vrot.slane %v212, %v216
      %v221 = vunpack.c.l.b16 %v178
      %v222 = vunpack.c.h.b16 %v178
      %v223 = vunpack.c.l.b16 %v179
      %v224 = vunpack.c.h.b16 %v179
      %v225 = vpack.c.b16 %v223, %v221
      %v226 = vpack.c.b16 %v224, %v222
      %v261 = vunpack.c.l.b16 %v180
      %v262 = vunpack.c.l.b16 %v181
      %v263 = vunpack.c.l.b16 %v182
      %v264 = vunpack.c.l.b16 %v183
      %v265 = vunpack.c.l.b16 %v184
      %v266 = vunpack.c.l.b16 %v185
      %v267 = vunpack.c.l.b16 %v186
      %v268 = vunpack.c.l.b16 %v187
      %v269 = vunpack.c.l.b16 %v188
      %v270 = vunpack.c.l.b16 %v189
      %v271 = vunpack.c.l.b16 %v190
      %v272 = vunpack.c.l.b16 %v191
      %v273 = vunpack.c.l.b16 %v192
      %v274 = vunpack.c.l.b16 %v193
      %v275 = vunpack.c.l.b16 %v194
      %v276 = vunpack.c.l.b16 %v195
      %v277 = vunpack.c.l.b16 %v196
      %v278 = vunpack.c.l.b16 %v197
      %v279 = vunpack.c.l.b16 %v198
      %v280 = vunpack.c.l.b16 %v199
      %v281 = vunpack.c.l.b16 %v200
      %v282 = vunpack.c.l.b16 %v201
      %v283 = vunpack.c.l.b16 %v202
      %v284 = vunpack.c.l.b16 %v203
      %v285 = vunpack.c.l.b16 %v204
      %v286 = vunpack.c.l.b16 %v205
      %v287 = vunpack.c.l.b16 %v206
      %v288 = vunpack.c.l.b16 %v207
      %v289 = vunpack.c.l.b16 %v208
      %v290 = vunpack.c.l.b16 %v209
      %v291 = vunpack.c.l.b16 %v210
      %v292 = vunpack.c.l.b16 %v211
      %v293 = vpack.c.b16 %v262, %v261
      %v294 = vpack.c.b16 %v264, %v263
      %v295 = vpack.c.b16 %v266, %v265
      %v296 = vpack.c.b16 %v268, %v267
      %v297 = vpack.c.b16 %v270, %v269
      %v298 = vpack.c.b16 %v272, %v271
      %v299 = vpack.c.b16 %v274, %v273
      %v300 = vpack.c.b16 %v276, %v275
      %v301 = vpack.c.b16 %v278, %v277
      %v302 = vpack.c.b16 %v280, %v279
      %v303 = vpack.c.b16 %v282, %v281
      %v304 = vpack.c.b16 %v284, %v283
      %v305 = vpack.c.b16 %v286, %v285
      %v306 = vpack.c.b16 %v288, %v287
      %v307 = vpack.c.b16 %v290, %v289
      %v308 = vpack.c.b16 %v292, %v291
      %325 = vmatprep.subr.bf16.mxu0 0
      %326 = vmatpush1.bf16.msra.mxu0 %v300
      %327 = vmatprep.subr.bf16.mxu0 0
      %328 = vmatpush1.bf16.msra.mxu0 %v299
      %329 = vmatprep.subr.bf16.mxu0 0
      %330 = vmatpush1.bf16.msra.mxu0 %v298
      %331 = vmatprep.subr.bf16.mxu0 0
      %332 = vmatpush1.bf16.msra.mxu0 %v297
      %333 = vmatprep.subr.bf16.mxu0 0
      %334 = vmatpush1.bf16.msra.mxu0 %v296
      %335 = vmatprep.subr.bf16.mxu0 0
      %336 = vmatpush1.bf16.msra.mxu0 %v295
      %337 = vmatprep.subr.bf16.mxu0 0
      %338 = vmatpush1.bf16.msra.mxu0 %v294
      %339 = vmatprep.subr.bf16.mxu0 0
      %340 = vmatpush1.bf16.msra.mxu0 %v293
      %341 = vmatprep.subr.bf16.mxu0 0
      %342 = vmatpush2.bf16.msra.mxu0 %v308
      %343 = vmatprep.subr.bf16.mxu0 0
      %344 = vmatpush2.bf16.msra.mxu0 %v307
      %345 = vmatprep.subr.bf16.mxu0 0
      %346 = vmatpush2.bf16.msra.mxu0 %v306
      %347 = vmatprep.subr.bf16.mxu0 0
      %348 = vmatpush2.bf16.msra.mxu0 %v305
      %349 = vmatprep.subr.bf16.mxu0 0
      %350 = vmatpush2.bf16.msra.mxu0 %v304
      %351 = vmatprep.subr.bf16.mxu0 0
      %352 = vmatpush2.bf16.msra.mxu0 %v303
      %353 = vmatprep.subr.bf16.mxu0 0
      %354 = vmatpush2.bf16.msra.mxu0 %v302
      %355 = vmatprep.subr.bf16.mxu0 0
      %356 = vmatpush2.bf16.msra.mxu0 %v301
      %357 = vmatprep.mubr.bf16.mxu0 %v226
      %358 = vmatmul.mubr.bf16.gmra.mxu0 %v225
      %v359 = vpop.f32.mrf.mxu0
      %v360 = vadd.f32 %v217, %v359
      %v361 = vpop.f32.mrf.mxu0
      %v362 = vpop.f32.mrf.mxu0
      %v363 = vadd.f32 %v217, %v362
      %v364 = vpop.f32.mrf.mxu0
      %365 = vdwg.mxu0
      %v366 = vmax.f32 %v360, 0.0
      %v367 = vmax.f32 %v363, 0.0
      %v368 = vpack.c.bf16 %v367, %v366
      %v370 = vunpack.c.l.b16 %v368
      %v371 = vunpack.c.h.b16 %v368
      %v372 = vpack.c.b16 %v370, %v370
      %v373 = vpack.c.b16 %v371, %v371
      %376 = vst [vmem:[%s175] sm:$0xf] %v372
      %377 = vst [vmem:[%s175 + $0x4] sm:$0xf] %v373
      %s378 = smul.u32 2, %s14
      %p379 = scmp.lt.s32.totalorder %s378, 3
      %s380 = scalar_select %p379, %s378, 3
      %s381 = smul.addr %s380, 4
      %s382 = scalar_lea.vmem %s3, %s381
      // Predicated region
      $region33: #{feature_extractor_forward.32} parent=31 // pred_check
        %p383 = pneg %p100
      $region34: #{feature_extractor_forward.32} parent=31 // pred_check_branch
        %385 = sbr.rel (%p383) target = $region36
      $region35: #{feature_extractor_forward.32} parent=31 // pred_region
        %s386 = smul.u32 2, %s14
      $region36: #{feature_extractor_forward.32} parent=31 // pred_fallthru
        _
    $region32: #{feature_extractor_forward.32} parent=5 // pred_fallthru
      _
    %p387 = scmp.le.s32.totalorder 2, %s9
    // Predicated region
    $region37: #{feature_extractor_forward.32} parent=5 // pred_check
      %p388 = pneg %p387
    $region38: #{feature_extractor_forward.32} parent=5 // pred_check_branch
      %390 = sbr.rel (%p388) target = $region40
    $region39: #{feature_extractor_forward.32} parent=5 // pred_region
      %s391 = ssub.s32 %s9, 2
      // Predicated region
      $region41: #{feature_extractor_forward.32} parent=39 // pred_check
        %p392 = pneg %p106
      $region42: #{feature_extractor_forward.32} parent=39 // pred_check_branch
        %394 = sbr.rel (%p392) target = $region44
      $region43: #{feature_extractor_forward.32} parent=39 // pred_region
        %s395 = smul.u32 2, %s15
        %p396 = scmp.lt.s32.totalorder %s395, 3
        %s397 = scalar_select %p396, %s395, 3
        %s398 = smul.addr %s397, 4
        %s399 = scalar_lea.vmem %s3, %s398
      $region44: #{feature_extractor_forward.32} parent=39 // pred_fallthru
        _
    $region40: #{feature_extractor_forward.32} parent=5 // pred_fallthru
      _
  $region6: #{feature_extractor_forward.32} parent=0 // loop_footer
    %s13 = sadd.s32 1, %s9
  $region7: #{feature_extractor_forward.32} parent=0 // loop_footer_branch
    %8 = sbr.rel target = $region3
  $region8: #{feature_extractor_forward.32} parent=0 // loop_exit
    _

// kernel: feature_extractor_forward.33
$region0: #{feature_extractor_forward.33}
  #allocation0 [shape = 'u32[]', space=smem, size = 0x4, offset = 0x4, fixed_abs, tag = 'smem constant byte address 0x4 - core index']
  #allocation1 [shape = 'u32[144,128]{1,0:T(1,128)}', space=vmem, size = 0x12000, scoped, tag = 'internal scratch']
  %s0 = inlined_call_operand.vmem [shape: bf16[32,128], index: 0, kind: input, shape index: {}]
  %s1 = inlined_call_operand.vmem [shape: bf16[128,128], index: 1, kind: input, shape index: {}]
  %s2 = inlined_call_operand.vmem [shape: f32[1,128], index: 2, kind: input, shape index: {}]
  %s3 = inlined_call_operand.vmem [shape: bf16[32,128], index: 3, kind: output, shape index: {}]
  %s4 = sld [smem:[#allocation0]]
  $region45: #{feature_extractor_forward.33} parent=0
    _
  %s6 = ssub.s32 1, %s4
  %s7 = scalar_select 0, %s6, %s4
  loop: start=0, step=1, limit=4
  $region2: #{feature_extractor_forward.33} parent=0 // loop_pre_header
    _
  $region3: #{feature_extractor_forward.33} parent=0 // loop_header
    %s9 = sphi 0, %s13
    %p10 = scmp.ge.s32.totalorder %s9, 4
    %s19 = sphi 0, %s21
    %s22 = sphi 0, %s19
    %s23 = sphi 0, %s22
    %s39 = sphi 0, %s23
    %s43 = sphi 0, %s43
    %s45 = sphi 0, %s43
    %s46 = sphi 0, %s45
    %s60 = sphi 0, %s46
    %s64 = sphi 0, %s64
    %s66 = sphi 0, %s64
    %s67 = sphi 0, %s66
    %s81 = sphi 0, %s67
    %s87 = sphi 0, %s89
    %s90 = sphi 0, %s87
    %s91 = sphi 0, %s90
    %s107 = sphi 0, %s91
  $region4: #{feature_extractor_forward.33} parent=0 // loop_header_branch
    %12 = sbr.rel (%p10) target = $region8
  $region5: #{feature_extractor_forward.33} parent=0 // loop_body
    %s14 = ssub.s32 %s9, 1
    %s15 = ssub.s32 %s9, 2
    %s16 = sadd.s32 %s9, 1
    %s17 = ssub.s32 %s9, %s16
    %p18 = scmp.eq.s32.totalorder %s17, 0
    %s20 = sadd.s32 %s19, 1
    %s21 = scalar_select %p18, %s19, %s20
    %p24 = pneg %p18
    %p25 = scmp.eq.s32.totalorder %s9, 1
    %p26 = por %p24, %p25
    %p27 = scmp.ne.s32.totalorder %s19, %s22
    %p28 = scmp.eq.s32.totalorder %s9, 0
    %p29 = por %p27, %p28
    %p30 = scmp.ne.s32.totalorder %s19, %s22
    %p31 = scmp.eq.s32.totalorder %s14, 1
    %p32 = por %p30, %p31
    %p33 = scmp.ne.s32.totalorder %s22, %s23
    %p34 = scmp.eq.s32.totalorder %s14, 0
    %p35 = por %p33, %p34
    %p36 = scmp.ne.s32.totalorder %s22, %s23
    %p37 = scmp.eq.s32.totalorder %s15, 1
    %p38 = por %p36, %p37
    %p40 = scmp.ne.s32.totalorder %s23, %s39
    %p41 = scmp.eq.s32.totalorder %s15, 0
    %p42 = por %p40, %p41
    %s44 = sadd.s32 %s43, 1
    %p47 = scmp.eq.s32.totalorder %s9, 1
    %p48 = scmp.ne.s32.totalorder %s43, %s45
    %p49 = scmp.eq.s32.totalorder %s9, 0
    %p50 = por %p48, %p49
    %p51 = scmp.ne.s32.totalorder %s43, %s45
    %p52 = scmp.eq.s32.totalorder %s14, 1
    %p53 = por %p51, %p52
    %p54 = scmp.ne.s32.totalorder %s45, %s46
    %p55 = scmp.eq.s32.totalorder %s14, 0
    %p56 = por %p54, %p55
    %p57 = scmp.ne.s32.totalorder %s45, %s46
    %p58 = scmp.eq.s32.totalorder %s15, 1
    %p59 = por %p57, %p58
    %p61 = scmp.ne.s32.totalorder %s46, %s60
    %p62 = scmp.eq.s32.totalorder %s15, 0
    %p63 = por %p61, %p62
    %s65 = sadd.s32 %s64, 1
    %p68 = scmp.eq.s32.totalorder %s9, 1
    %p69 = scmp.ne.s32.totalorder %s64, %s66
    %p70 = scmp.eq.s32.totalorder %s9, 0
    %p71 = por %p69, %p70
    %p72 = scmp.ne.s32.totalorder %s64, %s66
    %p73 = scmp.eq.s32.totalorder %s14, 1
    %p74 = por %p72, %p73
    %p75 = scmp.ne.s32.totalorder %s66, %s67
    %p76 = scmp.eq.s32.totalorder %s14, 0
    %p77 = por %p75, %p76
    %p78 = scmp.ne.s32.totalorder %s66, %s67
    %p79 = scmp.eq.s32.totalorder %s15, 1
    %p80 = por %p78, %p79
    %p82 = scmp.ne.s32.totalorder %s67, %s81
    %p83 = scmp.eq.s32.totalorder %s15, 0
    %p84 = por %p82, %p83
    %s85 = ssub.s32 %s9, %s16
    %p86 = scmp.eq.s32.totalorder %s85, 0
    %s88 = sadd.s32 %s87, 1
    %s89 = scalar_select %p86, %s87, %s88
    %p92 = pneg %p86
    %p93 = scmp.eq.s32.totalorder %s9, 1
    %p94 = por %p92, %p93
    %p95 = scmp.ne.s32.totalorder %s87, %s90
    %p96 = scmp.eq.s32.totalorder %s9, 0
    %p97 = por %p95, %p96
    %p98 = scmp.ne.s32.totalorder %s87, %s90
    %p99 = scmp.eq.s32.totalorder %s14, 1
    %p100 = por %p98, %p99
    %p101 = scmp.ne.s32.totalorder %s90, %s91
    %p102 = scmp.eq.s32.totalorder %s14, 0
    %p103 = por %p101, %p102
    %p104 = scmp.ne.s32.totalorder %s90, %s91
    %p105 = scmp.eq.s32.totalorder %s15, 1
    %p106 = por %p104, %p105
    %p108 = scmp.ne.s32.totalorder %s91, %s107
    %p109 = scmp.eq.s32.totalorder %s15, 0
    %p110 = por %p108, %p109
    %p111 = scmp.le.s32.totalorder 1, %s9
    %p112 = scmp.lt.s32.totalorder %s9, 3
    %p113 = pnand %p111, %p112
    %p114 = pneg %p113
    // Predicated region
    $region9: #{feature_extractor_forward.33} parent=5 // pred_check
      _
    $region10: #{feature_extractor_forward.33} parent=5 // pred_check_branch
      %116 = sbr.rel (%p113) target = $region12
    $region11: #{feature_extractor_forward.33} parent=5 // pred_region
      %s117 = ssub.s32 %s9, 1
      // Predicated region
      $region13: #{feature_extractor_forward.33} parent=11 // pred_check
        %p118 = pneg %p56
      $region14: #{feature_extractor_forward.33} parent=11 // pred_check_branch
        %120 = sbr.rel (%p118) target = $region16
      $region15: #{feature_extractor_forward.33} parent=11 // pred_region
        _
      $region16: #{feature_extractor_forward.33} parent=11 // pred_fallthru
        _
      // Predicated region
      $region17: #{feature_extractor_forward.33} parent=11 // pred_check
        %p121 = pneg %p77
      $region18: #{feature_extractor_forward.33} parent=11 // pred_check_branch
        %123 = sbr.rel (%p121) target = $region20
      $region19: #{feature_extractor_forward.33} parent=11 // pred_region
        _
      $region20: #{feature_extractor_forward.33} parent=11 // pred_fallthru
        _
    $region12: #{feature_extractor_forward.33} parent=5 // pred_fallthru
      _
    %p124 = scmp.lt.s32.totalorder %s9, 2
    // Predicated region
    $region21: #{feature_extractor_forward.33} parent=5 // pred_check
      %p125 = pneg %p124
    $region22: #{feature_extractor_forward.33} parent=5 // pred_check_branch
      %127 = sbr.rel (%p125) target = $region24
    $region23: #{feature_extractor_forward.33} parent=5 // pred_region
      // Predicated region
      $region25: #{feature_extractor_forward.33} parent=23 // pred_check
        %p128 = pneg %p29
      $region26: #{feature_extractor_forward.33} parent=23 // pred_check_branch
        %130 = sbr.rel (%p128) target = $region28
      $region27: #{feature_extractor_forward.33} parent=23 // pred_region
        %s131 = smul.u32 2, %s9
        %p132 = scmp.lt.s32.totalorder %s131, 3
        %s133 = scalar_select %p132, %s131, 3
        %s134 = smul.addr %s133, 4
        %s135 = scalar_lea.vmem %s0, %s134
        %s136 = smul.u32 2, %s9
      $region28: #{feature_extractor_forward.33} parent=23 // pred_fallthru
        _
    $region24: #{feature_extractor_forward.33} parent=5 // pred_fallthru
      _
    %p137 = scmp.le.s32.totalorder 1, %s9
    %p138 = scmp.lt.s32.totalorder %s9, 3
    %p139 = pnand %p137, %p138
    %p140 = pneg %p139
    // Predicated region
    $region29: #{feature_extractor_forward.33} parent=5 // pred_check
      _
    $region30: #{feature_extractor_forward.33} parent=5 // pred_check_branch
      %142 = sbr.rel (%p139) target = $region32
    $region31: #{feature_extractor_forward.33} parent=5 // pred_region
      %s143 = ssub.s32 %s9, 1
      %s144 = smul.u32 2, %s14
      %p145 = scmp.lt.s32.totalorder %s144, 3
      %s146 = scalar_select %p145, %s144, 3
      %s147 = smul.addr %s146, 4
      %s148 = scalar_lea.vmem %s0, %s147
      %p149 = pneg %p35
      %p150 = pneg %p32
      %p151 = pneg %p56
      %p152 = pneg %p53
      %p153 = pneg %p77
      %p154 = pneg %p74
      %p155 = pneg %p103
      %p156 = pneg %p100
      %s157 = smul.u32 2, %s14
      %p158 = scmp.lt.s32.totalorder %s157, 3
      %s159 = scalar_select %p158, %s157, 3
      %s160 = smul.addr %s159, 4
      %s161 = scalar_lea.vmem %s3, %s160
      %s162 = smul.u32 2, %s14
      %p163 = scmp.lt.s32.totalorder %s162, 3
      %s164 = scalar_select %p163, %s162, 3
      %s165 = smul.addr %s164, 4
      %s166 = scalar_lea.vmem %s0, %s165
      %s167 = smul.u32 2, %s14
      %s168 = smul.u32 2, %s14
      %p169 = scmp.lt.s32.totalorder %s168, 3
      %s170 = scalar_select %p169, %s168, 3
      %s171 = smul.addr %s170, 4
      %s172 = scalar_lea.vmem %s3, %s171
      %s173 = smul.u32 2, %s14
      %v175 = vld [vmem:[%s166] sm:$0xf]
      %v176 = vld [vmem:[%s166 + $0x4] sm:$0xf]
      %v177 = vld [vmem:[%s1] sm:$0xf]
      %v178 = vld [vmem:[%s1 + $0x4] sm:$0xf]
      %v179 = vld [vmem:[%s1 + $0x8] sm:$0xf]
      %v180 = vld [vmem:[%s1 + $0xc] sm:$0xf]
      %v181 = vld [vmem:[%s1 + $0x10] sm:$0xf]
      %v182 = vld [vmem:[%s1 + $0x14] sm:$0xf]
      %v183 = vld [vmem:[%s1 + $0x18] sm:$0xf]
      %v184 = vld [vmem:[%s1 + $0x1c] sm:$0xf]
      %v185 = vld [vmem:[%s1 + $0x20] sm:$0xf]
      %v186 = vld [vmem:[%s1 + $0x24] sm:$0xf]
      %v187 = vld [vmem:[%s1 + $0x28] sm:$0xf]
      %v188 = vld [vmem:[%s1 + $0x2c] sm:$0xf]
      %v189 = vld [vmem:[%s1 + $0x30] sm:$0xf]
      %v190 = vld [vmem:[%s1 + $0x34] sm:$0xf]
      %v191 = vld [vmem:[%s1 + $0x38] sm:$0xf]
      %v192 = vld [vmem:[%s1 + $0x3c] sm:$0xf]
      %v193 = vld [vmem:[%s2] sm:$0x1]
      %v195 = vlaneseq
      %v196 = vshrl.u32 %v195, 7
      %v197 = vsub.s32 0, %v196
      %v198 = vrot.slane %v193, %v197
      %v202 = vunpack.c.l.b16 %v175
      %v203 = vunpack.c.l.b16 %v176
      %v204 = vpack.c.b16 %v203, %v202
      %v222 = vunpack.c.l.b16 %v177
      %v223 = vunpack.c.l.b16 %v178
      %v224 = vunpack.c.l.b16 %v179
      %v225 = vunpack.c.l.b16 %v180
      %v226 = vunpack.c.l.b16 %v181
      %v227 = vunpack.c.l.b16 %v182
      %v228 = vunpack.c.l.b16 %v183
      %v229 = vunpack.c.l.b16 %v184
      %v230 = vunpack.c.l.b16 %v185
      %v231 = vunpack.c.l.b16 %v186
      %v232 = vunpack.c.l.b16 %v187
      %v233 = vunpack.c.l.b16 %v188
      %v234 = vunpack.c.l.b16 %v189
      %v235 = vunpack.c.l.b16 %v190
      %v236 = vunpack.c.l.b16 %v191
      %v237 = vunpack.c.l.b16 %v192
      %v238 = vpack.c.b16 %v223, %v222
      %v239 = vpack.c.b16 %v225, %v224
      %v240 = vpack.c.b16 %v227, %v226
      %v241 = vpack.c.b16 %v229, %v228
      %v242 = vpack.c.b16 %v231, %v230
      %v243 = vpack.c.b16 %v233, %v232
      %v244 = vpack.c.b16 %v235, %v234
      %v245 = vpack.c.b16 %v237, %v236
      %254 = vmatprep.subr.bf16.mxu0 0
      %255 = vmatpush1.bf16.msra.mxu0 %v245
      %256 = vmatprep.subr.bf16.mxu0 0
      %257 = vmatpush1.bf16.msra.mxu0 %v244
      %258 = vmatprep.subr.bf16.mxu0 0
      %259 = vmatpush1.bf16.msra.mxu0 %v243
      %260 = vmatprep.subr.bf16.mxu0 0
      %261 = vmatpush1.bf16.msra.mxu0 %v242
      %262 = vmatprep.subr.bf16.mxu0 0
      %263 = vmatpush1.bf16.msra.mxu0 %v241
      %264 = vmatprep.subr.bf16.mxu0 0
      %265 = vmatpush1.bf16.msra.mxu0 %v240
      %266 = vmatprep.subr.bf16.mxu0 0
      %267 = vmatpush1.bf16.msra.mxu0 %v239
      %268 = vmatprep.subr.bf16.mxu0 0
      %269 = vmatpush1.bf16.msra.mxu0 %v238
      %270 = vmatprep.subr.bf16.mxu0 0
      %271 = vmatpush2.bf16.msra.mxu0 0
      %272 = vmatprep.subr.bf16.mxu0 0
      %273 = vmatpush2.bf16.msra.mxu0 0
      %274 = vmatprep.subr.bf16.mxu0 0
      %275 = vmatpush2.bf16.msra.mxu0 0
      %276 = vmatprep.subr.bf16.mxu0 0
      %277 = vmatpush2.bf16.msra.mxu0 0
      %278 = vmatprep.subr.bf16.mxu0 0
      %279 = vmatpush2.bf16.msra.mxu0 0
      %280 = vmatprep.subr.bf16.mxu0 0
      %281 = vmatpush2.bf16.msra.mxu0 0
      %282 = vmatprep.subr.bf16.mxu0 0
      %283 = vmatpush2.bf16.msra.mxu0 0
      %284 = vmatprep.subr.bf16.mxu0 0
      %285 = vmatpush2.bf16.msra.mxu0 0
      %286 = vmatprep.mubr.bf16.mxu0 0
      %287 = vmatmul.mubr.bf16.gmra.mxu0 %v204
      %v288 = vpop.f32.mrf.mxu0
      %v289 = vadd.f32 %v198, %v288
      %v290 = vpop.f32.mrf.mxu0
      %v291 = vpop.f32.mrf.mxu0
      %v292 = vadd.f32 %v198, %v291
      %v293 = vpop.f32.mrf.mxu0
      %294 = vdwg.mxu0
      %v295 = vpack.c.bf16 %v292, %v289
      %v297 = vunpack.c.l.b16 %v295
      %v298 = vunpack.c.h.b16 %v295
      %v299 = vpack.c.b16 %v297, %v297
      %v300 = vpack.c.b16 %v298, %v298
      %303 = vst [vmem:[%s172] sm:$0xf] %v299
      %304 = vst [vmem:[%s172 + $0x4] sm:$0xf] %v300
      %s305 = smul.u32 2, %s14
      %p306 = scmp.lt.s32.totalorder %s305, 3
      %s307 = scalar_select %p306, %s305, 3
      %s308 = smul.addr %s307, 4
      %s309 = scalar_lea.vmem %s3, %s308
      // Predicated region
      $region33: #{feature_extractor_forward.33} parent=31 // pred_check
        %p310 = pneg %p100
      $region34: #{feature_extractor_forward.33} parent=31 // pred_check_branch
        %312 = sbr.rel (%p310) target = $region36
      $region35: #{feature_extractor_forward.33} parent=31 // pred_region
        %s313 = smul.u32 2, %s14
      $region36: #{feature_extractor_forward.33} parent=31 // pred_fallthru
        _
    $region32: #{feature_extractor_forward.33} parent=5 // pred_fallthru
      _
    %p314 = scmp.le.s32.totalorder 2, %s9
    // Predicated region
    $region37: #{feature_extractor_forward.33} parent=5 // pred_check
      %p315 = pneg %p314
    $region38: #{feature_extractor_forward.33} parent=5 // pred_check_branch
      %317 = sbr.rel (%p315) target = $region40
    $region39: #{feature_extractor_forward.33} parent=5 // pred_region
      %s318 = ssub.s32 %s9, 2
      // Predicated region
      $region41: #{feature_extractor_forward.33} parent=39 // pred_check
        %p319 = pneg %p106
      $region42: #{feature_extractor_forward.33} parent=39 // pred_check_branch
        %321 = sbr.rel (%p319) target = $region44
      $region43: #{feature_extractor_forward.33} parent=39 // pred_region
        %s322 = smul.u32 2, %s15
        %p323 = scmp.lt.s32.totalorder %s322, 3
        %s324 = scalar_select %p323, %s322, 3
        %s325 = smul.addr %s324, 4
        %s326 = scalar_lea.vmem %s3, %s325
      $region44: #{feature_extractor_forward.33} parent=39 // pred_fallthru
        _
    $region40: #{feature_extractor_forward.33} parent=5 // pred_fallthru
      _
  $region6: #{feature_extractor_forward.33} parent=0 // loop_footer
    %s13 = sadd.s32 1, %s9
  $region7: #{feature_extractor_forward.33} parent=0 // loop_footer_branch
    %8 = sbr.rel target = $region3
  $region8: #{feature_extractor_forward.33} parent=0 // loop_exit
    _

// kernel: feature_extractor_forward.35
$region0: #{feature_extractor_forward.35}
  #allocation0 [shape = 'u32[]', space=smem, size = 0x4, offset = 0x4, fixed_abs, tag = 'smem constant byte address 0x4 - core index']
  #allocation1 [shape = 'u32[144,128]{1,0:T(1,128)}', space=vmem, size = 0x12000, scoped, tag = 'internal scratch']
  %s0 = inlined_call_operand.vmem [shape: bf16[32,384], index: 0, kind: input, shape index: {}]
  %s1 = inlined_call_operand.vmem [shape: bf16[384,128], index: 1, kind: input, shape index: {}]
  %s2 = inlined_call_operand.vmem [shape: f32[1,128], index: 2, kind: input, shape index: {}]
  %s3 = inlined_call_operand.vmem [shape: bf16[32,128], index: 3, kind: output, shape index: {}]
  %s4 = sld [smem:[#allocation0]]
  $region45: #{feature_extractor_forward.35} parent=0
    _
  %s6 = ssub.s32 1, %s4
  %s7 = scalar_select 0, %s6, %s4
  loop: start=0, step=1, limit=4
  $region2: #{feature_extractor_forward.35} parent=0 // loop_pre_header
    _
  $region3: #{feature_extractor_forward.35} parent=0 // loop_header
    %s9 = sphi 0, %s13
    %p10 = scmp.ge.s32.totalorder %s9, 4
    %s19 = sphi 0, %s21
    %s22 = sphi 0, %s19
    %s23 = sphi 0, %s22
    %s39 = sphi 0, %s23
    %s43 = sphi 0, %s43
    %s45 = sphi 0, %s43
    %s46 = sphi 0, %s45
    %s60 = sphi 0, %s46
    %s64 = sphi 0, %s64
    %s66 = sphi 0, %s64
    %s67 = sphi 0, %s66
    %s81 = sphi 0, %s67
    %s87 = sphi 0, %s89
    %s90 = sphi 0, %s87
    %s91 = sphi 0, %s90
    %s107 = sphi 0, %s91
  $region4: #{feature_extractor_forward.35} parent=0 // loop_header_branch
    %12 = sbr.rel (%p10) target = $region8
  $region5: #{feature_extractor_forward.35} parent=0 // loop_body
    %s14 = ssub.s32 %s9, 1
    %s15 = ssub.s32 %s9, 2
    %s16 = sadd.s32 %s9, 1
    %s17 = ssub.s32 %s9, %s16
    %p18 = scmp.eq.s32.totalorder %s17, 0
    %s20 = sadd.s32 %s19, 1
    %s21 = scalar_select %p18, %s19, %s20
    %p24 = pneg %p18
    %p25 = scmp.eq.s32.totalorder %s9, 1
    %p26 = por %p24, %p25
    %p27 = scmp.ne.s32.totalorder %s19, %s22
    %p28 = scmp.eq.s32.totalorder %s9, 0
    %p29 = por %p27, %p28
    %p30 = scmp.ne.s32.totalorder %s19, %s22
    %p31 = scmp.eq.s32.totalorder %s14, 1
    %p32 = por %p30, %p31
    %p33 = scmp.ne.s32.totalorder %s22, %s23
    %p34 = scmp.eq.s32.totalorder %s14, 0
    %p35 = por %p33, %p34
    %p36 = scmp.ne.s32.totalorder %s22, %s23
    %p37 = scmp.eq.s32.totalorder %s15, 1
    %p38 = por %p36, %p37
    %p40 = scmp.ne.s32.totalorder %s23, %s39
    %p41 = scmp.eq.s32.totalorder %s15, 0
    %p42 = por %p40, %p41
    %s44 = sadd.s32 %s43, 1
    %p47 = scmp.eq.s32.totalorder %s9, 1
    %p48 = scmp.ne.s32.totalorder %s43, %s45
    %p49 = scmp.eq.s32.totalorder %s9, 0
    %p50 = por %p48, %p49
    %p51 = scmp.ne.s32.totalorder %s43, %s45
    %p52 = scmp.eq.s32.totalorder %s14, 1
    %p53 = por %p51, %p52
    %p54 = scmp.ne.s32.totalorder %s45, %s46
    %p55 = scmp.eq.s32.totalorder %s14, 0
    %p56 = por %p54, %p55
    %p57 = scmp.ne.s32.totalorder %s45, %s46
    %p58 = scmp.eq.s32.totalorder %s15, 1
    %p59 = por %p57, %p58
    %p61 = scmp.ne.s32.totalorder %s46, %s60
    %p62 = scmp.eq.s32.totalorder %s15, 0
    %p63 = por %p61, %p62
    %s65 = sadd.s32 %s64, 1
    %p68 = scmp.eq.s32.totalorder %s9, 1
    %p69 = scmp.ne.s32.totalorder %s64, %s66
    %p70 = scmp.eq.s32.totalorder %s9, 0
    %p71 = por %p69, %p70
    %p72 = scmp.ne.s32.totalorder %s64, %s66
    %p73 = scmp.eq.s32.totalorder %s14, 1
    %p74 = por %p72, %p73
    %p75 = scmp.ne.s32.totalorder %s66, %s67
    %p76 = scmp.eq.s32.totalorder %s14, 0
    %p77 = por %p75, %p76
    %p78 = scmp.ne.s32.totalorder %s66, %s67
    %p79 = scmp.eq.s32.totalorder %s15, 1
    %p80 = por %p78, %p79
    %p82 = scmp.ne.s32.totalorder %s67, %s81
    %p83 = scmp.eq.s32.totalorder %s15, 0
    %p84 = por %p82, %p83
    %s85 = ssub.s32 %s9, %s16
    %p86 = scmp.eq.s32.totalorder %s85, 0
    %s88 = sadd.s32 %s87, 1
    %s89 = scalar_select %p86, %s87, %s88
    %p92 = pneg %p86
    %p93 = scmp.eq.s32.totalorder %s9, 1
    %p94 = por %p92, %p93
    %p95 = scmp.ne.s32.totalorder %s87, %s90
    %p96 = scmp.eq.s32.totalorder %s9, 0
    %p97 = por %p95, %p96
    %p98 = scmp.ne.s32.totalorder %s87, %s90
    %p99 = scmp.eq.s32.totalorder %s14, 1
    %p100 = por %p98, %p99
    %p101 = scmp.ne.s32.totalorder %s90, %s91
    %p102 = scmp.eq.s32.totalorder %s14, 0
    %p103 = por %p101, %p102
    %p104 = scmp.ne.s32.totalorder %s90, %s91
    %p105 = scmp.eq.s32.totalorder %s15, 1
    %p106 = por %p104, %p105
    %p108 = scmp.ne.s32.totalorder %s91, %s107
    %p109 = scmp.eq.s32.totalorder %s15, 0
    %p110 = por %p108, %p109
    %p111 = scmp.le.s32.totalorder 1, %s9
    %p112 = scmp.lt.s32.totalorder %s9, 3
    %p113 = pnand %p111, %p112
    %p114 = pneg %p113
    // Predicated region
    $region9: #{feature_extractor_forward.35} parent=5 // pred_check
      _
    $region10: #{feature_extractor_forward.35} parent=5 // pred_check_branch
      %116 = sbr.rel (%p113) target = $region12
    $region11: #{feature_extractor_forward.35} parent=5 // pred_region
      %s117 = ssub.s32 %s9, 1
      // Predicated region
      $region13: #{feature_extractor_forward.35} parent=11 // pred_check
        %p118 = pneg %p56
      $region14: #{feature_extractor_forward.35} parent=11 // pred_check_branch
        %120 = sbr.rel (%p118) target = $region16
      $region15: #{feature_extractor_forward.35} parent=11 // pred_region
        _
      $region16: #{feature_extractor_forward.35} parent=11 // pred_fallthru
        _
      // Predicated region
      $region17: #{feature_extractor_forward.35} parent=11 // pred_check
        %p121 = pneg %p77
      $region18: #{feature_extractor_forward.35} parent=11 // pred_check_branch
        %123 = sbr.rel (%p121) target = $region20
      $region19: #{feature_extractor_forward.35} parent=11 // pred_region
        _
      $region20: #{feature_extractor_forward.35} parent=11 // pred_fallthru
        _
    $region12: #{feature_extractor_forward.35} parent=5 // pred_fallthru
      _
    %p124 = scmp.lt.s32.totalorder %s9, 2
    // Predicated region
    $region21: #{feature_extractor_forward.35} parent=5 // pred_check
      %p125 = pneg %p124
    $region22: #{feature_extractor_forward.35} parent=5 // pred_check_branch
      %127 = sbr.rel (%p125) target = $region24
    $region23: #{feature_extractor_forward.35} parent=5 // pred_region
      // Predicated region
      $region25: #{feature_extractor_forward.35} parent=23 // pred_check
        %p128 = pneg %p29
      $region26: #{feature_extractor_forward.35} parent=23 // pred_check_branch
        %130 = sbr.rel (%p128) target = $region28
      $region27: #{feature_extractor_forward.35} parent=23 // pred_region
        %s131 = smul.u32 2, %s9
        %p132 = scmp.lt.s32.totalorder %s131, 3
        %s133 = scalar_select %p132, %s131, 3
        %s134 = smul.addr %s133, 3
        %s135 = smul.addr %s134, 4
        %s136 = scalar_lea.vmem %s0, %s135
        %s137 = smul.u32 2, %s9
      $region28: #{feature_extractor_forward.35} parent=23 // pred_fallthru
        _
    $region24: #{feature_extractor_forward.35} parent=5 // pred_fallthru
      _
    %p138 = scmp.le.s32.totalorder 1, %s9
    %p139 = scmp.lt.s32.totalorder %s9, 3
    %p140 = pnand %p138, %p139
    %p141 = pneg %p140
    // Predicated region
    $region29: #{feature_extractor_forward.35} parent=5 // pred_check
      _
    $region30: #{feature_extractor_forward.35} parent=5 // pred_check_branch
      %143 = sbr.rel (%p140) target = $region32
    $region31: #{feature_extractor_forward.35} parent=5 // pred_region
      %s144 = ssub.s32 %s9, 1
      %s145 = smul.u32 2, %s14
      %p146 = scmp.lt.s32.totalorder %s145, 3
      %s147 = scalar_select %p146, %s145, 3
      %s148 = smul.addr %s147, 3
      %s149 = smul.addr %s148, 4
      %s150 = scalar_lea.vmem %s0, %s149
      %p151 = pneg %p35
      %p152 = pneg %p32
      %p153 = pneg %p56
      %p154 = pneg %p53
      %p155 = pneg %p77
      %p156 = pneg %p74
      %p157 = pneg %p103
      %p158 = pneg %p100
      %s159 = smul.u32 2, %s14
      %p160 = scmp.lt.s32.totalorder %s159, 3
      %s161 = scalar_select %p160, %s159, 3
      %s162 = smul.addr %s161, 4
      %s163 = scalar_lea.vmem %s3, %s162
      %s164 = smul.u32 2, %s14
      %p165 = scmp.lt.s32.totalorder %s164, 3
      %s166 = scalar_select %p165, %s164, 3
      %s167 = smul.addr %s166, 3
      %s168 = smul.addr %s167, 4
      %s169 = scalar_lea.vmem %s0, %s168
      %s170 = smul.u32 2, %s14
      %s171 = smul.u32 2, %s14
      %p172 = scmp.lt.s32.totalorder %s171, 3
      %s173 = scalar_select %p172, %s171, 3
      %s174 = smul.addr %s173, 4
      %s175 = scalar_lea.vmem %s3, %s174
      %s176 = smul.u32 2, %s14
      %v178 = vld [vmem:[%s169] sm:$0xff]
      %v179 = vld [vmem:[%s169 + $0x8] sm:$0xf]
      %v180 = vld [vmem:[%s169 + $0xc] sm:$0xff]
      %v181 = vld [vmem:[%s169 + $0x14] sm:$0xf]
      %v182 = vld [vmem:[%s1] sm:$0xf]
      %v183 = vld [vmem:[%s1 + $0x4] sm:$0xf]
      %v184 = vld [vmem:[%s1 + $0x8] sm:$0xf]
      %v185 = vld [vmem:[%s1 + $0xc] sm:$0xf]
      %v186 = vld [vmem:[%s1 + $0x10] sm:$0xf]
      %v187 = vld [vmem:[%s1 + $0x14] sm:$0xf]
      %v188 = vld [vmem:[%s1 + $0x18] sm:$0xf]
      %v189 = vld [vmem:[%s1 + $0x1c] sm:$0xf]
      %v190 = vld [vmem:[%s1 + $0x20] sm:$0xf]
      %v191 = vld [vmem:[%s1 + $0x24] sm:$0xf]
      %v192 = vld [vmem:[%s1 + $0x28] sm:$0xf]
      %v193 = vld [vmem:[%s1 + $0x2c] sm:$0xf]
      %v194 = vld [vmem:[%s1 + $0x30] sm:$0xf]
      %v195 = vld [vmem:[%s1 + $0x34] sm:$0xf]
      %v196 = vld [vmem:[%s1 + $0x38] sm:$0xf]
      %v197 = vld [vmem:[%s1 + $0x3c] sm:$0xf]
      %v198 = vld [vmem:[%s1 + $0x40] sm:$0xf]
      %v199 = vld [vmem:[%s1 + $0x44] sm:$0xf]
      %v200 = vld [vmem:[%s1 + $0x48] sm:$0xf]
      %v201 = vld [vmem:[%s1 + $0x4c] sm:$0xf]
      %v202 = vld [vmem:[%s1 + $0x50] sm:$0xf]
      %v203 = vld [vmem:[%s1 + $0x54] sm:$0xf]
      %v204 = vld [vmem:[%s1 + $0x58] sm:$0xf]
      %v205 = vld [vmem:[%s1 + $0x5c] sm:$0xf]
      %v206 = vld [vmem:[%s1 + $0x60] sm:$0xf]
      %v207 = vld [vmem:[%s1 + $0x64] sm:$0xf]
      %v208 = vld [vmem:[%s1 + $0x68] sm:$0xf]
      %v209 = vld [vmem:[%s1 + $0x6c] sm:$0xf]
      %v210 = vld [vmem:[%s1 + $0x70] sm:$0xf]
      %v211 = vld [vmem:[%s1 + $0x74] sm:$0xf]
      %v212 = vld [vmem:[%s1 + $0x78] sm:$0xf]
      %v213 = vld [vmem:[%s1 + $0x7c] sm:$0xf]
      %v214 = vld [vmem:[%s1 + $0x80] sm:$0xf]
      %v215 = vld [vmem:[%s1 + $0x84] sm:$0xf]
      %v216 = vld [vmem:[%s1 + $0x88] sm:$0xf]
      %v217 = vld [vmem:[%s1 + $0x8c] sm:$0xf]
      %v218 = vld [vmem:[%s1 + $0x90] sm:$0xf]
      %v219 = vld [vmem:[%s1 + $0x94] sm:$0xf]
      %v220 = vld [vmem:[%s1 + $0x98] sm:$0xf]
      %v221 = vld [vmem:[%s1 + $0x9c] sm:$0xf]
      %v222 = vld [vmem:[%s1 + $0xa0] sm:$0xf]
      %v223 = vld [vmem:[%s1 + $0xa4] sm:$0xf]
      %v224 = vld [vmem:[%s1 + $0xa8] sm:$0xf]
      %v225 = vld [vmem:[%s1 + $0xac] sm:$0xf]
      %v226 = vld [vmem:[%s1 + $0xb0] sm:$0xf]
      %v227 = vld [vmem:[%s1 + $0xb4] sm:$0xf]
      %v228 = vld [vmem:[%s1 + $0xb8] sm:$0xf]
      %v229 = vld [vmem:[%s1 + $0xbc] sm:$0xf]
      %v230 = vld [vmem:[%s2] sm:$0x1]
      %v232 = vlaneseq
      %v233 = vshrl.u32 %v232, 7
      %v234 = vsub.s32 0, %v233
      %v235 = vrot.slane %v230, %v234
      %v241 = vunpack.c.l.b16 %v178
      %v242 = vunpack.c.h.b16 %v178
      %v243 = vunpack.c.l.b16 %v179
      %v244 = vunpack.c.l.b16 %v180
      %v245 = vunpack.c.h.b16 %v180
      %v246 = vunpack.c.l.b16 %v181
      %v247 = vpack.c.b16 %v244, %v241
      %v248 = vpack.c.b16 %v245, %v242
      %v249 = vpack.c.b16 %v246, %v243
      %v301 = vunpack.c.l.b16 %v182
      %v302 = vunpack.c.l.b16 %v183
      %v303 = vunpack.c.l.b16 %v184
      %v304 = vunpack.c.l.b16 %v185
      %v305 = vunpack.c.l.b16 %v186
      %v306 = vunpack.c.l.b16 %v187
      %v307 = vunpack.c.l.b16 %v188
      %v308 = vunpack.c.l.b16 %v189
      %v309 = vunpack.c.l.b16 %v190
      %v310 = vunpack.c.l.b16 %v191
      %v311 = vunpack.c.l.b16 %v192
      %v312 = vunpack.c.l.b16 %v193
      %v313 = vunpack.c.l.b16 %v194
      %v314 = vunpack.c.l.b16 %v195
      %v315 = vunpack.c.l.b16 %v196
      %v316 = vunpack.c.l.b16 %v197
      %v317 = vunpack.c.l.b16 %v198
      %v318 = vunpack.c.l.b16 %v199
      %v319 = vunpack.c.l.b16 %v200
      %v320 = vunpack.c.l.b16 %v201
      %v321 = vunpack.c.l.b16 %v202
      %v322 = vunpack.c.l.b16 %v203
      %v323 = vunpack.c.l.b16 %v204
      %v324 = vunpack.c.l.b16 %v205
      %v325 = vunpack.c.l.b16 %v206
      %v326 = vunpack.c.l.b16 %v207
      %v327 = vunpack.c.l.b16 %v208
      %v328 = vunpack.c.l.b16 %v209
      %v329 = vunpack.c.l.b16 %v210
      %v330 = vunpack.c.l.b16 %v211
      %v331 = vunpack.c.l.b16 %v212
      %v332 = vunpack.c.l.b16 %v213
      %v333 = vunpack.c.l.b16 %v214
      %v334 = vunpack.c.l.b16 %v215
      %v335 = vunpack.c.l.b16 %v216
      %v336 = vunpack.c.l.b16 %v217
      %v337 = vunpack.c.l.b16 %v218
      %v338 = vunpack.c.l.b16 %v219
      %v339 = vunpack.c.l.b16 %v220
      %v340 = vunpack.c.l.b16 %v221
      %v341 = vunpack.c.l.b16 %v222
      %v342 = vunpack.c.l.b16 %v223
      %v343 = vunpack.c.l.b16 %v224
      %v344 = vunpack.c.l.b16 %v225
      %v345 = vunpack.c.l.b16 %v226
      %v346 = vunpack.c.l.b16 %v227
      %v347 = vunpack.c.l.b16 %v228
      %v348 = vunpack.c.l.b16 %v229
      %v349 = vpack.c.b16 %v302, %v301
      %v350 = vpack.c.b16 %v304, %v303
      %v351 = vpack.c.b16 %v306, %v305
      %v352 = vpack.c.b16 %v308, %v307
      %v353 = vpack.c.b16 %v310, %v309
      %v354 = vpack.c.b16 %v312, %v311
      %v355 = vpack.c.b16 %v314, %v313
      %v356 = vpack.c.b16 %v316, %v315
      %v357 = vpack.c.b16 %v318, %v317
      %v358 = vpack.c.b16 %v320, %v319
      %v359 = vpack.c.b16 %v322, %v321
      %v360 = vpack.c.b16 %v324, %v323
      %v361 = vpack.c.b16 %v326, %v325
      %v362 = vpack.c.b16 %v328, %v327
      %v363 = vpack.c.b16 %v330, %v329
      %v364 = vpack.c.b16 %v332, %v331
      %v365 = vpack.c.b16 %v334, %v333
      %v366 = vpack.c.b16 %v336, %v335
      %v367 = vpack.c.b16 %v338, %v337
      %v368 = vpack.c.b16 %v340, %v339
      %v369 = vpack.c.b16 %v342, %v341
      %v370 = vpack.c.b16 %v344, %v343
      %v371 = vpack.c.b16 %v346, %v345
      %v372 = vpack.c.b16 %v348, %v347
      %397 = vmatprep.subr.bf16.mxu0 0
      %398 = vmatpush1.bf16.msra.mxu0 %v356
      %399 = vmatprep.subr.bf16.mxu0 0
      %400 = vmatpush1.bf16.msra.mxu0 %v355
      %401 = vmatprep.subr.bf16.mxu0 0
      %402 = vmatpush1.bf16.msra.mxu0 %v354
      %403 = vmatprep.subr.bf16.mxu0 0
      %404 = vmatpush1.bf16.msra.mxu0 %v353
      %405 = vmatprep.subr.bf16.mxu0 0
      %406 = vmatpush1.bf16.msra.mxu0 %v352
      %407 = vmatprep.subr.bf16.mxu0 0
      %408 = vmatpush1.bf16.msra.mxu0 %v351
      %409 = vmatprep.subr.bf16.mxu0 0
      %410 = vmatpush1.bf16.msra.mxu0 %v350
      %411 = vmatprep.subr.bf16.mxu0 0
      %412 = vmatpush1.bf16.msra.mxu0 %v349
      %413 = vmatprep.subr.bf16.mxu0 0
      %414 = vmatpush2.bf16.msra.mxu0 %v364
      %415 = vmatprep.subr.bf16.mxu0 0
      %416 = vmatpush2.bf16.msra.mxu0 %v363
      %417 = vmatprep.subr.bf16.mxu0 0
      %418 = vmatpush2.bf16.msra.mxu0 %v362
      %419 = vmatprep.subr.bf16.mxu0 0
      %420 = vmatpush2.bf16.msra.mxu0 %v361
      %421 = vmatprep.subr.bf16.mxu0 0
      %422 = vmatpush2.bf16.msra.mxu0 %v360
      %423 = vmatprep.subr.bf16.mxu0 0
      %424 = vmatpush2.bf16.msra.mxu0 %v359
      %425 = vmatprep.subr.bf16.mxu0 0
      %426 = vmatpush2.bf16.msra.mxu0 %v358
      %427 = vmatprep.subr.bf16.mxu0 0
      %428 = vmatpush2.bf16.msra.mxu0 %v357
      %429 = vmatprep.mubr.bf16.mxu0 %v248
      %430 = vmatmul.mubr.bf16.gmra.mxu0 %v247
      %v431 = vpop.f32.mrf.mxu0
      %v432 = vadd.f32 %v235, %v431
      %v433 = vpop.f32.mrf.mxu0
      %v434 = vpop.f32.mrf.mxu0
      %v435 = vadd.f32 %v235, %v434
      %v436 = vpop.f32.mrf.mxu0
      %437 = vdwg.mxu0
      %438 = vmatprep.subr.bf16.mxu0 0
      %439 = vmatpush1.bf16.msra.mxu0 %v372
      %440 = vmatprep.subr.bf16.mxu0 0
      %441 = vmatpush1.bf16.msra.mxu0 %v371
      %442 = vmatprep.subr.bf16.mxu0 0
      %443 = vmatpush1.bf16.msra.mxu0 %v370
      %444 = vmatprep.subr.bf16.mxu0 0
      %445 = vmatpush1.bf16.msra.mxu0 %v369
      %446 = vmatprep.subr.bf16.mxu0 0
      %447 = vmatpush1.bf16.msra.mxu0 %v368
      %448 = vmatprep.subr.bf16.mxu0 0
      %449 = vmatpush1.bf16.msra.mxu0 %v367
      %450 = vmatprep.subr.bf16.mxu0 0
      %451 = vmatpush1.bf16.msra.mxu0 %v366
      %452 = vmatprep.subr.bf16.mxu0 0
      %453 = vmatpush1.bf16.msra.mxu0 %v365
      %454 = vmatprep.subr.bf16.mxu0 0
      %455 = vmatpush2.bf16.msra.mxu0 0
      %456 = vmatprep.subr.bf16.mxu0 0
      %457 = vmatpush2.bf16.msra.mxu0 0
      %458 = vmatprep.subr.bf16.mxu0 0
      %459 = vmatpush2.bf16.msra.mxu0 0
      %460 = vmatprep.subr.bf16.mxu0 0
      %461 = vmatpush2.bf16.msra.mxu0 0
      %462 = vmatprep.subr.bf16.mxu0 0
      %463 = vmatpush2.bf16.msra.mxu0 0
      %464 = vmatprep.subr.bf16.mxu0 0
      %465 = vmatpush2.bf16.msra.mxu0 0
      %466 = vmatprep.subr.bf16.mxu0 0
      %467 = vmatpush2.bf16.msra.mxu0 0
      %468 = vmatprep.subr.bf16.mxu0 0
      %469 = vmatpush2.bf16.msra.mxu0 0
      %470 = vmatprep.mubr.bf16.mxu0 0
      %471 = vmatmul.mubr.bf16.gmra.mxu0 %v249
      %v472 = vpop.f32.mrf.mxu0
      %v473 = vadd.f32 %v432, %v472
      %v474 = vpop.f32.mrf.mxu0
      %v475 = vpop.f32.mrf.mxu0
      %v476 = vadd.f32 %v435, %v475
      %v477 = vpop.f32.mrf.mxu0
      %478 = vdwg.mxu0
      %v479 = vmax.f32 %v473, 0.0
      %v480 = vmax.f32 %v476, 0.0
      %v481 = vpack.c.bf16 %v480, %v479
      %v483 = vunpack.c.l.b16 %v481
      %v484 = vunpack.c.h.b16 %v481
      %v485 = vpack.c.b16 %v483, %v483
      %v486 = vpack.c.b16 %v484, %v484
      %489 = vst [vmem:[%s175] sm:$0xf] %v485
      %490 = vst [vmem:[%s175 + $0x4] sm:$0xf] %v486
      %s491 = smul.u32 2, %s14
      %p492 = scmp.lt.s32.totalorder %s491, 3
      %s493 = scalar_select %p492, %s491, 3
      %s494 = smul.addr %s493, 4
      %s495 = scalar_lea.vmem %s3, %s494
      // Predicated region
      $region33: #{feature_extractor_forward.35} parent=31 // pred_check
        %p496 = pneg %p100
      $region34: #{feature_extractor_forward.35} parent=31 // pred_check_branch
        %498 = sbr.rel (%p496) target = $region36
      $region35: #{feature_extractor_forward.35} parent=31 // pred_region
        %s499 = smul.u32 2, %s14
      $region36: #{feature_extractor_forward.35} parent=31 // pred_fallthru
        _
    $region32: #{feature_extractor_forward.35} parent=5 // pred_fallthru
      _
    %p500 = scmp.le.s32.totalorder 2, %s9
    // Predicated region
    $region37: #{feature_extractor_forward.35} parent=5 // pred_check
      %p501 = pneg %p500
    $region38: #{feature_extractor_forward.35} parent=5 // pred_check_branch
      %503 = sbr.rel (%p501) target = $region40
    $region39: #{feature_extractor_forward.35} parent=5 // pred_region
      %s504 = ssub.s32 %s9, 2
      // Predicated region
      $region41: #{feature_extractor_forward.35} parent=39 // pred_check
        %p505 = pneg %p106
      $region42: #{feature_extractor_forward.35} parent=39 // pred_check_branch
        %507 = sbr.rel (%p505) target = $region44
      $region43: #{feature_extractor_forward.35} parent=39 // pred_region
        %s508 = smul.u32 2, %s15
        %p509 = scmp.lt.s32.totalorder %s508, 3
        %s510 = scalar_select %p509, %s508, 3
        %s511 = smul.addr %s510, 4
        %s512 = scalar_lea.vmem %s3, %s511
      $region44: #{feature_extractor_forward.35} parent=39 // pred_fallthru
        _
    $region40: #{feature_extractor_forward.35} parent=5 // pred_fallthru
      _
  $region6: #{feature_extractor_forward.35} parent=0 // loop_footer
    %s13 = sadd.s32 1, %s9
  $region7: #{feature_extractor_forward.35} parent=0 // loop_footer_branch
    %8 = sbr.rel target = $region3
  $region8: #{feature_extractor_forward.35} parent=0 // loop_exit
    _

// kernel: feature_extractor_forward.34
$region0: #{feature_extractor_forward.34}
  #allocation0 [shape = 'u32[]', space=smem, size = 0x4, offset = 0x4, fixed_abs, tag = 'smem constant byte address 0x4 - core index']
  #allocation1 [shape = 'u32[144,128]{1,0:T(1,128)}', space=vmem, size = 0x12000, scoped, tag = 'internal scratch']
  %s0 = inlined_call_operand.vmem [shape: bf16[32,384], index: 0, kind: input, shape index: {}]
  %s1 = inlined_call_operand.vmem [shape: bf16[384,128], index: 1, kind: input, shape index: {}]
  %s2 = inlined_call_operand.vmem [shape: f32[1,128], index: 2, kind: input, shape index: {}]
  %s3 = inlined_call_operand.vmem [shape: bf16[32,128], index: 3, kind: input, shape index: {}]
  %s4 = inlined_call_operand.vmem [shape: bf16[32,128], index: 4, kind: output, shape index: {}]
  %s5 = sld [smem:[#allocation0]]
  $region49: #{feature_extractor_forward.34} parent=0
    _
  %s7 = ssub.s32 1, %s5
  %s8 = scalar_select 0, %s7, %s5
  loop: start=0, step=1, limit=4
  $region2: #{feature_extractor_forward.34} parent=0 // loop_pre_header
    _
  $region3: #{feature_extractor_forward.34} parent=0 // loop_header
    %s10 = sphi 0, %s14
    %p11 = scmp.ge.s32.totalorder %s10, 4
    %s20 = sphi 0, %s22
    %s23 = sphi 0, %s20
    %s24 = sphi 0, %s23
    %s40 = sphi 0, %s24
    %s44 = sphi 0, %s44
    %s46 = sphi 0, %s44
    %s47 = sphi 0, %s46
    %s61 = sphi 0, %s47
    %s65 = sphi 0, %s65
    %s67 = sphi 0, %s65
    %s68 = sphi 0, %s67
    %s82 = sphi 0, %s68
    %s88 = sphi 0, %s90
    %s91 = sphi 0, %s88
    %s92 = sphi 0, %s91
    %s108 = sphi 0, %s92
    %s114 = sphi 0, %s116
    %s117 = sphi 0, %s114
    %s118 = sphi 0, %s117
    %s134 = sphi 0, %s118
  $region4: #{feature_extractor_forward.34} parent=0 // loop_header_branch
    %13 = sbr.rel (%p11) target = $region8
  $region5: #{feature_extractor_forward.34} parent=0 // loop_body
    %s15 = ssub.s32 %s10, 1
    %s16 = ssub.s32 %s10, 2
    %s17 = sadd.s32 %s10, 1
    %s18 = ssub.s32 %s10, %s17
    %p19 = scmp.eq.s32.totalorder %s18, 0
    %s21 = sadd.s32 %s20, 1
    %s22 = scalar_select %p19, %s20, %s21
    %p25 = pneg %p19
    %p26 = scmp.eq.s32.totalorder %s10, 1
    %p27 = por %p25, %p26
    %p28 = scmp.ne.s32.totalorder %s20, %s23
    %p29 = scmp.eq.s32.totalorder %s10, 0
    %p30 = por %p28, %p29
    %p31 = scmp.ne.s32.totalorder %s20, %s23
    %p32 = scmp.eq.s32.totalorder %s15, 1
    %p33 = por %p31, %p32
    %p34 = scmp.ne.s32.totalorder %s23, %s24
    %p35 = scmp.eq.s32.totalorder %s15, 0
    %p36 = por %p34, %p35
    %p37 = scmp.ne.s32.totalorder %s23, %s24
    %p38 = scmp.eq.s32.totalorder %s16, 1
    %p39 = por %p37, %p38
    %p41 = scmp.ne.s32.totalorder %s24, %s40
    %p42 = scmp.eq.s32.totalorder %s16, 0
    %p43 = por %p41, %p42
    %s45 = sadd.s32 %s44, 1
    %p48 = scmp.eq.s32.totalorder %s10, 1
    %p49 = scmp.ne.s32.totalorder %s44, %s46
    %p50 = scmp.eq.s32.totalorder %s10, 0
    %p51 = por %p49, %p50
    %p52 = scmp.ne.s32.totalorder %s44, %s46
    %p53 = scmp.eq.s32.totalorder %s15, 1
    %p54 = por %p52, %p53
    %p55 = scmp.ne.s32.totalorder %s46, %s47
    %p56 = scmp.eq.s32.totalorder %s15, 0
    %p57 = por %p55, %p56
    %p58 = scmp.ne.s32.totalorder %s46, %s47
    %p59 = scmp.eq.s32.totalorder %s16, 1
    %p60 = por %p58, %p59
    %p62 = scmp.ne.s32.totalorder %s47, %s61
    %p63 = scmp.eq.s32.totalorder %s16, 0
    %p64 = por %p62, %p63
    %s66 = sadd.s32 %s65, 1
    %p69 = scmp.eq.s32.totalorder %s10, 1
    %p70 = scmp.ne.s32.totalorder %s65, %s67
    %p71 = scmp.eq.s32.totalorder %s10, 0
    %p72 = por %p70, %p71
    %p73 = scmp.ne.s32.totalorder %s65, %s67
    %p74 = scmp.eq.s32.totalorder %s15, 1
    %p75 = por %p73, %p74
    %p76 = scmp.ne.s32.totalorder %s67, %s68
    %p77 = scmp.eq.s32.totalorder %s15, 0
    %p78 = por %p76, %p77
    %p79 = scmp.ne.s32.totalorder %s67, %s68
    %p80 = scmp.eq.s32.totalorder %s16, 1
    %p81 = por %p79, %p80
    %p83 = scmp.ne.s32.totalorder %s68, %s82
    %p84 = scmp.eq.s32.totalorder %s16, 0
    %p85 = por %p83, %p84
    %s86 = ssub.s32 %s10, %s17
    %p87 = scmp.eq.s32.totalorder %s86, 0
    %s89 = sadd.s32 %s88, 1
    %s90 = scalar_select %p87, %s88, %s89
    %p93 = pneg %p87
    %p94 = scmp.eq.s32.totalorder %s10, 1
    %p95 = por %p93, %p94
    %p96 = scmp.ne.s32.totalorder %s88, %s91
    %p97 = scmp.eq.s32.totalorder %s10, 0
    %p98 = por %p96, %p97
    %p99 = scmp.ne.s32.totalorder %s88, %s91
    %p100 = scmp.eq.s32.totalorder %s15, 1
    %p101 = por %p99, %p100
    %p102 = scmp.ne.s32.totalorder %s91, %s92
    %p103 = scmp.eq.s32.totalorder %s15, 0
    %p104 = por %p102, %p103
    %p105 = scmp.ne.s32.totalorder %s91, %s92
    %p106 = scmp.eq.s32.totalorder %s16, 1
    %p107 = por %p105, %p106
    %p109 = scmp.ne.s32.totalorder %s92, %s108
    %p110 = scmp.eq.s32.totalorder %s16, 0
    %p111 = por %p109, %p110
    %s112 = ssub.s32 %s10, %s17
    %p113 = scmp.eq.s32.totalorder %s112, 0
    %s115 = sadd.s32 %s114, 1
    %s116 = scalar_select %p113, %s114, %s115
    %p119 = pneg %p113
    %p120 = scmp.eq.s32.totalorder %s10, 1
    %p121 = por %p119, %p120
    %p122 = scmp.ne.s32.totalorder %s114, %s117
    %p123 = scmp.eq.s32.totalorder %s10, 0
    %p124 = por %p122, %p123
    %p125 = scmp.ne.s32.totalorder %s114, %s117
    %p126 = scmp.eq.s32.totalorder %s15, 1
    %p127 = por %p125, %p126
    %p128 = scmp.ne.s32.totalorder %s117, %s118
    %p129 = scmp.eq.s32.totalorder %s15, 0
    %p130 = por %p128, %p129
    %p131 = scmp.ne.s32.totalorder %s117, %s118
    %p132 = scmp.eq.s32.totalorder %s16, 1
    %p133 = por %p131, %p132
    %p135 = scmp.ne.s32.totalorder %s118, %s134
    %p136 = scmp.eq.s32.totalorder %s16, 0
    %p137 = por %p135, %p136
    %p138 = scmp.le.s32.totalorder 1, %s10
    %p139 = scmp.lt.s32.totalorder %s10, 3
    %p140 = pnand %p138, %p139
    %p141 = pneg %p140
    // Predicated region
    $region9: #{feature_extractor_forward.34} parent=5 // pred_check
      _
    $region10: #{feature_extractor_forward.34} parent=5 // pred_check_branch
      %143 = sbr.rel (%p140) target = $region12
    $region11: #{feature_extractor_forward.34} parent=5 // pred_region
      %s144 = ssub.s32 %s10, 1
      // Predicated region
      $region13: #{feature_extractor_forward.34} parent=11 // pred_check
        %p145 = pneg %p57
      $region14: #{feature_extractor_forward.34} parent=11 // pred_check_branch
        %147 = sbr.rel (%p145) target = $region16
      $region15: #{feature_extractor_forward.34} parent=11 // pred_region
        _
      $region16: #{feature_extractor_forward.34} parent=11 // pred_fallthru
        _
      // Predicated region
      $region17: #{feature_extractor_forward.34} parent=11 // pred_check
        %p148 = pneg %p78
      $region18: #{feature_extractor_forward.34} parent=11 // pred_check_branch
        %150 = sbr.rel (%p148) target = $region20
      $region19: #{feature_extractor_forward.34} parent=11 // pred_region
        _
      $region20: #{feature_extractor_forward.34} parent=11 // pred_fallthru
        _
    $region12: #{feature_extractor_forward.34} parent=5 // pred_fallthru
      _
    %p151 = scmp.lt.s32.totalorder %s10, 2
    // Predicated region
    $region21: #{feature_extractor_forward.34} parent=5 // pred_check
      %p152 = pneg %p151
    $region22: #{feature_extractor_forward.34} parent=5 // pred_check_branch
      %154 = sbr.rel (%p152) target = $region24
    $region23: #{feature_extractor_forward.34} parent=5 // pred_region
      // Predicated region
      $region25: #{feature_extractor_forward.34} parent=23 // pred_check
        %p155 = pneg %p30
      $region26: #{feature_extractor_forward.34} parent=23 // pred_check_branch
        %157 = sbr.rel (%p155) target = $region28
      $region27: #{feature_extractor_forward.34} parent=23 // pred_region
        %s158 = smul.u32 2, %s10
        %p159 = scmp.lt.s32.totalorder %s158, 3
        %s160 = scalar_select %p159, %s158, 3
        %s161 = smul.addr %s160, 3
        %s162 = smul.addr %s161, 4
        %s163 = scalar_lea.vmem %s0, %s162
        %s164 = smul.u32 2, %s10
      $region28: #{feature_extractor_forward.34} parent=23 // pred_fallthru
        _
      // Predicated region
      $region29: #{feature_extractor_forward.34} parent=23 // pred_check
        %p165 = pneg %p98
      $region30: #{feature_extractor_forward.34} parent=23 // pred_check_branch
        %167 = sbr.rel (%p165) target = $region32
      $region31: #{feature_extractor_forward.34} parent=23 // pred_region
        %s168 = smul.u32 2, %s10
        %p169 = scmp.lt.s32.totalorder %s168, 3
        %s170 = scalar_select %p169, %s168, 3
        %s171 = smul.addr %s170, 4
        %s172 = scalar_lea.vmem %s3, %s171
        %s173 = smul.u32 2, %s10
      $region32: #{feature_extractor_forward.34} parent=23 // pred_fallthru
        _
    $region24: #{feature_extractor_forward.34} parent=5 // pred_fallthru
      _
    %p174 = scmp.le.s32.totalorder 1, %s10
    %p175 = scmp.lt.s32.totalorder %s10, 3
    %p176 = pnand %p174, %p175
    %p177 = pneg %p176
    // Predicated region
    $region33: #{feature_extractor_forward.34} parent=5 // pred_check
      _
    $region34: #{feature_extractor_forward.34} parent=5 // pred_check_branch
      %179 = sbr.rel (%p176) target = $region36
    $region35: #{feature_extractor_forward.34} parent=5 // pred_region
      %s180 = ssub.s32 %s10, 1
      %s181 = smul.u32 2, %s15
      %p182 = scmp.lt.s32.totalorder %s181, 3
      %s183 = scalar_select %p182, %s181, 3
      %s184 = smul.addr %s183, 3
      %s185 = smul.addr %s184, 4
      %s186 = scalar_lea.vmem %s0, %s185
      %p187 = pneg %p36
      %p188 = pneg %p33
      %p189 = pneg %p57
      %p190 = pneg %p54
      %p191 = pneg %p78
      %p192 = pneg %p75
      %s193 = smul.u32 2, %s15
      %p194 = scmp.lt.s32.totalorder %s193, 3
      %s195 = scalar_select %p194, %s193, 3
      %s196 = smul.addr %s195, 4
      %s197 = scalar_lea.vmem %s3, %s196
      %p198 = pneg %p104
      %p199 = pneg %p101
      %p200 = pneg %p130
      %p201 = pneg %p127
      %s202 = smul.u32 2, %s15
      %p203 = scmp.lt.s32.totalorder %s202, 3
      %s204 = scalar_select %p203, %s202, 3
      %s205 = smul.addr %s204, 4
      %s206 = scalar_lea.vmem %s4, %s205
      %s207 = smul.u32 2, %s15
      %p208 = scmp.lt.s32.totalorder %s207, 3
      %s209 = scalar_select %p208, %s207, 3
      %s210 = smul.addr %s209, 3
      %s211 = smul.addr %s210, 4
      %s212 = scalar_lea.vmem %s0, %s211
      %s213 = smul.u32 2, %s15
      %s214 = smul.u32 2, %s15
      %p215 = scmp.lt.s32.totalorder %s214, 3
      %s216 = scalar_select %p215, %s214, 3
      %s217 = smul.addr %s216, 4
      %s218 = scalar_lea.vmem %s3, %s217
      %s219 = smul.u32 2, %s15
      %s220 = smul.u32 2, %s15
      %p221 = scmp.lt.s32.totalorder %s220, 3
      %s222 = scalar_select %p221, %s220, 3
      %s223 = smul.addr %s222, 4
      %s224 = scalar_lea.vmem %s4, %s223
      %s225 = smul.u32 2, %s15
      %v227 = vld [vmem:[%s212] sm:$0xff]
      %v228 = vld [vmem:[%s212 + $0x8] sm:$0xf]
      %v229 = vld [vmem:[%s212 + $0xc] sm:$0xff]
      %v230 = vld [vmem:[%s212 + $0x14] sm:$0xf]
      %v231 = vld [vmem:[%s1] sm:$0xf]
      %v232 = vld [vmem:[%s1 + $0x4] sm:$0xf]
      %v233 = vld [vmem:[%s1 + $0x8] sm:$0xf]
      %v234 = vld [vmem:[%s1 + $0xc] sm:$0xf]
      %v235 = vld [vmem:[%s1 + $0x10] sm:$0xf]
      %v236 = vld [vmem:[%s1 + $0x14] sm:$0xf]
      %v237 = vld [vmem:[%s1 + $0x18] sm:$0xf]
      %v238 = vld [vmem:[%s1 + $0x1c] sm:$0xf]
      %v239 = vld [vmem:[%s1 + $0x20] sm:$0xf]
      %v240 = vld [vmem:[%s1 + $0x24] sm:$0xf]
      %v241 = vld [vmem:[%s1 + $0x28] sm:$0xf]
      %v242 = vld [vmem:[%s1 + $0x2c] sm:$0xf]
      %v243 = vld [vmem:[%s1 + $0x30] sm:$0xf]
      %v244 = vld [vmem:[%s1 + $0x34] sm:$0xf]
      %v245 = vld [vmem:[%s1 + $0x38] sm:$0xf]
      %v246 = vld [vmem:[%s1 + $0x3c] sm:$0xf]
      %v247 = vld [vmem:[%s1 + $0x40] sm:$0xf]
      %v248 = vld [vmem:[%s1 + $0x44] sm:$0xf]
      %v249 = vld [vmem:[%s1 + $0x48] sm:$0xf]
      %v250 = vld [vmem:[%s1 + $0x4c] sm:$0xf]
      %v251 = vld [vmem:[%s1 + $0x50] sm:$0xf]
      %v252 = vld [vmem:[%s1 + $0x54] sm:$0xf]
      %v253 = vld [vmem:[%s1 + $0x58] sm:$0xf]
      %v254 = vld [vmem:[%s1 + $0x5c] sm:$0xf]
      %v255 = vld [vmem:[%s1 + $0x60] sm:$0xf]
      %v256 = vld [vmem:[%s1 + $0x64] sm:$0xf]
      %v257 = vld [vmem:[%s1 + $0x68] sm:$0xf]
      %v258 = vld [vmem:[%s1 + $0x6c] sm:$0xf]
      %v259 = vld [vmem:[%s1 + $0x70] sm:$0xf]
      %v260 = vld [vmem:[%s1 + $0x74] sm:$0xf]
      %v261 = vld [vmem:[%s1 + $0x78] sm:$0xf]
      %v262 = vld [vmem:[%s1 + $0x7c] sm:$0xf]
      %v263 = vld [vmem:[%s1 + $0x80] sm:$0xf]
      %v264 = vld [vmem:[%s1 + $0x84] sm:$0xf]
      %v265 = vld [vmem:[%s1 + $0x88] sm:$0xf]
      %v266 = vld [vmem:[%s1 + $0x8c] sm:$0xf]
      %v267 = vld [vmem:[%s1 + $0x90] sm:$0xf]
      %v268 = vld [vmem:[%s1 + $0x94] sm:$0xf]
      %v269 = vld [vmem:[%s1 + $0x98] sm:$0xf]
      %v270 = vld [vmem:[%s1 + $0x9c] sm:$0xf]
      %v271 = vld [vmem:[%s1 + $0xa0] sm:$0xf]
      %v272 = vld [vmem:[%s1 + $0xa4] sm:$0xf]
      %v273 = vld [vmem:[%s1 + $0xa8] sm:$0xf]
      %v274 = vld [vmem:[%s1 + $0xac] sm:$0xf]
      %v275 = vld [vmem:[%s1 + $0xb0] sm:$0xf]
      %v276 = vld [vmem:[%s1 + $0xb4] sm:$0xf]
      %v277 = vld [vmem:[%s1 + $0xb8] sm:$0xf]
      %v278 = vld [vmem:[%s1 + $0xbc] sm:$0xf]
      %v279 = vld [vmem:[%s2] sm:$0x1]
      %v281 = vlaneseq
      %v282 = vshrl.u32 %v281, 7
      %v283 = vsub.s32 0, %v282
      %v284 = vrot.slane %v279, %v283
      %v290 = vunpack.c.l.b16 %v227
      %v291 = vunpack.c.h.b16 %v227
      %v292 = vunpack.c.l.b16 %v228
      %v293 = vunpack.c.l.b16 %v229
      %v294 = vunpack.c.h.b16 %v229
      %v295 = vunpack.c.l.b16 %v230
      %v296 = vpack.c.b16 %v293, %v290
      %v297 = vpack.c.b16 %v294, %v291
      %v298 = vpack.c.b16 %v295, %v292
      %v350 = vunpack.c.l.b16 %v231
      %v351 = vunpack.c.l.b16 %v232
      %v352 = vunpack.c.l.b16 %v233
      %v353 = vunpack.c.l.b16 %v234
      %v354 = vunpack.c.l.b16 %v235
      %v355 = vunpack.c.l.b16 %v236
      %v356 = vunpack.c.l.b16 %v237
      %v357 = vunpack.c.l.b16 %v238
      %v358 = vunpack.c.l.b16 %v239
      %v359 = vunpack.c.l.b16 %v240
      %v360 = vunpack.c.l.b16 %v241
      %v361 = vunpack.c.l.b16 %v242
      %v362 = vunpack.c.l.b16 %v243
      %v363 = vunpack.c.l.b16 %v244
      %v364 = vunpack.c.l.b16 %v245
      %v365 = vunpack.c.l.b16 %v246
      %v366 = vunpack.c.l.b16 %v247
      %v367 = vunpack.c.l.b16 %v248
      %v368 = vunpack.c.l.b16 %v249
      %v369 = vunpack.c.l.b16 %v250
      %v370 = vunpack.c.l.b16 %v251
      %v371 = vunpack.c.l.b16 %v252
      %v372 = vunpack.c.l.b16 %v253
      %v373 = vunpack.c.l.b16 %v254
      %v374 = vunpack.c.l.b16 %v255
      %v375 = vunpack.c.l.b16 %v256
      %v376 = vunpack.c.l.b16 %v257
      %v377 = vunpack.c.l.b16 %v258
      %v378 = vunpack.c.l.b16 %v259
      %v379 = vunpack.c.l.b16 %v260
      %v380 = vunpack.c.l.b16 %v261
      %v381 = vunpack.c.l.b16 %v262
      %v382 = vunpack.c.l.b16 %v263
      %v383 = vunpack.c.l.b16 %v264
      %v384 = vunpack.c.l.b16 %v265
      %v385 = vunpack.c.l.b16 %v266
      %v386 = vunpack.c.l.b16 %v267
      %v387 = vunpack.c.l.b16 %v268
      %v388 = vunpack.c.l.b16 %v269
      %v389 = vunpack.c.l.b16 %v270
      %v390 = vunpack.c.l.b16 %v271
      %v391 = vunpack.c.l.b16 %v272
      %v392 = vunpack.c.l.b16 %v273
      %v393 = vunpack.c.l.b16 %v274
      %v394 = vunpack.c.l.b16 %v275
      %v395 = vunpack.c.l.b16 %v276
      %v396 = vunpack.c.l.b16 %v277
      %v397 = vunpack.c.l.b16 %v278
      %v398 = vpack.c.b16 %v351, %v350
      %v399 = vpack.c.b16 %v353, %v352
      %v400 = vpack.c.b16 %v355, %v354
      %v401 = vpack.c.b16 %v357, %v356
      %v402 = vpack.c.b16 %v359, %v358
      %v403 = vpack.c.b16 %v361, %v360
      %v404 = vpack.c.b16 %v363, %v362
      %v405 = vpack.c.b16 %v365, %v364
      %v406 = vpack.c.b16 %v367, %v366
      %v407 = vpack.c.b16 %v369, %v368
      %v408 = vpack.c.b16 %v371, %v370
      %v409 = vpack.c.b16 %v373, %v372
      %v410 = vpack.c.b16 %v375, %v374
      %v411 = vpack.c.b16 %v377, %v376
      %v412 = vpack.c.b16 %v379, %v378
      %v413 = vpack.c.b16 %v381, %v380
      %v414 = vpack.c.b16 %v383, %v382
      %v415 = vpack.c.b16 %v385, %v384
      %v416 = vpack.c.b16 %v387, %v386
      %v417 = vpack.c.b16 %v389, %v388
      %v418 = vpack.c.b16 %v391, %v390
      %v419 = vpack.c.b16 %v393, %v392
      %v420 = vpack.c.b16 %v395, %v394
      %v421 = vpack.c.b16 %v397, %v396
      %446 = vmatprep.subr.bf16.mxu0 0
      %447 = vmatpush1.bf16.msra.mxu0 %v405
      %448 = vmatprep.subr.bf16.mxu0 0
      %449 = vmatpush1.bf16.msra.mxu0 %v404
      %450 = vmatprep.subr.bf16.mxu0 0
      %451 = vmatpush1.bf16.msra.mxu0 %v403
      %452 = vmatprep.subr.bf16.mxu0 0
      %453 = vmatpush1.bf16.msra.mxu0 %v402
      %454 = vmatprep.subr.bf16.mxu0 0
      %455 = vmatpush1.bf16.msra.mxu0 %v401
      %456 = vmatprep.subr.bf16.mxu0 0
      %457 = vmatpush1.bf16.msra.mxu0 %v400
      %458 = vmatprep.subr.bf16.mxu0 0
      %459 = vmatpush1.bf16.msra.mxu0 %v399
      %460 = vmatprep.subr.bf16.mxu0 0
      %461 = vmatpush1.bf16.msra.mxu0 %v398
      %462 = vmatprep.subr.bf16.mxu0 0
      %463 = vmatpush2.bf16.msra.mxu0 %v413
      %464 = vmatprep.subr.bf16.mxu0 0
      %465 = vmatpush2.bf16.msra.mxu0 %v412
      %466 = vmatprep.subr.bf16.mxu0 0
      %467 = vmatpush2.bf16.msra.mxu0 %v411
      %468 = vmatprep.subr.bf16.mxu0 0
      %469 = vmatpush2.bf16.msra.mxu0 %v410
      %470 = vmatprep.subr.bf16.mxu0 0
      %471 = vmatpush2.bf16.msra.mxu0 %v409
      %472 = vmatprep.subr.bf16.mxu0 0
      %473 = vmatpush2.bf16.msra.mxu0 %v408
      %474 = vmatprep.subr.bf16.mxu0 0
      %475 = vmatpush2.bf16.msra.mxu0 %v407
      %476 = vmatprep.subr.bf16.mxu0 0
      %477 = vmatpush2.bf16.msra.mxu0 %v406
      %478 = vmatprep.mubr.bf16.mxu0 %v297
      %479 = vmatmul.mubr.bf16.gmra.mxu0 %v296
      %v480 = vpop.f32.mrf.mxu0
      %v481 = vadd.f32 %v284, %v480
      %v482 = vpop.f32.mrf.mxu0
      %v483 = vpop.f32.mrf.mxu0
      %v484 = vadd.f32 %v284, %v483
      %v485 = vpop.f32.mrf.mxu0
      %486 = vdwg.mxu0
      %487 = vmatprep.subr.bf16.mxu0 0
      %488 = vmatpush1.bf16.msra.mxu0 %v421
      %489 = vmatprep.subr.bf16.mxu0 0
      %490 = vmatpush1.bf16.msra.mxu0 %v420
      %491 = vmatprep.subr.bf16.mxu0 0
      %492 = vmatpush1.bf16.msra.mxu0 %v419
      %493 = vmatprep.subr.bf16.mxu0 0
      %494 = vmatpush1.bf16.msra.mxu0 %v418
      %495 = vmatprep.subr.bf16.mxu0 0
      %496 = vmatpush1.bf16.msra.mxu0 %v417
      %497 = vmatprep.subr.bf16.mxu0 0
      %498 = vmatpush1.bf16.msra.mxu0 %v416
      %499 = vmatprep.subr.bf16.mxu0 0
      %500 = vmatpush1.bf16.msra.mxu0 %v415
      %501 = vmatprep.subr.bf16.mxu0 0
      %502 = vmatpush1.bf16.msra.mxu0 %v414
      %503 = vmatprep.subr.bf16.mxu0 0
      %504 = vmatpush2.bf16.msra.mxu0 0
      %505 = vmatprep.subr.bf16.mxu0 0
      %506 = vmatpush2.bf16.msra.mxu0 0
      %507 = vmatprep.subr.bf16.mxu0 0
      %508 = vmatpush2.bf16.msra.mxu0 0
      %509 = vmatprep.subr.bf16.mxu0 0
      %510 = vmatpush2.bf16.msra.mxu0 0
      %511 = vmatprep.subr.bf16.mxu0 0
      %512 = vmatpush2.bf16.msra.mxu0 0
      %513 = vmatprep.subr.bf16.mxu0 0
      %514 = vmatpush2.bf16.msra.mxu0 0
      %515 = vmatprep.subr.bf16.mxu0 0
      %516 = vmatpush2.bf16.msra.mxu0 0
      %517 = vmatprep.subr.bf16.mxu0 0
      %518 = vmatpush2.bf16.msra.mxu0 0
      %519 = vmatprep.mubr.bf16.mxu0 0
      %520 = vmatmul.mubr.bf16.gmra.mxu0 %v298
      %v521 = vpop.f32.mrf.mxu0
      %v522 = vadd.f32 %v481, %v521
      %v523 = vpop.f32.mrf.mxu0
      %v524 = vpop.f32.mrf.mxu0
      %v525 = vadd.f32 %v484, %v524
      %v526 = vpop.f32.mrf.mxu0
      %527 = vdwg.mxu0
      %v528 = vld [vmem:[%s218] sm:$0xf]
      %v529 = vld [vmem:[%s218 + $0x4] sm:$0xf]
      %v530 = vunpack.c.l.bf16 %v528
      %v531 = vunpack.c.l.bf16 %v529
      %v532 = vadd.f32 %v522, %v530
      %v533 = vadd.f32 %v525, %v531
      %v534 = vmax.f32 %v532, 0.0
      %v535 = vmax.f32 %v533, 0.0
      %v536 = vpack.c.bf16 %v535, %v534
      %v538 = vunpack.c.l.b16 %v536
      %v539 = vunpack.c.h.b16 %v536
      %v540 = vpack.c.b16 %v538, %v538
      %v541 = vpack.c.b16 %v539, %v539
      %544 = vst [vmem:[%s224] sm:$0xf] %v540
      %545 = vst [vmem:[%s224 + $0x4] sm:$0xf] %v541
      %s546 = smul.u32 2, %s15
      %p547 = scmp.lt.s32.totalorder %s546, 3
      %s548 = scalar_select %p547, %s546, 3
      %s549 = smul.addr %s548, 4
      %s550 = scalar_lea.vmem %s4, %s549
      // Predicated region
      $region37: #{feature_extractor_forward.34} parent=35 // pred_check
        %p551 = pneg %p127
      $region38: #{feature_extractor_forward.34} parent=35 // pred_check_branch
        %553 = sbr.rel (%p551) target = $region40
      $region39: #{feature_extractor_forward.34} parent=35 // pred_region
        %s554 = smul.u32 2, %s15
      $region40: #{feature_extractor_forward.34} parent=35 // pred_fallthru
        _
    $region36: #{feature_extractor_forward.34} parent=5 // pred_fallthru
      _
    %p555 = scmp.le.s32.totalorder 2, %s10
    // Predicated region
    $region41: #{feature_extractor_forward.34} parent=5 // pred_check
      %p556 = pneg %p555
    $region42: #{feature_extractor_forward.34} parent=5 // pred_check_branch
      %558 = sbr.rel (%p556) target = $region44
    $region43: #{feature_extractor_forward.34} parent=5 // pred_region
      %s559 = ssub.s32 %s10, 2
      // Predicated region
      $region45: #{feature_extractor_forward.34} parent=43 // pred_check
        %p560 = pneg %p133
      $region46: #{feature_extractor_forward.34} parent=43 // pred_check_branch
        %562 = sbr.rel (%p560) target = $region48
      $region47: #{feature_extractor_forward.34} parent=43 // pred_region
        %s563 = smul.u32 2, %s16
        %p564 = scmp.lt.s32.totalorder %s563, 3
        %s565 = scalar_select %p564, %s563, 3
        %s566 = smul.addr %s565, 4
        %s567 = scalar_lea.vmem %s4, %s566
      $region48: #{feature_extractor_forward.34} parent=43 // pred_fallthru
        _
    $region44: #{feature_extractor_forward.34} parent=5 // pred_fallthru
      _
  $region6: #{feature_extractor_forward.34} parent=0 // loop_footer
    %s14 = sadd.s32 1, %s10
  $region7: #{feature_extractor_forward.34} parent=0 // loop_footer_branch
    %9 = sbr.rel target = $region3
  $region8: #{feature_extractor_forward.34} parent=0 // loop_exit
    _

// kernel: feature_extractor_forward.37
$region0: #{feature_extractor_forward.37}
  #allocation0 [shape = 'u32[]', space=smem, size = 0x4, offset = 0x4, fixed_abs, tag = 'smem constant byte address 0x4 - core index']
  #allocation1 [shape = 'u32[144,128]{1,0:T(1,128)}', space=vmem, size = 0x12000, scoped, tag = 'internal scratch']
  %s0 = inlined_call_operand.vmem [shape: bf16[8,384], index: 0, kind: input, shape index: {}]
  %s1 = inlined_call_operand.vmem [shape: bf16[384,128], index: 1, kind: input, shape index: {}]
  %s2 = inlined_call_operand.vmem [shape: f32[1,128], index: 2, kind: input, shape index: {}]
  %s3 = inlined_call_operand.vmem [shape: bf16[8,128], index: 3, kind: output, shape index: {}]
  %s4 = sld [smem:[#allocation0]]
  $region22: #{feature_extractor_forward.37} parent=0
    _
  %s6 = ssub.s32 1, %s4
  %s7 = scalar_select 0, %s6, %s4
  // Predicated region
  $region2: #{feature_extractor_forward.37} parent=0 // pred_check
    _
  $region3: #{feature_extractor_forward.37} parent=0 // pred_check_branch
    %9 = sbr.rel (0) target = $region5
  $region4: #{feature_extractor_forward.37} parent=0 // pred_region
    _
  $region5: #{feature_extractor_forward.37} parent=0 // pred_fallthru
    _
  // Predicated region
  $region6: #{feature_extractor_forward.37} parent=0 // pred_check
    _
  $region7: #{feature_extractor_forward.37} parent=0 // pred_check_branch
    %11 = sbr.rel (0) target = $region9
  $region8: #{feature_extractor_forward.37} parent=0 // pred_region
    _
  $region9: #{feature_extractor_forward.37} parent=0 // pred_fallthru
    _
  // Predicated region
  $region10: #{feature_extractor_forward.37} parent=0 // pred_check
    _
  $region11: #{feature_extractor_forward.37} parent=0 // pred_check_branch
    %13 = sbr.rel (0) target = $region13
  $region12: #{feature_extractor_forward.37} parent=0 // pred_region
    _
  $region13: #{feature_extractor_forward.37} parent=0 // pred_fallthru
    _
  %v15 = vld [vmem:[%s0] sm:$0xff]
  %v16 = vld [vmem:[%s0 + $0x8] sm:$0xf]
  %v17 = vld [vmem:[%s1] sm:$0xf]
  %v18 = vld [vmem:[%s1 + $0x4] sm:$0xf]
  %v19 = vld [vmem:[%s1 + $0x8] sm:$0xf]
  %v20 = vld [vmem:[%s1 + $0xc] sm:$0xf]
  %v21 = vld [vmem:[%s1 + $0x10] sm:$0xf]
  %v22 = vld [vmem:[%s1 + $0x14] sm:$0xf]
  %v23 = vld [vmem:[%s1 + $0x18] sm:$0xf]
  %v24 = vld [vmem:[%s1 + $0x1c] sm:$0xf]
  %v25 = vld [vmem:[%s1 + $0x20] sm:$0xf]
  %v26 = vld [vmem:[%s1 + $0x24] sm:$0xf]
  %v27 = vld [vmem:[%s1 + $0x28] sm:$0xf]
  %v28 = vld [vmem:[%s1 + $0x2c] sm:$0xf]
  %v29 = vld [vmem:[%s1 + $0x30] sm:$0xf]
  %v30 = vld [vmem:[%s1 + $0x34] sm:$0xf]
  %v31 = vld [vmem:[%s1 + $0x38] sm:$0xf]
  %v32 = vld [vmem:[%s1 + $0x3c] sm:$0xf]
  %v33 = vld [vmem:[%s1 + $0x40] sm:$0xf]
  %v34 = vld [vmem:[%s1 + $0x44] sm:$0xf]
  %v35 = vld [vmem:[%s1 + $0x48] sm:$0xf]
  %v36 = vld [vmem:[%s1 + $0x4c] sm:$0xf]
  %v37 = vld [vmem:[%s1 + $0x50] sm:$0xf]
  %v38 = vld [vmem:[%s1 + $0x54] sm:$0xf]
  %v39 = vld [vmem:[%s1 + $0x58] sm:$0xf]
  %v40 = vld [vmem:[%s1 + $0x5c] sm:$0xf]
  %v41 = vld [vmem:[%s1 + $0x60] sm:$0xf]
  %v42 = vld [vmem:[%s1 + $0x64] sm:$0xf]
  %v43 = vld [vmem:[%s1 + $0x68] sm:$0xf]
  %v44 = vld [vmem:[%s1 + $0x6c] sm:$0xf]
  %v45 = vld [vmem:[%s1 + $0x70] sm:$0xf]
  %v46 = vld [vmem:[%s1 + $0x74] sm:$0xf]
  %v47 = vld [vmem:[%s1 + $0x78] sm:$0xf]
  %v48 = vld [vmem:[%s1 + $0x7c] sm:$0xf]
  %v49 = vld [vmem:[%s1 + $0x80] sm:$0xf]
  %v50 = vld [vmem:[%s1 + $0x84] sm:$0xf]
  %v51 = vld [vmem:[%s1 + $0x88] sm:$0xf]
  %v52 = vld [vmem:[%s1 + $0x8c] sm:$0xf]
  %v53 = vld [vmem:[%s1 + $0x90] sm:$0xf]
  %v54 = vld [vmem:[%s1 + $0x94] sm:$0xf]
  %v55 = vld [vmem:[%s1 + $0x98] sm:$0xf]
  %v56 = vld [vmem:[%s1 + $0x9c] sm:$0xf]
  %v57 = vld [vmem:[%s1 + $0xa0] sm:$0xf]
  %v58 = vld [vmem:[%s1 + $0xa4] sm:$0xf]
  %v59 = vld [vmem:[%s1 + $0xa8] sm:$0xf]
  %v60 = vld [vmem:[%s1 + $0xac] sm:$0xf]
  %v61 = vld [vmem:[%s1 + $0xb0] sm:$0xf]
  %v62 = vld [vmem:[%s1 + $0xb4] sm:$0xf]
  %v63 = vld [vmem:[%s1 + $0xb8] sm:$0xf]
  %v64 = vld [vmem:[%s1 + $0xbc] sm:$0xf]
  %v65 = vld [vmem:[%s2] sm:$0x1]
  %v67 = vlaneseq
  %v68 = vshrl.u32 %v67, 7
  %v69 = vsub.s32 0, %v68
  %v70 = vrot.slane %v65, %v69
  %v74 = vunpack.c.l.b16 %v15
  %v75 = vunpack.c.h.b16 %v15
  %v76 = vunpack.c.l.b16 %v16
  %v77 = vpack.c.b16 %v74, %v74
  %v78 = vpack.c.b16 %v75, %v75
  %v79 = vpack.c.b16 %v76, %v76
  %v131 = vunpack.c.l.b16 %v17
  %v132 = vunpack.c.l.b16 %v18
  %v133 = vunpack.c.l.b16 %v19
  %v134 = vunpack.c.l.b16 %v20
  %v135 = vunpack.c.l.b16 %v21
  %v136 = vunpack.c.l.b16 %v22
  %v137 = vunpack.c.l.b16 %v23
  %v138 = vunpack.c.l.b16 %v24
  %v139 = vunpack.c.l.b16 %v25
  %v140 = vunpack.c.l.b16 %v26
  %v141 = vunpack.c.l.b16 %v27
  %v142 = vunpack.c.l.b16 %v28
  %v143 = vunpack.c.l.b16 %v29
  %v144 = vunpack.c.l.b16 %v30
  %v145 = vunpack.c.l.b16 %v31
  %v146 = vunpack.c.l.b16 %v32
  %v147 = vunpack.c.l.b16 %v33
  %v148 = vunpack.c.l.b16 %v34
  %v149 = vunpack.c.l.b16 %v35
  %v150 = vunpack.c.l.b16 %v36
  %v151 = vunpack.c.l.b16 %v37
  %v152 = vunpack.c.l.b16 %v38
  %v153 = vunpack.c.l.b16 %v39
  %v154 = vunpack.c.l.b16 %v40
  %v155 = vunpack.c.l.b16 %v41
  %v156 = vunpack.c.l.b16 %v42
  %v157 = vunpack.c.l.b16 %v43
  %v158 = vunpack.c.l.b16 %v44
  %v159 = vunpack.c.l.b16 %v45
  %v160 = vunpack.c.l.b16 %v46
  %v161 = vunpack.c.l.b16 %v47
  %v162 = vunpack.c.l.b16 %v48
  %v163 = vunpack.c.l.b16 %v49
  %v164 = vunpack.c.l.b16 %v50
  %v165 = vunpack.c.l.b16 %v51
  %v166 = vunpack.c.l.b16 %v52
  %v167 = vunpack.c.l.b16 %v53
  %v168 = vunpack.c.l.b16 %v54
  %v169 = vunpack.c.l.b16 %v55
  %v170 = vunpack.c.l.b16 %v56
  %v171 = vunpack.c.l.b16 %v57
  %v172 = vunpack.c.l.b16 %v58
  %v173 = vunpack.c.l.b16 %v59
  %v174 = vunpack.c.l.b16 %v60
  %v175 = vunpack.c.l.b16 %v61
  %v176 = vunpack.c.l.b16 %v62
  %v177 = vunpack.c.l.b16 %v63
  %v178 = vunpack.c.l.b16 %v64
  %v179 = vpack.c.b16 %v132, %v131
  %v180 = vpack.c.b16 %v134, %v133
  %v181 = vpack.c.b16 %v136, %v135
  %v182 = vpack.c.b16 %v138, %v137
  %v183 = vpack.c.b16 %v140, %v139
  %v184 = vpack.c.b16 %v142, %v141
  %v185 = vpack.c.b16 %v144, %v143
  %v186 = vpack.c.b16 %v146, %v145
  %v187 = vpack.c.b16 %v148, %v147
  %v188 = vpack.c.b16 %v150, %v149
  %v189 = vpack.c.b16 %v152, %v151
  %v190 = vpack.c.b16 %v154, %v153
  %v191 = vpack.c.b16 %v156, %v155
  %v192 = vpack.c.b16 %v158, %v157
  %v193 = vpack.c.b16 %v160, %v159
  %v194 = vpack.c.b16 %v162, %v161
  %v195 = vpack.c.b16 %v164, %v163
  %v196 = vpack.c.b16 %v166, %v165
  %v197 = vpack.c.b16 %v168, %v167
  %v198 = vpack.c.b16 %v170, %v169
  %v199 = vpack.c.b16 %v172, %v171
  %v200 = vpack.c.b16 %v174, %v173
  %v201 = vpack.c.b16 %v176, %v175
  %v202 = vpack.c.b16 %v178, %v177
  %227 = vmatprep.subr.bf16.mxu0 0
  %228 = vmatpush1.bf16.msra.mxu0 %v186
  %229 = vmatprep.subr.bf16.mxu0 0
  %230 = vmatpush1.bf16.msra.mxu0 %v185
  %231 = vmatprep.subr.bf16.mxu0 0
  %232 = vmatpush1.bf16.msra.mxu0 %v184
  %233 = vmatprep.subr.bf16.mxu0 0
  %234 = vmatpush1.bf16.msra.mxu0 %v183
  %235 = vmatprep.subr.bf16.mxu0 0
  %236 = vmatpush1.bf16.msra.mxu0 %v182
  %237 = vmatprep.subr.bf16.mxu0 0
  %238 = vmatpush1.bf16.msra.mxu0 %v181
  %239 = vmatprep.subr.bf16.mxu0 0
  %240 = vmatpush1.bf16.msra.mxu0 %v180
  %241 = vmatprep.subr.bf16.mxu0 0
  %242 = vmatpush1.bf16.msra.mxu0 %v179
  %243 = vmatprep.subr.bf16.mxu0 0
  %244 = vmatpush2.bf16.msra.mxu0 %v194
  %245 = vmatprep.subr.bf16.mxu0 0
  %246 = vmatpush2.bf16.msra.mxu0 %v193
  %247 = vmatprep.subr.bf16.mxu0 0
  %248 = vmatpush2.bf16.msra.mxu0 %v192
  %249 = vmatprep.subr.bf16.mxu0 0
  %250 = vmatpush2.bf16.msra.mxu0 %v191
  %251 = vmatprep.subr.bf16.mxu0 0
  %252 = vmatpush2.bf16.msra.mxu0 %v190
  %253 = vmatprep.subr.bf16.mxu0 0
  %254 = vmatpush2.bf16.msra.mxu0 %v189
  %255 = vmatprep.subr.bf16.mxu0 0
  %256 = vmatpush2.bf16.msra.mxu0 %v188
  %257 = vmatprep.subr.bf16.mxu0 0
  %258 = vmatpush2.bf16.msra.mxu0 %v187
  %259 = vmatprep.mubr.bf16.mxu0 %v78
  %260 = vmatmul.mubr.bf16.gmra.mxu0 %v77
  %v261 = vpop.f32.mrf.mxu0
  %v262 = vadd.f32 %v70, %v261
  %v263 = vpop.f32.mrf.mxu0
  %v264 = vpop.f32.mrf.mxu0
  %v265 = vpop.f32.mrf.mxu0
  %266 = vdwg.mxu0
  %267 = vmatprep.subr.bf16.mxu0 0
  %268 = vmatpush1.bf16.msra.mxu0 %v202
  %269 = vmatprep.subr.bf16.mxu0 0
  %270 = vmatpush1.bf16.msra.mxu0 %v201
  %271 = vmatprep.subr.bf16.mxu0 0
  %272 = vmatpush1.bf16.msra.mxu0 %v200
  %273 = vmatprep.subr.bf16.mxu0 0
  %274 = vmatpush1.bf16.msra.mxu0 %v199
  %275 = vmatprep.subr.bf16.mxu0 0
  %276 = vmatpush1.bf16.msra.mxu0 %v198
  %277 = vmatprep.subr.bf16.mxu0 0
  %278 = vmatpush1.bf16.msra.mxu0 %v197
  %279 = vmatprep.subr.bf16.mxu0 0
  %280 = vmatpush1.bf16.msra.mxu0 %v196
  %281 = vmatprep.subr.bf16.mxu0 0
  %282 = vmatpush1.bf16.msra.mxu0 %v195
  %283 = vmatprep.subr.bf16.mxu0 0
  %284 = vmatpush2.bf16.msra.mxu0 0
  %285 = vmatprep.subr.bf16.mxu0 0
  %286 = vmatpush2.bf16.msra.mxu0 0
  %287 = vmatprep.subr.bf16.mxu0 0
  %288 = vmatpush2.bf16.msra.mxu0 0
  %289 = vmatprep.subr.bf16.mxu0 0
  %290 = vmatpush2.bf16.msra.mxu0 0
  %291 = vmatprep.subr.bf16.mxu0 0
  %292 = vmatpush2.bf16.msra.mxu0 0
  %293 = vmatprep.subr.bf16.mxu0 0
  %294 = vmatpush2.bf16.msra.mxu0 0
  %295 = vmatprep.subr.bf16.mxu0 0
  %296 = vmatpush2.bf16.msra.mxu0 0
  %297 = vmatprep.subr.bf16.mxu0 0
  %298 = vmatpush2.bf16.msra.mxu0 0
  %299 = vmatprep.mubr.bf16.mxu0 0
  %300 = vmatmul.mubr.bf16.gmra.mxu0 %v79
  %v301 = vpop.f32.mrf.mxu0
  %v302 = vadd.f32 %v262, %v301
  %v303 = vpop.f32.mrf.mxu0
  %v304 = vpop.f32.mrf.mxu0
  %v305 = vpop.f32.mrf.mxu0
  %306 = vdwg.mxu0
  %v307 = vmax.f32 %v302, 0.0
  %v308 = vpack.c.bf16 %v307, %v307
  %309 = vst [vmem:[%s3] sm:$0xf] %v308
  // Predicated region
  $region14: #{feature_extractor_forward.37} parent=0 // pred_check
    _
  $region15: #{feature_extractor_forward.37} parent=0 // pred_check_branch
    %311 = sbr.rel (0) target = $region17
  $region16: #{feature_extractor_forward.37} parent=0 // pred_region
    _
  $region17: #{feature_extractor_forward.37} parent=0 // pred_fallthru
    _
  // Predicated region
  $region18: #{feature_extractor_forward.37} parent=0 // pred_check
    _
  $region19: #{feature_extractor_forward.37} parent=0 // pred_check_branch
    %313 = sbr.rel (0) target = $region21
  $region20: #{feature_extractor_forward.37} parent=0 // pred_region
    _
  $region21: #{feature_extractor_forward.37} parent=0 // pred_fallthru
    _

// kernel: feature_extractor_forward.38
$region0: #{feature_extractor_forward.38}
  #allocation0 [shape = 'u32[]', space=smem, size = 0x4, offset = 0x4, fixed_abs, tag = 'smem constant byte address 0x4 - core index']
  #allocation1 [shape = 'u32[144,128]{1,0:T(1,128)}', space=vmem, size = 0x12000, scoped, tag = 'internal scratch']
  %s0 = inlined_call_operand.vmem [shape: bf16[8,128], index: 0, kind: input, shape index: {}]
  %s1 = inlined_call_operand.vmem [shape: bf16[128,128], index: 1, kind: input, shape index: {}]
  %s2 = inlined_call_operand.vmem [shape: f32[1,128], index: 2, kind: input, shape index: {}]
  %s3 = inlined_call_operand.vmem [shape: bf16[8,128], index: 3, kind: output, shape index: {}]
  %s4 = sld [smem:[#allocation0]]
  $region22: #{feature_extractor_forward.38} parent=0
    _
  %s6 = ssub.s32 1, %s4
  %s7 = scalar_select 0, %s6, %s4
  // Predicated region
  $region2: #{feature_extractor_forward.38} parent=0 // pred_check
    _
  $region3: #{feature_extractor_forward.38} parent=0 // pred_check_branch
    %9 = sbr.rel (0) target = $region5
  $region4: #{feature_extractor_forward.38} parent=0 // pred_region
    _
  $region5: #{feature_extractor_forward.38} parent=0 // pred_fallthru
    _
  // Predicated region
  $region6: #{feature_extractor_forward.38} parent=0 // pred_check
    _
  $region7: #{feature_extractor_forward.38} parent=0 // pred_check_branch
    %11 = sbr.rel (0) target = $region9
  $region8: #{feature_extractor_forward.38} parent=0 // pred_region
    _
  $region9: #{feature_extractor_forward.38} parent=0 // pred_fallthru
    _
  // Predicated region
  $region10: #{feature_extractor_forward.38} parent=0 // pred_check
    _
  $region11: #{feature_extractor_forward.38} parent=0 // pred_check_branch
    %13 = sbr.rel (0) target = $region13
  $region12: #{feature_extractor_forward.38} parent=0 // pred_region
    _
  $region13: #{feature_extractor_forward.38} parent=0 // pred_fallthru
    _
  %v15 = vld [vmem:[%s0] sm:$0xf]
  %v16 = vld [vmem:[%s1] sm:$0xf]
  %v17 = vld [vmem:[%s1 + $0x4] sm:$0xf]
  %v18 = vld [vmem:[%s1 + $0x8] sm:$0xf]
  %v19 = vld [vmem:[%s1 + $0xc] sm:$0xf]
  %v20 = vld [vmem:[%s1 + $0x10] sm:$0xf]
  %v21 = vld [vmem:[%s1 + $0x14] sm:$0xf]
  %v22 = vld [vmem:[%s1 + $0x18] sm:$0xf]
  %v23 = vld [vmem:[%s1 + $0x1c] sm:$0xf]
  %v24 = vld [vmem:[%s1 + $0x20] sm:$0xf]
  %v25 = vld [vmem:[%s1 + $0x24] sm:$0xf]
  %v26 = vld [vmem:[%s1 + $0x28] sm:$0xf]
  %v27 = vld [vmem:[%s1 + $0x2c] sm:$0xf]
  %v28 = vld [vmem:[%s1 + $0x30] sm:$0xf]
  %v29 = vld [vmem:[%s1 + $0x34] sm:$0xf]
  %v30 = vld [vmem:[%s1 + $0x38] sm:$0xf]
  %v31 = vld [vmem:[%s1 + $0x3c] sm:$0xf]
  %v32 = vld [vmem:[%s2] sm:$0x1]
  %v34 = vlaneseq
  %v35 = vshrl.u32 %v34, 7
  %v36 = vsub.s32 0, %v35
  %v37 = vrot.slane %v32, %v36
  %v55 = vunpack.c.l.b16 %v16
  %v56 = vunpack.c.l.b16 %v17
  %v57 = vunpack.c.l.b16 %v18
  %v58 = vunpack.c.l.b16 %v19
  %v59 = vunpack.c.l.b16 %v20
  %v60 = vunpack.c.l.b16 %v21
  %v61 = vunpack.c.l.b16 %v22
  %v62 = vunpack.c.l.b16 %v23
  %v63 = vunpack.c.l.b16 %v24
  %v64 = vunpack.c.l.b16 %v25
  %v65 = vunpack.c.l.b16 %v26
  %v66 = vunpack.c.l.b16 %v27
  %v67 = vunpack.c.l.b16 %v28
  %v68 = vunpack.c.l.b16 %v29
  %v69 = vunpack.c.l.b16 %v30
  %v70 = vunpack.c.l.b16 %v31
  %v71 = vpack.c.b16 %v56, %v55
  %v72 = vpack.c.b16 %v58, %v57
  %v73 = vpack.c.b16 %v60, %v59
  %v74 = vpack.c.b16 %v62, %v61
  %v75 = vpack.c.b16 %v64, %v63
  %v76 = vpack.c.b16 %v66, %v65
  %v77 = vpack.c.b16 %v68, %v67
  %v78 = vpack.c.b16 %v70, %v69
  %87 = vmatprep.subr.bf16.mxu0 0
  %88 = vmatpush1.bf16.msra.mxu0 %v78
  %89 = vmatprep.subr.bf16.mxu0 0
  %90 = vmatpush1.bf16.msra.mxu0 %v77
  %91 = vmatprep.subr.bf16.mxu0 0
  %92 = vmatpush1.bf16.msra.mxu0 %v76
  %93 = vmatprep.subr.bf16.mxu0 0
  %94 = vmatpush1.bf16.msra.mxu0 %v75
  %95 = vmatprep.subr.bf16.mxu0 0
  %96 = vmatpush1.bf16.msra.mxu0 %v74
  %97 = vmatprep.subr.bf16.mxu0 0
  %98 = vmatpush1.bf16.msra.mxu0 %v73
  %99 = vmatprep.subr.bf16.mxu0 0
  %100 = vmatpush1.bf16.msra.mxu0 %v72
  %101 = vmatprep.subr.bf16.mxu0 0
  %102 = vmatpush1.bf16.msra.mxu0 %v71
  %103 = vmatprep.subr.bf16.mxu0 0
  %104 = vmatpush2.bf16.msra.mxu0 0
  %105 = vmatprep.subr.bf16.mxu0 0
  %106 = vmatpush2.bf16.msra.mxu0 0
  %107 = vmatprep.subr.bf16.mxu0 0
  %108 = vmatpush2.bf16.msra.mxu0 0
  %109 = vmatprep.subr.bf16.mxu0 0
  %110 = vmatpush2.bf16.msra.mxu0 0
  %111 = vmatprep.subr.bf16.mxu0 0
  %112 = vmatpush2.bf16.msra.mxu0 0
  %113 = vmatprep.subr.bf16.mxu0 0
  %114 = vmatpush2.bf16.msra.mxu0 0
  %115 = vmatprep.subr.bf16.mxu0 0
  %116 = vmatpush2.bf16.msra.mxu0 0
  %117 = vmatprep.subr.bf16.mxu0 0
  %118 = vmatpush2.bf16.msra.mxu0 0
  %119 = vmatprep.mubr.bf16.mxu0 0
  %120 = vmatmul.mubr.bf16.gmra.mxu0 %v15
  %v121 = vpop.f32.mrf.mxu0
  %v122 = vadd.f32 %v37, %v121
  %v123 = vpop.f32.mrf.mxu0
  %v124 = vpop.f32.mrf.mxu0
  %v125 = vpop.f32.mrf.mxu0
  %126 = vdwg.mxu0
  %v127 = vpack.c.bf16 %v122, %v122
  %128 = vst [vmem:[%s3] sm:$0xf] %v127
  // Predicated region
  $region14: #{feature_extractor_forward.38} parent=0 // pred_check
    _
  $region15: #{feature_extractor_forward.38} parent=0 // pred_check_branch
    %130 = sbr.rel (0) target = $region17
  $region16: #{feature_extractor_forward.38} parent=0 // pred_region
    _
  $region17: #{feature_extractor_forward.38} parent=0 // pred_fallthru
    _
  // Predicated region
  $region18: #{feature_extractor_forward.38} parent=0 // pred_check
    _
  $region19: #{feature_extractor_forward.38} parent=0 // pred_check_branch
    %132 = sbr.rel (0) target = $region21
  $region20: #{feature_extractor_forward.38} parent=0 // pred_region
    _
  $region21: #{feature_extractor_forward.38} parent=0 // pred_fallthru
    _

// kernel: feature_extractor_forward.40
$region0: #{feature_extractor_forward.40}
  #allocation0 [shape = 'u32[]', space=smem, size = 0x4, offset = 0x4, fixed_abs, tag = 'smem constant byte address 0x4 - core index']
  #allocation1 [shape = 'u32[144,128]{1,0:T(1,128)}', space=vmem, size = 0x12000, scoped, tag = 'internal scratch']
  %s0 = inlined_call_operand.vmem [shape: bf16[8,640], index: 0, kind: input, shape index: {}]
  %s1 = inlined_call_operand.vmem [shape: bf16[640,128], index: 1, kind: input, shape index: {}]
  %s2 = inlined_call_operand.vmem [shape: f32[1,128], index: 2, kind: input, shape index: {}]
  %s3 = inlined_call_operand.vmem [shape: bf16[8,128], index: 3, kind: output, shape index: {}]
  %s4 = sld [smem:[#allocation0]]
  $region22: #{feature_extractor_forward.40} parent=0
    _
  %s6 = ssub.s32 1, %s4
  %s7 = scalar_select 0, %s6, %s4
  // Predicated region
  $region2: #{feature_extractor_forward.40} parent=0 // pred_check
    _
  $region3: #{feature_extractor_forward.40} parent=0 // pred_check_branch
    %9 = sbr.rel (0) target = $region5
  $region4: #{feature_extractor_forward.40} parent=0 // pred_region
    _
  $region5: #{feature_extractor_forward.40} parent=0 // pred_fallthru
    _
  // Predicated region
  $region6: #{feature_extractor_forward.40} parent=0 // pred_check
    _
  $region7: #{feature_extractor_forward.40} parent=0 // pred_check_branch
    %11 = sbr.rel (0) target = $region9
  $region8: #{feature_extractor_forward.40} parent=0 // pred_region
    _
  $region9: #{feature_extractor_forward.40} parent=0 // pred_fallthru
    _
  // Predicated region
  $region10: #{feature_extractor_forward.40} parent=0 // pred_check
    _
  $region11: #{feature_extractor_forward.40} parent=0 // pred_check_branch
    %13 = sbr.rel (0) target = $region13
  $region12: #{feature_extractor_forward.40} parent=0 // pred_region
    _
  $region13: #{feature_extractor_forward.40} parent=0 // pred_fallthru
    _
  %v15 = vld [vmem:[%s0] sm:$0xff]
  %v16 = vld [vmem:[%s0 + $0x8] sm:$0xff]
  %v17 = vld [vmem:[%s0 + $0x10] sm:$0xf]
  %v18 = vld [vmem:[%s1] sm:$0xf]
  %v19 = vld [vmem:[%s1 + $0x4] sm:$0xf]
  %v20 = vld [vmem:[%s1 + $0x8] sm:$0xf]
  %v21 = vld [vmem:[%s1 + $0xc] sm:$0xf]
  %v22 = vld [vmem:[%s1 + $0x10] sm:$0xf]
  %v23 = vld [vmem:[%s1 + $0x14] sm:$0xf]
  %v24 = vld [vmem:[%s1 + $0x18] sm:$0xf]
  %v25 = vld [vmem:[%s1 + $0x1c] sm:$0xf]
  %v26 = vld [vmem:[%s1 + $0x20] sm:$0xf]
  %v27 = vld [vmem:[%s1 + $0x24] sm:$0xf]
  %v28 = vld [vmem:[%s1 + $0x28] sm:$0xf]
  %v29 = vld [vmem:[%s1 + $0x2c] sm:$0xf]
  %v30 = vld [vmem:[%s1 + $0x30] sm:$0xf]
  %v31 = vld [vmem:[%s1 + $0x34] sm:$0xf]
  %v32 = vld [vmem:[%s1 + $0x38] sm:$0xf]
  %v33 = vld [vmem:[%s1 + $0x3c] sm:$0xf]
  %v34 = vld [vmem:[%s1 + $0x40] sm:$0xf]
  %v35 = vld [vmem:[%s1 + $0x44] sm:$0xf]
  %v36 = vld [vmem:[%s1 + $0x48] sm:$0xf]
  %v37 = vld [vmem:[%s1 + $0x4c] sm:$0xf]
  %v38 = vld [vmem:[%s1 + $0x50] sm:$0xf]
  %v39 = vld [vmem:[%s1 + $0x54] sm:$0xf]
  %v40 = vld [vmem:[%s1 + $0x58] sm:$0xf]
  %v41 = vld [vmem:[%s1 + $0x5c] sm:$0xf]
  %v42 = vld [vmem:[%s1 + $0x60] sm:$0xf]
  %v43 = vld [vmem:[%s1 + $0x64] sm:$0xf]
  %v44 = vld [vmem:[%s1 + $0x68] sm:$0xf]
  %v45 = vld [vmem:[%s1 + $0x6c] sm:$0xf]
  %v46 = vld [vmem:[%s1 + $0x70] sm:$0xf]
  %v47 = vld [vmem:[%s1 + $0x74] sm:$0xf]
  %v48 = vld [vmem:[%s1 + $0x78] sm:$0xf]
  %v49 = vld [vmem:[%s1 + $0x7c] sm:$0xf]
  %v50 = vld [vmem:[%s1 + $0x80] sm:$0xf]
  %v51 = vld [vmem:[%s1 + $0x84] sm:$0xf]
  %v52 = vld [vmem:[%s1 + $0x88] sm:$0xf]
  %v53 = vld [vmem:[%s1 + $0x8c] sm:$0xf]
  %v54 = vld [vmem:[%s1 + $0x90] sm:$0xf]
  %v55 = vld [vmem:[%s1 + $0x94] sm:$0xf]
  %v56 = vld [vmem:[%s1 + $0x98] sm:$0xf]
  %v57 = vld [vmem:[%s1 + $0x9c] sm:$0xf]
  %v58 = vld [vmem:[%s1 + $0xa0] sm:$0xf]
  %v59 = vld [vmem:[%s1 + $0xa4] sm:$0xf]
  %v60 = vld [vmem:[%s1 + $0xa8] sm:$0xf]
  %v61 = vld [vmem:[%s1 + $0xac] sm:$0xf]
  %v62 = vld [vmem:[%s1 + $0xb0] sm:$0xf]
  %v63 = vld [vmem:[%s1 + $0xb4] sm:$0xf]
  %v64 = vld [vmem:[%s1 + $0xb8] sm:$0xf]
  %v65 = vld [vmem:[%s1 + $0xbc] sm:$0xf]
  %v66 = vld [vmem:[%s1 + $0xc0] sm:$0xf]
  %v67 = vld [vmem:[%s1 + $0xc4] sm:$0xf]
  %v68 = vld [vmem:[%s1 + $0xc8] sm:$0xf]
  %v69 = vld [vmem:[%s1 + $0xcc] sm:$0xf]
  %v70 = vld [vmem:[%s1 + $0xd0] sm:$0xf]
  %v71 = vld [vmem:[%s1 + $0xd4] sm:$0xf]
  %v72 = vld [vmem:[%s1 + $0xd8] sm:$0xf]
  %v73 = vld [vmem:[%s1 + $0xdc] sm:$0xf]
  %v74 = vld [vmem:[%s1 + $0xe0] sm:$0xf]
  %v75 = vld [vmem:[%s1 + $0xe4] sm:$0xf]
  %v76 = vld [vmem:[%s1 + $0xe8] sm:$0xf]
  %v77 = vld [vmem:[%s1 + $0xec] sm:$0xf]
  %v78 = vld [vmem:[%s1 + $0xf0] sm:$0xf]
  %v79 = vld [vmem:[%s1 + $0xf4] sm:$0xf]
  %v80 = vld [vmem:[%s1 + $0xf8] sm:$0xf]
  %v81 = vld [vmem:[%s1 + $0xfc] sm:$0xf]
  %v82 = vld [vmem:[%s1 + $0x100] sm:$0xf]
  %v83 = vld [vmem:[%s1 + $0x104] sm:$0xf]
  %v84 = vld [vmem:[%s1 + $0x108] sm:$0xf]
  %v85 = vld [vmem:[%s1 + $0x10c] sm:$0xf]
  %v86 = vld [vmem:[%s1 + $0x110] sm:$0xf]
  %v87 = vld [vmem:[%s1 + $0x114] sm:$0xf]
  %v88 = vld [vmem:[%s1 + $0x118] sm:$0xf]
  %v89 = vld [vmem:[%s1 + $0x11c] sm:$0xf]
  %v90 = vld [vmem:[%s1 + $0x120] sm:$0xf]
  %v91 = vld [vmem:[%s1 + $0x124] sm:$0xf]
  %v92 = vld [vmem:[%s1 + $0x128] sm:$0xf]
  %v93 = vld [vmem:[%s1 + $0x12c] sm:$0xf]
  %v94 = vld [vmem:[%s1 + $0x130] sm:$0xf]
  %v95 = vld [vmem:[%s1 + $0x134] sm:$0xf]
  %v96 = vld [vmem:[%s1 + $0x138] sm:$0xf]
  %v97 = vld [vmem:[%s1 + $0x13c] sm:$0xf]
  %v98 = vld [vmem:[%s2] sm:$0x1]
  %v100 = vlaneseq
  %v101 = vshrl.u32 %v100, 7
  %v102 = vsub.s32 0, %v101
  %v103 = vrot.slane %v98, %v102
  %v108 = vunpack.c.l.b16 %v15
  %v109 = vunpack.c.h.b16 %v15
  %v110 = vunpack.c.l.b16 %v16
  %v111 = vunpack.c.h.b16 %v16
  %v112 = vunpack.c.l.b16 %v17
  %v113 = vpack.c.b16 %v108, %v108
  %v114 = vpack.c.b16 %v109, %v109
  %v115 = vpack.c.b16 %v110, %v110
  %v116 = vpack.c.b16 %v111, %v111
  %v117 = vpack.c.b16 %v112, %v112
  %v203 = vunpack.c.l.b16 %v18
  %v204 = vunpack.c.l.b16 %v19
  %v205 = vunpack.c.l.b16 %v20
  %v206 = vunpack.c.l.b16 %v21
  %v207 = vunpack.c.l.b16 %v22
  %v208 = vunpack.c.l.b16 %v23
  %v209 = vunpack.c.l.b16 %v24
  %v210 = vunpack.c.l.b16 %v25
  %v211 = vunpack.c.l.b16 %v26
  %v212 = vunpack.c.l.b16 %v27
  %v213 = vunpack.c.l.b16 %v28
  %v214 = vunpack.c.l.b16 %v29
  %v215 = vunpack.c.l.b16 %v30
  %v216 = vunpack.c.l.b16 %v31
  %v217 = vunpack.c.l.b16 %v32
  %v218 = vunpack.c.l.b16 %v33
  %v219 = vunpack.c.l.b16 %v34
  %v220 = vunpack.c.l.b16 %v35
  %v221 = vunpack.c.l.b16 %v36
  %v222 = vunpack.c.l.b16 %v37
  %v223 = vunpack.c.l.b16 %v38
  %v224 = vunpack.c.l.b16 %v39
  %v225 = vunpack.c.l.b16 %v40
  %v226 = vunpack.c.l.b16 %v41
  %v227 = vunpack.c.l.b16 %v42
  %v228 = vunpack.c.l.b16 %v43
  %v229 = vunpack.c.l.b16 %v44
  %v230 = vunpack.c.l.b16 %v45
  %v231 = vunpack.c.l.b16 %v46
  %v232 = vunpack.c.l.b16 %v47
  %v233 = vunpack.c.l.b16 %v48
  %v234 = vunpack.c.l.b16 %v49
  %v235 = vunpack.c.l.b16 %v50
  %v236 = vunpack.c.l.b16 %v51
  %v237 = vunpack.c.l.b16 %v52
  %v238 = vunpack.c.l.b16 %v53
  %v239 = vunpack.c.l.b16 %v54
  %v240 = vunpack.c.l.b16 %v55
  %v241 = vunpack.c.l.b16 %v56
  %v242 = vunpack.c.l.b16 %v57
  %v243 = vunpack.c.l.b16 %v58
  %v244 = vunpack.c.l.b16 %v59
  %v245 = vunpack.c.l.b16 %v60
  %v246 = vunpack.c.l.b16 %v61
  %v247 = vunpack.c.l.b16 %v62
  %v248 = vunpack.c.l.b16 %v63
  %v249 = vunpack.c.l.b16 %v64
  %v250 = vunpack.c.l.b16 %v65
  %v251 = vunpack.c.l.b16 %v66
  %v252 = vunpack.c.l.b16 %v67
  %v253 = vunpack.c.l.b16 %v68
  %v254 = vunpack.c.l.b16 %v69
  %v255 = vunpack.c.l.b16 %v70
  %v256 = vunpack.c.l.b16 %v71
  %v257 = vunpack.c.l.b16 %v72
  %v258 = vunpack.c.l.b16 %v73
  %v259 = vunpack.c.l.b16 %v74
  %v260 = vunpack.c.l.b16 %v75
  %v261 = vunpack.c.l.b16 %v76
  %v262 = vunpack.c.l.b16 %v77
  %v263 = vunpack.c.l.b16 %v78
  %v264 = vunpack.c.l.b16 %v79
  %v265 = vunpack.c.l.b16 %v80
  %v266 = vunpack.c.l.b16 %v81
  %v267 = vunpack.c.l.b16 %v82
  %v268 = vunpack.c.l.b16 %v83
  %v269 = vunpack.c.l.b16 %v84
  %v270 = vunpack.c.l.b16 %v85
  %v271 = vunpack.c.l.b16 %v86
  %v272 = vunpack.c.l.b16 %v87
  %v273 = vunpack.c.l.b16 %v88
  %v274 = vunpack.c.l.b16 %v89
  %v275 = vunpack.c.l.b16 %v90
  %v276 = vunpack.c.l.b16 %v91
  %v277 = vunpack.c.l.b16 %v92
  %v278 = vunpack.c.l.b16 %v93
  %v279 = vunpack.c.l.b16 %v94
  %v280 = vunpack.c.l.b16 %v95
  %v281 = vunpack.c.l.b16 %v96
  %v282 = vunpack.c.l.b16 %v97
  %v283 = vpack.c.b16 %v204, %v203
  %v284 = vpack.c.b16 %v206, %v205
  %v285 = vpack.c.b16 %v208, %v207
  %v286 = vpack.c.b16 %v210, %v209
  %v287 = vpack.c.b16 %v212, %v211
  %v288 = vpack.c.b16 %v214, %v213
  %v289 = vpack.c.b16 %v216, %v215
  %v290 = vpack.c.b16 %v218, %v217
  %v291 = vpack.c.b16 %v220, %v219
  %v292 = vpack.c.b16 %v222, %v221
  %v293 = vpack.c.b16 %v224, %v223
  %v294 = vpack.c.b16 %v226, %v225
  %v295 = vpack.c.b16 %v228, %v227
  %v296 = vpack.c.b16 %v230, %v229
  %v297 = vpack.c.b16 %v232, %v231
  %v298 = vpack.c.b16 %v234, %v233
  %v299 = vpack.c.b16 %v236, %v235
  %v300 = vpack.c.b16 %v238, %v237
  %v301 = vpack.c.b16 %v240, %v239
  %v302 = vpack.c.b16 %v242, %v241
  %v303 = vpack.c.b16 %v244, %v243
  %v304 = vpack.c.b16 %v246, %v245
  %v305 = vpack.c.b16 %v248, %v247
  %v306 = vpack.c.b16 %v250, %v249
  %v307 = vpack.c.b16 %v252, %v251
  %v308 = vpack.c.b16 %v254, %v253
  %v309 = vpack.c.b16 %v256, %v255
  %v310 = vpack.c.b16 %v258, %v257
  %v311 = vpack.c.b16 %v260, %v259
  %v312 = vpack.c.b16 %v262, %v261
  %v313 = vpack.c.b16 %v264, %v263
  %v314 = vpack.c.b16 %v266, %v265
  %v315 = vpack.c.b16 %v268, %v267
  %v316 = vpack.c.b16 %v270, %v269
  %v317 = vpack.c.b16 %v272, %v271
  %v318 = vpack.c.b16 %v274, %v273
  %v319 = vpack.c.b16 %v276, %v275
  %v320 = vpack.c.b16 %v278, %v277
  %v321 = vpack.c.b16 %v280, %v279
  %v322 = vpack.c.b16 %v282, %v281
  %363 = vmatprep.subr.bf16.mxu0 0
  %364 = vmatpush1.bf16.msra.mxu0 %v290
  %365 = vmatprep.subr.bf16.mxu0 0
  %366 = vmatpush1.bf16.msra.mxu0 %v289
  %367 = vmatprep.subr.bf16.mxu0 0
  %368 = vmatpush1.bf16.msra.mxu0 %v288
  %369 = vmatprep.subr.bf16.mxu0 0
  %370 = vmatpush1.bf16.msra.mxu0 %v287
  %371 = vmatprep.subr.bf16.mxu0 0
  %372 = vmatpush1.bf16.msra.mxu0 %v286
  %373 = vmatprep.subr.bf16.mxu0 0
  %374 = vmatpush1.bf16.msra.mxu0 %v285
  %375 = vmatprep.subr.bf16.mxu0 0
  %376 = vmatpush1.bf16.msra.mxu0 %v284
  %377 = vmatprep.subr.bf16.mxu0 0
  %378 = vmatpush1.bf16.msra.mxu0 %v283
  %379 = vmatprep.subr.bf16.mxu0 0
  %380 = vmatpush2.bf16.msra.mxu0 %v298
  %381 = vmatprep.subr.bf16.mxu0 0
  %382 = vmatpush2.bf16.msra.mxu0 %v297
  %383 = vmatprep.subr.bf16.mxu0 0
  %384 = vmatpush2.bf16.msra.mxu0 %v296
  %385 = vmatprep.subr.bf16.mxu0 0
  %386 = vmatpush2.bf16.msra.mxu0 %v295
  %387 = vmatprep.subr.bf16.mxu0 0
  %388 = vmatpush2.bf16.msra.mxu0 %v294
  %389 = vmatprep.subr.bf16.mxu0 0
  %390 = vmatpush2.bf16.msra.mxu0 %v293
  %391 = vmatprep.subr.bf16.mxu0 0
  %392 = vmatpush2.bf16.msra.mxu0 %v292
  %393 = vmatprep.subr.bf16.mxu0 0
  %394 = vmatpush2.bf16.msra.mxu0 %v291
  %395 = vmatprep.mubr.bf16.mxu0 %v114
  %396 = vmatmul.mubr.bf16.gmra.mxu0 %v113
  %v397 = vpop.f32.mrf.mxu0
  %v398 = vadd.f32 %v103, %v397
  %v399 = vpop.f32.mrf.mxu0
  %v400 = vpop.f32.mrf.mxu0
  %v401 = vpop.f32.mrf.mxu0
  %402 = vdwg.mxu0
  %403 = vmatprep.subr.bf16.mxu0 0
  %404 = vmatpush1.bf16.msra.mxu0 %v306
  %405 = vmatprep.subr.bf16.mxu0 0
  %406 = vmatpush1.bf16.msra.mxu0 %v305
  %407 = vmatprep.subr.bf16.mxu0 0
  %408 = vmatpush1.bf16.msra.mxu0 %v304
  %409 = vmatprep.subr.bf16.mxu0 0
  %410 = vmatpush1.bf16.msra.mxu0 %v303
  %411 = vmatprep.subr.bf16.mxu0 0
  %412 = vmatpush1.bf16.msra.mxu0 %v302
  %413 = vmatprep.subr.bf16.mxu0 0
  %414 = vmatpush1.bf16.msra.mxu0 %v301
  %415 = vmatprep.subr.bf16.mxu0 0
  %416 = vmatpush1.bf16.msra.mxu0 %v300
  %417 = vmatprep.subr.bf16.mxu0 0
  %418 = vmatpush1.bf16.msra.mxu0 %v299
  %419 = vmatprep.subr.bf16.mxu0 0
  %420 = vmatpush2.bf16.msra.mxu0 %v314
  %421 = vmatprep.subr.bf16.mxu0 0
  %422 = vmatpush2.bf16.msra.mxu0 %v313
  %423 = vmatprep.subr.bf16.mxu0 0
  %424 = vmatpush2.bf16.msra.mxu0 %v312
  %425 = vmatprep.subr.bf16.mxu0 0
  %426 = vmatpush2.bf16.msra.mxu0 %v311
  %427 = vmatprep.subr.bf16.mxu0 0
  %428 = vmatpush2.bf16.msra.mxu0 %v310
  %429 = vmatprep.subr.bf16.mxu0 0
  %430 = vmatpush2.bf16.msra.mxu0 %v309
  %431 = vmatprep.subr.bf16.mxu0 0
  %432 = vmatpush2.bf16.msra.mxu0 %v308
  %433 = vmatprep.subr.bf16.mxu0 0
  %434 = vmatpush2.bf16.msra.mxu0 %v307
  %435 = vmatprep.mubr.bf16.mxu0 %v116
  %436 = vmatmul.mubr.bf16.gmra.mxu0 %v115
  %v437 = vpop.f32.mrf.mxu0
  %v438 = vadd.f32 %v398, %v437
  %v439 = vpop.f32.mrf.mxu0
  %v440 = vpop.f32.mrf.mxu0
  %v441 = vpop.f32.mrf.mxu0
  %442 = vdwg.mxu0
  %443 = vmatprep.subr.bf16.mxu0 0
  %444 = vmatpush1.bf16.msra.mxu0 %v322
  %445 = vmatprep.subr.bf16.mxu0 0
  %446 = vmatpush1.bf16.msra.mxu0 %v321
  %447 = vmatprep.subr.bf16.mxu0 0
  %448 = vmatpush1.bf16.msra.mxu0 %v320
  %449 = vmatprep.subr.bf16.mxu0 0
  %450 = vmatpush1.bf16.msra.mxu0 %v319
  %451 = vmatprep.subr.bf16.mxu0 0
  %452 = vmatpush1.bf16.msra.mxu0 %v318
  %453 = vmatprep.subr.bf16.mxu0 0
  %454 = vmatpush1.bf16.msra.mxu0 %v317
  %455 = vmatprep.subr.bf16.mxu0 0
  %456 = vmatpush1.bf16.msra.mxu0 %v316
  %457 = vmatprep.subr.bf16.mxu0 0
  %458 = vmatpush1.bf16.msra.mxu0 %v315
  %459 = vmatprep.subr.bf16.mxu0 0
  %460 = vmatpush2.bf16.msra.mxu0 0
  %461 = vmatprep.subr.bf16.mxu0 0
  %462 = vmatpush2.bf16.msra.mxu0 0
  %463 = vmatprep.subr.bf16.mxu0 0
  %464 = vmatpush2.bf16.msra.mxu0 0
  %465 = vmatprep.subr.bf16.mxu0 0
  %466 = vmatpush2.bf16.msra.mxu0 0
  %467 = vmatprep.subr.bf16.mxu0 0
  %468 = vmatpush2.bf16.msra.mxu0 0
  %469 = vmatprep.subr.bf16.mxu0 0
  %470 = vmatpush2.bf16.msra.mxu0 0
  %471 = vmatprep.subr.bf16.mxu0 0
  %472 = vmatpush2.bf16.msra.mxu0 0
  %473 = vmatprep.subr.bf16.mxu0 0
  %474 = vmatpush2.bf16.msra.mxu0 0
  %475 = vmatprep.mubr.bf16.mxu0 0
  %476 = vmatmul.mubr.bf16.gmra.mxu0 %v117
  %v477 = vpop.f32.mrf.mxu0
  %v478 = vadd.f32 %v438, %v477
  %v479 = vpop.f32.mrf.mxu0
  %v480 = vpop.f32.mrf.mxu0
  %v481 = vpop.f32.mrf.mxu0
  %482 = vdwg.mxu0
  %v483 = vmax.f32 %v478, 0.0
  %v484 = vpack.c.bf16 %v483, %v483
  %485 = vst [vmem:[%s3] sm:$0xf] %v484
  // Predicated region
  $region14: #{feature_extractor_forward.40} parent=0 // pred_check
    _
  $region15: #{feature_extractor_forward.40} parent=0 // pred_check_branch
    %487 = sbr.rel (0) target = $region17
  $region16: #{feature_extractor_forward.40} parent=0 // pred_region
    _
  $region17: #{feature_extractor_forward.40} parent=0 // pred_fallthru
    _
  // Predicated region
  $region18: #{feature_extractor_forward.40} parent=0 // pred_check
    _
  $region19: #{feature_extractor_forward.40} parent=0 // pred_check_branch
    %489 = sbr.rel (0) target = $region21
  $region20: #{feature_extractor_forward.40} parent=0 // pred_region
    _
  $region21: #{feature_extractor_forward.40} parent=0 // pred_fallthru
    _

// kernel: feature_extractor_forward.39
$region0: #{feature_extractor_forward.39}
  #allocation0 [shape = 'u32[]', space=smem, size = 0x4, offset = 0x4, fixed_abs, tag = 'smem constant byte address 0x4 - core index']
  #allocation1 [shape = 'u32[144,128]{1,0:T(1,128)}', space=vmem, size = 0x12000, scoped, tag = 'internal scratch']
  %s0 = inlined_call_operand.vmem [shape: bf16[8,640], index: 0, kind: input, shape index: {}]
  %s1 = inlined_call_operand.vmem [shape: bf16[640,128], index: 1, kind: input, shape index: {}]
  %s2 = inlined_call_operand.vmem [shape: f32[1,128], index: 2, kind: input, shape index: {}]
  %s3 = inlined_call_operand.vmem [shape: bf16[8,128], index: 3, kind: input, shape index: {}]
  %s4 = inlined_call_operand.vmem [shape: bf16[8,128], index: 4, kind: output, shape index: {}]
  %s5 = sld [smem:[#allocation0]]
  $region26: #{feature_extractor_forward.39} parent=0
    _
  %s7 = ssub.s32 1, %s5
  %s8 = scalar_select 0, %s7, %s5
  // Predicated region
  $region2: #{feature_extractor_forward.39} parent=0 // pred_check
    _
  $region3: #{feature_extractor_forward.39} parent=0 // pred_check_branch
    %10 = sbr.rel (0) target = $region5
  $region4: #{feature_extractor_forward.39} parent=0 // pred_region
    _
  $region5: #{feature_extractor_forward.39} parent=0 // pred_fallthru
    _
  // Predicated region
  $region6: #{feature_extractor_forward.39} parent=0 // pred_check
    _
  $region7: #{feature_extractor_forward.39} parent=0 // pred_check_branch
    %12 = sbr.rel (0) target = $region9
  $region8: #{feature_extractor_forward.39} parent=0 // pred_region
    _
  $region9: #{feature_extractor_forward.39} parent=0 // pred_fallthru
    _
  // Predicated region
  $region10: #{feature_extractor_forward.39} parent=0 // pred_check
    _
  $region11: #{feature_extractor_forward.39} parent=0 // pred_check_branch
    %14 = sbr.rel (0) target = $region13
  $region12: #{feature_extractor_forward.39} parent=0 // pred_region
    _
  $region13: #{feature_extractor_forward.39} parent=0 // pred_fallthru
    _
  // Predicated region
  $region14: #{feature_extractor_forward.39} parent=0 // pred_check
    _
  $region15: #{feature_extractor_forward.39} parent=0 // pred_check_branch
    %16 = sbr.rel (0) target = $region17
  $region16: #{feature_extractor_forward.39} parent=0 // pred_region
    _
  $region17: #{feature_extractor_forward.39} parent=0 // pred_fallthru
    _
  %v18 = vld [vmem:[%s0] sm:$0xff]
  %v19 = vld [vmem:[%s0 + $0x8] sm:$0xff]
  %v20 = vld [vmem:[%s0 + $0x10] sm:$0xf]
  %v21 = vld [vmem:[%s1] sm:$0xf]
  %v22 = vld [vmem:[%s1 + $0x4] sm:$0xf]
  %v23 = vld [vmem:[%s1 + $0x8] sm:$0xf]
  %v24 = vld [vmem:[%s1 + $0xc] sm:$0xf]
  %v25 = vld [vmem:[%s1 + $0x10] sm:$0xf]
  %v26 = vld [vmem:[%s1 + $0x14] sm:$0xf]
  %v27 = vld [vmem:[%s1 + $0x18] sm:$0xf]
  %v28 = vld [vmem:[%s1 + $0x1c] sm:$0xf]
  %v29 = vld [vmem:[%s1 + $0x20] sm:$0xf]
  %v30 = vld [vmem:[%s1 + $0x24] sm:$0xf]
  %v31 = vld [vmem:[%s1 + $0x28] sm:$0xf]
  %v32 = vld [vmem:[%s1 + $0x2c] sm:$0xf]
  %v33 = vld [vmem:[%s1 + $0x30] sm:$0xf]
  %v34 = vld [vmem:[%s1 + $0x34] sm:$0xf]
  %v35 = vld [vmem:[%s1 + $0x38] sm:$0xf]
  %v36 = vld [vmem:[%s1 + $0x3c] sm:$0xf]
  %v37 = vld [vmem:[%s1 + $0x40] sm:$0xf]
  %v38 = vld [vmem:[%s1 + $0x44] sm:$0xf]
  %v39 = vld [vmem:[%s1 + $0x48] sm:$0xf]
  %v40 = vld [vmem:[%s1 + $0x4c] sm:$0xf]
  %v41 = vld [vmem:[%s1 + $0x50] sm:$0xf]
  %v42 = vld [vmem:[%s1 + $0x54] sm:$0xf]
  %v43 = vld [vmem:[%s1 + $0x58] sm:$0xf]
  %v44 = vld [vmem:[%s1 + $0x5c] sm:$0xf]
  %v45 = vld [vmem:[%s1 + $0x60] sm:$0xf]
  %v46 = vld [vmem:[%s1 + $0x64] sm:$0xf]
  %v47 = vld [vmem:[%s1 + $0x68] sm:$0xf]
  %v48 = vld [vmem:[%s1 + $0x6c] sm:$0xf]
  %v49 = vld [vmem:[%s1 + $0x70] sm:$0xf]
  %v50 = vld [vmem:[%s1 + $0x74] sm:$0xf]
  %v51 = vld [vmem:[%s1 + $0x78] sm:$0xf]
  %v52 = vld [vmem:[%s1 + $0x7c] sm:$0xf]
  %v53 = vld [vmem:[%s1 + $0x80] sm:$0xf]
  %v54 = vld [vmem:[%s1 + $0x84] sm:$0xf]
  %v55 = vld [vmem:[%s1 + $0x88] sm:$0xf]
  %v56 = vld [vmem:[%s1 + $0x8c] sm:$0xf]
  %v57 = vld [vmem:[%s1 + $0x90] sm:$0xf]
  %v58 = vld [vmem:[%s1 + $0x94] sm:$0xf]
  %v59 = vld [vmem:[%s1 + $0x98] sm:$0xf]
  %v60 = vld [vmem:[%s1 + $0x9c] sm:$0xf]
  %v61 = vld [vmem:[%s1 + $0xa0] sm:$0xf]
  %v62 = vld [vmem:[%s1 + $0xa4] sm:$0xf]
  %v63 = vld [vmem:[%s1 + $0xa8] sm:$0xf]
  %v64 = vld [vmem:[%s1 + $0xac] sm:$0xf]
  %v65 = vld [vmem:[%s1 + $0xb0] sm:$0xf]
  %v66 = vld [vmem:[%s1 + $0xb4] sm:$0xf]
  %v67 = vld [vmem:[%s1 + $0xb8] sm:$0xf]
  %v68 = vld [vmem:[%s1 + $0xbc] sm:$0xf]
  %v69 = vld [vmem:[%s1 + $0xc0] sm:$0xf]
  %v70 = vld [vmem:[%s1 + $0xc4] sm:$0xf]
  %v71 = vld [vmem:[%s1 + $0xc8] sm:$0xf]
  %v72 = vld [vmem:[%s1 + $0xcc] sm:$0xf]
  %v73 = vld [vmem:[%s1 + $0xd0] sm:$0xf]
  %v74 = vld [vmem:[%s1 + $0xd4] sm:$0xf]
  %v75 = vld [vmem:[%s1 + $0xd8] sm:$0xf]
  %v76 = vld [vmem:[%s1 + $0xdc] sm:$0xf]
  %v77 = vld [vmem:[%s1 + $0xe0] sm:$0xf]
  %v78 = vld [vmem:[%s1 + $0xe4] sm:$0xf]
  %v79 = vld [vmem:[%s1 + $0xe8] sm:$0xf]
  %v80 = vld [vmem:[%s1 + $0xec] sm:$0xf]
  %v81 = vld [vmem:[%s1 + $0xf0] sm:$0xf]
  %v82 = vld [vmem:[%s1 + $0xf4] sm:$0xf]
  %v83 = vld [vmem:[%s1 + $0xf8] sm:$0xf]
  %v84 = vld [vmem:[%s1 + $0xfc] sm:$0xf]
  %v85 = vld [vmem:[%s1 + $0x100] sm:$0xf]
  %v86 = vld [vmem:[%s1 + $0x104] sm:$0xf]
  %v87 = vld [vmem:[%s1 + $0x108] sm:$0xf]
  %v88 = vld [vmem:[%s1 + $0x10c] sm:$0xf]
  %v89 = vld [vmem:[%s1 + $0x110] sm:$0xf]
  %v90 = vld [vmem:[%s1 + $0x114] sm:$0xf]
  %v91 = vld [vmem:[%s1 + $0x118] sm:$0xf]
  %v92 = vld [vmem:[%s1 + $0x11c] sm:$0xf]
  %v93 = vld [vmem:[%s1 + $0x120] sm:$0xf]
  %v94 = vld [vmem:[%s1 + $0x124] sm:$0xf]
  %v95 = vld [vmem:[%s1 + $0x128] sm:$0xf]
  %v96 = vld [vmem:[%s1 + $0x12c] sm:$0xf]
  %v97 = vld [vmem:[%s1 + $0x130] sm:$0xf]
  %v98 = vld [vmem:[%s1 + $0x134] sm:$0xf]
  %v99 = vld [vmem:[%s1 + $0x138] sm:$0xf]
  %v100 = vld [vmem:[%s1 + $0x13c] sm:$0xf]
  %v101 = vld [vmem:[%s2] sm:$0x1]
  %v103 = vlaneseq
  %v104 = vshrl.u32 %v103, 7
  %v105 = vsub.s32 0, %v104
  %v106 = vrot.slane %v101, %v105
  %v111 = vunpack.c.l.b16 %v18
  %v112 = vunpack.c.h.b16 %v18
  %v113 = vunpack.c.l.b16 %v19
  %v114 = vunpack.c.h.b16 %v19
  %v115 = vunpack.c.l.b16 %v20
  %v116 = vpack.c.b16 %v111, %v111
  %v117 = vpack.c.b16 %v112, %v112
  %v118 = vpack.c.b16 %v113, %v113
  %v119 = vpack.c.b16 %v114, %v114
  %v120 = vpack.c.b16 %v115, %v115
  %v206 = vunpack.c.l.b16 %v21
  %v207 = vunpack.c.l.b16 %v22
  %v208 = vunpack.c.l.b16 %v23
  %v209 = vunpack.c.l.b16 %v24
  %v210 = vunpack.c.l.b16 %v25
  %v211 = vunpack.c.l.b16 %v26
  %v212 = vunpack.c.l.b16 %v27
  %v213 = vunpack.c.l.b16 %v28
  %v214 = vunpack.c.l.b16 %v29
  %v215 = vunpack.c.l.b16 %v30
  %v216 = vunpack.c.l.b16 %v31
  %v217 = vunpack.c.l.b16 %v32
  %v218 = vunpack.c.l.b16 %v33
  %v219 = vunpack.c.l.b16 %v34
  %v220 = vunpack.c.l.b16 %v35
  %v221 = vunpack.c.l.b16 %v36
  %v222 = vunpack.c.l.b16 %v37
  %v223 = vunpack.c.l.b16 %v38
  %v224 = vunpack.c.l.b16 %v39
  %v225 = vunpack.c.l.b16 %v40
  %v226 = vunpack.c.l.b16 %v41
  %v227 = vunpack.c.l.b16 %v42
  %v228 = vunpack.c.l.b16 %v43
  %v229 = vunpack.c.l.b16 %v44
  %v230 = vunpack.c.l.b16 %v45
  %v231 = vunpack.c.l.b16 %v46
  %v232 = vunpack.c.l.b16 %v47
  %v233 = vunpack.c.l.b16 %v48
  %v234 = vunpack.c.l.b16 %v49
  %v235 = vunpack.c.l.b16 %v50
  %v236 = vunpack.c.l.b16 %v51
  %v237 = vunpack.c.l.b16 %v52
  %v238 = vunpack.c.l.b16 %v53
  %v239 = vunpack.c.l.b16 %v54
  %v240 = vunpack.c.l.b16 %v55
  %v241 = vunpack.c.l.b16 %v56
  %v242 = vunpack.c.l.b16 %v57
  %v243 = vunpack.c.l.b16 %v58
  %v244 = vunpack.c.l.b16 %v59
  %v245 = vunpack.c.l.b16 %v60
  %v246 = vunpack.c.l.b16 %v61
  %v247 = vunpack.c.l.b16 %v62
  %v248 = vunpack.c.l.b16 %v63
  %v249 = vunpack.c.l.b16 %v64
  %v250 = vunpack.c.l.b16 %v65
  %v251 = vunpack.c.l.b16 %v66
  %v252 = vunpack.c.l.b16 %v67
  %v253 = vunpack.c.l.b16 %v68
  %v254 = vunpack.c.l.b16 %v69
  %v255 = vunpack.c.l.b16 %v70
  %v256 = vunpack.c.l.b16 %v71
  %v257 = vunpack.c.l.b16 %v72
  %v258 = vunpack.c.l.b16 %v73
  %v259 = vunpack.c.l.b16 %v74
  %v260 = vunpack.c.l.b16 %v75
  %v261 = vunpack.c.l.b16 %v76
  %v262 = vunpack.c.l.b16 %v77
  %v263 = vunpack.c.l.b16 %v78
  %v264 = vunpack.c.l.b16 %v79
  %v265 = vunpack.c.l.b16 %v80
  %v266 = vunpack.c.l.b16 %v81
  %v267 = vunpack.c.l.b16 %v82
  %v268 = vunpack.c.l.b16 %v83
  %v269 = vunpack.c.l.b16 %v84
  %v270 = vunpack.c.l.b16 %v85
  %v271 = vunpack.c.l.b16 %v86
  %v272 = vunpack.c.l.b16 %v87
  %v273 = vunpack.c.l.b16 %v88
  %v274 = vunpack.c.l.b16 %v89
  %v275 = vunpack.c.l.b16 %v90
  %v276 = vunpack.c.l.b16 %v91
  %v277 = vunpack.c.l.b16 %v92
  %v278 = vunpack.c.l.b16 %v93
  %v279 = vunpack.c.l.b16 %v94
  %v280 = vunpack.c.l.b16 %v95
  %v281 = vunpack.c.l.b16 %v96
  %v282 = vunpack.c.l.b16 %v97
  %v283 = vunpack.c.l.b16 %v98
  %v284 = vunpack.c.l.b16 %v99
  %v285 = vunpack.c.l.b16 %v100
  %v286 = vpack.c.b16 %v207, %v206
  %v287 = vpack.c.b16 %v209, %v208
  %v288 = vpack.c.b16 %v211, %v210
  %v289 = vpack.c.b16 %v213, %v212
  %v290 = vpack.c.b16 %v215, %v214
  %v291 = vpack.c.b16 %v217, %v216
  %v292 = vpack.c.b16 %v219, %v218
  %v293 = vpack.c.b16 %v221, %v220
  %v294 = vpack.c.b16 %v223, %v222
  %v295 = vpack.c.b16 %v225, %v224
  %v296 = vpack.c.b16 %v227, %v226
  %v297 = vpack.c.b16 %v229, %v228
  %v298 = vpack.c.b16 %v231, %v230
  %v299 = vpack.c.b16 %v233, %v232
  %v300 = vpack.c.b16 %v235, %v234
  %v301 = vpack.c.b16 %v237, %v236
  %v302 = vpack.c.b16 %v239, %v238
  %v303 = vpack.c.b16 %v241, %v240
  %v304 = vpack.c.b16 %v243, %v242
  %v305 = vpack.c.b16 %v245, %v244
  %v306 = vpack.c.b16 %v247, %v246
  %v307 = vpack.c.b16 %v249, %v248
  %v308 = vpack.c.b16 %v251, %v250
  %v309 = vpack.c.b16 %v253, %v252
  %v310 = vpack.c.b16 %v255, %v254
  %v311 = vpack.c.b16 %v257, %v256
  %v312 = vpack.c.b16 %v259, %v258
  %v313 = vpack.c.b16 %v261, %v260
  %v314 = vpack.c.b16 %v263, %v262
  %v315 = vpack.c.b16 %v265, %v264
  %v316 = vpack.c.b16 %v267, %v266
  %v317 = vpack.c.b16 %v269, %v268
  %v318 = vpack.c.b16 %v271, %v270
  %v319 = vpack.c.b16 %v273, %v272
  %v320 = vpack.c.b16 %v275, %v274
  %v321 = vpack.c.b16 %v277, %v276
  %v322 = vpack.c.b16 %v279, %v278
  %v323 = vpack.c.b16 %v281, %v280
  %v324 = vpack.c.b16 %v283, %v282
  %v325 = vpack.c.b16 %v285, %v284
  %366 = vmatprep.subr.bf16.mxu0 0
  %367 = vmatpush1.bf16.msra.mxu0 %v293
  %368 = vmatprep.subr.bf16.mxu0 0
  %369 = vmatpush1.bf16.msra.mxu0 %v292
  %370 = vmatprep.subr.bf16.mxu0 0
  %371 = vmatpush1.bf16.msra.mxu0 %v291
  %372 = vmatprep.subr.bf16.mxu0 0
  %373 = vmatpush1.bf16.msra.mxu0 %v290
  %374 = vmatprep.subr.bf16.mxu0 0
  %375 = vmatpush1.bf16.msra.mxu0 %v289
  %376 = vmatprep.subr.bf16.mxu0 0
  %377 = vmatpush1.bf16.msra.mxu0 %v288
  %378 = vmatprep.subr.bf16.mxu0 0
  %379 = vmatpush1.bf16.msra.mxu0 %v287
  %380 = vmatprep.subr.bf16.mxu0 0
  %381 = vmatpush1.bf16.msra.mxu0 %v286
  %382 = vmatprep.subr.bf16.mxu0 0
  %383 = vmatpush2.bf16.msra.mxu0 %v301
  %384 = vmatprep.subr.bf16.mxu0 0
  %385 = vmatpush2.bf16.msra.mxu0 %v300
  %386 = vmatprep.subr.bf16.mxu0 0
  %387 = vmatpush2.bf16.msra.mxu0 %v299
  %388 = vmatprep.subr.bf16.mxu0 0
  %389 = vmatpush2.bf16.msra.mxu0 %v298
  %390 = vmatprep.subr.bf16.mxu0 0
  %391 = vmatpush2.bf16.msra.mxu0 %v297
  %392 = vmatprep.subr.bf16.mxu0 0
  %393 = vmatpush2.bf16.msra.mxu0 %v296
  %394 = vmatprep.subr.bf16.mxu0 0
  %395 = vmatpush2.bf16.msra.mxu0 %v295
  %396 = vmatprep.subr.bf16.mxu0 0
  %397 = vmatpush2.bf16.msra.mxu0 %v294
  %398 = vmatprep.mubr.bf16.mxu0 %v117
  %399 = vmatmul.mubr.bf16.gmra.mxu0 %v116
  %v400 = vpop.f32.mrf.mxu0
  %v401 = vadd.f32 %v106, %v400
  %v402 = vpop.f32.mrf.mxu0
  %v403 = vpop.f32.mrf.mxu0
  %v404 = vpop.f32.mrf.mxu0
  %405 = vdwg.mxu0
  %406 = vmatprep.subr.bf16.mxu0 0
  %407 = vmatpush1.bf16.msra.mxu0 %v309
  %408 = vmatprep.subr.bf16.mxu0 0
  %409 = vmatpush1.bf16.msra.mxu0 %v308
  %410 = vmatprep.subr.bf16.mxu0 0
  %411 = vmatpush1.bf16.msra.mxu0 %v307
  %412 = vmatprep.subr.bf16.mxu0 0
  %413 = vmatpush1.bf16.msra.mxu0 %v306
  %414 = vmatprep.subr.bf16.mxu0 0
  %415 = vmatpush1.bf16.msra.mxu0 %v305
  %416 = vmatprep.subr.bf16.mxu0 0
  %417 = vmatpush1.bf16.msra.mxu0 %v304
  %418 = vmatprep.subr.bf16.mxu0 0
  %419 = vmatpush1.bf16.msra.mxu0 %v303
  %420 = vmatprep.subr.bf16.mxu0 0
  %421 = vmatpush1.bf16.msra.mxu0 %v302
  %422 = vmatprep.subr.bf16.mxu0 0
  %423 = vmatpush2.bf16.msra.mxu0 %v317
  %424 = vmatprep.subr.bf16.mxu0 0
  %425 = vmatpush2.bf16.msra.mxu0 %v316
  %426 = vmatprep.subr.bf16.mxu0 0
  %427 = vmatpush2.bf16.msra.mxu0 %v315
  %428 = vmatprep.subr.bf16.mxu0 0
  %429 = vmatpush2.bf16.msra.mxu0 %v314
  %430 = vmatprep.subr.bf16.mxu0 0
  %431 = vmatpush2.bf16.msra.mxu0 %v313
  %432 = vmatprep.subr.bf16.mxu0 0
  %433 = vmatpush2.bf16.msra.mxu0 %v312
  %434 = vmatprep.subr.bf16.mxu0 0
  %435 = vmatpush2.bf16.msra.mxu0 %v311
  %436 = vmatprep.subr.bf16.mxu0 0
  %437 = vmatpush2.bf16.msra.mxu0 %v310
  %438 = vmatprep.mubr.bf16.mxu0 %v119
  %439 = vmatmul.mubr.bf16.gmra.mxu0 %v118
  %v440 = vpop.f32.mrf.mxu0
  %v441 = vadd.f32 %v401, %v440
  %v442 = vpop.f32.mrf.mxu0
  %v443 = vpop.f32.mrf.mxu0
  %v444 = vpop.f32.mrf.mxu0
  %445 = vdwg.mxu0
  %446 = vmatprep.subr.bf16.mxu0 0
  %447 = vmatpush1.bf16.msra.mxu0 %v325
  %448 = vmatprep.subr.bf16.mxu0 0
  %449 = vmatpush1.bf16.msra.mxu0 %v324
  %450 = vmatprep.subr.bf16.mxu0 0
  %451 = vmatpush1.bf16.msra.mxu0 %v323
  %452 = vmatprep.subr.bf16.mxu0 0
  %453 = vmatpush1.bf16.msra.mxu0 %v322
  %454 = vmatprep.subr.bf16.mxu0 0
  %455 = vmatpush1.bf16.msra.mxu0 %v321
  %456 = vmatprep.subr.bf16.mxu0 0
  %457 = vmatpush1.bf16.msra.mxu0 %v320
  %458 = vmatprep.subr.bf16.mxu0 0
  %459 = vmatpush1.bf16.msra.mxu0 %v319
  %460 = vmatprep.subr.bf16.mxu0 0
  %461 = vmatpush1.bf16.msra.mxu0 %v318
  %462 = vmatprep.subr.bf16.mxu0 0
  %463 = vmatpush2.bf16.msra.mxu0 0
  %464 = vmatprep.subr.bf16.mxu0 0
  %465 = vmatpush2.bf16.msra.mxu0 0
  %466 = vmatprep.subr.bf16.mxu0 0
  %467 = vmatpush2.bf16.msra.mxu0 0
  %468 = vmatprep.subr.bf16.mxu0 0
  %469 = vmatpush2.bf16.msra.mxu0 0
  %470 = vmatprep.subr.bf16.mxu0 0
  %471 = vmatpush2.bf16.msra.mxu0 0
  %472 = vmatprep.subr.bf16.mxu0 0
  %473 = vmatpush2.bf16.msra.mxu0 0
  %474 = vmatprep.subr.bf16.mxu0 0
  %475 = vmatpush2.bf16.msra.mxu0 0
  %476 = vmatprep.subr.bf16.mxu0 0
  %477 = vmatpush2.bf16.msra.mxu0 0
  %478 = vmatprep.mubr.bf16.mxu0 0
  %479 = vmatmul.mubr.bf16.gmra.mxu0 %v120
  %v480 = vpop.f32.mrf.mxu0
  %v481 = vadd.f32 %v441, %v480
  %v482 = vpop.f32.mrf.mxu0
  %v483 = vpop.f32.mrf.mxu0
  %v484 = vpop.f32.mrf.mxu0
  %485 = vdwg.mxu0
  %v486 = vld [vmem:[%s3] sm:$0xf]
  %v487 = vunpack.c.l.bf16 %v486
  %v488 = vadd.f32 %v481, %v487
  %v489 = vmax.f32 %v488, 0.0
  %v490 = vpack.c.bf16 %v489, %v489
  %491 = vst [vmem:[%s4] sm:$0xf] %v490
  // Predicated region
  $region18: #{feature_extractor_forward.39} parent=0 // pred_check
    _
  $region19: #{feature_extractor_forward.39} parent=0 // pred_check_branch
    %493 = sbr.rel (0) target = $region21
  $region20: #{feature_extractor_forward.39} parent=0 // pred_region
    _
  $region21: #{feature_extractor_forward.39} parent=0 // pred_fallthru
    _
  // Predicated region
  $region22: #{feature_extractor_forward.39} parent=0 // pred_check
    _
  $region23: #{feature_extractor_forward.39} parent=0 // pred_check_branch
    %495 = sbr.rel (0) target = $region25
  $region24: #{feature_extractor_forward.39} parent=0 // pred_region
    _
  $region25: #{feature_extractor_forward.39} parent=0 // pred_fallthru
    _

</llo_original>
